<compile_context>
chip_gen: v7x
topology: tpu7x:2x2x1
jax: 0.10.0
libtpu: 0.0.40
codegen_flags: <defaults>
</compile_context>

<pallas_src>
import numpy as np
import jax
import jax.numpy as jnp
from jax.experimental import pallas as pl
from jax.experimental.pallas import tpu as pltpu

H = 4          # attention heads (TransformerConv heads=4)
C = 8          # out_channels per head (32 / 4)
HID = 32       # hidden width per GNN layer (hc = [32, 32, 32])
L = 2          # number of HeteroConv layers (len(hc) - 1)
E = 2          # edge types: ('same_ue', 'same_ap')
LN_EPS = 1e-5  # torch_geometric LayerNorm eps (added to std)
A_PAD = 128    # lane-dense padded action width for the output slab

_INV_SQRT_C = 1.0 / np.sqrt(float(C))


def _forward_math(x, adj, w0, b0, wqkvs, bqkvs, gamma, beta, w1, b1, w2, b2):
    """Shared math: used inside the Pallas kernel AND as the pure-JAX
    reference, so both paths run identical arithmetic."""
    n = x.shape[0]

    # lin0: input_shape -> 32
    h = jnp.dot(x, w0, preferred_element_type=jnp.float32) + b0
    embs = [h]

    for l in range(L):
        # HeteroConv with aggr='sum' over the two edge types (channel->channel)
        agg = jnp.zeros((n, HID), jnp.float32)
        for e in range(E):
            idx = l * E + e
            # fused [Wq | Wk | Wv | Wskip] projection: one lane-dense [32, 128] matmul
            proj = (jnp.dot(h, wqkvs[idx], preferred_element_type=jnp.float32)
                    + bqkvs[idx])                                   # [N, 128]
            q = jnp.transpose(proj[:, 0 * HID:1 * HID].reshape(n, H, C), (1, 0, 2))
            k = jnp.transpose(proj[:, 1 * HID:2 * HID].reshape(n, H, C), (1, 0, 2))
            v = jnp.transpose(proj[:, 2 * HID:3 * HID].reshape(n, H, C), (1, 0, 2))
            skip = proj[:, 3 * HID:4 * HID]                         # root_weight path

            mask = adj[e] > 0.0                                     # [N, N] (dst, src)
            # batched per-head scores: sc[h, i, j] = <q_i^h, k_j^h> / sqrt(C)
            sc = jnp.einsum('hnc,hmc->hnm', q, k,
                            preferred_element_type=jnp.float32) * _INV_SQRT_C
            # scatter-softmax over incoming edges of each dst node
            sc = jnp.where(mask[None], sc, -1e30)
            m = jnp.max(sc, axis=-1, keepdims=True)
            p = jnp.where(mask[None], jnp.exp(sc - m), 0.0)
            denom = jnp.maximum(jnp.sum(p, axis=-1, keepdims=True), 1e-30)
            alpha = p * (1.0 / denom)                               # nodes w/o edges -> 0
            attn = jnp.einsum('hnm,hmc->hnc', alpha, v,
                              preferred_element_type=jnp.float32)
            attn = jnp.transpose(attn, (1, 0, 2)).reshape(n, HID)   # concat heads
            agg = agg + attn + skip                                 # sum aggregation

        # relu, then torch_geometric LayerNorm(mode='graph') with batch=None:
        # normalize over all nodes & features of the (single) graph.
        # TODO(synk): per-graph normalization when a `batch` vector is supplied.
        a = jnp.maximum(agg, 0.0)
        cnt = float(n * HID)
        mu = jnp.sum(a) / cnt
        var = jnp.maximum(jnp.sum(a * a) / cnt - mu * mu, 0.0)
        std = jnp.sqrt(var)
        h = (a - mu) / (std + LN_EPS) * gamma[l] + beta[l]
        embs.append(h)

    # lin1 on concat(embs) WITHOUT materializing the 96-lane concat:
    # z = h0 @ w1[0] + h1 @ w1[1] + h2 @ w1[2] + b1
    z = b1
    for i in range(L + 1):
        z = z + jnp.dot(embs[i], w1[i], preferred_element_type=jnp.float32)
    # lin2: 32 -> n_actions (padded to A_PAD inside the kernel path)
    return jnp.dot(z, w2, preferred_element_type=jnp.float32) + b2


def gnn_agent_kernel(x_ref, adj_ref, w0_ref, b0_ref, wqkvs_ref, bqkvs_ref,
                     gamma_ref, beta_ref, w1_ref, b1_ref, w2_ref, b2_ref,
                     out_ref):
    out_ref[0] = _forward_math(
        x_ref[0], adj_ref[0], w0_ref[...], b0_ref[...],
        wqkvs_ref[...], bqkvs_ref[...], gamma_ref[...], beta_ref[...],
        w1_ref[...], b1_ref[...], w2_ref[...], b2_ref[...])


def gnn_agent_forward(x, adj, params, hidden_state=None):
    """x: [B, N, input_shape] node features; adj: [B, E, N, N] dense edge masks."""
    bsz, n, f_in = x.shape
    n_actions = params['w2'].shape[-1]

    # lane-dense output head: pad n_actions -> A_PAD (sliced off after the call)
    w2p = jnp.zeros((HID, A_PAD), jnp.float32).at[:, :n_actions].set(params['w2'])
    b2p = jnp.zeros((1, A_PAD), jnp.float32).at[:, :n_actions].set(params['b2'])

    weights = (params['w0'], params['b0'], params['wqkvs'], params['bqkvs'],
               params['gamma'], params['beta'], params['w1'], params['b1'],
               w2p, b2p)

    def _const(ndim):
        return lambda b: (0,) * ndim

    in_specs = [
        pl.BlockSpec((1, n, f_in), lambda b: (b, 0, 0)),
        pl.BlockSpec((1, E, n, n), lambda b: (b, 0, 0, 0)),
    ] + [pl.BlockSpec(w.shape, _const(w.ndim)) for w in weights]

    out = pl.pallas_call(
        gnn_agent_kernel,
        grid=(bsz,),
        out_shape=jax.ShapeDtypeStruct((bsz, n, A_PAD), jnp.float32),
        in_specs=in_specs,
        out_specs=pl.BlockSpec((1, n, A_PAD), lambda b: (b, 0, 0)),
        compiler_params=pltpu.CompilerParams(
            dimension_semantics=("parallel",)),
    )(x, adj, *weights)

    # mirrors (actions, hidden_state) of the nn.Module
    return out[:, :, :n_actions], hidden_state


def init_params(key, input_shape, n_actions):
    ks = jax.random.split(key, 8)

    def glorot(k, shape):
        fi, fo = shape[-2], shape[-1]
        lim = np.sqrt(6.0 / (fi + fo))
        return jax.random.uniform(k, shape, jnp.float32, -lim, lim)

    # per (layer, edge-type) TransformerConv weights [Wq, Wk, Wv, Wskip],
    # pre-fused on the output dim into one lane-dense [HID, 4*HID] matrix.
    wc4 = glorot(ks[2], (L * E, 4, HID, HID))
    wqkvs = jnp.transpose(wc4, (0, 2, 1, 3)).reshape(L * E, HID, 4 * HID)

    return dict(
        # lin0
        w0=glorot(ks[0], (input_shape, HID)),
        b0=0.01 * jax.random.normal(ks[1], (1, HID), jnp.float32),
        # fused conv projections + biases
        wqkvs=wqkvs,
        bqkvs=0.01 * jax.random.normal(ks[3], (L * E, 1, 4 * HID), jnp.float32),
        # LayerNorm affine params (defaults: weight=1, bias=0)
        gamma=jnp.ones((L, 1, HID), jnp.float32),
        beta=jnp.zeros((L, 1, HID), jnp.float32),
        # lin1 (sum(hc)=96 -> 32) stored as 3 stacked [32, 32] blocks (no concat)
        w1=glorot(ks[4], (L + 1, HID, HID)),
        b1=0.01 * jax.random.normal(ks[5], (1, HID), jnp.float32),
        # lin2 (32 -> n_actions)
        w2=glorot(ks[6], (HID, n_actions)),
        b2=0.01 * jax.random.normal(ks[7], (1, n_actions), jnp.float32),
    )


if __name__ == "__main__":
    B = 4           # batched graphs (agents/timesteps) -> parallel grid axis
    N = 16          # number of 'channel' nodes per graph
    F_IN = 24       # input_shape
    N_ACTIONS = 8   # args.n_actions

    key = jax.random.PRNGKey(0)
    kx, kp = jax.random.split(key)
    x = jax.random.normal(kx, (B, N, F_IN), jnp.float32)

    # Deterministic synthetic edge_index_dict as dense adjacency masks.
    # 'same_ue': nodes in the same group of 4 consecutive indices are connected.
    # 'same_ap': nodes with equal index mod 4 are connected. No self-loops.
    group = 4
    adj_np = np.zeros((E, N, N), np.float32)
    for i in range(N):
        for j in range(N):
            if i == j:
                continue
            if i // group == j // group:
                adj_np[0, i, j] = 1.0
            if i % group == j % group:
                adj_np[1, i, j] = 1.0
    adj = jnp.tile(jnp.asarray(adj_np)[None], (B, 1, 1, 1))

    params = init_params(kp, F_IN, N_ACTIONS)

    actions, hidden = gnn_agent_forward(x, adj, params, hidden_state=None)
    actions = jax.block_until_ready(actions)
    assert actions.shape == (B, N, N_ACTIONS)

    # pure-JAX reference (identical math) for every graph in the batch
    for b in range(B):
        ref = _forward_math(x[b], adj[b], params['w0'], params['b0'],
                            params['wqkvs'], params['bqkvs'],
                            params['gamma'], params['beta'],
                            params['w1'], params['b1'],
                            params['w2'], params['b2'])
        np.testing.assert_allclose(np.asarray(actions[b]), np.asarray(ref),
                                   rtol=2e-3, atol=2e-3)
    print("KERNEL_OK")
</pallas_src>

<mosaic_0001>
module attributes {stable_mosaic.version = 11 : i64} {
  func.func @gnn_agent_kernel(%arg0: i32, %arg1: memref<1x16x24xf32, #tpu.memory_space<vmem>>, %arg2: memref<1x2x16x16xf32, #tpu.memory_space<vmem>>, %arg3: memref<24x32xf32, #tpu.memory_space<vmem>>, %arg4: memref<1x32xf32, #tpu.memory_space<vmem>>, %arg5: memref<4x32x128xf32, #tpu.memory_space<vmem>>, %arg6: memref<4x1x128xf32, #tpu.memory_space<vmem>>, %arg7: memref<2x1x32xf32, #tpu.memory_space<vmem>>, %arg8: memref<2x1x32xf32, #tpu.memory_space<vmem>>, %arg9: memref<3x32x32xf32, #tpu.memory_space<vmem>>, %arg10: memref<1x32xf32, #tpu.memory_space<vmem>>, %arg11: memref<32x128xf32, #tpu.memory_space<vmem>>, %arg12: memref<1x128xf32, #tpu.memory_space<vmem>>, %arg13: memref<1x16x128xf32, #tpu.memory_space<vmem>>) attributes {dimension_semantics = [#tpu.dimension_semantics<parallel>], iteration_bounds = array<i64: 4>, scalar_prefetch = 0 : i64, scratch_operands = 0 : i64, tpu.core_type = #tpu.core_type<tc>, window_params = [{transform_indices = @transform_0, window_bounds = array<i64: 1, 16, 24>}, {transform_indices = @transform_1, window_bounds = array<i64: 1, 2, 16, 16>}, {pipeline_mode = #tpu.pipeline_mode<synchronous>, transform_indices = @transform_2, window_bounds = array<i64: 24, 32>}, {pipeline_mode = #tpu.pipeline_mode<synchronous>, transform_indices = @transform_3, window_bounds = array<i64: 1, 32>}, {pipeline_mode = #tpu.pipeline_mode<synchronous>, transform_indices = @transform_4, window_bounds = array<i64: 4, 32, 128>}, {pipeline_mode = #tpu.pipeline_mode<synchronous>, transform_indices = @transform_5, window_bounds = array<i64: 4, 1, 128>}, {pipeline_mode = #tpu.pipeline_mode<synchronous>, transform_indices = @transform_6, window_bounds = array<i64: 2, 1, 32>}, {pipeline_mode = #tpu.pipeline_mode<synchronous>, transform_indices = @transform_7, window_bounds = array<i64: 2, 1, 32>}, {pipeline_mode = #tpu.pipeline_mode<synchronous>, transform_indices = @transform_8, window_bounds = array<i64: 3, 32, 32>}, {pipeline_mode = #tpu.pipeline_mode<synchronous>, transform_indices = @transform_9, window_bounds = array<i64: 1, 32>}, {pipeline_mode = #tpu.pipeline_mode<synchronous>, transform_indices = @transform_10, window_bounds = array<i64: 32, 128>}, {pipeline_mode = #tpu.pipeline_mode<synchronous>, transform_indices = @transform_11, window_bounds = array<i64: 1, 128>}, {transform_indices = @transform_12, window_bounds = array<i64: 1, 16, 128>}]} {
    %c0 = arith.constant 0 : index
    %c0_0 = arith.constant 0 : index
    %c0_1 = arith.constant 0 : index
    %0 = vector.load %arg1[%c0, %c0_0, %c0_1] : memref<1x16x24xf32, #tpu.memory_space<vmem>>, vector<1x16x24xf32>
    %1 = vector.shape_cast %0 : vector<1x16x24xf32> to vector<16x24xf32>
    %c0_2 = arith.constant 0 : index
    %c0_3 = arith.constant 0 : index
    %c0_4 = arith.constant 0 : index
    %c0_5 = arith.constant 0 : index
    %2 = vector.load %arg2[%c0_2, %c0_3, %c0_4, %c0_5] : memref<1x2x16x16xf32, #tpu.memory_space<vmem>>, vector<1x2x16x16xf32>
    %3 = vector.shape_cast %2 : vector<1x2x16x16xf32> to vector<2x16x16xf32>
    %c0_6 = arith.constant 0 : index
    %c0_7 = arith.constant 0 : index
    %4 = vector.load %arg3[%c0_6, %c0_7] : memref<24x32xf32, #tpu.memory_space<vmem>>, vector<24x32xf32>
    %c0_8 = arith.constant 0 : index
    %c0_9 = arith.constant 0 : index
    %5 = vector.load %arg4[%c0_8, %c0_9] : memref<1x32xf32, #tpu.memory_space<vmem>>, vector<1x32xf32>
    %c0_10 = arith.constant 0 : index
    %c0_11 = arith.constant 0 : index
    %c0_12 = arith.constant 0 : index
    %6 = vector.load %arg5[%c0_10, %c0_11, %c0_12] : memref<4x32x128xf32, #tpu.memory_space<vmem>>, vector<4x32x128xf32>
    %c0_13 = arith.constant 0 : index
    %c0_14 = arith.constant 0 : index
    %c0_15 = arith.constant 0 : index
    %7 = vector.load %arg6[%c0_13, %c0_14, %c0_15] : memref<4x1x128xf32, #tpu.memory_space<vmem>>, vector<4x1x128xf32>
    %c0_16 = arith.constant 0 : index
    %c0_17 = arith.constant 0 : index
    %c0_18 = arith.constant 0 : index
    %8 = vector.load %arg7[%c0_16, %c0_17, %c0_18] : memref<2x1x32xf32, #tpu.memory_space<vmem>>, vector<2x1x32xf32>
    %c0_19 = arith.constant 0 : index
    %c0_20 = arith.constant 0 : index
    %c0_21 = arith.constant 0 : index
    %9 = vector.load %arg8[%c0_19, %c0_20, %c0_21] : memref<2x1x32xf32, #tpu.memory_space<vmem>>, vector<2x1x32xf32>
    %c0_22 = arith.constant 0 : index
    %c0_23 = arith.constant 0 : index
    %c0_24 = arith.constant 0 : index
    %10 = vector.load %arg9[%c0_22, %c0_23, %c0_24] : memref<3x32x32xf32, #tpu.memory_space<vmem>>, vector<3x32x32xf32>
    %c0_25 = arith.constant 0 : index
    %c0_26 = arith.constant 0 : index
    %11 = vector.load %arg10[%c0_25, %c0_26] : memref<1x32xf32, #tpu.memory_space<vmem>>, vector<1x32xf32>
    %c0_27 = arith.constant 0 : index
    %c0_28 = arith.constant 0 : index
    %12 = vector.load %arg11[%c0_27, %c0_28] : memref<32x128xf32, #tpu.memory_space<vmem>>, vector<32x128xf32>
    %c0_29 = arith.constant 0 : index
    %c0_30 = arith.constant 0 : index
    %13 = vector.load %arg12[%c0_29, %c0_30] : memref<1x128xf32, #tpu.memory_space<vmem>>, vector<1x128xf32>
    %cst = arith.constant dense<0.000000e+00> : vector<16x32xf32>
    %14 = tpu.matmul %1, %4, %cst {dimension_numbers = #tpu.dot_dimension_numbers<[1], [0], [0], [1], [0, 0, 1, 1], [], []>} : vector<16x24xf32>, vector<24x32xf32>, vector<16x32xf32> -> vector<16x32xf32>
    %15 = vector.broadcast %5 : vector<1x32xf32> to vector<16x32xf32>
    %16 = arith.addf %14, %15 : vector<16x32xf32>
    %cst_31 = arith.constant 0.000000e+00 : f32
    %17 = vector.broadcast %cst_31 : f32 to vector<16x32xf32>
    %18 = vector.extract_strided_slice %6 {offsets = [0, 0, 0], sizes = [1, 32, 128], strides = [1, 1, 1]} : vector<4x32x128xf32> to vector<1x32x128xf32>
    %19 = vector.shape_cast %18 : vector<1x32x128xf32> to vector<32x128xf32>
    %cst_32 = arith.constant dense<0.000000e+00> : vector<16x128xf32>
    %20 = tpu.matmul %16, %19, %cst_32 {dimension_numbers = #tpu.dot_dimension_numbers<[1], [0], [0], [1], [0, 0, 1, 1], [], []>} : vector<16x32xf32>, vector<32x128xf32>, vector<16x128xf32> -> vector<16x128xf32>
    %21 = vector.extract_strided_slice %7 {offsets = [0, 0, 0], sizes = [1, 1, 128], strides = [1, 1, 1]} : vector<4x1x128xf32> to vector<1x1x128xf32>
    %22 = vector.shape_cast %21 : vector<1x1x128xf32> to vector<1x128xf32>
    %23 = vector.broadcast %22 : vector<1x128xf32> to vector<16x128xf32>
    %24 = arith.addf %20, %23 : vector<16x128xf32>
    %25 = vector.extract_strided_slice %24 {offsets = [0, 0], sizes = [16, 32], strides = [1, 1]} : vector<16x128xf32> to vector<16x32xf32>
    %26 = vector.shape_cast %25 : vector<16x32xf32> to vector<16x4x8xf32>
    %27 = tpu.transpose %26, [1, 0, 2] : vector<16x4x8xf32> -> vector<4x16x8xf32>
    %28 = vector.extract_strided_slice %24 {offsets = [0, 32], sizes = [16, 32], strides = [1, 1]} : vector<16x128xf32> to vector<16x32xf32>
    %29 = vector.shape_cast %28 : vector<16x32xf32> to vector<16x4x8xf32>
    %30 = tpu.transpose %29, [1, 0, 2] : vector<16x4x8xf32> -> vector<4x16x8xf32>
    %31 = vector.extract_strided_slice %24 {offsets = [0, 64], sizes = [16, 32], strides = [1, 1]} : vector<16x128xf32> to vector<16x32xf32>
    %32 = vector.shape_cast %31 : vector<16x32xf32> to vector<16x4x8xf32>
    %33 = tpu.transpose %32, [1, 0, 2] : vector<16x4x8xf32> -> vector<4x16x8xf32>
    %34 = vector.extract_strided_slice %24 {offsets = [0, 96], sizes = [16, 32], strides = [1, 1]} : vector<16x128xf32> to vector<16x32xf32>
    %35 = vector.extract_strided_slice %3 {offsets = [0, 0, 0], sizes = [1, 16, 16], strides = [1, 1, 1]} : vector<2x16x16xf32> to vector<1x16x16xf32>
    %36 = vector.shape_cast %35 : vector<1x16x16xf32> to vector<16x16xf32>
    %cst_33 = arith.constant 0.000000e+00 : f32
    %37 = vector.broadcast %cst_33 : f32 to vector<16x16xf32>
    %38 = arith.cmpf ogt, %36, %37 : vector<16x16xf32>
    "tpu.trace_start"() <{level = 10 : i32, message = "hnc,hmc->hnm"}> : () -> ()
    %cst_34 = arith.constant dense<0.000000e+00> : vector<4x16x16xf32>
    %39 = tpu.matmul %27, %30, %cst_34 {dimension_numbers = #tpu.dot_dimension_numbers<[2], [2], [1], [1], [0, 0, 0, 1, 1, 1], [0], [0]>} : vector<4x16x8xf32>, vector<4x16x8xf32>, vector<4x16x16xf32> -> vector<4x16x16xf32>
    "tpu.trace_stop"() : () -> ()
    %cst_35 = arith.constant 0.353553385 : f32
    %40 = vector.broadcast %cst_35 : f32 to vector<4x16x16xf32>
    %41 = arith.mulf %39, %40 : vector<4x16x16xf32>
    %42 = vector.shape_cast %38 : vector<16x16xi1> to vector<1x16x16xi1>
    %cst_36 = arith.constant -1.000000e+30 : f32
    %43 = vector.shape_cast %42 : vector<1x16x16xi1> to vector<1x16x16xi1>
    %44 = vector.broadcast %43 : vector<1x16x16xi1> to vector<4x16x16xi1>
    %45 = vector.broadcast %cst_36 : f32 to vector<4x16x16xf32>
    %46 = arith.select %44, %41, %45 : vector<4x16x16xi1>, vector<4x16x16xf32>
    %cst_37 = arith.constant dense<0xFF800000> : vector<4x16xf32>
    %47 = vector.multi_reduction <maximumf>, %46, %cst_37 [2] : vector<4x16x16xf32> to vector<4x16xf32>
    %48 = vector.shape_cast %47 : vector<4x16xf32> to vector<4x16x1xf32>
    %49 = vector.shape_cast %38 : vector<16x16xi1> to vector<1x16x16xi1>
    %50 = vector.broadcast %48 : vector<4x16x1xf32> to vector<4x16x16xf32>
    %51 = arith.subf %46, %50 : vector<4x16x16xf32>
    %52 = math.exp %51 : vector<4x16x16xf32>
    %cst_38 = arith.constant 0.000000e+00 : f32
    %53 = vector.shape_cast %49 : vector<1x16x16xi1> to vector<1x16x16xi1>
    %54 = vector.broadcast %53 : vector<1x16x16xi1> to vector<4x16x16xi1>
    %55 = vector.broadcast %cst_38 : f32 to vector<4x16x16xf32>
    %56 = arith.select %54, %52, %55 : vector<4x16x16xi1>, vector<4x16x16xf32>
    %cst_39 = arith.constant dense<0.000000e+00> : vector<4x16xf32>
    %57 = vector.multi_reduction <add>, %56, %cst_39 [2] : vector<4x16x16xf32> to vector<4x16xf32>
    %58 = vector.shape_cast %57 : vector<4x16xf32> to vector<4x16x1xf32>
    %cst_40 = arith.constant 1.000000e-30 : f32
    %59 = vector.broadcast %cst_40 : f32 to vector<4x16x1xf32>
    %60 = arith.maximumf %58, %59 : vector<4x16x1xf32>
    %cst_41 = arith.constant 1.000000e+00 : f32
    %61 = vector.broadcast %cst_41 : f32 to vector<4x16x1xf32>
    %62 = arith.divf %61, %60 : vector<4x16x1xf32>
    %63 = vector.broadcast %62 : vector<4x16x1xf32> to vector<4x16x16xf32>
    %64 = arith.mulf %56, %63 : vector<4x16x16xf32>
    "tpu.trace_start"() <{level = 10 : i32, message = "hnm,hmc->hnc"}> : () -> ()
    %cst_42 = arith.constant dense<0.000000e+00> : vector<4x16x8xf32>
    %65 = tpu.matmul %64, %33, %cst_42 {dimension_numbers = #tpu.dot_dimension_numbers<[2], [1], [1], [2], [0, 0, 0, 1, 1, 2], [0], [0]>} : vector<4x16x16xf32>, vector<4x16x8xf32>, vector<4x16x8xf32> -> vector<4x16x8xf32>
    "tpu.trace_stop"() : () -> ()
    %66 = tpu.transpose %65, [1, 0, 2] : vector<4x16x8xf32> -> vector<16x4x8xf32>
    %67 = vector.shape_cast %66 : vector<16x4x8xf32> to vector<16x32xf32>
    %68 = arith.addf %17, %67 : vector<16x32xf32>
    %69 = arith.addf %68, %34 : vector<16x32xf32>
    %70 = vector.extract_strided_slice %6 {offsets = [1, 0, 0], sizes = [1, 32, 128], strides = [1, 1, 1]} : vector<4x32x128xf32> to vector<1x32x128xf32>
    %71 = vector.shape_cast %70 : vector<1x32x128xf32> to vector<32x128xf32>
    %cst_43 = arith.constant dense<0.000000e+00> : vector<16x128xf32>
    %72 = tpu.matmul %16, %71, %cst_43 {dimension_numbers = #tpu.dot_dimension_numbers<[1], [0], [0], [1], [0, 0, 1, 1], [], []>} : vector<16x32xf32>, vector<32x128xf32>, vector<16x128xf32> -> vector<16x128xf32>
    %73 = vector.extract_strided_slice %7 {offsets = [1, 0, 0], sizes = [1, 1, 128], strides = [1, 1, 1]} : vector<4x1x128xf32> to vector<1x1x128xf32>
    %74 = vector.shape_cast %73 : vector<1x1x128xf32> to vector<1x128xf32>
    %75 = vector.broadcast %74 : vector<1x128xf32> to vector<16x128xf32>
    %76 = arith.addf %72, %75 : vector<16x128xf32>
    %77 = vector.extract_strided_slice %76 {offsets = [0, 0], sizes = [16, 32], strides = [1, 1]} : vector<16x128xf32> to vector<16x32xf32>
    %78 = vector.shape_cast %77 : vector<16x32xf32> to vector<16x4x8xf32>
    %79 = tpu.transpose %78, [1, 0, 2] : vector<16x4x8xf32> -> vector<4x16x8xf32>
    %80 = vector.extract_strided_slice %76 {offsets = [0, 32], sizes = [16, 32], strides = [1, 1]} : vector<16x128xf32> to vector<16x32xf32>
    %81 = vector.shape_cast %80 : vector<16x32xf32> to vector<16x4x8xf32>
    %82 = tpu.transpose %81, [1, 0, 2] : vector<16x4x8xf32> -> vector<4x16x8xf32>
    %83 = vector.extract_strided_slice %76 {offsets = [0, 64], sizes = [16, 32], strides = [1, 1]} : vector<16x128xf32> to vector<16x32xf32>
    %84 = vector.shape_cast %83 : vector<16x32xf32> to vector<16x4x8xf32>
    %85 = tpu.transpose %84, [1, 0, 2] : vector<16x4x8xf32> -> vector<4x16x8xf32>
    %86 = vector.extract_strided_slice %76 {offsets = [0, 96], sizes = [16, 32], strides = [1, 1]} : vector<16x128xf32> to vector<16x32xf32>
    %87 = vector.extract_strided_slice %3 {offsets = [1, 0, 0], sizes = [1, 16, 16], strides = [1, 1, 1]} : vector<2x16x16xf32> to vector<1x16x16xf32>
    %88 = vector.shape_cast %87 : vector<1x16x16xf32> to vector<16x16xf32>
    %cst_44 = arith.constant 0.000000e+00 : f32
    %89 = vector.broadcast %cst_44 : f32 to vector<16x16xf32>
    %90 = arith.cmpf ogt, %88, %89 : vector<16x16xf32>
    "tpu.trace_start"() <{level = 10 : i32, message = "hnc,hmc->hnm"}> : () -> ()
    %cst_45 = arith.constant dense<0.000000e+00> : vector<4x16x16xf32>
    %91 = tpu.matmul %79, %82, %cst_45 {dimension_numbers = #tpu.dot_dimension_numbers<[2], [2], [1], [1], [0, 0, 0, 1, 1, 1], [0], [0]>} : vector<4x16x8xf32>, vector<4x16x8xf32>, vector<4x16x16xf32> -> vector<4x16x16xf32>
    "tpu.trace_stop"() : () -> ()
    %cst_46 = arith.constant 0.353553385 : f32
    %92 = vector.broadcast %cst_46 : f32 to vector<4x16x16xf32>
    %93 = arith.mulf %91, %92 : vector<4x16x16xf32>
    %94 = vector.shape_cast %90 : vector<16x16xi1> to vector<1x16x16xi1>
    %cst_47 = arith.constant -1.000000e+30 : f32
    %95 = vector.shape_cast %94 : vector<1x16x16xi1> to vector<1x16x16xi1>
    %96 = vector.broadcast %95 : vector<1x16x16xi1> to vector<4x16x16xi1>
    %97 = vector.broadcast %cst_47 : f32 to vector<4x16x16xf32>
    %98 = arith.select %96, %93, %97 : vector<4x16x16xi1>, vector<4x16x16xf32>
    %cst_48 = arith.constant dense<0xFF800000> : vector<4x16xf32>
    %99 = vector.multi_reduction <maximumf>, %98, %cst_48 [2] : vector<4x16x16xf32> to vector<4x16xf32>
    %100 = vector.shape_cast %99 : vector<4x16xf32> to vector<4x16x1xf32>
    %101 = vector.shape_cast %90 : vector<16x16xi1> to vector<1x16x16xi1>
    %102 = vector.broadcast %100 : vector<4x16x1xf32> to vector<4x16x16xf32>
    %103 = arith.subf %98, %102 : vector<4x16x16xf32>
    %104 = math.exp %103 : vector<4x16x16xf32>
    %cst_49 = arith.constant 0.000000e+00 : f32
    %105 = vector.shape_cast %101 : vector<1x16x16xi1> to vector<1x16x16xi1>
    %106 = vector.broadcast %105 : vector<1x16x16xi1> to vector<4x16x16xi1>
    %107 = vector.broadcast %cst_49 : f32 to vector<4x16x16xf32>
    %108 = arith.select %106, %104, %107 : vector<4x16x16xi1>, vector<4x16x16xf32>
    %cst_50 = arith.constant dense<0.000000e+00> : vector<4x16xf32>
    %109 = vector.multi_reduction <add>, %108, %cst_50 [2] : vector<4x16x16xf32> to vector<4x16xf32>
    %110 = vector.shape_cast %109 : vector<4x16xf32> to vector<4x16x1xf32>
    %cst_51 = arith.constant 1.000000e-30 : f32
    %111 = vector.broadcast %cst_51 : f32 to vector<4x16x1xf32>
    %112 = arith.maximumf %110, %111 : vector<4x16x1xf32>
    %cst_52 = arith.constant 1.000000e+00 : f32
    %113 = vector.broadcast %cst_52 : f32 to vector<4x16x1xf32>
    %114 = arith.divf %113, %112 : vector<4x16x1xf32>
    %115 = vector.broadcast %114 : vector<4x16x1xf32> to vector<4x16x16xf32>
    %116 = arith.mulf %108, %115 : vector<4x16x16xf32>
    "tpu.trace_start"() <{level = 10 : i32, message = "hnm,hmc->hnc"}> : () -> ()
    %cst_53 = arith.constant dense<0.000000e+00> : vector<4x16x8xf32>
    %117 = tpu.matmul %116, %85, %cst_53 {dimension_numbers = #tpu.dot_dimension_numbers<[2], [1], [1], [2], [0, 0, 0, 1, 1, 2], [0], [0]>} : vector<4x16x16xf32>, vector<4x16x8xf32>, vector<4x16x8xf32> -> vector<4x16x8xf32>
    "tpu.trace_stop"() : () -> ()
    %118 = tpu.transpose %117, [1, 0, 2] : vector<4x16x8xf32> -> vector<16x4x8xf32>
    %119 = vector.shape_cast %118 : vector<16x4x8xf32> to vector<16x32xf32>
    %120 = arith.addf %69, %119 : vector<16x32xf32>
    %121 = arith.addf %120, %86 : vector<16x32xf32>
    %cst_54 = arith.constant 0.000000e+00 : f32
    %122 = vector.broadcast %cst_54 : f32 to vector<16x32xf32>
    %123 = arith.maximumf %121, %122 : vector<16x32xf32>
    %124 = vector.shape_cast %123 : vector<16x32xf32> to vector<1x16x32xf32>
    %cst_55 = arith.constant dense<0.000000e+00> : vector<1xf32>
    %125 = vector.multi_reduction <add>, %124, %cst_55 [1, 2] : vector<1x16x32xf32> to vector<1xf32>
    %126 = vector.shape_cast %125 : vector<1xf32> to vector<1x1x1xf32>
    %127 = vector.extract %126[0, 0, 0] : f32 from vector<1x1x1xf32>
    %cst_56 = arith.constant 5.120000e+02 : f32
    %128 = arith.divf %127, %cst_56 : f32
    %129 = arith.mulf %123, %123 : vector<16x32xf32>
    %130 = vector.shape_cast %129 : vector<16x32xf32> to vector<1x16x32xf32>
    %cst_57 = arith.constant dense<0.000000e+00> : vector<1xf32>
    %131 = vector.multi_reduction <add>, %130, %cst_57 [1, 2] : vector<1x16x32xf32> to vector<1xf32>
    %132 = vector.shape_cast %131 : vector<1xf32> to vector<1x1x1xf32>
    %133 = vector.extract %132[0, 0, 0] : f32 from vector<1x1x1xf32>
    %cst_58 = arith.constant 5.120000e+02 : f32
    %134 = arith.divf %133, %cst_58 : f32
    %135 = arith.mulf %128, %128 : f32
    %136 = arith.subf %134, %135 : f32
    %cst_59 = arith.constant 0.000000e+00 : f32
    %137 = arith.maximumf %136, %cst_59 : f32
    %138 = math.sqrt %137 : f32
    %139 = vector.broadcast %128 : f32 to vector<16x32xf32>
    %140 = arith.subf %123, %139 : vector<16x32xf32>
    %cst_60 = arith.constant 9.99999974E-6 : f32
    %141 = arith.addf %138, %cst_60 : f32
    %142 = vector.broadcast %141 : f32 to vector<16x32xf32>
    %143 = arith.divf %140, %142 : vector<16x32xf32>
    %144 = vector.extract_strided_slice %8 {offsets = [0, 0, 0], sizes = [1, 1, 32], strides = [1, 1, 1]} : vector<2x1x32xf32> to vector<1x1x32xf32>
    %145 = vector.shape_cast %144 : vector<1x1x32xf32> to vector<1x32xf32>
    %146 = vector.broadcast %145 : vector<1x32xf32> to vector<16x32xf32>
    %147 = arith.mulf %143, %146 : vector<16x32xf32>
    %148 = vector.extract_strided_slice %9 {offsets = [0, 0, 0], sizes = [1, 1, 32], strides = [1, 1, 1]} : vector<2x1x32xf32> to vector<1x1x32xf32>
    %149 = vector.shape_cast %148 : vector<1x1x32xf32> to vector<1x32xf32>
    %150 = vector.broadcast %149 : vector<1x32xf32> to vector<16x32xf32>
    %151 = arith.addf %147, %150 : vector<16x32xf32>
    %cst_61 = arith.constant 0.000000e+00 : f32
    %152 = vector.broadcast %cst_61 : f32 to vector<16x32xf32>
    %153 = vector.extract_strided_slice %6 {offsets = [2, 0, 0], sizes = [1, 32, 128], strides = [1, 1, 1]} : vector<4x32x128xf32> to vector<1x32x128xf32>
    %154 = vector.shape_cast %153 : vector<1x32x128xf32> to vector<32x128xf32>
    %cst_62 = arith.constant dense<0.000000e+00> : vector<16x128xf32>
    %155 = tpu.matmul %151, %154, %cst_62 {dimension_numbers = #tpu.dot_dimension_numbers<[1], [0], [0], [1], [0, 0, 1, 1], [], []>} : vector<16x32xf32>, vector<32x128xf32>, vector<16x128xf32> -> vector<16x128xf32>
    %156 = vector.extract_strided_slice %7 {offsets = [2, 0, 0], sizes = [1, 1, 128], strides = [1, 1, 1]} : vector<4x1x128xf32> to vector<1x1x128xf32>
    %157 = vector.shape_cast %156 : vector<1x1x128xf32> to vector<1x128xf32>
    %158 = vector.broadcast %157 : vector<1x128xf32> to vector<16x128xf32>
    %159 = arith.addf %155, %158 : vector<16x128xf32>
    %160 = vector.extract_strided_slice %159 {offsets = [0, 0], sizes = [16, 32], strides = [1, 1]} : vector<16x128xf32> to vector<16x32xf32>
    %161 = vector.shape_cast %160 : vector<16x32xf32> to vector<16x4x8xf32>
    %162 = tpu.transpose %161, [1, 0, 2] : vector<16x4x8xf32> -> vector<4x16x8xf32>
    %163 = vector.extract_strided_slice %159 {offsets = [0, 32], sizes = [16, 32], strides = [1, 1]} : vector<16x128xf32> to vector<16x32xf32>
    %164 = vector.shape_cast %163 : vector<16x32xf32> to vector<16x4x8xf32>
    %165 = tpu.transpose %164, [1, 0, 2] : vector<16x4x8xf32> -> vector<4x16x8xf32>
    %166 = vector.extract_strided_slice %159 {offsets = [0, 64], sizes = [16, 32], strides = [1, 1]} : vector<16x128xf32> to vector<16x32xf32>
    %167 = vector.shape_cast %166 : vector<16x32xf32> to vector<16x4x8xf32>
    %168 = tpu.transpose %167, [1, 0, 2] : vector<16x4x8xf32> -> vector<4x16x8xf32>
    %169 = vector.extract_strided_slice %159 {offsets = [0, 96], sizes = [16, 32], strides = [1, 1]} : vector<16x128xf32> to vector<16x32xf32>
    %170 = vector.extract_strided_slice %3 {offsets = [0, 0, 0], sizes = [1, 16, 16], strides = [1, 1, 1]} : vector<2x16x16xf32> to vector<1x16x16xf32>
    %171 = vector.shape_cast %170 : vector<1x16x16xf32> to vector<16x16xf32>
    %cst_63 = arith.constant 0.000000e+00 : f32
    %172 = vector.broadcast %cst_63 : f32 to vector<16x16xf32>
    %173 = arith.cmpf ogt, %171, %172 : vector<16x16xf32>
    "tpu.trace_start"() <{level = 10 : i32, message = "hnc,hmc->hnm"}> : () -> ()
    %cst_64 = arith.constant dense<0.000000e+00> : vector<4x16x16xf32>
    %174 = tpu.matmul %162, %165, %cst_64 {dimension_numbers = #tpu.dot_dimension_numbers<[2], [2], [1], [1], [0, 0, 0, 1, 1, 1], [0], [0]>} : vector<4x16x8xf32>, vector<4x16x8xf32>, vector<4x16x16xf32> -> vector<4x16x16xf32>
    "tpu.trace_stop"() : () -> ()
    %cst_65 = arith.constant 0.353553385 : f32
    %175 = vector.broadcast %cst_65 : f32 to vector<4x16x16xf32>
    %176 = arith.mulf %174, %175 : vector<4x16x16xf32>
    %177 = vector.shape_cast %173 : vector<16x16xi1> to vector<1x16x16xi1>
    %cst_66 = arith.constant -1.000000e+30 : f32
    %178 = vector.shape_cast %177 : vector<1x16x16xi1> to vector<1x16x16xi1>
    %179 = vector.broadcast %178 : vector<1x16x16xi1> to vector<4x16x16xi1>
    %180 = vector.broadcast %cst_66 : f32 to vector<4x16x16xf32>
    %181 = arith.select %179, %176, %180 : vector<4x16x16xi1>, vector<4x16x16xf32>
    %cst_67 = arith.constant dense<0xFF800000> : vector<4x16xf32>
    %182 = vector.multi_reduction <maximumf>, %181, %cst_67 [2] : vector<4x16x16xf32> to vector<4x16xf32>
    %183 = vector.shape_cast %182 : vector<4x16xf32> to vector<4x16x1xf32>
    %184 = vector.shape_cast %173 : vector<16x16xi1> to vector<1x16x16xi1>
    %185 = vector.broadcast %183 : vector<4x16x1xf32> to vector<4x16x16xf32>
    %186 = arith.subf %181, %185 : vector<4x16x16xf32>
    %187 = math.exp %186 : vector<4x16x16xf32>
    %cst_68 = arith.constant 0.000000e+00 : f32
    %188 = vector.shape_cast %184 : vector<1x16x16xi1> to vector<1x16x16xi1>
    %189 = vector.broadcast %188 : vector<1x16x16xi1> to vector<4x16x16xi1>
    %190 = vector.broadcast %cst_68 : f32 to vector<4x16x16xf32>
    %191 = arith.select %189, %187, %190 : vector<4x16x16xi1>, vector<4x16x16xf32>
    %cst_69 = arith.constant dense<0.000000e+00> : vector<4x16xf32>
    %192 = vector.multi_reduction <add>, %191, %cst_69 [2] : vector<4x16x16xf32> to vector<4x16xf32>
    %193 = vector.shape_cast %192 : vector<4x16xf32> to vector<4x16x1xf32>
    %cst_70 = arith.constant 1.000000e-30 : f32
    %194 = vector.broadcast %cst_70 : f32 to vector<4x16x1xf32>
    %195 = arith.maximumf %193, %194 : vector<4x16x1xf32>
    %cst_71 = arith.constant 1.000000e+00 : f32
    %196 = vector.broadcast %cst_71 : f32 to vector<4x16x1xf32>
    %197 = arith.divf %196, %195 : vector<4x16x1xf32>
    %198 = vector.broadcast %197 : vector<4x16x1xf32> to vector<4x16x16xf32>
    %199 = arith.mulf %191, %198 : vector<4x16x16xf32>
    "tpu.trace_start"() <{level = 10 : i32, message = "hnm,hmc->hnc"}> : () -> ()
    %cst_72 = arith.constant dense<0.000000e+00> : vector<4x16x8xf32>
    %200 = tpu.matmul %199, %168, %cst_72 {dimension_numbers = #tpu.dot_dimension_numbers<[2], [1], [1], [2], [0, 0, 0, 1, 1, 2], [0], [0]>} : vector<4x16x16xf32>, vector<4x16x8xf32>, vector<4x16x8xf32> -> vector<4x16x8xf32>
    "tpu.trace_stop"() : () -> ()
    %201 = tpu.transpose %200, [1, 0, 2] : vector<4x16x8xf32> -> vector<16x4x8xf32>
    %202 = vector.shape_cast %201 : vector<16x4x8xf32> to vector<16x32xf32>
    %203 = arith.addf %152, %202 : vector<16x32xf32>
    %204 = arith.addf %203, %169 : vector<16x32xf32>
    %205 = vector.extract_strided_slice %6 {offsets = [3, 0, 0], sizes = [1, 32, 128], strides = [1, 1, 1]} : vector<4x32x128xf32> to vector<1x32x128xf32>
    %206 = vector.shape_cast %205 : vector<1x32x128xf32> to vector<32x128xf32>
    %cst_73 = arith.constant dense<0.000000e+00> : vector<16x128xf32>
    %207 = tpu.matmul %151, %206, %cst_73 {dimension_numbers = #tpu.dot_dimension_numbers<[1], [0], [0], [1], [0, 0, 1, 1], [], []>} : vector<16x32xf32>, vector<32x128xf32>, vector<16x128xf32> -> vector<16x128xf32>
    %208 = vector.extract_strided_slice %7 {offsets = [3, 0, 0], sizes = [1, 1, 128], strides = [1, 1, 1]} : vector<4x1x128xf32> to vector<1x1x128xf32>
    %209 = vector.shape_cast %208 : vector<1x1x128xf32> to vector<1x128xf32>
    %210 = vector.broadcast %209 : vector<1x128xf32> to vector<16x128xf32>
    %211 = arith.addf %207, %210 : vector<16x128xf32>
    %212 = vector.extract_strided_slice %211 {offsets = [0, 0], sizes = [16, 32], strides = [1, 1]} : vector<16x128xf32> to vector<16x32xf32>
    %213 = vector.shape_cast %212 : vector<16x32xf32> to vector<16x4x8xf32>
    %214 = tpu.transpose %213, [1, 0, 2] : vector<16x4x8xf32> -> vector<4x16x8xf32>
    %215 = vector.extract_strided_slice %211 {offsets = [0, 32], sizes = [16, 32], strides = [1, 1]} : vector<16x128xf32> to vector<16x32xf32>
    %216 = vector.shape_cast %215 : vector<16x32xf32> to vector<16x4x8xf32>
    %217 = tpu.transpose %216, [1, 0, 2] : vector<16x4x8xf32> -> vector<4x16x8xf32>
    %218 = vector.extract_strided_slice %211 {offsets = [0, 64], sizes = [16, 32], strides = [1, 1]} : vector<16x128xf32> to vector<16x32xf32>
    %219 = vector.shape_cast %218 : vector<16x32xf32> to vector<16x4x8xf32>
    %220 = tpu.transpose %219, [1, 0, 2] : vector<16x4x8xf32> -> vector<4x16x8xf32>
    %221 = vector.extract_strided_slice %211 {offsets = [0, 96], sizes = [16, 32], strides = [1, 1]} : vector<16x128xf32> to vector<16x32xf32>
    %222 = vector.extract_strided_slice %3 {offsets = [1, 0, 0], sizes = [1, 16, 16], strides = [1, 1, 1]} : vector<2x16x16xf32> to vector<1x16x16xf32>
    %223 = vector.shape_cast %222 : vector<1x16x16xf32> to vector<16x16xf32>
    %cst_74 = arith.constant 0.000000e+00 : f32
    %224 = vector.broadcast %cst_74 : f32 to vector<16x16xf32>
    %225 = arith.cmpf ogt, %223, %224 : vector<16x16xf32>
    "tpu.trace_start"() <{level = 10 : i32, message = "hnc,hmc->hnm"}> : () -> ()
    %cst_75 = arith.constant dense<0.000000e+00> : vector<4x16x16xf32>
    %226 = tpu.matmul %214, %217, %cst_75 {dimension_numbers = #tpu.dot_dimension_numbers<[2], [2], [1], [1], [0, 0, 0, 1, 1, 1], [0], [0]>} : vector<4x16x8xf32>, vector<4x16x8xf32>, vector<4x16x16xf32> -> vector<4x16x16xf32>
    "tpu.trace_stop"() : () -> ()
    %cst_76 = arith.constant 0.353553385 : f32
    %227 = vector.broadcast %cst_76 : f32 to vector<4x16x16xf32>
    %228 = arith.mulf %226, %227 : vector<4x16x16xf32>
    %229 = vector.shape_cast %225 : vector<16x16xi1> to vector<1x16x16xi1>
    %cst_77 = arith.constant -1.000000e+30 : f32
    %230 = vector.shape_cast %229 : vector<1x16x16xi1> to vector<1x16x16xi1>
    %231 = vector.broadcast %230 : vector<1x16x16xi1> to vector<4x16x16xi1>
    %232 = vector.broadcast %cst_77 : f32 to vector<4x16x16xf32>
    %233 = arith.select %231, %228, %232 : vector<4x16x16xi1>, vector<4x16x16xf32>
    %cst_78 = arith.constant dense<0xFF800000> : vector<4x16xf32>
    %234 = vector.multi_reduction <maximumf>, %233, %cst_78 [2] : vector<4x16x16xf32> to vector<4x16xf32>
    %235 = vector.shape_cast %234 : vector<4x16xf32> to vector<4x16x1xf32>
    %236 = vector.shape_cast %225 : vector<16x16xi1> to vector<1x16x16xi1>
    %237 = vector.broadcast %235 : vector<4x16x1xf32> to vector<4x16x16xf32>
    %238 = arith.subf %233, %237 : vector<4x16x16xf32>
    %239 = math.exp %238 : vector<4x16x16xf32>
    %cst_79 = arith.constant 0.000000e+00 : f32
    %240 = vector.shape_cast %236 : vector<1x16x16xi1> to vector<1x16x16xi1>
    %241 = vector.broadcast %240 : vector<1x16x16xi1> to vector<4x16x16xi1>
    %242 = vector.broadcast %cst_79 : f32 to vector<4x16x16xf32>
    %243 = arith.select %241, %239, %242 : vector<4x16x16xi1>, vector<4x16x16xf32>
    %cst_80 = arith.constant dense<0.000000e+00> : vector<4x16xf32>
    %244 = vector.multi_reduction <add>, %243, %cst_80 [2] : vector<4x16x16xf32> to vector<4x16xf32>
    %245 = vector.shape_cast %244 : vector<4x16xf32> to vector<4x16x1xf32>
    %cst_81 = arith.constant 1.000000e-30 : f32
    %246 = vector.broadcast %cst_81 : f32 to vector<4x16x1xf32>
    %247 = arith.maximumf %245, %246 : vector<4x16x1xf32>
    %cst_82 = arith.constant 1.000000e+00 : f32
    %248 = vector.broadcast %cst_82 : f32 to vector<4x16x1xf32>
    %249 = arith.divf %248, %247 : vector<4x16x1xf32>
    %250 = vector.broadcast %249 : vector<4x16x1xf32> to vector<4x16x16xf32>
    %251 = arith.mulf %243, %250 : vector<4x16x16xf32>
    "tpu.trace_start"() <{level = 10 : i32, message = "hnm,hmc->hnc"}> : () -> ()
    %cst_83 = arith.constant dense<0.000000e+00> : vector<4x16x8xf32>
    %252 = tpu.matmul %251, %220, %cst_83 {dimension_numbers = #tpu.dot_dimension_numbers<[2], [1], [1], [2], [0, 0, 0, 1, 1, 2], [0], [0]>} : vector<4x16x16xf32>, vector<4x16x8xf32>, vector<4x16x8xf32> -> vector<4x16x8xf32>
    "tpu.trace_stop"() : () -> ()
    %253 = tpu.transpose %252, [1, 0, 2] : vector<4x16x8xf32> -> vector<16x4x8xf32>
    %254 = vector.shape_cast %253 : vector<16x4x8xf32> to vector<16x32xf32>
    %255 = arith.addf %204, %254 : vector<16x32xf32>
    %256 = arith.addf %255, %221 : vector<16x32xf32>
    %cst_84 = arith.constant 0.000000e+00 : f32
    %257 = vector.broadcast %cst_84 : f32 to vector<16x32xf32>
    %258 = arith.maximumf %256, %257 : vector<16x32xf32>
    %259 = vector.shape_cast %258 : vector<16x32xf32> to vector<1x16x32xf32>
    %cst_85 = arith.constant dense<0.000000e+00> : vector<1xf32>
    %260 = vector.multi_reduction <add>, %259, %cst_85 [1, 2] : vector<1x16x32xf32> to vector<1xf32>
    %261 = vector.shape_cast %260 : vector<1xf32> to vector<1x1x1xf32>
    %262 = vector.extract %261[0, 0, 0] : f32 from vector<1x1x1xf32>
    %cst_86 = arith.constant 5.120000e+02 : f32
    %263 = arith.divf %262, %cst_86 : f32
    %264 = arith.mulf %258, %258 : vector<16x32xf32>
    %265 = vector.shape_cast %264 : vector<16x32xf32> to vector<1x16x32xf32>
    %cst_87 = arith.constant dense<0.000000e+00> : vector<1xf32>
    %266 = vector.multi_reduction <add>, %265, %cst_87 [1, 2] : vector<1x16x32xf32> to vector<1xf32>
    %267 = vector.shape_cast %266 : vector<1xf32> to vector<1x1x1xf32>
    %268 = vector.extract %267[0, 0, 0] : f32 from vector<1x1x1xf32>
    %cst_88 = arith.constant 5.120000e+02 : f32
    %269 = arith.divf %268, %cst_88 : f32
    %270 = arith.mulf %263, %263 : f32
    %271 = arith.subf %269, %270 : f32
    %cst_89 = arith.constant 0.000000e+00 : f32
    %272 = arith.maximumf %271, %cst_89 : f32
    %273 = math.sqrt %272 : f32
    %274 = vector.broadcast %263 : f32 to vector<16x32xf32>
    %275 = arith.subf %258, %274 : vector<16x32xf32>
    %cst_90 = arith.constant 9.99999974E-6 : f32
    %276 = arith.addf %273, %cst_90 : f32
    %277 = vector.broadcast %276 : f32 to vector<16x32xf32>
    %278 = arith.divf %275, %277 : vector<16x32xf32>
    %279 = vector.extract_strided_slice %8 {offsets = [1, 0, 0], sizes = [1, 1, 32], strides = [1, 1, 1]} : vector<2x1x32xf32> to vector<1x1x32xf32>
    %280 = vector.shape_cast %279 : vector<1x1x32xf32> to vector<1x32xf32>
    %281 = vector.broadcast %280 : vector<1x32xf32> to vector<16x32xf32>
    %282 = arith.mulf %278, %281 : vector<16x32xf32>
    %283 = vector.extract_strided_slice %9 {offsets = [1, 0, 0], sizes = [1, 1, 32], strides = [1, 1, 1]} : vector<2x1x32xf32> to vector<1x1x32xf32>
    %284 = vector.shape_cast %283 : vector<1x1x32xf32> to vector<1x32xf32>
    %285 = vector.broadcast %284 : vector<1x32xf32> to vector<16x32xf32>
    %286 = arith.addf %282, %285 : vector<16x32xf32>
    %287 = vector.extract_strided_slice %10 {offsets = [0, 0, 0], sizes = [1, 32, 32], strides = [1, 1, 1]} : vector<3x32x32xf32> to vector<1x32x32xf32>
    %288 = vector.shape_cast %287 : vector<1x32x32xf32> to vector<32x32xf32>
    %cst_91 = arith.constant dense<0.000000e+00> : vector<16x32xf32>
    %289 = tpu.matmul %16, %288, %cst_91 {dimension_numbers = #tpu.dot_dimension_numbers<[1], [0], [0], [1], [0, 0, 1, 1], [], []>} : vector<16x32xf32>, vector<32x32xf32>, vector<16x32xf32> -> vector<16x32xf32>
    %290 = vector.broadcast %11 : vector<1x32xf32> to vector<16x32xf32>
    %291 = arith.addf %290, %289 : vector<16x32xf32>
    %292 = vector.extract_strided_slice %10 {offsets = [1, 0, 0], sizes = [1, 32, 32], strides = [1, 1, 1]} : vector<3x32x32xf32> to vector<1x32x32xf32>
    %293 = vector.shape_cast %292 : vector<1x32x32xf32> to vector<32x32xf32>
    %cst_92 = arith.constant dense<0.000000e+00> : vector<16x32xf32>
    %294 = tpu.matmul %151, %293, %cst_92 {dimension_numbers = #tpu.dot_dimension_numbers<[1], [0], [0], [1], [0, 0, 1, 1], [], []>} : vector<16x32xf32>, vector<32x32xf32>, vector<16x32xf32> -> vector<16x32xf32>
    %295 = arith.addf %291, %294 : vector<16x32xf32>
    %296 = vector.extract_strided_slice %10 {offsets = [2, 0, 0], sizes = [1, 32, 32], strides = [1, 1, 1]} : vector<3x32x32xf32> to vector<1x32x32xf32>
    %297 = vector.shape_cast %296 : vector<1x32x32xf32> to vector<32x32xf32>
    %cst_93 = arith.constant dense<0.000000e+00> : vector<16x32xf32>
    %298 = tpu.matmul %286, %297, %cst_93 {dimension_numbers = #tpu.dot_dimension_numbers<[1], [0], [0], [1], [0, 0, 1, 1], [], []>} : vector<16x32xf32>, vector<32x32xf32>, vector<16x32xf32> -> vector<16x32xf32>
    %299 = arith.addf %295, %298 : vector<16x32xf32>
    %cst_94 = arith.constant dense<0.000000e+00> : vector<16x128xf32>
    %300 = tpu.matmul %299, %12, %cst_94 {dimension_numbers = #tpu.dot_dimension_numbers<[1], [0], [0], [1], [0, 0, 1, 1], [], []>} : vector<16x32xf32>, vector<32x128xf32>, vector<16x128xf32> -> vector<16x128xf32>
    %301 = vector.broadcast %13 : vector<1x128xf32> to vector<16x128xf32>
    %302 = arith.addf %300, %301 : vector<16x128xf32>
    %c0_95 = arith.constant 0 : index
    %c0_96 = arith.constant 0 : index
    %c0_97 = arith.constant 0 : index
    %303 = vector.load %arg13[%c0_95, %c0_96, %c0_97] : memref<1x16x128xf32, #tpu.memory_space<vmem>>, vector<1x16x128xf32>
    %304 = vector.shape_cast %303 : vector<1x16x128xf32> to vector<16x128xf32>
    %305 = vector.shape_cast %302 : vector<16x128xf32> to vector<1x16x128xf32>
    tpu.vector_store %arg13[%c0_95, %c0_96, %c0_97], %305 {strides = array<i32>} : memref<1x16x128xf32, #tpu.memory_space<vmem>>, vector<1x16x128xf32>,
    return
  }
  func.func @transform_0(%arg0: i32) -> (i32, i32, i32) {
    %c0_i32 = arith.constant 0 : i32
    %c0_i32_0 = arith.constant 0 : i32
    %c0_i32_1 = arith.constant 0 : i32
    return %arg0, %c0_i32, %c0_i32_0 : i32, i32, i32
  }
  func.func @transform_1(%arg0: i32) -> (i32, i32, i32, i32) {
    %c0_i32 = arith.constant 0 : i32
    %c0_i32_0 = arith.constant 0 : i32
    %c0_i32_1 = arith.constant 0 : i32
    %c0_i32_2 = arith.constant 0 : i32
    return %arg0, %c0_i32, %c0_i32_0, %c0_i32_1 : i32, i32, i32, i32
  }
  func.func @transform_2(%arg0: i32) -> (i32, i32) {
    %c0_i32 = arith.constant 0 : i32
    %c0_i32_0 = arith.constant 0 : i32
    %c0_i32_1 = arith.constant 0 : i32
    return %c0_i32, %c0_i32_0 : i32, i32
  }
  func.func @transform_3(%arg0: i32) -> (i32, i32) {
    %c0_i32 = arith.constant 0 : i32
    %c0_i32_0 = arith.constant 0 : i32
    %c0_i32_1 = arith.constant 0 : i32
    return %c0_i32, %c0_i32_0 : i32, i32
  }
  func.func @transform_4(%arg0: i32) -> (i32, i32, i32) {
    %c0_i32 = arith.constant 0 : i32
    %c0_i32_0 = arith.constant 0 : i32
    %c0_i32_1 = arith.constant 0 : i32
    %c0_i32_2 = arith.constant 0 : i32
    return %c0_i32, %c0_i32_0, %c0_i32_1 : i32, i32, i32
  }
  func.func @transform_5(%arg0: i32) -> (i32, i32, i32) {
    %c0_i32 = arith.constant 0 : i32
    %c0_i32_0 = arith.constant 0 : i32
    %c0_i32_1 = arith.constant 0 : i32
    %c0_i32_2 = arith.constant 0 : i32
    return %c0_i32, %c0_i32_0, %c0_i32_1 : i32, i32, i32
  }
  func.func @transform_6(%arg0: i32) -> (i32, i32, i32) {
    %c0_i32 = arith.constant 0 : i32
    %c0_i32_0 = arith.constant 0 : i32
    %c0_i32_1 = arith.constant 0 : i32
    %c0_i32_2 = arith.constant 0 : i32
    return %c0_i32, %c0_i32_0, %c0_i32_1 : i32, i32, i32
  }
  func.func @transform_7(%arg0: i32) -> (i32, i32, i32) {
    %c0_i32 = arith.constant 0 : i32
    %c0_i32_0 = arith.constant 0 : i32
    %c0_i32_1 = arith.constant 0 : i32
    %c0_i32_2 = arith.constant 0 : i32
    return %c0_i32, %c0_i32_0, %c0_i32_1 : i32, i32, i32
  }
  func.func @transform_8(%arg0: i32) -> (i32, i32, i32) {
    %c0_i32 = arith.constant 0 : i32
    %c0_i32_0 = arith.constant 0 : i32
    %c0_i32_1 = arith.constant 0 : i32
    %c0_i32_2 = arith.constant 0 : i32
    return %c0_i32, %c0_i32_0, %c0_i32_1 : i32, i32, i32
  }
  func.func @transform_9(%arg0: i32) -> (i32, i32) {
    %c0_i32 = arith.constant 0 : i32
    %c0_i32_0 = arith.constant 0 : i32
    %c0_i32_1 = arith.constant 0 : i32
    return %c0_i32, %c0_i32_0 : i32, i32
  }
  func.func @transform_10(%arg0: i32) -> (i32, i32) {
    %c0_i32 = arith.constant 0 : i32
    %c0_i32_0 = arith.constant 0 : i32
    %c0_i32_1 = arith.constant 0 : i32
    return %c0_i32, %c0_i32_0 : i32, i32
  }
  func.func @transform_11(%arg0: i32) -> (i32, i32) {
    %c0_i32 = arith.constant 0 : i32
    %c0_i32_0 = arith.constant 0 : i32
    %c0_i32_1 = arith.constant 0 : i32
    return %c0_i32, %c0_i32_0 : i32, i32
  }
  func.func @transform_12(%arg0: i32) -> (i32, i32, i32) {
    %c0_i32 = arith.constant 0 : i32
    %c0_i32_0 = arith.constant 0 : i32
    %c0_i32_1 = arith.constant 0 : i32
    return %arg0, %c0_i32, %c0_i32_0 : i32, i32, i32
  }
}

</mosaic_0001>

<llo_original>
// kernel: tpu_custom_call.1
$region0: #{tpu_custom_call.1}
  #allocation0 [shape = 'u32[]', space=smem, size = 0x4, offset = 0x4, fixed_abs, tag = 'smem constant byte address 0x4 - core index']
  #allocation1 [shape = 'u32[144,128]{1,0:T(1,128)}', space=vmem, size = 0x12000, scoped, tag = 'internal scratch']
  %s0 = inlined_call_operand.hbm [shape: f32[4,16,24], index: 0, kind: input, shape index: {}]
  %s1 = inlined_call_operand.hbm [shape: f32[4,2,16,16], index: 1, kind: input, shape index: {}]
  %s2 = inlined_call_operand.hbm [shape: f32[24,32], index: 2, kind: input, shape index: {}]
  %s3 = inlined_call_operand.vmem [shape: f32[1,32], index: 3, kind: input, shape index: {}]
  %s4 = inlined_call_operand.hbm [shape: f32[4,32,128], index: 4, kind: input, shape index: {}]
  %s5 = inlined_call_operand.vmem [shape: f32[4,1,128], index: 5, kind: input, shape index: {}]
  %s6 = inlined_call_operand.hbm [shape: f32[2,1,32], index: 6, kind: input, shape index: {}]
  %s7 = inlined_call_operand.hbm [shape: f32[2,1,32], index: 7, kind: input, shape index: {}]
  %s8 = inlined_call_operand.hbm [shape: f32[3,32,32], index: 8, kind: input, shape index: {}]
  %s9 = inlined_call_operand.hbm [shape: f32[1,32], index: 9, kind: input, shape index: {}]
  %s10 = inlined_call_operand.vmem [shape: f32[32,128], index: 10, kind: input, shape index: {}]
  %s11 = inlined_call_operand.vmem [shape: f32[1,128], index: 11, kind: input, shape index: {}]
  %s12 = inlined_call_operand.hbm [shape: f32[4,16,128], index: 12, kind: output, shape index: {}]
  %s13 = sld [smem:[#allocation0]]
  $region113: #{tpu_custom_call.1} parent=0
    _
  %s15 = ssub.s32 1, %s13
  %s16 = scalar_select 0, %s15, %s13
  $region1: #{tpu_custom_call.1} parent=0
    #allocation2 [shape = 'u8[16384]{0}', space=vmem, size = 0x4000, scoped, tag = 'input window, operand 0']
    #allocation3 [shape = 's32[2]{0}', space=sflag, size = 0x8, scoped, tag = 'scoped memory for tpu_custom_call.1']
    #allocation4 [shape = 's32[2]{0}', space=sflag, size = 0x8, scoped, tag = 'scoped memory for tpu_custom_call.1']
    #allocation5 [shape = 'u8[32768]{0}', space=vmem, size = 0x8000, scoped, tag = 'input window, operand 1']
    #allocation6 [shape = 's32[2]{0}', space=sflag, size = 0x8, scoped, tag = 'scoped memory for tpu_custom_call.1']
    #allocation7 [shape = 'u8[12288]{0}', space=vmem, size = 0x3000, scoped, tag = 'input window, operand 2, single buffered']
    #allocation8 [shape = 'u8[65536]{0}', space=vmem, size = 0x10000, scoped, tag = 'input window, operand 4, single buffered']
    #allocation9 [shape = 's32[1]{0}', space=sflag, size = 0x4, scoped, tag = 'scoped memory for tpu_custom_call.1']
    #allocation10 [shape = 'u8[1024]{0}', space=vmem, size = 0x400, scoped, tag = 'input window, operand 6, single buffered']
    #allocation11 [shape = 'u8[1024]{0}', space=vmem, size = 0x400, scoped, tag = 'input window, operand 7, single buffered']
    #allocation12 [shape = 's32[1]{0}', space=sflag, size = 0x4, scoped, tag = 'scoped memory for tpu_custom_call.1']
    #allocation13 [shape = 'u8[49152]{0}', space=vmem, size = 0xc000, scoped, tag = 'input window, operand 8, single buffered']
    #allocation14 [shape = 'u8[512]{0}', space=vmem, size = 0x400, scoped, tag = 'input window, operand 9, single buffered']
    #allocation15 [shape = 's32[1]{0}', space=sflag, size = 0x4, scoped, tag = 'scoped memory for tpu_custom_call.1']
    #allocation16 [shape = 'u8[16384]{0}', space=vmem, size = 0x4000, scoped, tag = 'output window, operand 0']
    %17 = vsyncpa [#allocation3], 0
    %s18 = scalar_lea.sflag [#allocation3], 1
    %19 = vsyncpa %s18, 0
    %20 = vsyncpa [#allocation6], 0
    %s21 = scalar_lea.sflag [#allocation6], 1
    %22 = vsyncpa %s21, 0
    %23 = vsyncpa [#allocation9], 0
    %24 = vsyncpa [#allocation12], 0
    %25 = vsyncpa [#allocation15], 0
    %26 = vsyncpa [#allocation4], 0
    %s27 = scalar_lea.sflag [#allocation4], 1
    %28 = vsyncpa %s27, 0
    loop: start=0, step=1, limit=6
    $region2: #{tpu_custom_call.1} parent=1 // loop_pre_header
      _
    $region3: #{tpu_custom_call.1} parent=1 // loop_header
      %s30 = sphi 0, %s34
      %p31 = scmp.ge.s32.totalorder %s30, 6
      %s40 = sphi 0, %s42
      %s43 = sphi 0, %s40
      %s44 = sphi 0, %s43
      %s60 = sphi 0, %s44
      %s66 = sphi 0, %s68
      %s69 = sphi 0, %s66
      %s70 = sphi 0, %s69
      %s86 = sphi 0, %s70
      %s90 = sphi 0, %s90
      %s92 = sphi 0, %s90
      %s93 = sphi 0, %s92
      %s107 = sphi 0, %s93
      %s111 = sphi 0, %s111
      %s113 = sphi 0, %s111
      %s114 = sphi 0, %s113
      %s128 = sphi 0, %s114
      %s132 = sphi 0, %s132
      %s134 = sphi 0, %s132
      %s135 = sphi 0, %s134
      %s149 = sphi 0, %s135
      %s153 = sphi 0, %s153
      %s155 = sphi 0, %s153
      %s156 = sphi 0, %s155
      %s170 = sphi 0, %s156
      %s174 = sphi 0, %s174
      %s176 = sphi 0, %s174
      %s177 = sphi 0, %s176
      %s191 = sphi 0, %s177
      %s195 = sphi 0, %s195
      %s197 = sphi 0, %s195
      %s198 = sphi 0, %s197
      %s212 = sphi 0, %s198
      %s216 = sphi 0, %s216
      %s218 = sphi 0, %s216
      %s219 = sphi 0, %s218
      %s233 = sphi 0, %s219
      %s237 = sphi 0, %s237
      %s239 = sphi 0, %s237
      %s240 = sphi 0, %s239
      %s254 = sphi 0, %s240
      %s258 = sphi 0, %s258
      %s260 = sphi 0, %s258
      %s261 = sphi 0, %s260
      %s275 = sphi 0, %s261
      %s279 = sphi 0, %s279
      %s281 = sphi 0, %s279
      %s282 = sphi 0, %s281
      %s296 = sphi 0, %s282
      %s302 = sphi 0, %s304
      %s305 = sphi 0, %s302
      %s306 = sphi 0, %s305
      %s322 = sphi 0, %s306
    $region4: #{tpu_custom_call.1} parent=1 // loop_header_branch
      %33 = sbr.rel (%p31) target = $region8
    $region5: #{tpu_custom_call.1} parent=1 // loop_body
      %s35 = ssub.s32 %s30, 1
      %s36 = ssub.s32 %s30, 2
      %s37 = sadd.s32 %s30, 1
      %s38 = ssub.s32 %s30, %s37
      %p39 = scmp.eq.s32.totalorder %s38, 0
      %s41 = sadd.s32 %s40, 1
      %s42 = scalar_select %p39, %s40, %s41
      %p45 = pneg %p39
      %p46 = scmp.eq.s32.totalorder %s30, 3
      %p47 = por %p45, %p46
      %p48 = scmp.ne.s32.totalorder %s40, %s43
      %p49 = scmp.eq.s32.totalorder %s30, 0
      %p50 = por %p48, %p49
      %p51 = scmp.ne.s32.totalorder %s40, %s43
      %p52 = scmp.eq.s32.totalorder %s35, 3
      %p53 = por %p51, %p52
      %p54 = scmp.ne.s32.totalorder %s43, %s44
      %p55 = scmp.eq.s32.totalorder %s35, 0
      %p56 = por %p54, %p55
      %p57 = scmp.ne.s32.totalorder %s43, %s44
      %p58 = scmp.eq.s32.totalorder %s36, 3
      %p59 = por %p57, %p58
      %p61 = scmp.ne.s32.totalorder %s44, %s60
      %p62 = scmp.eq.s32.totalorder %s36, 0
      %p63 = por %p61, %p62
      %s64 = ssub.s32 %s30, %s37
      %p65 = scmp.eq.s32.totalorder %s64, 0
      %s67 = sadd.s32 %s66, 1
      %s68 = scalar_select %p65, %s66, %s67
      %p71 = pneg %p65
      %p72 = scmp.eq.s32.totalorder %s30, 3
      %p73 = por %p71, %p72
      %p74 = scmp.ne.s32.totalorder %s66, %s69
      %p75 = scmp.eq.s32.totalorder %s30, 0
      %p76 = por %p74, %p75
      %p77 = scmp.ne.s32.totalorder %s66, %s69
      %p78 = scmp.eq.s32.totalorder %s35, 3
      %p79 = por %p77, %p78
      %p80 = scmp.ne.s32.totalorder %s69, %s70
      %p81 = scmp.eq.s32.totalorder %s35, 0
      %p82 = por %p80, %p81
      %p83 = scmp.ne.s32.totalorder %s69, %s70
      %p84 = scmp.eq.s32.totalorder %s36, 3
      %p85 = por %p83, %p84
      %p87 = scmp.ne.s32.totalorder %s70, %s86
      %p88 = scmp.eq.s32.totalorder %s36, 0
      %p89 = por %p87, %p88
      %s91 = sadd.s32 %s90, 1
      %p94 = scmp.eq.s32.totalorder %s30, 3
      %p95 = scmp.ne.s32.totalorder %s90, %s92
      %p96 = scmp.eq.s32.totalorder %s30, 0
      %p97 = por %p95, %p96
      %p98 = scmp.ne.s32.totalorder %s90, %s92
      %p99 = scmp.eq.s32.totalorder %s35, 3
      %p100 = por %p98, %p99
      %p101 = scmp.ne.s32.totalorder %s92, %s93
      %p102 = scmp.eq.s32.totalorder %s35, 0
      %p103 = por %p101, %p102
      %p104 = scmp.ne.s32.totalorder %s92, %s93
      %p105 = scmp.eq.s32.totalorder %s36, 3
      %p106 = por %p104, %p105
      %p108 = scmp.ne.s32.totalorder %s93, %s107
      %p109 = scmp.eq.s32.totalorder %s36, 0
      %p110 = por %p108, %p109
      %s112 = sadd.s32 %s111, 1
      %p115 = scmp.eq.s32.totalorder %s30, 3
      %p116 = scmp.ne.s32.totalorder %s111, %s113
      %p117 = scmp.eq.s32.totalorder %s30, 0
      %p118 = por %p116, %p117
      %p119 = scmp.ne.s32.totalorder %s111, %s113
      %p120 = scmp.eq.s32.totalorder %s35, 3
      %p121 = por %p119, %p120
      %p122 = scmp.ne.s32.totalorder %s113, %s114
      %p123 = scmp.eq.s32.totalorder %s35, 0
      %p124 = por %p122, %p123
      %p125 = scmp.ne.s32.totalorder %s113, %s114
      %p126 = scmp.eq.s32.totalorder %s36, 3
      %p127 = por %p125, %p126
      %p129 = scmp.ne.s32.totalorder %s114, %s128
      %p130 = scmp.eq.s32.totalorder %s36, 0
      %p131 = por %p129, %p130
      %s133 = sadd.s32 %s132, 1
      %p136 = scmp.eq.s32.totalorder %s30, 3
      %p137 = scmp.ne.s32.totalorder %s132, %s134
      %p138 = scmp.eq.s32.totalorder %s30, 0
      %p139 = por %p137, %p138
      %p140 = scmp.ne.s32.totalorder %s132, %s134
      %p141 = scmp.eq.s32.totalorder %s35, 3
      %p142 = por %p140, %p141
      %p143 = scmp.ne.s32.totalorder %s134, %s135
      %p144 = scmp.eq.s32.totalorder %s35, 0
      %p145 = por %p143, %p144
      %p146 = scmp.ne.s32.totalorder %s134, %s135
      %p147 = scmp.eq.s32.totalorder %s36, 3
      %p148 = por %p146, %p147
      %p150 = scmp.ne.s32.totalorder %s135, %s149
      %p151 = scmp.eq.s32.totalorder %s36, 0
      %p152 = por %p150, %p151
      %s154 = sadd.s32 %s153, 1
      %p157 = scmp.eq.s32.totalorder %s30, 3
      %p158 = scmp.ne.s32.totalorder %s153, %s155
      %p159 = scmp.eq.s32.totalorder %s30, 0
      %p160 = por %p158, %p159
      %p161 = scmp.ne.s32.totalorder %s153, %s155
      %p162 = scmp.eq.s32.totalorder %s35, 3
      %p163 = por %p161, %p162
      %p164 = scmp.ne.s32.totalorder %s155, %s156
      %p165 = scmp.eq.s32.totalorder %s35, 0
      %p166 = por %p164, %p165
      %p167 = scmp.ne.s32.totalorder %s155, %s156
      %p168 = scmp.eq.s32.totalorder %s36, 3
      %p169 = por %p167, %p168
      %p171 = scmp.ne.s32.totalorder %s156, %s170
      %p172 = scmp.eq.s32.totalorder %s36, 0
      %p173 = por %p171, %p172
      %s175 = sadd.s32 %s174, 1
      %p178 = scmp.eq.s32.totalorder %s30, 3
      %p179 = scmp.ne.s32.totalorder %s174, %s176
      %p180 = scmp.eq.s32.totalorder %s30, 0
      %p181 = por %p179, %p180
      %p182 = scmp.ne.s32.totalorder %s174, %s176
      %p183 = scmp.eq.s32.totalorder %s35, 3
      %p184 = por %p182, %p183
      %p185 = scmp.ne.s32.totalorder %s176, %s177
      %p186 = scmp.eq.s32.totalorder %s35, 0
      %p187 = por %p185, %p186
      %p188 = scmp.ne.s32.totalorder %s176, %s177
      %p189 = scmp.eq.s32.totalorder %s36, 3
      %p190 = por %p188, %p189
      %p192 = scmp.ne.s32.totalorder %s177, %s191
      %p193 = scmp.eq.s32.totalorder %s36, 0
      %p194 = por %p192, %p193
      %s196 = sadd.s32 %s195, 1
      %p199 = scmp.eq.s32.totalorder %s30, 3
      %p200 = scmp.ne.s32.totalorder %s195, %s197
      %p201 = scmp.eq.s32.totalorder %s30, 0
      %p202 = por %p200, %p201
      %p203 = scmp.ne.s32.totalorder %s195, %s197
      %p204 = scmp.eq.s32.totalorder %s35, 3
      %p205 = por %p203, %p204
      %p206 = scmp.ne.s32.totalorder %s197, %s198
      %p207 = scmp.eq.s32.totalorder %s35, 0
      %p208 = por %p206, %p207
      %p209 = scmp.ne.s32.totalorder %s197, %s198
      %p210 = scmp.eq.s32.totalorder %s36, 3
      %p211 = por %p209, %p210
      %p213 = scmp.ne.s32.totalorder %s198, %s212
      %p214 = scmp.eq.s32.totalorder %s36, 0
      %p215 = por %p213, %p214
      %s217 = sadd.s32 %s216, 1
      %p220 = scmp.eq.s32.totalorder %s30, 3
      %p221 = scmp.ne.s32.totalorder %s216, %s218
      %p222 = scmp.eq.s32.totalorder %s30, 0
      %p223 = por %p221, %p222
      %p224 = scmp.ne.s32.totalorder %s216, %s218
      %p225 = scmp.eq.s32.totalorder %s35, 3
      %p226 = por %p224, %p225
      %p227 = scmp.ne.s32.totalorder %s218, %s219
      %p228 = scmp.eq.s32.totalorder %s35, 0
      %p229 = por %p227, %p228
      %p230 = scmp.ne.s32.totalorder %s218, %s219
      %p231 = scmp.eq.s32.totalorder %s36, 3
      %p232 = por %p230, %p231
      %p234 = scmp.ne.s32.totalorder %s219, %s233
      %p235 = scmp.eq.s32.totalorder %s36, 0
      %p236 = por %p234, %p235
      %s238 = sadd.s32 %s237, 1
      %p241 = scmp.eq.s32.totalorder %s30, 3
      %p242 = scmp.ne.s32.totalorder %s237, %s239
      %p243 = scmp.eq.s32.totalorder %s30, 0
      %p244 = por %p242, %p243
      %p245 = scmp.ne.s32.totalorder %s237, %s239
      %p246 = scmp.eq.s32.totalorder %s35, 3
      %p247 = por %p245, %p246
      %p248 = scmp.ne.s32.totalorder %s239, %s240
      %p249 = scmp.eq.s32.totalorder %s35, 0
      %p250 = por %p248, %p249
      %p251 = scmp.ne.s32.totalorder %s239, %s240
      %p252 = scmp.eq.s32.totalorder %s36, 3
      %p253 = por %p251, %p252
      %p255 = scmp.ne.s32.totalorder %s240, %s254
      %p256 = scmp.eq.s32.totalorder %s36, 0
      %p257 = por %p255, %p256
      %s259 = sadd.s32 %s258, 1
      %p262 = scmp.eq.s32.totalorder %s30, 3
      %p263 = scmp.ne.s32.totalorder %s258, %s260
      %p264 = scmp.eq.s32.totalorder %s30, 0
      %p265 = por %p263, %p264
      %p266 = scmp.ne.s32.totalorder %s258, %s260
      %p267 = scmp.eq.s32.totalorder %s35, 3
      %p268 = por %p266, %p267
      %p269 = scmp.ne.s32.totalorder %s260, %s261
      %p270 = scmp.eq.s32.totalorder %s35, 0
      %p271 = por %p269, %p270
      %p272 = scmp.ne.s32.totalorder %s260, %s261
      %p273 = scmp.eq.s32.totalorder %s36, 3
      %p274 = por %p272, %p273
      %p276 = scmp.ne.s32.totalorder %s261, %s275
      %p277 = scmp.eq.s32.totalorder %s36, 0
      %p278 = por %p276, %p277
      %s280 = sadd.s32 %s279, 1
      %p283 = scmp.eq.s32.totalorder %s30, 3
      %p284 = scmp.ne.s32.totalorder %s279, %s281
      %p285 = scmp.eq.s32.totalorder %s30, 0
      %p286 = por %p284, %p285
      %p287 = scmp.ne.s32.totalorder %s279, %s281
      %p288 = scmp.eq.s32.totalorder %s35, 3
      %p289 = por %p287, %p288
      %p290 = scmp.ne.s32.totalorder %s281, %s282
      %p291 = scmp.eq.s32.totalorder %s35, 0
      %p292 = por %p290, %p291
      %p293 = scmp.ne.s32.totalorder %s281, %s282
      %p294 = scmp.eq.s32.totalorder %s36, 3
      %p295 = por %p293, %p294
      %p297 = scmp.ne.s32.totalorder %s282, %s296
      %p298 = scmp.eq.s32.totalorder %s36, 0
      %p299 = por %p297, %p298
      %s300 = ssub.s32 %s30, %s37
      %p301 = scmp.eq.s32.totalorder %s300, 0
      %s303 = sadd.s32 %s302, 1
      %s304 = scalar_select %p301, %s302, %s303
      %p307 = pneg %p301
      %p308 = scmp.eq.s32.totalorder %s30, 3
      %p309 = por %p307, %p308
      %p310 = scmp.ne.s32.totalorder %s302, %s305
      %p311 = scmp.eq.s32.totalorder %s30, 0
      %p312 = por %p310, %p311
      %p313 = scmp.ne.s32.totalorder %s302, %s305
      %p314 = scmp.eq.s32.totalorder %s35, 3
      %p315 = por %p313, %p314
      %p316 = scmp.ne.s32.totalorder %s305, %s306
      %p317 = scmp.eq.s32.totalorder %s35, 0
      %p318 = por %p316, %p317
      %p319 = scmp.ne.s32.totalorder %s305, %s306
      %p320 = scmp.eq.s32.totalorder %s36, 3
      %p321 = por %p319, %p320
      %p323 = scmp.ne.s32.totalorder %s306, %s322
      %p324 = scmp.eq.s32.totalorder %s36, 0
      %p325 = por %p323, %p324
      %p326 = scmp.le.s32.totalorder 1, %s30
      %p327 = scmp.lt.s32.totalorder %s30, 5
      %p328 = pnand %p326, %p327
      %p329 = pneg %p328
      // Predicated region
      $region9: #{tpu_custom_call.1} parent=5 // pred_check
        _
      $region10: #{tpu_custom_call.1} parent=5 // pred_check_branch
        %331 = sbr.rel (%p328) target = $region12
      $region11: #{tpu_custom_call.1} parent=5 // pred_region
        %s332 = ssub.s32 %s30, 1
        // Predicated region
        $region13: #{tpu_custom_call.1} parent=11 // pred_check
          %p333 = pneg %p103
        $region14: #{tpu_custom_call.1} parent=11 // pred_check_branch
          %335 = sbr.rel (%p333) target = $region16
        $region15: #{tpu_custom_call.1} parent=11 // pred_region
          %s337 = ssub.s32 384, 384
          %338 = vsyncadd [#allocation6], %s337
          %s339 = sshll.u32 [#allocation7], 4
          %s340 = int_to_ptr.vmem [resolvable:$true] %s339
          %345 = dma.hbm_to_vmem [thread:$0]  %s2, 384, %s340, [#allocation6], 128, 128, 8
        $region16: #{tpu_custom_call.1} parent=11 // pred_fallthru
          _
        // Predicated region
        $region17: #{tpu_custom_call.1} parent=11 // pred_check
          %p346 = pneg %p124
        $region18: #{tpu_custom_call.1} parent=11 // pred_check_branch
          %348 = sbr.rel (%p346) target = $region20
        $region19: #{tpu_custom_call.1} parent=11 // pred_region
          _
        $region20: #{tpu_custom_call.1} parent=11 // pred_fallthru
          _
        // Predicated region
        $region21: #{tpu_custom_call.1} parent=11 // pred_check
          %p349 = pneg %p145
        $region22: #{tpu_custom_call.1} parent=11 // pred_check_branch
          %351 = sbr.rel (%p349) target = $region24
        $region23: #{tpu_custom_call.1} parent=11 // pred_region
          %s353 = ssub.s32 2048, 2048
          %354 = vsyncadd [#allocation9], %s353
          %s355 = sshll.u32 [#allocation8], 4
          %s356 = int_to_ptr.vmem [resolvable:$true] %s355
          %361 = dma.hbm_to_vmem [thread:$0]  %s4, 2048, %s356, [#allocation9], 128, 128, 8
        $region24: #{tpu_custom_call.1} parent=11 // pred_fallthru
          _
        // Predicated region
        $region25: #{tpu_custom_call.1} parent=11 // pred_check
          %p362 = pneg %p166
        $region26: #{tpu_custom_call.1} parent=11 // pred_check_branch
          %364 = sbr.rel (%p362) target = $region28
        $region27: #{tpu_custom_call.1} parent=11 // pred_region
          _
        $region28: #{tpu_custom_call.1} parent=11 // pred_fallthru
          _
        // Predicated region
        $region29: #{tpu_custom_call.1} parent=11 // pred_check
          %p365 = pneg %p187
        $region30: #{tpu_custom_call.1} parent=11 // pred_check_branch
          %367 = sbr.rel (%p365) target = $region32
        $region31: #{tpu_custom_call.1} parent=11 // pred_region
          %s369 = ssub.s32 32, 32
          %370 = vsyncadd [#allocation9], %s369
          %s371 = sshll.u32 [#allocation10], 4
          %s372 = int_to_ptr.vmem [resolvable:$true] %s371
          %377 = dma.hbm_to_vmem [thread:$0]  %s6, 32, %s372, [#allocation9], 16, 16, 1
        $region32: #{tpu_custom_call.1} parent=11 // pred_fallthru
          _
        // Predicated region
        $region33: #{tpu_custom_call.1} parent=11 // pred_check
          %p378 = pneg %p208
        $region34: #{tpu_custom_call.1} parent=11 // pred_check_branch
          %380 = sbr.rel (%p378) target = $region36
        $region35: #{tpu_custom_call.1} parent=11 // pred_region
          %s382 = ssub.s32 32, 32
          %383 = vsyncadd [#allocation12], %s382
          %s384 = sshll.u32 [#allocation11], 4
          %s385 = int_to_ptr.vmem [resolvable:$true] %s384
          %390 = dma.hbm_to_vmem [thread:$0]  %s7, 32, %s385, [#allocation12], 16, 16, 1
        $region36: #{tpu_custom_call.1} parent=11 // pred_fallthru
          _
        // Predicated region
        $region37: #{tpu_custom_call.1} parent=11 // pred_check
          %p391 = pneg %p229
        $region38: #{tpu_custom_call.1} parent=11 // pred_check_branch
          %393 = sbr.rel (%p391) target = $region40
        $region39: #{tpu_custom_call.1} parent=11 // pred_region
          %s395 = ssub.s32 1536, 1536
          %396 = vsyncadd [#allocation12], %s395
          %s397 = sshll.u32 [#allocation13], 4
          %s398 = int_to_ptr.vmem [resolvable:$true] %s397
          %403 = dma.hbm_to_vmem [thread:$0]  %s8, 1536, %s398, [#allocation12], 128, 128, 8
        $region40: #{tpu_custom_call.1} parent=11 // pred_fallthru
          _
        // Predicated region
        $region41: #{tpu_custom_call.1} parent=11 // pred_check
          %p404 = pneg %p250
        $region42: #{tpu_custom_call.1} parent=11 // pred_check_branch
          %406 = sbr.rel (%p404) target = $region44
        $region43: #{tpu_custom_call.1} parent=11 // pred_region
          %s408 = ssub.s32 16, 16
          %409 = vsyncadd [#allocation15], %s408
          %s411 = sshll.u32 [#allocation14], 4
          %s412 = int_to_ptr.vmem [resolvable:$true] %s411
          %414 = dma.hbm_to_vmem [thread:$0]  %s9, 16, %s412, [#allocation15]
        $region44: #{tpu_custom_call.1} parent=11 // pred_fallthru
          _
        // Predicated region
        $region45: #{tpu_custom_call.1} parent=11 // pred_check
          %p415 = pneg %p271
        $region46: #{tpu_custom_call.1} parent=11 // pred_check_branch
          %417 = sbr.rel (%p415) target = $region48
        $region47: #{tpu_custom_call.1} parent=11 // pred_region
          _
        $region48: #{tpu_custom_call.1} parent=11 // pred_fallthru
          _
        // Predicated region
        $region49: #{tpu_custom_call.1} parent=11 // pred_check
          %p418 = pneg %p292
        $region50: #{tpu_custom_call.1} parent=11 // pred_check_branch
          %420 = sbr.rel (%p418) target = $region52
        $region51: #{tpu_custom_call.1} parent=11 // pred_region
          _
        $region52: #{tpu_custom_call.1} parent=11 // pred_fallthru
          _
      $region12: #{tpu_custom_call.1} parent=5 // pred_fallthru
        _
      %p421 = scmp.lt.s32.totalorder %s30, 4
      // Predicated region
      $region53: #{tpu_custom_call.1} parent=5 // pred_check
        %p422 = pneg %p421
      $region54: #{tpu_custom_call.1} parent=5 // pred_check_branch
        %424 = sbr.rel (%p422) target = $region56
      $region55: #{tpu_custom_call.1} parent=5 // pred_region
        // Predicated region
        $region57: #{tpu_custom_call.1} parent=55 // pred_check
          %p425 = pneg %p50
        $region58: #{tpu_custom_call.1} parent=55 // pred_check_branch
          %427 = sbr.rel (%p425) target = $region60
        $region59: #{tpu_custom_call.1} parent=55 // pred_region
          %s428 = sand.u32 %s40, 1
          %s429 = scalar_lea.sflag [#allocation3], %s428
          %s430 = sand.u32 %s40, 1
          %s431 = smul.addr %s430, 16
          %s432 = scalar_lea.vmem [#allocation2], %s431
          %s434 = ssub.s32 256, 256
          %435 = vsyncadd %s429, %s434
          %s436 = smul.addr %s30, 2
          %s437 = smul.addr %s436, 128
          %s438 = scalar_lea.hbm %s0, %s437
          %s439 = sshll.u32 %s432, 4
          %s440 = int_to_ptr.vmem [resolvable:$true] %s439
          %445 = dma.hbm_to_vmem [thread:$0]  %s438, 256, %s440, %s429, 128, 128, 8
        $region60: #{tpu_custom_call.1} parent=55 // pred_fallthru
          _
        // Predicated region
        $region61: #{tpu_custom_call.1} parent=55 // pred_check
          %p446 = pneg %p76
        $region62: #{tpu_custom_call.1} parent=55 // pred_check_branch
          %448 = sbr.rel (%p446) target = $region64
        $region63: #{tpu_custom_call.1} parent=55 // pred_region
          %s449 = sand.u32 %s30, 1
          %s450 = scalar_lea.sflag [#allocation6], %s449
          %s451 = sand.u32 %s66, 1
          %s452 = smul.addr %s451, 32
          %s453 = scalar_lea.vmem [#allocation5], %s452
          %s455 = ssub.s32 512, 512
          %456 = vsyncadd %s450, %s455
          %s457 = smul.addr %s30, 4
          %s458 = smul.addr %s457, 128
          %s459 = scalar_lea.hbm %s1, %s458
          %s460 = sshll.u32 %s453, 4
          %s461 = int_to_ptr.vmem [resolvable:$true] %s460
          %466 = dma.hbm_to_vmem [thread:$0]  %s459, 512, %s461, %s450, 128, 128, 8
        $region64: #{tpu_custom_call.1} parent=55 // pred_fallthru
          _
      $region56: #{tpu_custom_call.1} parent=5 // pred_fallthru
        _
      %p467 = scmp.le.s32.totalorder 1, %s30
      %p468 = scmp.lt.s32.totalorder %s30, 5
      %p469 = pnand %p467, %p468
      %p470 = pneg %p469
      // Predicated region
      $region65: #{tpu_custom_call.1} parent=5 // pred_check
        _
      $region66: #{tpu_custom_call.1} parent=5 // pred_check_branch
        %472 = sbr.rel (%p469) target = $region68
      $region67: #{tpu_custom_call.1} parent=5 // pred_region
        %s473 = ssub.s32 %s30, 1
        %s474 = sand.u32 %s43, 1
        %s475 = scalar_lea.sflag [#allocation3], %s474
        %s476 = sand.u32 %s43, 1
        %s477 = smul.addr %s476, 16
        %s478 = scalar_lea.vmem [#allocation2], %s477
        // Predicated region
        $region69: #{tpu_custom_call.1} parent=67 // pred_check
          %p479 = pneg %p56
        $region70: #{tpu_custom_call.1} parent=67 // pred_check_branch
          %481 = sbr.rel (%p479) target = $region72
        $region71: #{tpu_custom_call.1} parent=67 // pred_region
          %482 = dma.done %s475, 256
        $region72: #{tpu_custom_call.1} parent=67 // pred_fallthru
          _
        %s483 = sand.u32 %s35, 1
        %s484 = scalar_lea.sflag [#allocation6], %s483
        %s485 = sand.u32 %s69, 1
        %s486 = smul.addr %s485, 32
        %s487 = scalar_lea.vmem [#allocation5], %s486
        // Predicated region
        $region73: #{tpu_custom_call.1} parent=67 // pred_check
          %p488 = pneg %p82
        $region74: #{tpu_custom_call.1} parent=67 // pred_check_branch
          %490 = sbr.rel (%p488) target = $region76
        $region75: #{tpu_custom_call.1} parent=67 // pred_region
          %491 = dma.done %s484, 512
        $region76: #{tpu_custom_call.1} parent=67 // pred_fallthru
          _
        // Predicated region
        $region77: #{tpu_custom_call.1} parent=67 // pred_check
          %p492 = pneg %p103
        $region78: #{tpu_custom_call.1} parent=67 // pred_check_branch
          %494 = sbr.rel (%p492) target = $region80
        $region79: #{tpu_custom_call.1} parent=67 // pred_region
          %495 = dma.done [#allocation6], 384
        $region80: #{tpu_custom_call.1} parent=67 // pred_fallthru
          _
        // Predicated region
        $region81: #{tpu_custom_call.1} parent=67 // pred_check
          %p496 = pneg %p145
        $region82: #{tpu_custom_call.1} parent=67 // pred_check_branch
          %498 = sbr.rel (%p496) target = $region84
        $region83: #{tpu_custom_call.1} parent=67 // pred_region
          %499 = dma.done [#allocation9], 2048
        $region84: #{tpu_custom_call.1} parent=67 // pred_fallthru
          _
        // Predicated region
        $region85: #{tpu_custom_call.1} parent=67 // pred_check
          %p500 = pneg %p187
        $region86: #{tpu_custom_call.1} parent=67 // pred_check_branch
          %502 = sbr.rel (%p500) target = $region88
        $region87: #{tpu_custom_call.1} parent=67 // pred_region
          %503 = dma.done [#allocation9], 32
        $region88: #{tpu_custom_call.1} parent=67 // pred_fallthru
          _
        // Predicated region
        $region89: #{tpu_custom_call.1} parent=67 // pred_check
          %p504 = pneg %p208
        $region90: #{tpu_custom_call.1} parent=67 // pred_check_branch
          %506 = sbr.rel (%p504) target = $region92
        $region91: #{tpu_custom_call.1} parent=67 // pred_region
          %507 = dma.done [#allocation12], 32
        $region92: #{tpu_custom_call.1} parent=67 // pred_fallthru
          _
        // Predicated region
        $region93: #{tpu_custom_call.1} parent=67 // pred_check
          %p508 = pneg %p229
        $region94: #{tpu_custom_call.1} parent=67 // pred_check_branch
          %510 = sbr.rel (%p508) target = $region96
        $region95: #{tpu_custom_call.1} parent=67 // pred_region
          %511 = dma.done [#allocation12], 1536
        $region96: #{tpu_custom_call.1} parent=67 // pred_fallthru
          _
        // Predicated region
        $region97: #{tpu_custom_call.1} parent=67 // pred_check
          %p512 = pneg %p250
        $region98: #{tpu_custom_call.1} parent=67 // pred_check_branch
          %514 = sbr.rel (%p512) target = $region100
        $region99: #{tpu_custom_call.1} parent=67 // pred_region
          %515 = dma.done [#allocation15], 16
        $region100: #{tpu_custom_call.1} parent=67 // pred_fallthru
          _
        %s516 = sand.u32 %s43, 1
        %s517 = scalar_lea.sflag [#allocation3], %s516
        %s518 = sand.u32 %s43, 1
        %s519 = smul.addr %s518, 16
        %s520 = scalar_lea.vmem [#allocation2], %s519
        %p521 = pneg %p56
        %p522 = pneg %p53
        %s523 = sand.u32 %s35, 1
        %s524 = scalar_lea.sflag [#allocation6], %s523
        %s525 = sand.u32 %s69, 1
        %s526 = smul.addr %s525, 32
        %s527 = scalar_lea.vmem [#allocation5], %s526
        %p528 = pneg %p82
        %p529 = pneg %p79
        %p530 = pneg %p103
        %p531 = pneg %p100
        %p532 = pneg %p124
        %p533 = pneg %p121
        %p534 = pneg %p145
        %p535 = pneg %p142
        %p536 = pneg %p166
        %p537 = pneg %p163
        %p538 = pneg %p187
        %p539 = pneg %p184
        %p540 = pneg %p208
        %p541 = pneg %p205
        %p542 = pneg %p229
        %p543 = pneg %p226
        %p544 = pneg %p250
        %p545 = pneg %p247
        %p546 = pneg %p271
        %p547 = pneg %p268
        %p548 = pneg %p292
        %p549 = pneg %p289
        %p550 = pneg %p318
        %p551 = pneg %p315
        %s552 = sand.u32 %s305, 1
        %s553 = scalar_lea.sflag [#allocation4], %s552
        %s554 = sand.u32 %s305, 1
        %s555 = smul.addr %s554, 16
        %s556 = scalar_lea.vmem [#allocation16], %s555
        %v557 = vld [vmem:[%s478] sm:$0xff]
        %v558 = vld [vmem:[%s478 + $0x8] sm:$0xff]
        %v559 = vld [vmem:[%s487] sm:$0xff]
        %v560 = vld [vmem:[%s487 + $0x8] sm:$0xff]
        %v561 = vld [vmem:[%s487 + $0x10] sm:$0xff]
        %v562 = vld [vmem:[%s487 + $0x18] sm:$0xff]
        %v563 = vld [vmem:[#allocation7] sm:$0xff]
        %v564 = vld [vmem:[#allocation7 + $0x8] sm:$0xff]
        %v565 = vld [vmem:[#allocation7 + $0x10] sm:$0xff]
        %v566 = vld [vmem:[%s3] sm:$0x1]
        %v567 = vld [vmem:[#allocation8] sm:$0xff]
        %v568 = vld [vmem:[#allocation8 + $0x8] sm:$0xff]
        %v569 = vld [vmem:[#allocation8 + $0x10] sm:$0xff]
        %v570 = vld [vmem:[#allocation8 + $0x18] sm:$0xff]
        %v571 = vld [vmem:[#allocation8 + $0x20] sm:$0xff]
        %v572 = vld [vmem:[#allocation8 + $0x28] sm:$0xff]
        %v573 = vld [vmem:[#allocation8 + $0x30] sm:$0xff]
        %v574 = vld [vmem:[#allocation8 + $0x38] sm:$0xff]
        %v575 = vld [vmem:[#allocation8 + $0x40] sm:$0xff]
        %v576 = vld [vmem:[#allocation8 + $0x48] sm:$0xff]
        %v577 = vld [vmem:[#allocation8 + $0x50] sm:$0xff]
        %v578 = vld [vmem:[#allocation8 + $0x58] sm:$0xff]
        %v579 = vld [vmem:[#allocation8 + $0x60] sm:$0xff]
        %v580 = vld [vmem:[#allocation8 + $0x68] sm:$0xff]
        %v581 = vld [vmem:[#allocation8 + $0x70] sm:$0xff]
        %v582 = vld [vmem:[#allocation8 + $0x78] sm:$0xff]
        %v583 = vld [vmem:[%s5] sm:$0x1]
        %v584 = vld [vmem:[%s5 + $0x1] sm:$0x1]
        %v585 = vld [vmem:[%s5 + $0x2] sm:$0x1]
        %v586 = vld [vmem:[%s5 + $0x3] sm:$0x1]
        %v587 = vld [vmem:[#allocation10] sm:$0x1]
        %v588 = vld [vmem:[#allocation10 + $0x1] sm:$0x1]
        %v589 = vld [vmem:[#allocation11] sm:$0x1]
        %v590 = vld [vmem:[#allocation11 + $0x1] sm:$0x1]
        %v591 = vld [vmem:[#allocation13] sm:$0xff]
        %v592 = vld [vmem:[#allocation13 + $0x8] sm:$0xff]
        %v593 = vld [vmem:[#allocation13 + $0x10] sm:$0xff]
        %v594 = vld [vmem:[#allocation13 + $0x18] sm:$0xff]
        %v595 = vld [vmem:[#allocation13 + $0x20] sm:$0xff]
        %v596 = vld [vmem:[#allocation13 + $0x28] sm:$0xff]
        %v597 = vld [vmem:[#allocation13 + $0x30] sm:$0xff]
        %v598 = vld [vmem:[#allocation13 + $0x38] sm:$0xff]
        %v599 = vld [vmem:[#allocation13 + $0x40] sm:$0xff]
        %v600 = vld [vmem:[#allocation13 + $0x48] sm:$0xff]
        %v601 = vld [vmem:[#allocation13 + $0x50] sm:$0xff]
        %v602 = vld [vmem:[#allocation13 + $0x58] sm:$0xff]
        %v603 = vld [vmem:[#allocation14] sm:$0x1]
        %v604 = vld [vmem:[%s10] sm:$0xff]
        %v605 = vld [vmem:[%s10 + $0x8] sm:$0xff]
        %v606 = vld [vmem:[%s10 + $0x10] sm:$0xff]
        %v607 = vld [vmem:[%s10 + $0x18] sm:$0xff]
        %v608 = vld [vmem:[%s11] sm:$0x1]
        %v610 = vlaneseq
        %v611 = vshrl.u32 %v610, 7
        %v612 = vsub.s32 0, %v611
        %v613 = vrot.slane %v566, %v612
        %vm615 = vcmask 195584
        %v617 = vsel %vm615, %v557, 0
        %v620 = vsel %vm615, %v558, 0
        %622 = vmatprep.subr.mxu0 0.0
        %623 = vmatpush1.msra.mxu0 %v563
        %624 = vmatprep.subr.mxu0 0.0
        %625 = vmatpush1.msra.mxu0 %v564
        %626 = vmatprep.subr.mxu0 0.0
        %627 = vmatpush1.msra.mxu0 %v565
        %628 = vmatprep.subr.mxu0 0.0
        %629 = vmatpush1.msra.mxu0 0.0
        %630 = vmatprep.subr.mxu0 0.0
        %631 = vmatpush1.msra.mxu0 0.0
        %632 = vmatprep.subr.mxu0 0.0
        %633 = vmatpush1.msra.mxu0 0.0
        %634 = vmatprep.subr.mxu0 0.0
        %635 = vmatpush1.msra.mxu0 0.0
        %636 = vmatprep.subr.mxu0 0.0
        %637 = vmatpush1.msra.mxu0 0.0
        %638 = vmatprep.subr.mxu0 0.0
        %639 = vmatpush1.msra.mxu0 0.0
        %640 = vmatprep.subr.mxu0 0.0
        %641 = vmatpush1.msra.mxu0 0.0
        %642 = vmatprep.subr.mxu0 0.0
        %643 = vmatpush1.msra.mxu0 0.0
        %644 = vmatprep.subr.mxu0 0.0
        %645 = vmatpush1.msra.mxu0 0.0
        %646 = vmatprep.subr.mxu0 0.0
        %647 = vmatpush1.msra.mxu0 0.0
        %648 = vmatprep.subr.mxu0 0.0
        %649 = vmatpush1.msra.mxu0 0.0
        %650 = vmatprep.subr.mxu0 0.0
        %651 = vmatpush1.msra.mxu0 0.0
        %652 = vmatprep.subr.mxu0 0.0
        %653 = vmatpush1.msra.mxu0 0.0
        %654 = vmatprep.subr.mxu0 0.0
        %655 = vmatpush1.msra.mxu0 0.0
        %656 = vmatprep.subr.mxu0 0.0
        %657 = vmatpush1.msra.mxu0 0.0
        %658 = vmatprep.subr.mxu0 0.0
        %659 = vmatpush1.msra.mxu0 0.0
        %660 = vmatprep.subr.mxu0 0.0
        %661 = vmatpush1.msra.mxu0 0.0
        %662 = vmatprep.subr.mxu0 0.0
        %663 = vmatpush1.msra.mxu0 0.0
        %664 = vmatprep.subr.mxu0 0.0
        %665 = vmatpush1.msra.mxu0 0.0
        %666 = vmatprep.subr.mxu0 0.0
        %667 = vmatpush1.msra.mxu0 0.0
        %668 = vmatprep.subr.mxu0 0.0
        %669 = vmatpush1.msra.mxu0 0.0
        %670 = vmatprep.subr.mxu0 0.0
        %671 = vmatpush1.msra.mxu0 0.0
        %672 = vmatprep.subr.mxu0 0.0
        %673 = vmatpush1.msra.mxu0 0.0
        %674 = vmatprep.subr.mxu0 0.0
        %675 = vmatpush1.msra.mxu0 0.0
        %676 = vmatprep.subr.mxu0 0.0
        %677 = vmatpush1.msra.mxu0 0.0
        %678 = vmatprep.subr.mxu0 0.0
        %679 = vmatpush1.msra.mxu0 0.0
        %680 = vmatprep.subr.mxu0 0.0
        %681 = vmatpush1.msra.mxu0 0.0
        %682 = vmatprep.subr.mxu0 0.0
        %683 = vmatpush1.msra.mxu0 0.0
        %684 = vmatprep.subr.mxu0 0.0
        %685 = vmatpush1.msra.mxu0 0.0
        %686 = vmatprep.mubr.f32.mxu0 0.0
        %687 = vmatmul.mubr.f32.gmra.mrb[0].mxu0 %v617
        %v688 = vpop.f32.mrb[0].mxu0
        %v689 = vadd.f32 %v613, %v688
        %v690 = vpop.f32.mrb[0].mxu0
        %691 = vmatprep.mubr.f32.mxu0 0.0
        %692 = vmatmul.mubr.f32.gmra.mrb[0].mxu0 %v620
        %v693 = vpop.f32.mrb[0].mxu0
        %v694 = vadd.f32 %v613, %v693
        %v695 = vpop.f32.mrb[0].mxu0
        %696 = vdwg.mxu0
        %v698 = vlaneseq
        %v699 = vshrl.u32 %v698, 7
        %v700 = vsub.s32 0, %v699
        %v701 = vrot.slane %v583, %v700
        %vm703 = vcmask 261120
        %v705 = vsel %vm703, %v689, 0
        %v708 = vsel %vm703, %v694, 0
        %710 = vmatprep.subr.mxu0 0.0
        %711 = vmatpush1.msra.mxu0 %v567
        %712 = vmatprep.subr.mxu0 0.0
        %713 = vmatpush1.msra.mxu0 %v568
        %714 = vmatprep.subr.mxu0 0.0
        %715 = vmatpush1.msra.mxu0 %v569
        %716 = vmatprep.subr.mxu0 0.0
        %717 = vmatpush1.msra.mxu0 %v570
        %718 = vmatprep.subr.mxu0 0.0
        %719 = vmatpush1.msra.mxu0 0.0
        %720 = vmatprep.subr.mxu0 0.0
        %721 = vmatpush1.msra.mxu0 0.0
        %722 = vmatprep.subr.mxu0 0.0
        %723 = vmatpush1.msra.mxu0 0.0
        %724 = vmatprep.subr.mxu0 0.0
        %725 = vmatpush1.msra.mxu0 0.0
        %726 = vmatprep.subr.mxu0 0.0
        %727 = vmatpush1.msra.mxu0 0.0
        %728 = vmatprep.subr.mxu0 0.0
        %729 = vmatpush1.msra.mxu0 0.0
        %730 = vmatprep.subr.mxu0 0.0
        %731 = vmatpush1.msra.mxu0 0.0
        %732 = vmatprep.subr.mxu0 0.0
        %733 = vmatpush1.msra.mxu0 0.0
        %734 = vmatprep.subr.mxu0 0.0
        %735 = vmatpush1.msra.mxu0 0.0
        %736 = vmatprep.subr.mxu0 0.0
        %737 = vmatpush1.msra.mxu0 0.0
        %738 = vmatprep.subr.mxu0 0.0
        %739 = vmatpush1.msra.mxu0 0.0
        %740 = vmatprep.subr.mxu0 0.0
        %741 = vmatpush1.msra.mxu0 0.0
        %742 = vmatprep.subr.mxu0 0.0
        %743 = vmatpush1.msra.mxu0 0.0
        %744 = vmatprep.subr.mxu0 0.0
        %745 = vmatpush1.msra.mxu0 0.0
        %746 = vmatprep.subr.mxu0 0.0
        %747 = vmatpush1.msra.mxu0 0.0
        %748 = vmatprep.subr.mxu0 0.0
        %749 = vmatpush1.msra.mxu0 0.0
        %750 = vmatprep.subr.mxu0 0.0
        %751 = vmatpush1.msra.mxu0 0.0
        %752 = vmatprep.subr.mxu0 0.0
        %753 = vmatpush1.msra.mxu0 0.0
        %754 = vmatprep.subr.mxu0 0.0
        %755 = vmatpush1.msra.mxu0 0.0
        %756 = vmatprep.subr.mxu0 0.0
        %757 = vmatpush1.msra.mxu0 0.0
        %758 = vmatprep.subr.mxu0 0.0
        %759 = vmatpush1.msra.mxu0 0.0
        %760 = vmatprep.subr.mxu0 0.0
        %761 = vmatpush1.msra.mxu0 0.0
        %762 = vmatprep.subr.mxu0 0.0
        %763 = vmatpush1.msra.mxu0 0.0
        %764 = vmatprep.subr.mxu0 0.0
        %765 = vmatpush1.msra.mxu0 0.0
        %766 = vmatprep.subr.mxu0 0.0
        %767 = vmatpush1.msra.mxu0 0.0
        %768 = vmatprep.subr.mxu0 0.0
        %769 = vmatpush1.msra.mxu0 0.0
        %770 = vmatprep.subr.mxu0 0.0
        %771 = vmatpush1.msra.mxu0 0.0
        %772 = vmatprep.subr.mxu0 0.0
        %773 = vmatpush1.msra.mxu0 0.0
        %774 = vmatprep.mubr.f32.mxu0 0.0
        %775 = vmatmul.mubr.f32.gmra.mrb[0].mxu0 %v705
        %v776 = vpop.f32.mrb[0].mxu0
        %v777 = vadd.f32 %v701, %v776
        %v778 = vpop.f32.mrb[0].mxu0
        %779 = vmatprep.mubr.f32.mxu0 0.0
        %780 = vmatmul.mubr.f32.gmra.mrb[0].mxu0 %v708
        %v781 = vpop.f32.mrb[0].mxu0
        %v782 = vadd.f32 %v701, %v781
        %v783 = vpop.f32.mrb[0].mxu0
        %784 = vdwg.mxu0
        %787 = vrot.lane.b32.xlu0 %v777, 120
        %v788 = vpop.permute.xlu0 %787
        %789 = vrot.lane.b32.xlu0 %v782, 120
        %v790 = vpop.permute.xlu0 %789
        %793 = vrot.lane.b32.xlu0 %v777, 112
        %v794 = vpop.permute.xlu0 %793
        %795 = vrot.lane.b32.xlu0 %v782, 112
        %v796 = vpop.permute.xlu0 %795
        %799 = vrot.lane.b32.xlu0 %v777, 104
        %v800 = vpop.permute.xlu0 %799
        %801 = vrot.lane.b32.xlu0 %v782, 104
        %v802 = vpop.permute.xlu0 %801
        %v805 = vcombine.low %v777, %v794
        %v806 = vcombine.high %v777, %v794
        %v808 = vunpack.c.l.s4 1983009808
        %v809 = vunpack.c.0.s8 %v808
        %v810 = vlaneseq
        %v811 = vshrl.u32 %v810, 7
        %v812 = vsub.s32 %v809, %v811
        %v813 = vrot.slane %v805, %v812
        %v815 = vunpack.c.l.s4 1983009808
        %v816 = vunpack.c.0.s8 %v815
        %v817 = vlaneseq
        %v818 = vshrl.u32 %v817, 7
        %v819 = vsub.s32 %v816, %v818
        %v820 = vrot.slane %v806, %v819
        %v821 = vcombine.low %v788, %v800
        %v822 = vcombine.high %v788, %v800
        %v824 = vunpack.c.l.s4 1983009808
        %v825 = vunpack.c.0.s8 %v824
        %v826 = vlaneseq
        %v827 = vshrl.u32 %v826, 7
        %v828 = vsub.s32 %v825, %v827
        %v829 = vrot.slane %v821, %v828
        %v831 = vunpack.c.l.s4 1983009808
        %v832 = vunpack.c.0.s8 %v831
        %v833 = vlaneseq
        %v834 = vshrl.u32 %v833, 7
        %v835 = vsub.s32 %v832, %v834
        %v836 = vrot.slane %v822, %v835
        %v837 = vcombine.low %v813, %v829
        %v838 = vcombine.high %v813, %v829
        %v840 = vunpack.c.l.s4 1934713408
        %v841 = vunpack.c.0.s8 %v840
        %v842 = vlaneseq
        %v843 = vshrl.u32 %v842, 7
        %v844 = vsub.s32 %v841, %v843
        %v845 = vrot.slane %v837, %v844
        %v847 = vunpack.c.l.s4 1934713408
        %v848 = vunpack.c.0.s8 %v847
        %v849 = vlaneseq
        %v850 = vshrl.u32 %v849, 7
        %v851 = vsub.s32 %v848, %v850
        %v852 = vrot.slane %v838, %v851
        %v853 = vcombine.low %v820, %v836
        %v854 = vcombine.high %v820, %v836
        %v856 = vunpack.c.l.s4 1934713408
        %v857 = vunpack.c.0.s8 %v856
        %v858 = vlaneseq
        %v859 = vshrl.u32 %v858, 7
        %v860 = vsub.s32 %v857, %v859
        %v861 = vrot.slane %v853, %v860
        %v863 = vunpack.c.l.s4 1934713408
        %v864 = vunpack.c.0.s8 %v863
        %v865 = vlaneseq
        %v866 = vshrl.u32 %v865, 7
        %v867 = vsub.s32 %v864, %v866
        %v868 = vrot.slane %v854, %v867
        %v869 = vcombine.high %v845, 0.0
        %v870 = vcombine.high %v852, 0.0
        %v871 = vcombine.high %v861, 0.0
        %v872 = vcombine.high %v868, 0.0
        %v873 = vcombine.low %v782, %v796
        %v874 = vcombine.high %v782, %v796
        %v876 = vunpack.c.l.s4 1983009808
        %v877 = vunpack.c.0.s8 %v876
        %v878 = vlaneseq
        %v879 = vshrl.u32 %v878, 7
        %v880 = vsub.s32 %v877, %v879
        %v881 = vrot.slane %v873, %v880
        %v883 = vunpack.c.l.s4 1983009808
        %v884 = vunpack.c.0.s8 %v883
        %v885 = vlaneseq
        %v886 = vshrl.u32 %v885, 7
        %v887 = vsub.s32 %v884, %v886
        %v888 = vrot.slane %v874, %v887
        %v889 = vcombine.low %v790, %v802
        %v890 = vcombine.high %v790, %v802
        %v892 = vunpack.c.l.s4 1983009808
        %v893 = vunpack.c.0.s8 %v892
        %v894 = vlaneseq
        %v895 = vshrl.u32 %v894, 7
        %v896 = vsub.s32 %v893, %v895
        %v897 = vrot.slane %v889, %v896
        %v899 = vunpack.c.l.s4 1983009808
        %v900 = vunpack.c.0.s8 %v899
        %v901 = vlaneseq
        %v902 = vshrl.u32 %v901, 7
        %v903 = vsub.s32 %v900, %v902
        %v904 = vrot.slane %v890, %v903
        %v905 = vcombine.low %v881, %v897
        %v906 = vcombine.high %v881, %v897
        %v908 = vunpack.c.l.s4 1934713408
        %v909 = vunpack.c.0.s8 %v908
        %v910 = vlaneseq
        %v911 = vshrl.u32 %v910, 7
        %v912 = vsub.s32 %v909, %v911
        %v913 = vrot.slane %v905, %v912
        %v915 = vunpack.c.l.s4 1934713408
        %v916 = vunpack.c.0.s8 %v915
        %v917 = vlaneseq
        %v918 = vshrl.u32 %v917, 7
        %v919 = vsub.s32 %v916, %v918
        %v920 = vrot.slane %v906, %v919
        %v921 = vcombine.low %v888, %v904
        %v922 = vcombine.high %v888, %v904
        %v924 = vunpack.c.l.s4 1934713408
        %v925 = vunpack.c.0.s8 %v924
        %v926 = vlaneseq
        %v927 = vshrl.u32 %v926, 7
        %v928 = vsub.s32 %v925, %v927
        %v929 = vrot.slane %v921, %v928
        %v931 = vunpack.c.l.s4 1934713408
        %v932 = vunpack.c.0.s8 %v931
        %v933 = vlaneseq
        %v934 = vshrl.u32 %v933, 7
        %v935 = vsub.s32 %v932, %v934
        %v936 = vrot.slane %v922, %v935
        %v937 = vcombine.high %v913, 0.0
        %v938 = vcombine.high %v920, 0.0
        %v939 = vcombine.high %v929, 0.0
        %v940 = vcombine.high %v936, 0.0
        %v941 = vcombine.low %v845, %v852
        %v943 = vunpack.c.l.s4 1983009808
        %v944 = vunpack.c.0.s8 %v943
        %v945 = vlaneseq
        %v946 = vshrl.u32 %v945, 7
        %v947 = vsub.s32 %v944, %v946
        %v948 = vrot.slane %v941, %v947
        %v949 = vcombine.low %v869, %v870
        %v951 = vunpack.c.l.s4 1983009808
        %v952 = vunpack.c.0.s8 %v951
        %v953 = vlaneseq
        %v954 = vshrl.u32 %v953, 7
        %v955 = vsub.s32 %v952, %v954
        %v956 = vrot.slane %v949, %v955
        %v957 = vcombine.low %v861, %v868
        %v959 = vunpack.c.l.s4 1983009808
        %v960 = vunpack.c.0.s8 %v959
        %v961 = vlaneseq
        %v962 = vshrl.u32 %v961, 7
        %v963 = vsub.s32 %v960, %v962
        %v964 = vrot.slane %v957, %v963
        %v965 = vcombine.low %v871, %v872
        %v967 = vunpack.c.l.s4 1983009808
        %v968 = vunpack.c.0.s8 %v967
        %v969 = vlaneseq
        %v970 = vshrl.u32 %v969, 7
        %v971 = vsub.s32 %v968, %v970
        %v972 = vrot.slane %v965, %v971
        %v973 = vcombine.low %v948, %v956
        %v974 = vcombine.high %v948, %v956
        %v976 = vunpack.c.l.s4 1934713408
        %v977 = vunpack.c.0.s8 %v976
        %v978 = vlaneseq
        %v979 = vshrl.u32 %v978, 7
        %v980 = vsub.s32 %v977, %v979
        %v981 = vrot.slane %v973, %v980
        %v983 = vunpack.c.l.s4 1934713408
        %v984 = vunpack.c.0.s8 %v983
        %v985 = vlaneseq
        %v986 = vshrl.u32 %v985, 7
        %v987 = vsub.s32 %v984, %v986
        %v988 = vrot.slane %v974, %v987
        %v989 = vcombine.low %v964, %v972
        %v990 = vcombine.high %v964, %v972
        %v992 = vunpack.c.l.s4 1934713408
        %v993 = vunpack.c.0.s8 %v992
        %v994 = vlaneseq
        %v995 = vshrl.u32 %v994, 7
        %v996 = vsub.s32 %v993, %v995
        %v997 = vrot.slane %v989, %v996
        %v999 = vunpack.c.l.s4 1934713408
        %v1000 = vunpack.c.0.s8 %v999
        %v1001 = vlaneseq
        %v1002 = vshrl.u32 %v1001, 7
        %v1003 = vsub.s32 %v1000, %v1002
        %v1004 = vrot.slane %v990, %v1003
        %v1005 = vcombine.low %v981, %v997
        %v1006 = vcombine.high %v981, %v997
        %v1007 = vcombine.low %v988, %v1004
        %v1008 = vcombine.high %v988, %v1004
        %v1009 = vcombine.low %v913, %v920
        %v1011 = vunpack.c.l.s4 1983009808
        %v1012 = vunpack.c.0.s8 %v1011
        %v1013 = vlaneseq
        %v1014 = vshrl.u32 %v1013, 7
        %v1015 = vsub.s32 %v1012, %v1014
        %v1016 = vrot.slane %v1009, %v1015
        %v1017 = vcombine.low %v937, %v938
        %v1019 = vunpack.c.l.s4 1983009808
        %v1020 = vunpack.c.0.s8 %v1019
        %v1021 = vlaneseq
        %v1022 = vshrl.u32 %v1021, 7
        %v1023 = vsub.s32 %v1020, %v1022
        %v1024 = vrot.slane %v1017, %v1023
        %v1025 = vcombine.low %v929, %v936
        %v1027 = vunpack.c.l.s4 1983009808
        %v1028 = vunpack.c.0.s8 %v1027
        %v1029 = vlaneseq
        %v1030 = vshrl.u32 %v1029, 7
        %v1031 = vsub.s32 %v1028, %v1030
        %v1032 = vrot.slane %v1025, %v1031
        %v1033 = vcombine.low %v939, %v940
        %v1035 = vunpack.c.l.s4 1983009808
        %v1036 = vunpack.c.0.s8 %v1035
        %v1037 = vlaneseq
        %v1038 = vshrl.u32 %v1037, 7
        %v1039 = vsub.s32 %v1036, %v1038
        %v1040 = vrot.slane %v1033, %v1039
        %v1041 = vcombine.low %v1016, %v1024
        %v1042 = vcombine.high %v1016, %v1024
        %v1044 = vunpack.c.l.s4 1934713408
        %v1045 = vunpack.c.0.s8 %v1044
        %v1046 = vlaneseq
        %v1047 = vshrl.u32 %v1046, 7
        %v1048 = vsub.s32 %v1045, %v1047
        %v1049 = vrot.slane %v1041, %v1048
        %v1051 = vunpack.c.l.s4 1934713408
        %v1052 = vunpack.c.0.s8 %v1051
        %v1053 = vlaneseq
        %v1054 = vshrl.u32 %v1053, 7
        %v1055 = vsub.s32 %v1052, %v1054
        %v1056 = vrot.slane %v1042, %v1055
        %v1057 = vcombine.low %v1032, %v1040
        %v1058 = vcombine.high %v1032, %v1040
        %v1060 = vunpack.c.l.s4 1934713408
        %v1061 = vunpack.c.0.s8 %v1060
        %v1062 = vlaneseq
        %v1063 = vshrl.u32 %v1062, 7
        %v1064 = vsub.s32 %v1061, %v1063
        %v1065 = vrot.slane %v1057, %v1064
        %v1067 = vunpack.c.l.s4 1934713408
        %v1068 = vunpack.c.0.s8 %v1067
        %v1069 = vlaneseq
        %v1070 = vshrl.u32 %v1069, 7
        %v1071 = vsub.s32 %v1068, %v1070
        %v1072 = vrot.slane %v1058, %v1071
        %v1073 = vcombine.low %v1049, %v1065
        %v1074 = vcombine.high %v1049, %v1065
        %v1075 = vcombine.low %v1056, %v1072
        %v1076 = vcombine.high %v1056, %v1072
        %1077 = vrot.lane.b32.xlu0 %v777, 96
        %v1078 = vpop.permute.xlu0 %1077
        %1079 = vrot.lane.b32.xlu0 %v782, 96
        %v1080 = vpop.permute.xlu0 %1079
        %1081 = vrot.lane.b32.xlu0 %v788, 96
        %v1082 = vpop.permute.xlu0 %1081
        %1083 = vrot.lane.b32.xlu0 %v790, 96
        %v1084 = vpop.permute.xlu0 %1083
        %1085 = vrot.lane.b32.xlu0 %v794, 96
        %v1086 = vpop.permute.xlu0 %1085
        %1087 = vrot.lane.b32.xlu0 %v796, 96
        %v1088 = vpop.permute.xlu0 %1087
        %1089 = vrot.lane.b32.xlu0 %v800, 96
        %v1090 = vpop.permute.xlu0 %1089
        %1091 = vrot.lane.b32.xlu0 %v802, 96
        %v1092 = vpop.permute.xlu0 %1091
        %v1101 = vcombine.low %v1078, %v1086
        %v1102 = vcombine.high %v1078, %v1086
        %v1104 = vunpack.c.l.s4 1983009808
        %v1105 = vunpack.c.0.s8 %v1104
        %v1106 = vlaneseq
        %v1107 = vshrl.u32 %v1106, 7
        %v1108 = vsub.s32 %v1105, %v1107
        %v1109 = vrot.slane %v1101, %v1108
        %v1111 = vunpack.c.l.s4 1983009808
        %v1112 = vunpack.c.0.s8 %v1111
        %v1113 = vlaneseq
        %v1114 = vshrl.u32 %v1113, 7
        %v1115 = vsub.s32 %v1112, %v1114
        %v1116 = vrot.slane %v1102, %v1115
        %v1117 = vcombine.low %v1082, %v1090
        %v1118 = vcombine.high %v1082, %v1090
        %v1120 = vunpack.c.l.s4 1983009808
        %v1121 = vunpack.c.0.s8 %v1120
        %v1122 = vlaneseq
        %v1123 = vshrl.u32 %v1122, 7
        %v1124 = vsub.s32 %v1121, %v1123
        %v1125 = vrot.slane %v1117, %v1124
        %v1127 = vunpack.c.l.s4 1983009808
        %v1128 = vunpack.c.0.s8 %v1127
        %v1129 = vlaneseq
        %v1130 = vshrl.u32 %v1129, 7
        %v1131 = vsub.s32 %v1128, %v1130
        %v1132 = vrot.slane %v1118, %v1131
        %v1133 = vcombine.low %v1109, %v1125
        %v1134 = vcombine.high %v1109, %v1125
        %v1136 = vunpack.c.l.s4 1934713408
        %v1137 = vunpack.c.0.s8 %v1136
        %v1138 = vlaneseq
        %v1139 = vshrl.u32 %v1138, 7
        %v1140 = vsub.s32 %v1137, %v1139
        %v1141 = vrot.slane %v1133, %v1140
        %v1143 = vunpack.c.l.s4 1934713408
        %v1144 = vunpack.c.0.s8 %v1143
        %v1145 = vlaneseq
        %v1146 = vshrl.u32 %v1145, 7
        %v1147 = vsub.s32 %v1144, %v1146
        %v1148 = vrot.slane %v1134, %v1147
        %v1149 = vcombine.low %v1116, %v1132
        %v1150 = vcombine.high %v1116, %v1132
        %v1152 = vunpack.c.l.s4 1934713408
        %v1153 = vunpack.c.0.s8 %v1152
        %v1154 = vlaneseq
        %v1155 = vshrl.u32 %v1154, 7
        %v1156 = vsub.s32 %v1153, %v1155
        %v1157 = vrot.slane %v1149, %v1156
        %v1159 = vunpack.c.l.s4 1934713408
        %v1160 = vunpack.c.0.s8 %v1159
        %v1161 = vlaneseq
        %v1162 = vshrl.u32 %v1161, 7
        %v1163 = vsub.s32 %v1160, %v1162
        %v1164 = vrot.slane %v1150, %v1163
        %v1165 = vcombine.high %v1141, 0.0
        %v1166 = vcombine.high %v1148, 0.0
        %v1167 = vcombine.high %v1157, 0.0
        %v1168 = vcombine.high %v1164, 0.0
        %v1169 = vcombine.low %v1080, %v1088
        %v1170 = vcombine.high %v1080, %v1088
        %v1172 = vunpack.c.l.s4 1983009808
        %v1173 = vunpack.c.0.s8 %v1172
        %v1174 = vlaneseq
        %v1175 = vshrl.u32 %v1174, 7
        %v1176 = vsub.s32 %v1173, %v1175
        %v1177 = vrot.slane %v1169, %v1176
        %v1179 = vunpack.c.l.s4 1983009808
        %v1180 = vunpack.c.0.s8 %v1179
        %v1181 = vlaneseq
        %v1182 = vshrl.u32 %v1181, 7
        %v1183 = vsub.s32 %v1180, %v1182
        %v1184 = vrot.slane %v1170, %v1183
        %v1185 = vcombine.low %v1084, %v1092
        %v1186 = vcombine.high %v1084, %v1092
        %v1188 = vunpack.c.l.s4 1983009808
        %v1189 = vunpack.c.0.s8 %v1188
        %v1190 = vlaneseq
        %v1191 = vshrl.u32 %v1190, 7
        %v1192 = vsub.s32 %v1189, %v1191
        %v1193 = vrot.slane %v1185, %v1192
        %v1195 = vunpack.c.l.s4 1983009808
        %v1196 = vunpack.c.0.s8 %v1195
        %v1197 = vlaneseq
        %v1198 = vshrl.u32 %v1197, 7
        %v1199 = vsub.s32 %v1196, %v1198
        %v1200 = vrot.slane %v1186, %v1199
        %v1201 = vcombine.low %v1177, %v1193
        %v1202 = vcombine.high %v1177, %v1193
        %v1204 = vunpack.c.l.s4 1934713408
        %v1205 = vunpack.c.0.s8 %v1204
        %v1206 = vlaneseq
        %v1207 = vshrl.u32 %v1206, 7
        %v1208 = vsub.s32 %v1205, %v1207
        %v1209 = vrot.slane %v1201, %v1208
        %v1211 = vunpack.c.l.s4 1934713408
        %v1212 = vunpack.c.0.s8 %v1211
        %v1213 = vlaneseq
        %v1214 = vshrl.u32 %v1213, 7
        %v1215 = vsub.s32 %v1212, %v1214
        %v1216 = vrot.slane %v1202, %v1215
        %v1217 = vcombine.low %v1184, %v1200
        %v1218 = vcombine.high %v1184, %v1200
        %v1220 = vunpack.c.l.s4 1934713408
        %v1221 = vunpack.c.0.s8 %v1220
        %v1222 = vlaneseq
        %v1223 = vshrl.u32 %v1222, 7
        %v1224 = vsub.s32 %v1221, %v1223
        %v1225 = vrot.slane %v1217, %v1224
        %v1227 = vunpack.c.l.s4 1934713408
        %v1228 = vunpack.c.0.s8 %v1227
        %v1229 = vlaneseq
        %v1230 = vshrl.u32 %v1229, 7
        %v1231 = vsub.s32 %v1228, %v1230
        %v1232 = vrot.slane %v1218, %v1231
        %v1233 = vcombine.high %v1209, 0.0
        %v1234 = vcombine.high %v1216, 0.0
        %v1235 = vcombine.high %v1225, 0.0
        %v1236 = vcombine.high %v1232, 0.0
        %v1237 = vcombine.low %v1141, %v1148
        %v1239 = vunpack.c.l.s4 1983009808
        %v1240 = vunpack.c.0.s8 %v1239
        %v1241 = vlaneseq
        %v1242 = vshrl.u32 %v1241, 7
        %v1243 = vsub.s32 %v1240, %v1242
        %v1244 = vrot.slane %v1237, %v1243
        %v1245 = vcombine.low %v1165, %v1166
        %v1247 = vunpack.c.l.s4 1983009808
        %v1248 = vunpack.c.0.s8 %v1247
        %v1249 = vlaneseq
        %v1250 = vshrl.u32 %v1249, 7
        %v1251 = vsub.s32 %v1248, %v1250
        %v1252 = vrot.slane %v1245, %v1251
        %v1253 = vcombine.low %v1157, %v1164
        %v1255 = vunpack.c.l.s4 1983009808
        %v1256 = vunpack.c.0.s8 %v1255
        %v1257 = vlaneseq
        %v1258 = vshrl.u32 %v1257, 7
        %v1259 = vsub.s32 %v1256, %v1258
        %v1260 = vrot.slane %v1253, %v1259
        %v1261 = vcombine.low %v1167, %v1168
        %v1263 = vunpack.c.l.s4 1983009808
        %v1264 = vunpack.c.0.s8 %v1263
        %v1265 = vlaneseq
        %v1266 = vshrl.u32 %v1265, 7
        %v1267 = vsub.s32 %v1264, %v1266
        %v1268 = vrot.slane %v1261, %v1267
        %v1269 = vcombine.low %v1244, %v1252
        %v1270 = vcombine.high %v1244, %v1252
        %v1272 = vunpack.c.l.s4 1934713408
        %v1273 = vunpack.c.0.s8 %v1272
        %v1274 = vlaneseq
        %v1275 = vshrl.u32 %v1274, 7
        %v1276 = vsub.s32 %v1273, %v1275
        %v1277 = vrot.slane %v1269, %v1276
        %v1279 = vunpack.c.l.s4 1934713408
        %v1280 = vunpack.c.0.s8 %v1279
        %v1281 = vlaneseq
        %v1282 = vshrl.u32 %v1281, 7
        %v1283 = vsub.s32 %v1280, %v1282
        %v1284 = vrot.slane %v1270, %v1283
        %v1285 = vcombine.low %v1260, %v1268
        %v1286 = vcombine.high %v1260, %v1268
        %v1288 = vunpack.c.l.s4 1934713408
        %v1289 = vunpack.c.0.s8 %v1288
        %v1290 = vlaneseq
        %v1291 = vshrl.u32 %v1290, 7
        %v1292 = vsub.s32 %v1289, %v1291
        %v1293 = vrot.slane %v1285, %v1292
        %v1295 = vunpack.c.l.s4 1934713408
        %v1296 = vunpack.c.0.s8 %v1295
        %v1297 = vlaneseq
        %v1298 = vshrl.u32 %v1297, 7
        %v1299 = vsub.s32 %v1296, %v1298
        %v1300 = vrot.slane %v1286, %v1299
        %v1301 = vcombine.low %v1277, %v1293
        %v1302 = vcombine.high %v1277, %v1293
        %v1303 = vcombine.low %v1284, %v1300
        %v1304 = vcombine.high %v1284, %v1300
        %v1305 = vcombine.low %v1209, %v1216
        %v1307 = vunpack.c.l.s4 1983009808
        %v1308 = vunpack.c.0.s8 %v1307
        %v1309 = vlaneseq
        %v1310 = vshrl.u32 %v1309, 7
        %v1311 = vsub.s32 %v1308, %v1310
        %v1312 = vrot.slane %v1305, %v1311
        %v1313 = vcombine.low %v1233, %v1234
        %v1315 = vunpack.c.l.s4 1983009808
        %v1316 = vunpack.c.0.s8 %v1315
        %v1317 = vlaneseq
        %v1318 = vshrl.u32 %v1317, 7
        %v1319 = vsub.s32 %v1316, %v1318
        %v1320 = vrot.slane %v1313, %v1319
        %v1321 = vcombine.low %v1225, %v1232
        %v1323 = vunpack.c.l.s4 1983009808
        %v1324 = vunpack.c.0.s8 %v1323
        %v1325 = vlaneseq
        %v1326 = vshrl.u32 %v1325, 7
        %v1327 = vsub.s32 %v1324, %v1326
        %v1328 = vrot.slane %v1321, %v1327
        %v1329 = vcombine.low %v1235, %v1236
        %v1331 = vunpack.c.l.s4 1983009808
        %v1332 = vunpack.c.0.s8 %v1331
        %v1333 = vlaneseq
        %v1334 = vshrl.u32 %v1333, 7
        %v1335 = vsub.s32 %v1332, %v1334
        %v1336 = vrot.slane %v1329, %v1335
        %v1337 = vcombine.low %v1312, %v1320
        %v1338 = vcombine.high %v1312, %v1320
        %v1340 = vunpack.c.l.s4 1934713408
        %v1341 = vunpack.c.0.s8 %v1340
        %v1342 = vlaneseq
        %v1343 = vshrl.u32 %v1342, 7
        %v1344 = vsub.s32 %v1341, %v1343
        %v1345 = vrot.slane %v1337, %v1344
        %v1347 = vunpack.c.l.s4 1934713408
        %v1348 = vunpack.c.0.s8 %v1347
        %v1349 = vlaneseq
        %v1350 = vshrl.u32 %v1349, 7
        %v1351 = vsub.s32 %v1348, %v1350
        %v1352 = vrot.slane %v1338, %v1351
        %v1353 = vcombine.low %v1328, %v1336
        %v1354 = vcombine.high %v1328, %v1336
        %v1356 = vunpack.c.l.s4 1934713408
        %v1357 = vunpack.c.0.s8 %v1356
        %v1358 = vlaneseq
        %v1359 = vshrl.u32 %v1358, 7
        %v1360 = vsub.s32 %v1357, %v1359
        %v1361 = vrot.slane %v1353, %v1360
        %v1363 = vunpack.c.l.s4 1934713408
        %v1364 = vunpack.c.0.s8 %v1363
        %v1365 = vlaneseq
        %v1366 = vshrl.u32 %v1365, 7
        %v1367 = vsub.s32 %v1364, %v1366
        %v1368 = vrot.slane %v1354, %v1367
        %v1369 = vcombine.low %v1345, %v1361
        %v1370 = vcombine.high %v1345, %v1361
        %v1371 = vcombine.low %v1352, %v1368
        %v1372 = vcombine.high %v1352, %v1368
        %1373 = vrot.lane.b32.xlu0 %v777, 64
        %v1374 = vpop.permute.xlu0 %1373
        %1375 = vrot.lane.b32.xlu0 %v782, 64
        %v1376 = vpop.permute.xlu0 %1375
        %1377 = vrot.lane.b32.xlu0 %v788, 64
        %v1378 = vpop.permute.xlu0 %1377
        %1379 = vrot.lane.b32.xlu0 %v790, 64
        %v1380 = vpop.permute.xlu0 %1379
        %1381 = vrot.lane.b32.xlu0 %v794, 64
        %v1382 = vpop.permute.xlu0 %1381
        %1383 = vrot.lane.b32.xlu0 %v796, 64
        %v1384 = vpop.permute.xlu0 %1383
        %1385 = vrot.lane.b32.xlu0 %v800, 64
        %v1386 = vpop.permute.xlu0 %1385
        %1387 = vrot.lane.b32.xlu0 %v802, 64
        %v1388 = vpop.permute.xlu0 %1387
        %v1397 = vcombine.low %v1374, %v1382
        %v1398 = vcombine.high %v1374, %v1382
        %v1400 = vunpack.c.l.s4 1983009808
        %v1401 = vunpack.c.0.s8 %v1400
        %v1402 = vlaneseq
        %v1403 = vshrl.u32 %v1402, 7
        %v1404 = vsub.s32 %v1401, %v1403
        %v1405 = vrot.slane %v1397, %v1404
        %v1407 = vunpack.c.l.s4 1983009808
        %v1408 = vunpack.c.0.s8 %v1407
        %v1409 = vlaneseq
        %v1410 = vshrl.u32 %v1409, 7
        %v1411 = vsub.s32 %v1408, %v1410
        %v1412 = vrot.slane %v1398, %v1411
        %v1413 = vcombine.low %v1378, %v1386
        %v1414 = vcombine.high %v1378, %v1386
        %v1416 = vunpack.c.l.s4 1983009808
        %v1417 = vunpack.c.0.s8 %v1416
        %v1418 = vlaneseq
        %v1419 = vshrl.u32 %v1418, 7
        %v1420 = vsub.s32 %v1417, %v1419
        %v1421 = vrot.slane %v1413, %v1420
        %v1423 = vunpack.c.l.s4 1983009808
        %v1424 = vunpack.c.0.s8 %v1423
        %v1425 = vlaneseq
        %v1426 = vshrl.u32 %v1425, 7
        %v1427 = vsub.s32 %v1424, %v1426
        %v1428 = vrot.slane %v1414, %v1427
        %v1429 = vcombine.low %v1405, %v1421
        %v1430 = vcombine.high %v1405, %v1421
        %v1432 = vunpack.c.l.s4 1934713408
        %v1433 = vunpack.c.0.s8 %v1432
        %v1434 = vlaneseq
        %v1435 = vshrl.u32 %v1434, 7
        %v1436 = vsub.s32 %v1433, %v1435
        %v1437 = vrot.slane %v1429, %v1436
        %v1439 = vunpack.c.l.s4 1934713408
        %v1440 = vunpack.c.0.s8 %v1439
        %v1441 = vlaneseq
        %v1442 = vshrl.u32 %v1441, 7
        %v1443 = vsub.s32 %v1440, %v1442
        %v1444 = vrot.slane %v1430, %v1443
        %v1445 = vcombine.low %v1412, %v1428
        %v1446 = vcombine.high %v1412, %v1428
        %v1448 = vunpack.c.l.s4 1934713408
        %v1449 = vunpack.c.0.s8 %v1448
        %v1450 = vlaneseq
        %v1451 = vshrl.u32 %v1450, 7
        %v1452 = vsub.s32 %v1449, %v1451
        %v1453 = vrot.slane %v1445, %v1452
        %v1455 = vunpack.c.l.s4 1934713408
        %v1456 = vunpack.c.0.s8 %v1455
        %v1457 = vlaneseq
        %v1458 = vshrl.u32 %v1457, 7
        %v1459 = vsub.s32 %v1456, %v1458
        %v1460 = vrot.slane %v1446, %v1459
        %v1461 = vcombine.high %v1437, 0.0
        %v1462 = vcombine.high %v1444, 0.0
        %v1463 = vcombine.high %v1453, 0.0
        %v1464 = vcombine.high %v1460, 0.0
        %v1465 = vcombine.low %v1376, %v1384
        %v1466 = vcombine.high %v1376, %v1384
        %v1468 = vunpack.c.l.s4 1983009808
        %v1469 = vunpack.c.0.s8 %v1468
        %v1470 = vlaneseq
        %v1471 = vshrl.u32 %v1470, 7
        %v1472 = vsub.s32 %v1469, %v1471
        %v1473 = vrot.slane %v1465, %v1472
        %v1475 = vunpack.c.l.s4 1983009808
        %v1476 = vunpack.c.0.s8 %v1475
        %v1477 = vlaneseq
        %v1478 = vshrl.u32 %v1477, 7
        %v1479 = vsub.s32 %v1476, %v1478
        %v1480 = vrot.slane %v1466, %v1479
        %v1481 = vcombine.low %v1380, %v1388
        %v1482 = vcombine.high %v1380, %v1388
        %v1484 = vunpack.c.l.s4 1983009808
        %v1485 = vunpack.c.0.s8 %v1484
        %v1486 = vlaneseq
        %v1487 = vshrl.u32 %v1486, 7
        %v1488 = vsub.s32 %v1485, %v1487
        %v1489 = vrot.slane %v1481, %v1488
        %v1491 = vunpack.c.l.s4 1983009808
        %v1492 = vunpack.c.0.s8 %v1491
        %v1493 = vlaneseq
        %v1494 = vshrl.u32 %v1493, 7
        %v1495 = vsub.s32 %v1492, %v1494
        %v1496 = vrot.slane %v1482, %v1495
        %v1497 = vcombine.low %v1473, %v1489
        %v1498 = vcombine.high %v1473, %v1489
        %v1500 = vunpack.c.l.s4 1934713408
        %v1501 = vunpack.c.0.s8 %v1500
        %v1502 = vlaneseq
        %v1503 = vshrl.u32 %v1502, 7
        %v1504 = vsub.s32 %v1501, %v1503
        %v1505 = vrot.slane %v1497, %v1504
        %v1507 = vunpack.c.l.s4 1934713408
        %v1508 = vunpack.c.0.s8 %v1507
        %v1509 = vlaneseq
        %v1510 = vshrl.u32 %v1509, 7
        %v1511 = vsub.s32 %v1508, %v1510
        %v1512 = vrot.slane %v1498, %v1511
        %v1513 = vcombine.low %v1480, %v1496
        %v1514 = vcombine.high %v1480, %v1496
        %v1516 = vunpack.c.l.s4 1934713408
        %v1517 = vunpack.c.0.s8 %v1516
        %v1518 = vlaneseq
        %v1519 = vshrl.u32 %v1518, 7
        %v1520 = vsub.s32 %v1517, %v1519
        %v1521 = vrot.slane %v1513, %v1520
        %v1523 = vunpack.c.l.s4 1934713408
        %v1524 = vunpack.c.0.s8 %v1523
        %v1525 = vlaneseq
        %v1526 = vshrl.u32 %v1525, 7
        %v1527 = vsub.s32 %v1524, %v1526
        %v1528 = vrot.slane %v1514, %v1527
        %v1529 = vcombine.high %v1505, 0.0
        %v1530 = vcombine.high %v1512, 0.0
        %v1531 = vcombine.high %v1521, 0.0
        %v1532 = vcombine.high %v1528, 0.0
        %v1533 = vcombine.low %v1437, %v1444
        %v1535 = vunpack.c.l.s4 1983009808
        %v1536 = vunpack.c.0.s8 %v1535
        %v1537 = vlaneseq
        %v1538 = vshrl.u32 %v1537, 7
        %v1539 = vsub.s32 %v1536, %v1538
        %v1540 = vrot.slane %v1533, %v1539
        %v1541 = vcombine.low %v1461, %v1462
        %v1543 = vunpack.c.l.s4 1983009808
        %v1544 = vunpack.c.0.s8 %v1543
        %v1545 = vlaneseq
        %v1546 = vshrl.u32 %v1545, 7
        %v1547 = vsub.s32 %v1544, %v1546
        %v1548 = vrot.slane %v1541, %v1547
        %v1549 = vcombine.low %v1453, %v1460
        %v1551 = vunpack.c.l.s4 1983009808
        %v1552 = vunpack.c.0.s8 %v1551
        %v1553 = vlaneseq
        %v1554 = vshrl.u32 %v1553, 7
        %v1555 = vsub.s32 %v1552, %v1554
        %v1556 = vrot.slane %v1549, %v1555
        %v1557 = vcombine.low %v1463, %v1464
        %v1559 = vunpack.c.l.s4 1983009808
        %v1560 = vunpack.c.0.s8 %v1559
        %v1561 = vlaneseq
        %v1562 = vshrl.u32 %v1561, 7
        %v1563 = vsub.s32 %v1560, %v1562
        %v1564 = vrot.slane %v1557, %v1563
        %v1565 = vcombine.low %v1540, %v1548
        %v1566 = vcombine.high %v1540, %v1548
        %v1568 = vunpack.c.l.s4 1934713408
        %v1569 = vunpack.c.0.s8 %v1568
        %v1570 = vlaneseq
        %v1571 = vshrl.u32 %v1570, 7
        %v1572 = vsub.s32 %v1569, %v1571
        %v1573 = vrot.slane %v1565, %v1572
        %v1575 = vunpack.c.l.s4 1934713408
        %v1576 = vunpack.c.0.s8 %v1575
        %v1577 = vlaneseq
        %v1578 = vshrl.u32 %v1577, 7
        %v1579 = vsub.s32 %v1576, %v1578
        %v1580 = vrot.slane %v1566, %v1579
        %v1581 = vcombine.low %v1556, %v1564
        %v1582 = vcombine.high %v1556, %v1564
        %v1584 = vunpack.c.l.s4 1934713408
        %v1585 = vunpack.c.0.s8 %v1584
        %v1586 = vlaneseq
        %v1587 = vshrl.u32 %v1586, 7
        %v1588 = vsub.s32 %v1585, %v1587
        %v1589 = vrot.slane %v1581, %v1588
        %v1591 = vunpack.c.l.s4 1934713408
        %v1592 = vunpack.c.0.s8 %v1591
        %v1593 = vlaneseq
        %v1594 = vshrl.u32 %v1593, 7
        %v1595 = vsub.s32 %v1592, %v1594
        %v1596 = vrot.slane %v1582, %v1595
        %v1597 = vcombine.low %v1573, %v1589
        %v1598 = vcombine.high %v1573, %v1589
        %v1599 = vcombine.low %v1580, %v1596
        %v1600 = vcombine.high %v1580, %v1596
        %v1601 = vcombine.low %v1505, %v1512
        %v1603 = vunpack.c.l.s4 1983009808
        %v1604 = vunpack.c.0.s8 %v1603
        %v1605 = vlaneseq
        %v1606 = vshrl.u32 %v1605, 7
        %v1607 = vsub.s32 %v1604, %v1606
        %v1608 = vrot.slane %v1601, %v1607
        %v1609 = vcombine.low %v1529, %v1530
        %v1611 = vunpack.c.l.s4 1983009808
        %v1612 = vunpack.c.0.s8 %v1611
        %v1613 = vlaneseq
        %v1614 = vshrl.u32 %v1613, 7
        %v1615 = vsub.s32 %v1612, %v1614
        %v1616 = vrot.slane %v1609, %v1615
        %v1617 = vcombine.low %v1521, %v1528
        %v1619 = vunpack.c.l.s4 1983009808
        %v1620 = vunpack.c.0.s8 %v1619
        %v1621 = vlaneseq
        %v1622 = vshrl.u32 %v1621, 7
        %v1623 = vsub.s32 %v1620, %v1622
        %v1624 = vrot.slane %v1617, %v1623
        %v1625 = vcombine.low %v1531, %v1532
        %v1627 = vunpack.c.l.s4 1983009808
        %v1628 = vunpack.c.0.s8 %v1627
        %v1629 = vlaneseq
        %v1630 = vshrl.u32 %v1629, 7
        %v1631 = vsub.s32 %v1628, %v1630
        %v1632 = vrot.slane %v1625, %v1631
        %v1633 = vcombine.low %v1608, %v1616
        %v1634 = vcombine.high %v1608, %v1616
        %v1636 = vunpack.c.l.s4 1934713408
        %v1637 = vunpack.c.0.s8 %v1636
        %v1638 = vlaneseq
        %v1639 = vshrl.u32 %v1638, 7
        %v1640 = vsub.s32 %v1637, %v1639
        %v1641 = vrot.slane %v1633, %v1640
        %v1643 = vunpack.c.l.s4 1934713408
        %v1644 = vunpack.c.0.s8 %v1643
        %v1645 = vlaneseq
        %v1646 = vshrl.u32 %v1645, 7
        %v1647 = vsub.s32 %v1644, %v1646
        %v1648 = vrot.slane %v1634, %v1647
        %v1649 = vcombine.low %v1624, %v1632
        %v1650 = vcombine.high %v1624, %v1632
        %v1652 = vunpack.c.l.s4 1934713408
        %v1653 = vunpack.c.0.s8 %v1652
        %v1654 = vlaneseq
        %v1655 = vshrl.u32 %v1654, 7
        %v1656 = vsub.s32 %v1653, %v1655
        %v1657 = vrot.slane %v1649, %v1656
        %v1659 = vunpack.c.l.s4 1934713408
        %v1660 = vunpack.c.0.s8 %v1659
        %v1661 = vlaneseq
        %v1662 = vshrl.u32 %v1661, 7
        %v1663 = vsub.s32 %v1660, %v1662
        %v1664 = vrot.slane %v1650, %v1663
        %v1665 = vcombine.low %v1641, %v1657
        %v1666 = vcombine.high %v1641, %v1657
        %v1667 = vcombine.low %v1648, %v1664
        %v1668 = vcombine.high %v1648, %v1664
        %vm1669 = vcmp.gt.f32.partialorder %v559, 0.0
        %vm1670 = vcmp.gt.f32.partialorder %v560, 0.0
        %vm1671 = vcmask 64512
        %v1673 = vsel %vm1671, %v1005, 0
        %v1676 = vsel %vm1671, %v1073, 0
        %v1679 = vsel %vm1671, %v1301, 0
        %v1682 = vsel %vm1671, %v1369, 0
        %1684 = vmatprep.subr.mxu0 0.0
        %1685 = vmatpush1.xpose.msra.mxu0 %v1679
        %1686 = vmatprep.subr.mxu0 0.0
        %1687 = vmatpush1.xpose.msra.mxu0 %v1682
        %1688 = vmatprep.subr.mxu0 0.0
        %1689 = vmatpush1.xpose.msra.mxu0 0.0
        %1690 = vmatprep.subr.mxu0 0.0
        %1691 = vmatpush1.xpose.msra.mxu0 0.0
        %1692 = vmatprep.subr.mxu0 0.0
        %1693 = vmatpush1.xpose.msra.mxu0 0.0
        %1694 = vmatprep.subr.mxu0 0.0
        %1695 = vmatpush1.xpose.msra.mxu0 0.0
        %1696 = vmatprep.subr.mxu0 0.0
        %1697 = vmatpush1.xpose.msra.mxu0 0.0
        %1698 = vmatprep.subr.mxu0 0.0
        %1699 = vmatpush1.xpose.msra.mxu0 0.0
        %1700 = vmatprep.subr.mxu0 0.0
        %1701 = vmatpush1.xpose.msra.mxu0 0.0
        %1702 = vmatprep.subr.mxu0 0.0
        %1703 = vmatpush1.xpose.msra.mxu0 0.0
        %1704 = vmatprep.subr.mxu0 0.0
        %1705 = vmatpush1.xpose.msra.mxu0 0.0
        %1706 = vmatprep.subr.mxu0 0.0
        %1707 = vmatpush1.xpose.msra.mxu0 0.0
        %1708 = vmatprep.subr.mxu0 0.0
        %1709 = vmatpush1.xpose.msra.mxu0 0.0
        %1710 = vmatprep.subr.mxu0 0.0
        %1711 = vmatpush1.xpose.msra.mxu0 0.0
        %1712 = vmatprep.subr.mxu0 0.0
        %1713 = vmatpush1.xpose.msra.mxu0 0.0
        %1714 = vmatprep.subr.mxu0 0.0
        %1715 = vmatpush1.xpose.msra.mxu0 0.0
        %1716 = vmatprep.subr.mxu0 0.0
        %1717 = vmatpush1.xpose.msra.mxu0 0.0
        %1718 = vmatprep.subr.mxu0 0.0
        %1719 = vmatpush1.xpose.msra.mxu0 0.0
        %1720 = vmatprep.subr.mxu0 0.0
        %1721 = vmatpush1.xpose.msra.mxu0 0.0
        %1722 = vmatprep.subr.mxu0 0.0
        %1723 = vmatpush1.xpose.msra.mxu0 0.0
        %1724 = vmatprep.subr.mxu0 0.0
        %1725 = vmatpush1.xpose.msra.mxu0 0.0
        %1726 = vmatprep.subr.mxu0 0.0
        %1727 = vmatpush1.xpose.msra.mxu0 0.0
        %1728 = vmatprep.subr.mxu0 0.0
        %1729 = vmatpush1.xpose.msra.mxu0 0.0
        %1730 = vmatprep.subr.mxu0 0.0
        %1731 = vmatpush1.xpose.msra.mxu0 0.0
        %1732 = vmatprep.subr.mxu0 0.0
        %1733 = vmatpush1.xpose.msra.mxu0 0.0
        %1734 = vmatprep.subr.mxu0 0.0
        %1735 = vmatpush1.xpose.msra.mxu0 0.0
        %1736 = vmatprep.subr.mxu0 0.0
        %1737 = vmatpush1.xpose.msra.mxu0 0.0
        %1738 = vmatprep.subr.mxu0 0.0
        %1739 = vmatpush1.xpose.msra.mxu0 0.0
        %1740 = vmatprep.subr.mxu0 0.0
        %1741 = vmatpush1.xpose.msra.mxu0 0.0
        %1742 = vmatprep.subr.mxu0 0.0
        %1743 = vmatpush1.xpose.msra.mxu0 0.0
        %1744 = vmatprep.subr.mxu0 0.0
        %1745 = vmatpush1.xpose.msra.mxu0 0.0
        %1746 = vmatprep.subr.mxu0 0.0
        %1747 = vmatpush1.xpose.msra.mxu0 0.0
        %1748 = vmatprep.mubr.f32.mxu0 0.0
        %1749 = vmatmul.mubr.f32.gmra.mrb[0].mxu0 %v1673
        %v1750 = vpop.f32.mrb[0].mxu0
        %v1751 = vadd.f32 0.0, %v1750
        %v1752 = vpop.f32.mrb[0].mxu0
        %1753 = vmatprep.mubr.f32.mxu0 0.0
        %1754 = vmatmul.mubr.f32.gmra.mrb[0].mxu0 %v1676
        %v1755 = vpop.f32.mrb[0].mxu0
        %v1756 = vadd.f32 0.0, %v1755
        %v1757 = vpop.f32.mrb[0].mxu0
        %1758 = vdwg.mxu0
        %v1760 = vsel %vm1671, %v1006, 0
        %v1763 = vsel %vm1671, %v1074, 0
        %v1766 = vsel %vm1671, %v1302, 0
        %v1769 = vsel %vm1671, %v1370, 0
        %1771 = vmatprep.subr.mxu0 0.0
        %1772 = vmatpush1.xpose.msra.mxu0 %v1766
        %1773 = vmatprep.subr.mxu0 0.0
        %1774 = vmatpush1.xpose.msra.mxu0 %v1769
        %1775 = vmatprep.subr.mxu0 0.0
        %1776 = vmatpush1.xpose.msra.mxu0 0.0
        %1777 = vmatprep.subr.mxu0 0.0
        %1778 = vmatpush1.xpose.msra.mxu0 0.0
        %1779 = vmatprep.subr.mxu0 0.0
        %1780 = vmatpush1.xpose.msra.mxu0 0.0
        %1781 = vmatprep.subr.mxu0 0.0
        %1782 = vmatpush1.xpose.msra.mxu0 0.0
        %1783 = vmatprep.subr.mxu0 0.0
        %1784 = vmatpush1.xpose.msra.mxu0 0.0
        %1785 = vmatprep.subr.mxu0 0.0
        %1786 = vmatpush1.xpose.msra.mxu0 0.0
        %1787 = vmatprep.subr.mxu0 0.0
        %1788 = vmatpush1.xpose.msra.mxu0 0.0
        %1789 = vmatprep.subr.mxu0 0.0
        %1790 = vmatpush1.xpose.msra.mxu0 0.0
        %1791 = vmatprep.subr.mxu0 0.0
        %1792 = vmatpush1.xpose.msra.mxu0 0.0
        %1793 = vmatprep.subr.mxu0 0.0
        %1794 = vmatpush1.xpose.msra.mxu0 0.0
        %1795 = vmatprep.subr.mxu0 0.0
        %1796 = vmatpush1.xpose.msra.mxu0 0.0
        %1797 = vmatprep.subr.mxu0 0.0
        %1798 = vmatpush1.xpose.msra.mxu0 0.0
        %1799 = vmatprep.subr.mxu0 0.0
        %1800 = vmatpush1.xpose.msra.mxu0 0.0
        %1801 = vmatprep.subr.mxu0 0.0
        %1802 = vmatpush1.xpose.msra.mxu0 0.0
        %1803 = vmatprep.subr.mxu0 0.0
        %1804 = vmatpush1.xpose.msra.mxu0 0.0
        %1805 = vmatprep.subr.mxu0 0.0
        %1806 = vmatpush1.xpose.msra.mxu0 0.0
        %1807 = vmatprep.subr.mxu0 0.0
        %1808 = vmatpush1.xpose.msra.mxu0 0.0
        %1809 = vmatprep.subr.mxu0 0.0
        %1810 = vmatpush1.xpose.msra.mxu0 0.0
        %1811 = vmatprep.subr.mxu0 0.0
        %1812 = vmatpush1.xpose.msra.mxu0 0.0
        %1813 = vmatprep.subr.mxu0 0.0
        %1814 = vmatpush1.xpose.msra.mxu0 0.0
        %1815 = vmatprep.subr.mxu0 0.0
        %1816 = vmatpush1.xpose.msra.mxu0 0.0
        %1817 = vmatprep.subr.mxu0 0.0
        %1818 = vmatpush1.xpose.msra.mxu0 0.0
        %1819 = vmatprep.subr.mxu0 0.0
        %1820 = vmatpush1.xpose.msra.mxu0 0.0
        %1821 = vmatprep.subr.mxu0 0.0
        %1822 = vmatpush1.xpose.msra.mxu0 0.0
        %1823 = vmatprep.subr.mxu0 0.0
        %1824 = vmatpush1.xpose.msra.mxu0 0.0
        %1825 = vmatprep.subr.mxu0 0.0
        %1826 = vmatpush1.xpose.msra.mxu0 0.0
        %1827 = vmatprep.subr.mxu0 0.0
        %1828 = vmatpush1.xpose.msra.mxu0 0.0
        %1829 = vmatprep.subr.mxu0 0.0
        %1830 = vmatpush1.xpose.msra.mxu0 0.0
        %1831 = vmatprep.subr.mxu0 0.0
        %1832 = vmatpush1.xpose.msra.mxu0 0.0
        %1833 = vmatprep.subr.mxu0 0.0
        %1834 = vmatpush1.xpose.msra.mxu0 0.0
        %1835 = vmatprep.mubr.f32.mxu0 0.0
        %1836 = vmatmul.mubr.f32.gmra.mrb[0].mxu0 %v1760
        %v1837 = vpop.f32.mrb[0].mxu0
        %v1838 = vadd.f32 0.0, %v1837
        %v1839 = vpop.f32.mrb[0].mxu0
        %1840 = vmatprep.mubr.f32.mxu0 0.0
        %1841 = vmatmul.mubr.f32.gmra.mrb[0].mxu0 %v1763
        %v1842 = vpop.f32.mrb[0].mxu0
        %v1843 = vadd.f32 0.0, %v1842
        %v1844 = vpop.f32.mrb[0].mxu0
        %1845 = vdwg.mxu0
        %v1847 = vsel %vm1671, %v1007, 0
        %v1850 = vsel %vm1671, %v1075, 0
        %v1853 = vsel %vm1671, %v1303, 0
        %v1856 = vsel %vm1671, %v1371, 0
        %1858 = vmatprep.subr.mxu0 0.0
        %1859 = vmatpush1.xpose.msra.mxu0 %v1853
        %1860 = vmatprep.subr.mxu0 0.0
        %1861 = vmatpush1.xpose.msra.mxu0 %v1856
        %1862 = vmatprep.subr.mxu0 0.0
        %1863 = vmatpush1.xpose.msra.mxu0 0.0
        %1864 = vmatprep.subr.mxu0 0.0
        %1865 = vmatpush1.xpose.msra.mxu0 0.0
        %1866 = vmatprep.subr.mxu0 0.0
        %1867 = vmatpush1.xpose.msra.mxu0 0.0
        %1868 = vmatprep.subr.mxu0 0.0
        %1869 = vmatpush1.xpose.msra.mxu0 0.0
        %1870 = vmatprep.subr.mxu0 0.0
        %1871 = vmatpush1.xpose.msra.mxu0 0.0
        %1872 = vmatprep.subr.mxu0 0.0
        %1873 = vmatpush1.xpose.msra.mxu0 0.0
        %1874 = vmatprep.subr.mxu0 0.0
        %1875 = vmatpush1.xpose.msra.mxu0 0.0
        %1876 = vmatprep.subr.mxu0 0.0
        %1877 = vmatpush1.xpose.msra.mxu0 0.0
        %1878 = vmatprep.subr.mxu0 0.0
        %1879 = vmatpush1.xpose.msra.mxu0 0.0
        %1880 = vmatprep.subr.mxu0 0.0
        %1881 = vmatpush1.xpose.msra.mxu0 0.0
        %1882 = vmatprep.subr.mxu0 0.0
        %1883 = vmatpush1.xpose.msra.mxu0 0.0
        %1884 = vmatprep.subr.mxu0 0.0
        %1885 = vmatpush1.xpose.msra.mxu0 0.0
        %1886 = vmatprep.subr.mxu0 0.0
        %1887 = vmatpush1.xpose.msra.mxu0 0.0
        %1888 = vmatprep.subr.mxu0 0.0
        %1889 = vmatpush1.xpose.msra.mxu0 0.0
        %1890 = vmatprep.subr.mxu0 0.0
        %1891 = vmatpush1.xpose.msra.mxu0 0.0
        %1892 = vmatprep.subr.mxu0 0.0
        %1893 = vmatpush1.xpose.msra.mxu0 0.0
        %1894 = vmatprep.subr.mxu0 0.0
        %1895 = vmatpush1.xpose.msra.mxu0 0.0
        %1896 = vmatprep.subr.mxu0 0.0
        %1897 = vmatpush1.xpose.msra.mxu0 0.0
        %1898 = vmatprep.subr.mxu0 0.0
        %1899 = vmatpush1.xpose.msra.mxu0 0.0
        %1900 = vmatprep.subr.mxu0 0.0
        %1901 = vmatpush1.xpose.msra.mxu0 0.0
        %1902 = vmatprep.subr.mxu0 0.0
        %1903 = vmatpush1.xpose.msra.mxu0 0.0
        %1904 = vmatprep.subr.mxu0 0.0
        %1905 = vmatpush1.xpose.msra.mxu0 0.0
        %1906 = vmatprep.subr.mxu0 0.0
        %1907 = vmatpush1.xpose.msra.mxu0 0.0
        %1908 = vmatprep.subr.mxu0 0.0
        %1909 = vmatpush1.xpose.msra.mxu0 0.0
        %1910 = vmatprep.subr.mxu0 0.0
        %1911 = vmatpush1.xpose.msra.mxu0 0.0
        %1912 = vmatprep.subr.mxu0 0.0
        %1913 = vmatpush1.xpose.msra.mxu0 0.0
        %1914 = vmatprep.subr.mxu0 0.0
        %1915 = vmatpush1.xpose.msra.mxu0 0.0
        %1916 = vmatprep.subr.mxu0 0.0
        %1917 = vmatpush1.xpose.msra.mxu0 0.0
        %1918 = vmatprep.subr.mxu0 0.0
        %1919 = vmatpush1.xpose.msra.mxu0 0.0
        %1920 = vmatprep.subr.mxu0 0.0
        %1921 = vmatpush1.xpose.msra.mxu0 0.0
        %1922 = vmatprep.mubr.f32.mxu0 0.0
        %1923 = vmatmul.mubr.f32.gmra.mrb[0].mxu0 %v1847
        %v1924 = vpop.f32.mrb[0].mxu0
        %v1925 = vadd.f32 0.0, %v1924
        %v1926 = vpop.f32.mrb[0].mxu0
        %1927 = vmatprep.mubr.f32.mxu0 0.0
        %1928 = vmatmul.mubr.f32.gmra.mrb[0].mxu0 %v1850
        %v1929 = vpop.f32.mrb[0].mxu0
        %v1930 = vadd.f32 0.0, %v1929
        %v1931 = vpop.f32.mrb[0].mxu0
        %1932 = vdwg.mxu0
        %v1934 = vsel %vm1671, %v1008, 0
        %v1937 = vsel %vm1671, %v1076, 0
        %v1940 = vsel %vm1671, %v1304, 0
        %v1943 = vsel %vm1671, %v1372, 0
        %1945 = vmatprep.subr.mxu0 0.0
        %1946 = vmatpush1.xpose.msra.mxu0 %v1940
        %1947 = vmatprep.subr.mxu0 0.0
        %1948 = vmatpush1.xpose.msra.mxu0 %v1943
        %1949 = vmatprep.subr.mxu0 0.0
        %1950 = vmatpush1.xpose.msra.mxu0 0.0
        %1951 = vmatprep.subr.mxu0 0.0
        %1952 = vmatpush1.xpose.msra.mxu0 0.0
        %1953 = vmatprep.subr.mxu0 0.0
        %1954 = vmatpush1.xpose.msra.mxu0 0.0
        %1955 = vmatprep.subr.mxu0 0.0
        %1956 = vmatpush1.xpose.msra.mxu0 0.0
        %1957 = vmatprep.subr.mxu0 0.0
        %1958 = vmatpush1.xpose.msra.mxu0 0.0
        %1959 = vmatprep.subr.mxu0 0.0
        %1960 = vmatpush1.xpose.msra.mxu0 0.0
        %1961 = vmatprep.subr.mxu0 0.0
        %1962 = vmatpush1.xpose.msra.mxu0 0.0
        %1963 = vmatprep.subr.mxu0 0.0
        %1964 = vmatpush1.xpose.msra.mxu0 0.0
        %1965 = vmatprep.subr.mxu0 0.0
        %1966 = vmatpush1.xpose.msra.mxu0 0.0
        %1967 = vmatprep.subr.mxu0 0.0
        %1968 = vmatpush1.xpose.msra.mxu0 0.0
        %1969 = vmatprep.subr.mxu0 0.0
        %1970 = vmatpush1.xpose.msra.mxu0 0.0
        %1971 = vmatprep.subr.mxu0 0.0
        %1972 = vmatpush1.xpose.msra.mxu0 0.0
        %1973 = vmatprep.subr.mxu0 0.0
        %1974 = vmatpush1.xpose.msra.mxu0 0.0
        %1975 = vmatprep.subr.mxu0 0.0
        %1976 = vmatpush1.xpose.msra.mxu0 0.0
        %1977 = vmatprep.subr.mxu0 0.0
        %1978 = vmatpush1.xpose.msra.mxu0 0.0
        %1979 = vmatprep.subr.mxu0 0.0
        %1980 = vmatpush1.xpose.msra.mxu0 0.0
        %1981 = vmatprep.subr.mxu0 0.0
        %1982 = vmatpush1.xpose.msra.mxu0 0.0
        %1983 = vmatprep.subr.mxu0 0.0
        %1984 = vmatpush1.xpose.msra.mxu0 0.0
        %1985 = vmatprep.subr.mxu0 0.0
        %1986 = vmatpush1.xpose.msra.mxu0 0.0
        %1987 = vmatprep.subr.mxu0 0.0
        %1988 = vmatpush1.xpose.msra.mxu0 0.0
        %1989 = vmatprep.subr.mxu0 0.0
        %1990 = vmatpush1.xpose.msra.mxu0 0.0
        %1991 = vmatprep.subr.mxu0 0.0
        %1992 = vmatpush1.xpose.msra.mxu0 0.0
        %1993 = vmatprep.subr.mxu0 0.0
        %1994 = vmatpush1.xpose.msra.mxu0 0.0
        %1995 = vmatprep.subr.mxu0 0.0
        %1996 = vmatpush1.xpose.msra.mxu0 0.0
        %1997 = vmatprep.subr.mxu0 0.0
        %1998 = vmatpush1.xpose.msra.mxu0 0.0
        %1999 = vmatprep.subr.mxu0 0.0
        %2000 = vmatpush1.xpose.msra.mxu0 0.0
        %2001 = vmatprep.subr.mxu0 0.0
        %2002 = vmatpush1.xpose.msra.mxu0 0.0
        %2003 = vmatprep.subr.mxu0 0.0
        %2004 = vmatpush1.xpose.msra.mxu0 0.0
        %2005 = vmatprep.subr.mxu0 0.0
        %2006 = vmatpush1.xpose.msra.mxu0 0.0
        %2007 = vmatprep.subr.mxu0 0.0
        %2008 = vmatpush1.xpose.msra.mxu0 0.0
        %2009 = vmatprep.mubr.f32.mxu0 0.0
        %2010 = vmatmul.mubr.f32.gmra.mrb[0].mxu0 %v1934
        %v2011 = vpop.f32.mrb[0].mxu0
        %v2012 = vadd.f32 0.0, %v2011
        %v2013 = vpop.f32.mrb[0].mxu0
        %2014 = vmatprep.mubr.f32.mxu0 0.0
        %2015 = vmatmul.mubr.f32.gmra.mrb[0].mxu0 %v1937
        %v2016 = vpop.f32.mrb[0].mxu0
        %v2017 = vadd.f32 0.0, %v2016
        %v2018 = vpop.f32.mrb[0].mxu0
        %2019 = vdwg.mxu0
        %v2020 = vmul.f32 %v1751, 0.35355338
        %v2021 = vmul.f32 %v1756, 0.35355338
        %v2022 = vmul.f32 %v1838, 0.35355338
        %v2023 = vmul.f32 %v1843, 0.35355338
        %v2024 = vmul.f32 %v1925, 0.35355338
        %v2025 = vmul.f32 %v1930, 0.35355338
        %v2026 = vmul.f32 %v2012, 0.35355338
        %v2027 = vmul.f32 %v2017, 0.35355338
        %v2028 = vsel %vm1669, 1, 0
        %v2029 = vsel %vm1670, 1, 0
        %vm2030 = vcmp.eq.s32.totalorder %v2028, 1
        %vm2031 = vcmp.eq.s32.totalorder %v2029, 1
        %v2032 = vsel %vm2030, %v2020, -1e+30
        %v2033 = vsel %vm2031, %v2021, -1e+30
        %v2034 = vsel %vm2030, %v2022, -1e+30
        %v2035 = vsel %vm2031, %v2023, -1e+30
        %v2036 = vsel %vm2030, %v2024, -1e+30
        %v2037 = vsel %vm2031, %v2025, -1e+30
        %v2038 = vsel %vm2030, %v2026, -1e+30
        %v2039 = vsel %vm2031, %v2027, -1e+30
        %vm2040 = vcmask 130048
        %v2041 = vsel %vm2040, %v2032, -inf
        %2042 = vmax.xlane.f32.xlu0 %v2041
        %v2043 = vpop.xlane.xlu0 %2042
        %v2044 = vsel %vm2040, %v2033, -inf
        %2045 = vmax.xlane.f32.xlu0 %v2044
        %v2046 = vpop.xlane.xlu0 %2045
        %v2047 = vsel %vm2040, %v2034, -inf
        %2048 = vmax.xlane.f32.xlu0 %v2047
        %v2049 = vpop.xlane.xlu0 %2048
        %v2050 = vsel %vm2040, %v2035, -inf
        %2051 = vmax.xlane.f32.xlu0 %v2050
        %v2052 = vpop.xlane.xlu0 %2051
        %v2053 = vsel %vm2040, %v2036, -inf
        %2054 = vmax.xlane.f32.xlu0 %v2053
        %v2055 = vpop.xlane.xlu0 %2054
        %v2056 = vsel %vm2040, %v2037, -inf
        %2057 = vmax.xlane.f32.xlu0 %v2056
        %v2058 = vpop.xlane.xlu0 %2057
        %v2059 = vsel %vm2040, %v2038, -inf
        %2060 = vmax.xlane.f32.xlu0 %v2059
        %v2061 = vpop.xlane.xlu0 %2060
        %v2062 = vsel %vm2040, %v2039, -inf
        %2063 = vmax.xlane.f32.xlu0 %v2062
        %v2064 = vpop.xlane.xlu0 %2063
        %v2065 = vsub.f32 %v2032, %v2043
        %v2066 = vsub.f32 %v2033, %v2046
        %v2067 = vsub.f32 %v2034, %v2049
        %v2068 = vsub.f32 %v2035, %v2052
        %v2069 = vsub.f32 %v2036, %v2055
        %v2070 = vsub.f32 %v2037, %v2058
        %v2071 = vsub.f32 %v2038, %v2061
        %v2072 = vsub.f32 %v2039, %v2064
        %v2073 = vmul.f32 %v2065, 1.442695
        %v2074 = vpow.pop %v2073
        %v2075 = vmul.f32 %v2066, 1.442695
        %v2076 = vpow.pop %v2075
        %v2077 = vmul.f32 %v2067, 1.442695
        %v2078 = vpow.pop %v2077
        %v2079 = vmul.f32 %v2068, 1.442695
        %v2080 = vpow.pop %v2079
        %v2081 = vmul.f32 %v2069, 1.442695
        %v2082 = vpow.pop %v2081
        %v2083 = vmul.f32 %v2070, 1.442695
        %v2084 = vpow.pop %v2083
        %v2085 = vmul.f32 %v2071, 1.442695
        %v2086 = vpow.pop %v2085
        %v2087 = vmul.f32 %v2072, 1.442695
        %v2088 = vpow.pop %v2087
        %v2089 = vsel %vm2030, %v2074, 0.0
        %v2090 = vsel %vm2031, %v2076, 0.0
        %v2091 = vsel %vm2030, %v2078, 0.0
        %v2092 = vsel %vm2031, %v2080, 0.0
        %v2093 = vsel %vm2030, %v2082, 0.0
        %v2094 = vsel %vm2031, %v2084, 0.0
        %v2095 = vsel %vm2030, %v2086, 0.0
        %v2096 = vsel %vm2031, %v2088, 0.0
        %v2097 = vsel %vm2040, %v2089, 0.0
        %2098 = vadd.xlane.f32.xlu0 %v2097
        %v2099 = vpop.xlane.xlu0 %2098
        %v2100 = vsel %vm2040, %v2090, 0.0
        %2101 = vadd.xlane.f32.xlu0 %v2100
        %v2102 = vpop.xlane.xlu0 %2101
        %v2103 = vsel %vm2040, %v2091, 0.0
        %2104 = vadd.xlane.f32.xlu0 %v2103
        %v2105 = vpop.xlane.xlu0 %2104
        %v2106 = vsel %vm2040, %v2092, 0.0
        %2107 = vadd.xlane.f32.xlu0 %v2106
        %v2108 = vpop.xlane.xlu0 %2107
        %v2109 = vsel %vm2040, %v2093, 0.0
        %2110 = vadd.xlane.f32.xlu0 %v2109
        %v2111 = vpop.xlane.xlu0 %2110
        %v2112 = vsel %vm2040, %v2094, 0.0
        %2113 = vadd.xlane.f32.xlu0 %v2112
        %v2114 = vpop.xlane.xlu0 %2113
        %v2115 = vsel %vm2040, %v2095, 0.0
        %2116 = vadd.xlane.f32.xlu0 %v2115
        %v2117 = vpop.xlane.xlu0 %2116
        %v2118 = vsel %vm2040, %v2096, 0.0
        %2119 = vadd.xlane.f32.xlu0 %v2118
        %v2120 = vpop.xlane.xlu0 %2119
        %v2121 = vmax.f32 %v2099, 1e-30
        %v2122 = vmax.f32 %v2102, 1e-30
        %v2123 = vmax.f32 %v2105, 1e-30
        %v2124 = vmax.f32 %v2108, 1e-30
        %v2125 = vmax.f32 %v2111, 1e-30
        %v2126 = vmax.f32 %v2114, 1e-30
        %v2127 = vmax.f32 %v2117, 1e-30
        %v2128 = vmax.f32 %v2120, 1e-30
        %v2129 = vrcp.pop %v2121
        %v2130 = vmul.f32 1.0, %v2129
        %v2131 = vrcp.pop %v2122
        %v2132 = vmul.f32 1.0, %v2131
        %v2133 = vrcp.pop %v2123
        %v2134 = vmul.f32 1.0, %v2133
        %v2135 = vrcp.pop %v2124
        %v2136 = vmul.f32 1.0, %v2135
        %v2137 = vrcp.pop %v2125
        %v2138 = vmul.f32 1.0, %v2137
        %v2139 = vrcp.pop %v2126
        %v2140 = vmul.f32 1.0, %v2139
        %v2141 = vrcp.pop %v2127
        %v2142 = vmul.f32 1.0, %v2141
        %v2143 = vrcp.pop %v2128
        %v2144 = vmul.f32 1.0, %v2143
        %v2145 = vmul.f32 %v2089, %v2130
        %v2146 = vmul.f32 %v2090, %v2132
        %v2147 = vmul.f32 %v2091, %v2134
        %v2148 = vmul.f32 %v2092, %v2136
        %v2149 = vmul.f32 %v2093, %v2138
        %v2150 = vmul.f32 %v2094, %v2140
        %v2151 = vmul.f32 %v2095, %v2142
        %v2152 = vmul.f32 %v2096, %v2144
        %v2154 = vsel %vm2040, %v2145, 0
        %v2157 = vsel %vm2040, %v2146, 0
        %2159 = vmatprep.subr.mxu0 0.0
        %2160 = vmatpush1.msra.mxu0 %v1597
        %2161 = vmatprep.subr.mxu0 0.0
        %2162 = vmatpush1.msra.mxu0 %v1665
        %2163 = vmatprep.subr.mxu0 0.0
        %2164 = vmatpush1.msra.mxu0 0.0
        %2165 = vmatprep.subr.mxu0 0.0
        %2166 = vmatpush1.msra.mxu0 0.0
        %2167 = vmatprep.subr.mxu0 0.0
        %2168 = vmatpush1.msra.mxu0 0.0
        %2169 = vmatprep.subr.mxu0 0.0
        %2170 = vmatpush1.msra.mxu0 0.0
        %2171 = vmatprep.subr.mxu0 0.0
        %2172 = vmatpush1.msra.mxu0 0.0
        %2173 = vmatprep.subr.mxu0 0.0
        %2174 = vmatpush1.msra.mxu0 0.0
        %2175 = vmatprep.subr.mxu0 0.0
        %2176 = vmatpush1.msra.mxu0 0.0
        %2177 = vmatprep.subr.mxu0 0.0
        %2178 = vmatpush1.msra.mxu0 0.0
        %2179 = vmatprep.subr.mxu0 0.0
        %2180 = vmatpush1.msra.mxu0 0.0
        %2181 = vmatprep.subr.mxu0 0.0
        %2182 = vmatpush1.msra.mxu0 0.0
        %2183 = vmatprep.subr.mxu0 0.0
        %2184 = vmatpush1.msra.mxu0 0.0
        %2185 = vmatprep.subr.mxu0 0.0
        %2186 = vmatpush1.msra.mxu0 0.0
        %2187 = vmatprep.subr.mxu0 0.0
        %2188 = vmatpush1.msra.mxu0 0.0
        %2189 = vmatprep.subr.mxu0 0.0
        %2190 = vmatpush1.msra.mxu0 0.0
        %2191 = vmatprep.subr.mxu0 0.0
        %2192 = vmatpush1.msra.mxu0 0.0
        %2193 = vmatprep.subr.mxu0 0.0
        %2194 = vmatpush1.msra.mxu0 0.0
        %2195 = vmatprep.subr.mxu0 0.0
        %2196 = vmatpush1.msra.mxu0 0.0
        %2197 = vmatprep.subr.mxu0 0.0
        %2198 = vmatpush1.msra.mxu0 0.0
        %2199 = vmatprep.subr.mxu0 0.0
        %2200 = vmatpush1.msra.mxu0 0.0
        %2201 = vmatprep.subr.mxu0 0.0
        %2202 = vmatpush1.msra.mxu0 0.0
        %2203 = vmatprep.subr.mxu0 0.0
        %2204 = vmatpush1.msra.mxu0 0.0
        %2205 = vmatprep.subr.mxu0 0.0
        %2206 = vmatpush1.msra.mxu0 0.0
        %2207 = vmatprep.subr.mxu0 0.0
        %2208 = vmatpush1.msra.mxu0 0.0
        %2209 = vmatprep.subr.mxu0 0.0
        %2210 = vmatpush1.msra.mxu0 0.0
        %2211 = vmatprep.subr.mxu0 0.0
        %2212 = vmatpush1.msra.mxu0 0.0
        %2213 = vmatprep.subr.mxu0 0.0
        %2214 = vmatpush1.msra.mxu0 0.0
        %2215 = vmatprep.subr.mxu0 0.0
        %2216 = vmatpush1.msra.mxu0 0.0
        %2217 = vmatprep.subr.mxu0 0.0
        %2218 = vmatpush1.msra.mxu0 0.0
        %2219 = vmatprep.subr.mxu0 0.0
        %2220 = vmatpush1.msra.mxu0 0.0
        %2221 = vmatprep.subr.mxu0 0.0
        %2222 = vmatpush1.msra.mxu0 0.0
        %2223 = vmatprep.mubr.f32.mxu0 0.0
        %2224 = vmatmul.mubr.f32.gmra.mrb[0].mxu0 %v2154
        %v2225 = vpop.f32.mrb[0].mxu0
        %v2226 = vadd.f32 0.0, %v2225
        %v2227 = vpop.f32.mrb[0].mxu0
        %2228 = vmatprep.mubr.f32.mxu0 0.0
        %2229 = vmatmul.mubr.f32.gmra.mrb[0].mxu0 %v2157
        %v2230 = vpop.f32.mrb[0].mxu0
        %v2231 = vadd.f32 0.0, %v2230
        %v2232 = vpop.f32.mrb[0].mxu0
        %2233 = vdwg.mxu0
        %v2235 = vsel %vm2040, %v2147, 0
        %v2238 = vsel %vm2040, %v2148, 0
        %2240 = vmatprep.subr.mxu0 0.0
        %2241 = vmatpush1.msra.mxu0 %v1598
        %2242 = vmatprep.subr.mxu0 0.0
        %2243 = vmatpush1.msra.mxu0 %v1666
        %2244 = vmatprep.subr.mxu0 0.0
        %2245 = vmatpush1.msra.mxu0 0.0
        %2246 = vmatprep.subr.mxu0 0.0
        %2247 = vmatpush1.msra.mxu0 0.0
        %2248 = vmatprep.subr.mxu0 0.0
        %2249 = vmatpush1.msra.mxu0 0.0
        %2250 = vmatprep.subr.mxu0 0.0
        %2251 = vmatpush1.msra.mxu0 0.0
        %2252 = vmatprep.subr.mxu0 0.0
        %2253 = vmatpush1.msra.mxu0 0.0
        %2254 = vmatprep.subr.mxu0 0.0
        %2255 = vmatpush1.msra.mxu0 0.0
        %2256 = vmatprep.subr.mxu0 0.0
        %2257 = vmatpush1.msra.mxu0 0.0
        %2258 = vmatprep.subr.mxu0 0.0
        %2259 = vmatpush1.msra.mxu0 0.0
        %2260 = vmatprep.subr.mxu0 0.0
        %2261 = vmatpush1.msra.mxu0 0.0
        %2262 = vmatprep.subr.mxu0 0.0
        %2263 = vmatpush1.msra.mxu0 0.0
        %2264 = vmatprep.subr.mxu0 0.0
        %2265 = vmatpush1.msra.mxu0 0.0
        %2266 = vmatprep.subr.mxu0 0.0
        %2267 = vmatpush1.msra.mxu0 0.0
        %2268 = vmatprep.subr.mxu0 0.0
        %2269 = vmatpush1.msra.mxu0 0.0
        %2270 = vmatprep.subr.mxu0 0.0
        %2271 = vmatpush1.msra.mxu0 0.0
        %2272 = vmatprep.subr.mxu0 0.0
        %2273 = vmatpush1.msra.mxu0 0.0
        %2274 = vmatprep.subr.mxu0 0.0
        %2275 = vmatpush1.msra.mxu0 0.0
        %2276 = vmatprep.subr.mxu0 0.0
        %2277 = vmatpush1.msra.mxu0 0.0
        %2278 = vmatprep.subr.mxu0 0.0
        %2279 = vmatpush1.msra.mxu0 0.0
        %2280 = vmatprep.subr.mxu0 0.0
        %2281 = vmatpush1.msra.mxu0 0.0
        %2282 = vmatprep.subr.mxu0 0.0
        %2283 = vmatpush1.msra.mxu0 0.0
        %2284 = vmatprep.subr.mxu0 0.0
        %2285 = vmatpush1.msra.mxu0 0.0
        %2286 = vmatprep.subr.mxu0 0.0
        %2287 = vmatpush1.msra.mxu0 0.0
        %2288 = vmatprep.subr.mxu0 0.0
        %2289 = vmatpush1.msra.mxu0 0.0
        %2290 = vmatprep.subr.mxu0 0.0
        %2291 = vmatpush1.msra.mxu0 0.0
        %2292 = vmatprep.subr.mxu0 0.0
        %2293 = vmatpush1.msra.mxu0 0.0
        %2294 = vmatprep.subr.mxu0 0.0
        %2295 = vmatpush1.msra.mxu0 0.0
        %2296 = vmatprep.subr.mxu0 0.0
        %2297 = vmatpush1.msra.mxu0 0.0
        %2298 = vmatprep.subr.mxu0 0.0
        %2299 = vmatpush1.msra.mxu0 0.0
        %2300 = vmatprep.subr.mxu0 0.0
        %2301 = vmatpush1.msra.mxu0 0.0
        %2302 = vmatprep.subr.mxu0 0.0
        %2303 = vmatpush1.msra.mxu0 0.0
        %2304 = vmatprep.mubr.f32.mxu0 0.0
        %2305 = vmatmul.mubr.f32.gmra.mrb[0].mxu0 %v2235
        %v2306 = vpop.f32.mrb[0].mxu0
        %v2307 = vadd.f32 0.0, %v2306
        %v2308 = vpop.f32.mrb[0].mxu0
        %2309 = vmatprep.mubr.f32.mxu0 0.0
        %2310 = vmatmul.mubr.f32.gmra.mrb[0].mxu0 %v2238
        %v2311 = vpop.f32.mrb[0].mxu0
        %v2312 = vadd.f32 0.0, %v2311
        %v2313 = vpop.f32.mrb[0].mxu0
        %2314 = vdwg.mxu0
        %v2316 = vsel %vm2040, %v2149, 0
        %v2319 = vsel %vm2040, %v2150, 0
        %2321 = vmatprep.subr.mxu0 0.0
        %2322 = vmatpush1.msra.mxu0 %v1599
        %2323 = vmatprep.subr.mxu0 0.0
        %2324 = vmatpush1.msra.mxu0 %v1667
        %2325 = vmatprep.subr.mxu0 0.0
        %2326 = vmatpush1.msra.mxu0 0.0
        %2327 = vmatprep.subr.mxu0 0.0
        %2328 = vmatpush1.msra.mxu0 0.0
        %2329 = vmatprep.subr.mxu0 0.0
        %2330 = vmatpush1.msra.mxu0 0.0
        %2331 = vmatprep.subr.mxu0 0.0
        %2332 = vmatpush1.msra.mxu0 0.0
        %2333 = vmatprep.subr.mxu0 0.0
        %2334 = vmatpush1.msra.mxu0 0.0
        %2335 = vmatprep.subr.mxu0 0.0
        %2336 = vmatpush1.msra.mxu0 0.0
        %2337 = vmatprep.subr.mxu0 0.0
        %2338 = vmatpush1.msra.mxu0 0.0
        %2339 = vmatprep.subr.mxu0 0.0
        %2340 = vmatpush1.msra.mxu0 0.0
        %2341 = vmatprep.subr.mxu0 0.0
        %2342 = vmatpush1.msra.mxu0 0.0
        %2343 = vmatprep.subr.mxu0 0.0
        %2344 = vmatpush1.msra.mxu0 0.0
        %2345 = vmatprep.subr.mxu0 0.0
        %2346 = vmatpush1.msra.mxu0 0.0
        %2347 = vmatprep.subr.mxu0 0.0
        %2348 = vmatpush1.msra.mxu0 0.0
        %2349 = vmatprep.subr.mxu0 0.0
        %2350 = vmatpush1.msra.mxu0 0.0
        %2351 = vmatprep.subr.mxu0 0.0
        %2352 = vmatpush1.msra.mxu0 0.0
        %2353 = vmatprep.subr.mxu0 0.0
        %2354 = vmatpush1.msra.mxu0 0.0
        %2355 = vmatprep.subr.mxu0 0.0
        %2356 = vmatpush1.msra.mxu0 0.0
        %2357 = vmatprep.subr.mxu0 0.0
        %2358 = vmatpush1.msra.mxu0 0.0
        %2359 = vmatprep.subr.mxu0 0.0
        %2360 = vmatpush1.msra.mxu0 0.0
        %2361 = vmatprep.subr.mxu0 0.0
        %2362 = vmatpush1.msra.mxu0 0.0
        %2363 = vmatprep.subr.mxu0 0.0
        %2364 = vmatpush1.msra.mxu0 0.0
        %2365 = vmatprep.subr.mxu0 0.0
        %2366 = vmatpush1.msra.mxu0 0.0
        %2367 = vmatprep.subr.mxu0 0.0
        %2368 = vmatpush1.msra.mxu0 0.0
        %2369 = vmatprep.subr.mxu0 0.0
        %2370 = vmatpush1.msra.mxu0 0.0
        %2371 = vmatprep.subr.mxu0 0.0
        %2372 = vmatpush1.msra.mxu0 0.0
        %2373 = vmatprep.subr.mxu0 0.0
        %2374 = vmatpush1.msra.mxu0 0.0
        %2375 = vmatprep.subr.mxu0 0.0
        %2376 = vmatpush1.msra.mxu0 0.0
        %2377 = vmatprep.subr.mxu0 0.0
        %2378 = vmatpush1.msra.mxu0 0.0
        %2379 = vmatprep.subr.mxu0 0.0
        %2380 = vmatpush1.msra.mxu0 0.0
        %2381 = vmatprep.subr.mxu0 0.0
        %2382 = vmatpush1.msra.mxu0 0.0
        %2383 = vmatprep.subr.mxu0 0.0
        %2384 = vmatpush1.msra.mxu0 0.0
        %2385 = vmatprep.mubr.f32.mxu0 0.0
        %2386 = vmatmul.mubr.f32.gmra.mrb[0].mxu0 %v2316
        %v2387 = vpop.f32.mrb[0].mxu0
        %v2388 = vadd.f32 0.0, %v2387
        %v2389 = vpop.f32.mrb[0].mxu0
        %2390 = vmatprep.mubr.f32.mxu0 0.0
        %2391 = vmatmul.mubr.f32.gmra.mrb[0].mxu0 %v2319
        %v2392 = vpop.f32.mrb[0].mxu0
        %v2393 = vadd.f32 0.0, %v2392
        %v2394 = vpop.f32.mrb[0].mxu0
        %2395 = vdwg.mxu0
        %v2397 = vsel %vm2040, %v2151, 0
        %v2400 = vsel %vm2040, %v2152, 0
        %2402 = vmatprep.subr.mxu0 0.0
        %2403 = vmatpush1.msra.mxu0 %v1600
        %2404 = vmatprep.subr.mxu0 0.0
        %2405 = vmatpush1.msra.mxu0 %v1668
        %2406 = vmatprep.subr.mxu0 0.0
        %2407 = vmatpush1.msra.mxu0 0.0
        %2408 = vmatprep.subr.mxu0 0.0
        %2409 = vmatpush1.msra.mxu0 0.0
        %2410 = vmatprep.subr.mxu0 0.0
        %2411 = vmatpush1.msra.mxu0 0.0
        %2412 = vmatprep.subr.mxu0 0.0
        %2413 = vmatpush1.msra.mxu0 0.0
        %2414 = vmatprep.subr.mxu0 0.0
        %2415 = vmatpush1.msra.mxu0 0.0
        %2416 = vmatprep.subr.mxu0 0.0
        %2417 = vmatpush1.msra.mxu0 0.0
        %2418 = vmatprep.subr.mxu0 0.0
        %2419 = vmatpush1.msra.mxu0 0.0
        %2420 = vmatprep.subr.mxu0 0.0
        %2421 = vmatpush1.msra.mxu0 0.0
        %2422 = vmatprep.subr.mxu0 0.0
        %2423 = vmatpush1.msra.mxu0 0.0
        %2424 = vmatprep.subr.mxu0 0.0
        %2425 = vmatpush1.msra.mxu0 0.0
        %2426 = vmatprep.subr.mxu0 0.0
        %2427 = vmatpush1.msra.mxu0 0.0
        %2428 = vmatprep.subr.mxu0 0.0
        %2429 = vmatpush1.msra.mxu0 0.0
        %2430 = vmatprep.subr.mxu0 0.0
        %2431 = vmatpush1.msra.mxu0 0.0
        %2432 = vmatprep.subr.mxu0 0.0
        %2433 = vmatpush1.msra.mxu0 0.0
        %2434 = vmatprep.subr.mxu0 0.0
        %2435 = vmatpush1.msra.mxu0 0.0
        %2436 = vmatprep.subr.mxu0 0.0
        %2437 = vmatpush1.msra.mxu0 0.0
        %2438 = vmatprep.subr.mxu0 0.0
        %2439 = vmatpush1.msra.mxu0 0.0
        %2440 = vmatprep.subr.mxu0 0.0
        %2441 = vmatpush1.msra.mxu0 0.0
        %2442 = vmatprep.subr.mxu0 0.0
        %2443 = vmatpush1.msra.mxu0 0.0
        %2444 = vmatprep.subr.mxu0 0.0
        %2445 = vmatpush1.msra.mxu0 0.0
        %2446 = vmatprep.subr.mxu0 0.0
        %2447 = vmatpush1.msra.mxu0 0.0
        %2448 = vmatprep.subr.mxu0 0.0
        %2449 = vmatpush1.msra.mxu0 0.0
        %2450 = vmatprep.subr.mxu0 0.0
        %2451 = vmatpush1.msra.mxu0 0.0
        %2452 = vmatprep.subr.mxu0 0.0
        %2453 = vmatpush1.msra.mxu0 0.0
        %2454 = vmatprep.subr.mxu0 0.0
        %2455 = vmatpush1.msra.mxu0 0.0
        %2456 = vmatprep.subr.mxu0 0.0
        %2457 = vmatpush1.msra.mxu0 0.0
        %2458 = vmatprep.subr.mxu0 0.0
        %2459 = vmatpush1.msra.mxu0 0.0
        %2460 = vmatprep.subr.mxu0 0.0
        %2461 = vmatpush1.msra.mxu0 0.0
        %2462 = vmatprep.subr.mxu0 0.0
        %2463 = vmatpush1.msra.mxu0 0.0
        %2464 = vmatprep.subr.mxu0 0.0
        %2465 = vmatpush1.msra.mxu0 0.0
        %2466 = vmatprep.mubr.f32.mxu0 0.0
        %2467 = vmatmul.mubr.f32.gmra.mrb[0].mxu0 %v2397
        %v2468 = vpop.f32.mrb[0].mxu0
        %v2469 = vadd.f32 0.0, %v2468
        %v2470 = vpop.f32.mrb[0].mxu0
        %2471 = vmatprep.mubr.f32.mxu0 0.0
        %2472 = vmatmul.mubr.f32.gmra.mrb[0].mxu0 %v2400
        %v2473 = vpop.f32.mrb[0].mxu0
        %v2474 = vadd.f32 0.0, %v2473
        %v2475 = vpop.f32.mrb[0].mxu0
        %2476 = vdwg.mxu0
        %v2477 = vcombine.low %v2226, %v2388
        %v2478 = vcombine.high %v2226, %v2388
        %v2480 = vunpack.c.l.s4 1983009808
        %v2481 = vunpack.c.0.s8 %v2480
        %v2482 = vlaneseq
        %v2483 = vshrl.u32 %v2482, 7
        %v2484 = vsub.s32 %v2481, %v2483
        %v2485 = vrot.slane %v2477, %v2484
        %v2487 = vunpack.c.l.s4 1983009808
        %v2488 = vunpack.c.0.s8 %v2487
        %v2489 = vlaneseq
        %v2490 = vshrl.u32 %v2489, 7
        %v2491 = vsub.s32 %v2488, %v2490
        %v2492 = vrot.slane %v2478, %v2491
        %v2493 = vcombine.low %v2307, %v2469
        %v2494 = vcombine.high %v2307, %v2469
        %v2496 = vunpack.c.l.s4 1983009808
        %v2497 = vunpack.c.0.s8 %v2496
        %v2498 = vlaneseq
        %v2499 = vshrl.u32 %v2498, 7
        %v2500 = vsub.s32 %v2497, %v2499
        %v2501 = vrot.slane %v2493, %v2500
        %v2503 = vunpack.c.l.s4 1983009808
        %v2504 = vunpack.c.0.s8 %v2503
        %v2505 = vlaneseq
        %v2506 = vshrl.u32 %v2505, 7
        %v2507 = vsub.s32 %v2504, %v2506
        %v2508 = vrot.slane %v2494, %v2507
        %v2509 = vcombine.low %v2485, %v2501
        %v2510 = vcombine.high %v2485, %v2501
        %v2512 = vunpack.c.l.s4 1934713408
        %v2513 = vunpack.c.0.s8 %v2512
        %v2514 = vlaneseq
        %v2515 = vshrl.u32 %v2514, 7
        %v2516 = vsub.s32 %v2513, %v2515
        %v2517 = vrot.slane %v2509, %v2516
        %v2519 = vunpack.c.l.s4 1934713408
        %v2520 = vunpack.c.0.s8 %v2519
        %v2521 = vlaneseq
        %v2522 = vshrl.u32 %v2521, 7
        %v2523 = vsub.s32 %v2520, %v2522
        %v2524 = vrot.slane %v2510, %v2523
        %v2525 = vcombine.low %v2492, %v2508
        %v2526 = vcombine.high %v2492, %v2508
        %v2528 = vunpack.c.l.s4 1934713408
        %v2529 = vunpack.c.0.s8 %v2528
        %v2530 = vlaneseq
        %v2531 = vshrl.u32 %v2530, 7
        %v2532 = vsub.s32 %v2529, %v2531
        %v2533 = vrot.slane %v2525, %v2532
        %v2535 = vunpack.c.l.s4 1934713408
        %v2536 = vunpack.c.0.s8 %v2535
        %v2537 = vlaneseq
        %v2538 = vshrl.u32 %v2537, 7
        %v2539 = vsub.s32 %v2536, %v2538
        %v2540 = vrot.slane %v2526, %v2539
        %v2541 = vcombine.high %v2517, 0.0
        %v2542 = vcombine.high %v2524, 0.0
        %v2543 = vcombine.high %v2533, 0.0
        %v2544 = vcombine.high %v2540, 0.0
        %v2545 = vcombine.low %v2231, %v2393
        %v2546 = vcombine.high %v2231, %v2393
        %v2548 = vunpack.c.l.s4 1983009808
        %v2549 = vunpack.c.0.s8 %v2548
        %v2550 = vlaneseq
        %v2551 = vshrl.u32 %v2550, 7
        %v2552 = vsub.s32 %v2549, %v2551
        %v2553 = vrot.slane %v2545, %v2552
        %v2555 = vunpack.c.l.s4 1983009808
        %v2556 = vunpack.c.0.s8 %v2555
        %v2557 = vlaneseq
        %v2558 = vshrl.u32 %v2557, 7
        %v2559 = vsub.s32 %v2556, %v2558
        %v2560 = vrot.slane %v2546, %v2559
        %v2561 = vcombine.low %v2312, %v2474
        %v2562 = vcombine.high %v2312, %v2474
        %v2564 = vunpack.c.l.s4 1983009808
        %v2565 = vunpack.c.0.s8 %v2564
        %v2566 = vlaneseq
        %v2567 = vshrl.u32 %v2566, 7
        %v2568 = vsub.s32 %v2565, %v2567
        %v2569 = vrot.slane %v2561, %v2568
        %v2571 = vunpack.c.l.s4 1983009808
        %v2572 = vunpack.c.0.s8 %v2571
        %v2573 = vlaneseq
        %v2574 = vshrl.u32 %v2573, 7
        %v2575 = vsub.s32 %v2572, %v2574
        %v2576 = vrot.slane %v2562, %v2575
        %v2577 = vcombine.low %v2553, %v2569
        %v2578 = vcombine.high %v2553, %v2569
        %v2580 = vunpack.c.l.s4 1934713408
        %v2581 = vunpack.c.0.s8 %v2580
        %v2582 = vlaneseq
        %v2583 = vshrl.u32 %v2582, 7
        %v2584 = vsub.s32 %v2581, %v2583
        %v2585 = vrot.slane %v2577, %v2584
        %v2587 = vunpack.c.l.s4 1934713408
        %v2588 = vunpack.c.0.s8 %v2587
        %v2589 = vlaneseq
        %v2590 = vshrl.u32 %v2589, 7
        %v2591 = vsub.s32 %v2588, %v2590
        %v2592 = vrot.slane %v2578, %v2591
        %v2593 = vcombine.low %v2560, %v2576
        %v2594 = vcombine.high %v2560, %v2576
        %v2596 = vunpack.c.l.s4 1934713408
        %v2597 = vunpack.c.0.s8 %v2596
        %v2598 = vlaneseq
        %v2599 = vshrl.u32 %v2598, 7
        %v2600 = vsub.s32 %v2597, %v2599
        %v2601 = vrot.slane %v2593, %v2600
        %v2603 = vunpack.c.l.s4 1934713408
        %v2604 = vunpack.c.0.s8 %v2603
        %v2605 = vlaneseq
        %v2606 = vshrl.u32 %v2605, 7
        %v2607 = vsub.s32 %v2604, %v2606
        %v2608 = vrot.slane %v2594, %v2607
        %v2609 = vcombine.high %v2585, 0.0
        %v2610 = vcombine.high %v2592, 0.0
        %v2611 = vcombine.high %v2601, 0.0
        %v2612 = vcombine.high %v2608, 0.0
        %v2613 = vcombine.low %v2517, %v2524
        %v2615 = vunpack.c.l.s4 1983009808
        %v2616 = vunpack.c.0.s8 %v2615
        %v2617 = vlaneseq
        %v2618 = vshrl.u32 %v2617, 7
        %v2619 = vsub.s32 %v2616, %v2618
        %v2620 = vrot.slane %v2613, %v2619
        %v2621 = vcombine.low %v2541, %v2542
        %v2623 = vunpack.c.l.s4 1983009808
        %v2624 = vunpack.c.0.s8 %v2623
        %v2625 = vlaneseq
        %v2626 = vshrl.u32 %v2625, 7
        %v2627 = vsub.s32 %v2624, %v2626
        %v2628 = vrot.slane %v2621, %v2627
        %v2629 = vcombine.low %v2533, %v2540
        %v2631 = vunpack.c.l.s4 1983009808
        %v2632 = vunpack.c.0.s8 %v2631
        %v2633 = vlaneseq
        %v2634 = vshrl.u32 %v2633, 7
        %v2635 = vsub.s32 %v2632, %v2634
        %v2636 = vrot.slane %v2629, %v2635
        %v2637 = vcombine.low %v2543, %v2544
        %v2639 = vunpack.c.l.s4 1983009808
        %v2640 = vunpack.c.0.s8 %v2639
        %v2641 = vlaneseq
        %v2642 = vshrl.u32 %v2641, 7
        %v2643 = vsub.s32 %v2640, %v2642
        %v2644 = vrot.slane %v2637, %v2643
        %v2645 = vcombine.low %v2620, %v2628
        %v2646 = vcombine.high %v2620, %v2628
        %v2648 = vunpack.c.l.s4 1934713408
        %v2649 = vunpack.c.0.s8 %v2648
        %v2650 = vlaneseq
        %v2651 = vshrl.u32 %v2650, 7
        %v2652 = vsub.s32 %v2649, %v2651
        %v2653 = vrot.slane %v2645, %v2652
        %v2655 = vunpack.c.l.s4 1934713408
        %v2656 = vunpack.c.0.s8 %v2655
        %v2657 = vlaneseq
        %v2658 = vshrl.u32 %v2657, 7
        %v2659 = vsub.s32 %v2656, %v2658
        %v2660 = vrot.slane %v2646, %v2659
        %v2661 = vcombine.low %v2636, %v2644
        %v2662 = vcombine.high %v2636, %v2644
        %v2664 = vunpack.c.l.s4 1934713408
        %v2665 = vunpack.c.0.s8 %v2664
        %v2666 = vlaneseq
        %v2667 = vshrl.u32 %v2666, 7
        %v2668 = vsub.s32 %v2665, %v2667
        %v2669 = vrot.slane %v2661, %v2668
        %v2671 = vunpack.c.l.s4 1934713408
        %v2672 = vunpack.c.0.s8 %v2671
        %v2673 = vlaneseq
        %v2674 = vshrl.u32 %v2673, 7
        %v2675 = vsub.s32 %v2672, %v2674
        %v2676 = vrot.slane %v2662, %v2675
        %v2677 = vcombine.low %v2653, %v2669
        %v2678 = vcombine.high %v2653, %v2669
        %v2679 = vcombine.low %v2660, %v2676
        %v2680 = vcombine.high %v2660, %v2676
        %v2681 = vcombine.low %v2585, %v2592
        %v2683 = vunpack.c.l.s4 1983009808
        %v2684 = vunpack.c.0.s8 %v2683
        %v2685 = vlaneseq
        %v2686 = vshrl.u32 %v2685, 7
        %v2687 = vsub.s32 %v2684, %v2686
        %v2688 = vrot.slane %v2681, %v2687
        %v2689 = vcombine.low %v2609, %v2610
        %v2691 = vunpack.c.l.s4 1983009808
        %v2692 = vunpack.c.0.s8 %v2691
        %v2693 = vlaneseq
        %v2694 = vshrl.u32 %v2693, 7
        %v2695 = vsub.s32 %v2692, %v2694
        %v2696 = vrot.slane %v2689, %v2695
        %v2697 = vcombine.low %v2601, %v2608
        %v2699 = vunpack.c.l.s4 1983009808
        %v2700 = vunpack.c.0.s8 %v2699
        %v2701 = vlaneseq
        %v2702 = vshrl.u32 %v2701, 7
        %v2703 = vsub.s32 %v2700, %v2702
        %v2704 = vrot.slane %v2697, %v2703
        %v2705 = vcombine.low %v2611, %v2612
        %v2707 = vunpack.c.l.s4 1983009808
        %v2708 = vunpack.c.0.s8 %v2707
        %v2709 = vlaneseq
        %v2710 = vshrl.u32 %v2709, 7
        %v2711 = vsub.s32 %v2708, %v2710
        %v2712 = vrot.slane %v2705, %v2711
        %v2713 = vcombine.low %v2688, %v2696
        %v2714 = vcombine.high %v2688, %v2696
        %v2716 = vunpack.c.l.s4 1934713408
        %v2717 = vunpack.c.0.s8 %v2716
        %v2718 = vlaneseq
        %v2719 = vshrl.u32 %v2718, 7
        %v2720 = vsub.s32 %v2717, %v2719
        %v2721 = vrot.slane %v2713, %v2720
        %v2723 = vunpack.c.l.s4 1934713408
        %v2724 = vunpack.c.0.s8 %v2723
        %v2725 = vlaneseq
        %v2726 = vshrl.u32 %v2725, 7
        %v2727 = vsub.s32 %v2724, %v2726
        %v2728 = vrot.slane %v2714, %v2727
        %v2729 = vcombine.low %v2704, %v2712
        %v2730 = vcombine.high %v2704, %v2712
        %v2732 = vunpack.c.l.s4 1934713408
        %v2733 = vunpack.c.0.s8 %v2732
        %v2734 = vlaneseq
        %v2735 = vshrl.u32 %v2734, 7
        %v2736 = vsub.s32 %v2733, %v2735
        %v2737 = vrot.slane %v2729, %v2736
        %v2739 = vunpack.c.l.s4 1934713408
        %v2740 = vunpack.c.0.s8 %v2739
        %v2741 = vlaneseq
        %v2742 = vshrl.u32 %v2741, 7
        %v2743 = vsub.s32 %v2740, %v2742
        %v2744 = vrot.slane %v2730, %v2743
        %v2745 = vcombine.low %v2721, %v2737
        %v2746 = vcombine.high %v2721, %v2737
        %v2747 = vcombine.low %v2728, %v2744
        %v2748 = vcombine.high %v2728, %v2744
        %2751 = vrot.lane.b32.xlu0 %v2678, 8
        %v2752 = vpop.permute.xlu0 %2751
        %2753 = vrot.lane.b32.xlu0 %v2746, 8
        %v2754 = vpop.permute.xlu0 %2753
        %2759 = vrot.lane.b32.xlu0 %v2679, 16
        %v2760 = vpop.permute.xlu0 %2759
        %2761 = vrot.lane.b32.xlu0 %v2747, 16
        %v2762 = vpop.permute.xlu0 %2761
        %2767 = vrot.lane.b32.xlu0 %v2680, 24
        %v2768 = vpop.permute.xlu0 %2767
        %2769 = vrot.lane.b32.xlu0 %v2748, 24
        %v2770 = vpop.permute.xlu0 %2769
        %v2773 = vsel %vm1671, %v2677, %v2752
        %v2774 = vsel %vm1671, %v2745, %v2754
        %v2775 = vsel %vm2040, %v2773, %v2760
        %v2776 = vsel %vm2040, %v2774, %v2762
        %v2777 = vsel %vm615, %v2775, %v2768
        %v2778 = vsel %vm615, %v2776, %v2770
        %v2779 = vadd.f32 %v2777, 0.0
        %v2780 = vadd.f32 %v2778, 0.0
        %2781 = vrot.lane.b32.xlu0 %v777, 32
        %v2782 = vpop.permute.xlu0 %2781
        %2783 = vrot.lane.b32.xlu0 %v782, 32
        %v2784 = vpop.permute.xlu0 %2783
        %v2787 = vadd.f32 %v2779, %v2782
        %v2788 = vadd.f32 %v2780, %v2784
        %v2790 = vlaneseq
        %v2791 = vshrl.u32 %v2790, 7
        %v2792 = vsub.s32 0, %v2791
        %v2793 = vrot.slane %v584, %v2792
        %2795 = vmatprep.subr.mxu0 0.0
        %2796 = vmatpush1.msra.mxu0 %v571
        %2797 = vmatprep.subr.mxu0 0.0
        %2798 = vmatpush1.msra.mxu0 %v572
        %2799 = vmatprep.subr.mxu0 0.0
        %2800 = vmatpush1.msra.mxu0 %v573
        %2801 = vmatprep.subr.mxu0 0.0
        %2802 = vmatpush1.msra.mxu0 %v574
        %2803 = vmatprep.subr.mxu0 0.0
        %2804 = vmatpush1.msra.mxu0 0.0
        %2805 = vmatprep.subr.mxu0 0.0
        %2806 = vmatpush1.msra.mxu0 0.0
        %2807 = vmatprep.subr.mxu0 0.0
        %2808 = vmatpush1.msra.mxu0 0.0
        %2809 = vmatprep.subr.mxu0 0.0
        %2810 = vmatpush1.msra.mxu0 0.0
        %2811 = vmatprep.subr.mxu0 0.0
        %2812 = vmatpush1.msra.mxu0 0.0
        %2813 = vmatprep.subr.mxu0 0.0
        %2814 = vmatpush1.msra.mxu0 0.0
        %2815 = vmatprep.subr.mxu0 0.0
        %2816 = vmatpush1.msra.mxu0 0.0
        %2817 = vmatprep.subr.mxu0 0.0
        %2818 = vmatpush1.msra.mxu0 0.0
        %2819 = vmatprep.subr.mxu0 0.0
        %2820 = vmatpush1.msra.mxu0 0.0
        %2821 = vmatprep.subr.mxu0 0.0
        %2822 = vmatpush1.msra.mxu0 0.0
        %2823 = vmatprep.subr.mxu0 0.0
        %2824 = vmatpush1.msra.mxu0 0.0
        %2825 = vmatprep.subr.mxu0 0.0
        %2826 = vmatpush1.msra.mxu0 0.0
        %2827 = vmatprep.subr.mxu0 0.0
        %2828 = vmatpush1.msra.mxu0 0.0
        %2829 = vmatprep.subr.mxu0 0.0
        %2830 = vmatpush1.msra.mxu0 0.0
        %2831 = vmatprep.subr.mxu0 0.0
        %2832 = vmatpush1.msra.mxu0 0.0
        %2833 = vmatprep.subr.mxu0 0.0
        %2834 = vmatpush1.msra.mxu0 0.0
        %2835 = vmatprep.subr.mxu0 0.0
        %2836 = vmatpush1.msra.mxu0 0.0
        %2837 = vmatprep.subr.mxu0 0.0
        %2838 = vmatpush1.msra.mxu0 0.0
        %2839 = vmatprep.subr.mxu0 0.0
        %2840 = vmatpush1.msra.mxu0 0.0
        %2841 = vmatprep.subr.mxu0 0.0
        %2842 = vmatpush1.msra.mxu0 0.0
        %2843 = vmatprep.subr.mxu0 0.0
        %2844 = vmatpush1.msra.mxu0 0.0
        %2845 = vmatprep.subr.mxu0 0.0
        %2846 = vmatpush1.msra.mxu0 0.0
        %2847 = vmatprep.subr.mxu0 0.0
        %2848 = vmatpush1.msra.mxu0 0.0
        %2849 = vmatprep.subr.mxu0 0.0
        %2850 = vmatpush1.msra.mxu0 0.0
        %2851 = vmatprep.subr.mxu0 0.0
        %2852 = vmatpush1.msra.mxu0 0.0
        %2853 = vmatprep.subr.mxu0 0.0
        %2854 = vmatpush1.msra.mxu0 0.0
        %2855 = vmatprep.subr.mxu0 0.0
        %2856 = vmatpush1.msra.mxu0 0.0
        %2857 = vmatprep.subr.mxu0 0.0
        %2858 = vmatpush1.msra.mxu0 0.0
        %2859 = vmatprep.mubr.f32.mxu0 0.0
        %2860 = vmatmul.mubr.f32.gmra.mrb[0].mxu0 %v705
        %v2861 = vpop.f32.mrb[0].mxu0
        %v2862 = vadd.f32 %v2793, %v2861
        %v2863 = vpop.f32.mrb[0].mxu0
        %2864 = vmatprep.mubr.f32.mxu0 0.0
        %2865 = vmatmul.mubr.f32.gmra.mrb[0].mxu0 %v708
        %v2866 = vpop.f32.mrb[0].mxu0
        %v2867 = vadd.f32 %v2793, %v2866
        %v2868 = vpop.f32.mrb[0].mxu0
        %2869 = vdwg.mxu0
        %2872 = vrot.lane.b32.xlu0 %v2862, 120
        %v2873 = vpop.permute.xlu0 %2872
        %2874 = vrot.lane.b32.xlu0 %v2867, 120
        %v2875 = vpop.permute.xlu0 %2874
        %2878 = vrot.lane.b32.xlu0 %v2862, 112
        %v2879 = vpop.permute.xlu0 %2878
        %2880 = vrot.lane.b32.xlu0 %v2867, 112
        %v2881 = vpop.permute.xlu0 %2880
        %2884 = vrot.lane.b32.xlu0 %v2862, 104
        %v2885 = vpop.permute.xlu0 %2884
        %2886 = vrot.lane.b32.xlu0 %v2867, 104
        %v2887 = vpop.permute.xlu0 %2886
        %v2890 = vcombine.low %v2862, %v2879
        %v2891 = vcombine.high %v2862, %v2879
        %v2893 = vunpack.c.l.s4 1983009808
        %v2894 = vunpack.c.0.s8 %v2893
        %v2895 = vlaneseq
        %v2896 = vshrl.u32 %v2895, 7
        %v2897 = vsub.s32 %v2894, %v2896
        %v2898 = vrot.slane %v2890, %v2897
        %v2900 = vunpack.c.l.s4 1983009808
        %v2901 = vunpack.c.0.s8 %v2900
        %v2902 = vlaneseq
        %v2903 = vshrl.u32 %v2902, 7
        %v2904 = vsub.s32 %v2901, %v2903
        %v2905 = vrot.slane %v2891, %v2904
        %v2906 = vcombine.low %v2873, %v2885
        %v2907 = vcombine.high %v2873, %v2885
        %v2909 = vunpack.c.l.s4 1983009808
        %v2910 = vunpack.c.0.s8 %v2909
        %v2911 = vlaneseq
        %v2912 = vshrl.u32 %v2911, 7
        %v2913 = vsub.s32 %v2910, %v2912
        %v2914 = vrot.slane %v2906, %v2913
        %v2916 = vunpack.c.l.s4 1983009808
        %v2917 = vunpack.c.0.s8 %v2916
        %v2918 = vlaneseq
        %v2919 = vshrl.u32 %v2918, 7
        %v2920 = vsub.s32 %v2917, %v2919
        %v2921 = vrot.slane %v2907, %v2920
        %v2922 = vcombine.low %v2898, %v2914
        %v2923 = vcombine.high %v2898, %v2914
        %v2925 = vunpack.c.l.s4 1934713408
        %v2926 = vunpack.c.0.s8 %v2925
        %v2927 = vlaneseq
        %v2928 = vshrl.u32 %v2927, 7
        %v2929 = vsub.s32 %v2926, %v2928
        %v2930 = vrot.slane %v2922, %v2929
        %v2932 = vunpack.c.l.s4 1934713408
        %v2933 = vunpack.c.0.s8 %v2932
        %v2934 = vlaneseq
        %v2935 = vshrl.u32 %v2934, 7
        %v2936 = vsub.s32 %v2933, %v2935
        %v2937 = vrot.slane %v2923, %v2936
        %v2938 = vcombine.low %v2905, %v2921
        %v2939 = vcombine.high %v2905, %v2921
        %v2941 = vunpack.c.l.s4 1934713408
        %v2942 = vunpack.c.0.s8 %v2941
        %v2943 = vlaneseq
        %v2944 = vshrl.u32 %v2943, 7
        %v2945 = vsub.s32 %v2942, %v2944
        %v2946 = vrot.slane %v2938, %v2945
        %v2948 = vunpack.c.l.s4 1934713408
        %v2949 = vunpack.c.0.s8 %v2948
        %v2950 = vlaneseq
        %v2951 = vshrl.u32 %v2950, 7
        %v2952 = vsub.s32 %v2949, %v2951
        %v2953 = vrot.slane %v2939, %v2952
        %v2954 = vcombine.high %v2930, 0.0
        %v2955 = vcombine.high %v2937, 0.0
        %v2956 = vcombine.high %v2946, 0.0
        %v2957 = vcombine.high %v2953, 0.0
        %v2958 = vcombine.low %v2867, %v2881
        %v2959 = vcombine.high %v2867, %v2881
        %v2961 = vunpack.c.l.s4 1983009808
        %v2962 = vunpack.c.0.s8 %v2961
        %v2963 = vlaneseq
        %v2964 = vshrl.u32 %v2963, 7
        %v2965 = vsub.s32 %v2962, %v2964
        %v2966 = vrot.slane %v2958, %v2965
        %v2968 = vunpack.c.l.s4 1983009808
        %v2969 = vunpack.c.0.s8 %v2968
        %v2970 = vlaneseq
        %v2971 = vshrl.u32 %v2970, 7
        %v2972 = vsub.s32 %v2969, %v2971
        %v2973 = vrot.slane %v2959, %v2972
        %v2974 = vcombine.low %v2875, %v2887
        %v2975 = vcombine.high %v2875, %v2887
        %v2977 = vunpack.c.l.s4 1983009808
        %v2978 = vunpack.c.0.s8 %v2977
        %v2979 = vlaneseq
        %v2980 = vshrl.u32 %v2979, 7
        %v2981 = vsub.s32 %v2978, %v2980
        %v2982 = vrot.slane %v2974, %v2981
        %v2984 = vunpack.c.l.s4 1983009808
        %v2985 = vunpack.c.0.s8 %v2984
        %v2986 = vlaneseq
        %v2987 = vshrl.u32 %v2986, 7
        %v2988 = vsub.s32 %v2985, %v2987
        %v2989 = vrot.slane %v2975, %v2988
        %v2990 = vcombine.low %v2966, %v2982
        %v2991 = vcombine.high %v2966, %v2982
        %v2993 = vunpack.c.l.s4 1934713408
        %v2994 = vunpack.c.0.s8 %v2993
        %v2995 = vlaneseq
        %v2996 = vshrl.u32 %v2995, 7
        %v2997 = vsub.s32 %v2994, %v2996
        %v2998 = vrot.slane %v2990, %v2997
        %v3000 = vunpack.c.l.s4 1934713408
        %v3001 = vunpack.c.0.s8 %v3000
        %v3002 = vlaneseq
        %v3003 = vshrl.u32 %v3002, 7
        %v3004 = vsub.s32 %v3001, %v3003
        %v3005 = vrot.slane %v2991, %v3004
        %v3006 = vcombine.low %v2973, %v2989
        %v3007 = vcombine.high %v2973, %v2989
        %v3009 = vunpack.c.l.s4 1934713408
        %v3010 = vunpack.c.0.s8 %v3009
        %v3011 = vlaneseq
        %v3012 = vshrl.u32 %v3011, 7
        %v3013 = vsub.s32 %v3010, %v3012
        %v3014 = vrot.slane %v3006, %v3013
        %v3016 = vunpack.c.l.s4 1934713408
        %v3017 = vunpack.c.0.s8 %v3016
        %v3018 = vlaneseq
        %v3019 = vshrl.u32 %v3018, 7
        %v3020 = vsub.s32 %v3017, %v3019
        %v3021 = vrot.slane %v3007, %v3020
        %v3022 = vcombine.high %v2998, 0.0
        %v3023 = vcombine.high %v3005, 0.0
        %v3024 = vcombine.high %v3014, 0.0
        %v3025 = vcombine.high %v3021, 0.0
        %v3026 = vcombine.low %v2930, %v2937
        %v3028 = vunpack.c.l.s4 1983009808
        %v3029 = vunpack.c.0.s8 %v3028
        %v3030 = vlaneseq
        %v3031 = vshrl.u32 %v3030, 7
        %v3032 = vsub.s32 %v3029, %v3031
        %v3033 = vrot.slane %v3026, %v3032
        %v3034 = vcombine.low %v2954, %v2955
        %v3036 = vunpack.c.l.s4 1983009808
        %v3037 = vunpack.c.0.s8 %v3036
        %v3038 = vlaneseq
        %v3039 = vshrl.u32 %v3038, 7
        %v3040 = vsub.s32 %v3037, %v3039
        %v3041 = vrot.slane %v3034, %v3040
        %v3042 = vcombine.low %v2946, %v2953
        %v3044 = vunpack.c.l.s4 1983009808
        %v3045 = vunpack.c.0.s8 %v3044
        %v3046 = vlaneseq
        %v3047 = vshrl.u32 %v3046, 7
        %v3048 = vsub.s32 %v3045, %v3047
        %v3049 = vrot.slane %v3042, %v3048
        %v3050 = vcombine.low %v2956, %v2957
        %v3052 = vunpack.c.l.s4 1983009808
        %v3053 = vunpack.c.0.s8 %v3052
        %v3054 = vlaneseq
        %v3055 = vshrl.u32 %v3054, 7
        %v3056 = vsub.s32 %v3053, %v3055
        %v3057 = vrot.slane %v3050, %v3056
        %v3058 = vcombine.low %v3033, %v3041
        %v3059 = vcombine.high %v3033, %v3041
        %v3061 = vunpack.c.l.s4 1934713408
        %v3062 = vunpack.c.0.s8 %v3061
        %v3063 = vlaneseq
        %v3064 = vshrl.u32 %v3063, 7
        %v3065 = vsub.s32 %v3062, %v3064
        %v3066 = vrot.slane %v3058, %v3065
        %v3068 = vunpack.c.l.s4 1934713408
        %v3069 = vunpack.c.0.s8 %v3068
        %v3070 = vlaneseq
        %v3071 = vshrl.u32 %v3070, 7
        %v3072 = vsub.s32 %v3069, %v3071
        %v3073 = vrot.slane %v3059, %v3072
        %v3074 = vcombine.low %v3049, %v3057
        %v3075 = vcombine.high %v3049, %v3057
        %v3077 = vunpack.c.l.s4 1934713408
        %v3078 = vunpack.c.0.s8 %v3077
        %v3079 = vlaneseq
        %v3080 = vshrl.u32 %v3079, 7
        %v3081 = vsub.s32 %v3078, %v3080
        %v3082 = vrot.slane %v3074, %v3081
        %v3084 = vunpack.c.l.s4 1934713408
        %v3085 = vunpack.c.0.s8 %v3084
        %v3086 = vlaneseq
        %v3087 = vshrl.u32 %v3086, 7
        %v3088 = vsub.s32 %v3085, %v3087
        %v3089 = vrot.slane %v3075, %v3088
        %v3090 = vcombine.low %v3066, %v3082
        %v3091 = vcombine.high %v3066, %v3082
        %v3092 = vcombine.low %v3073, %v3089
        %v3093 = vcombine.high %v3073, %v3089
        %v3094 = vcombine.low %v2998, %v3005
        %v3096 = vunpack.c.l.s4 1983009808
        %v3097 = vunpack.c.0.s8 %v3096
        %v3098 = vlaneseq
        %v3099 = vshrl.u32 %v3098, 7
        %v3100 = vsub.s32 %v3097, %v3099
        %v3101 = vrot.slane %v3094, %v3100
        %v3102 = vcombine.low %v3022, %v3023
        %v3104 = vunpack.c.l.s4 1983009808
        %v3105 = vunpack.c.0.s8 %v3104
        %v3106 = vlaneseq
        %v3107 = vshrl.u32 %v3106, 7
        %v3108 = vsub.s32 %v3105, %v3107
        %v3109 = vrot.slane %v3102, %v3108
        %v3110 = vcombine.low %v3014, %v3021
        %v3112 = vunpack.c.l.s4 1983009808
        %v3113 = vunpack.c.0.s8 %v3112
        %v3114 = vlaneseq
        %v3115 = vshrl.u32 %v3114, 7
        %v3116 = vsub.s32 %v3113, %v3115
        %v3117 = vrot.slane %v3110, %v3116
        %v3118 = vcombine.low %v3024, %v3025
        %v3120 = vunpack.c.l.s4 1983009808
        %v3121 = vunpack.c.0.s8 %v3120
        %v3122 = vlaneseq
        %v3123 = vshrl.u32 %v3122, 7
        %v3124 = vsub.s32 %v3121, %v3123
        %v3125 = vrot.slane %v3118, %v3124
        %v3126 = vcombine.low %v3101, %v3109
        %v3127 = vcombine.high %v3101, %v3109
        %v3129 = vunpack.c.l.s4 1934713408
        %v3130 = vunpack.c.0.s8 %v3129
        %v3131 = vlaneseq
        %v3132 = vshrl.u32 %v3131, 7
        %v3133 = vsub.s32 %v3130, %v3132
        %v3134 = vrot.slane %v3126, %v3133
        %v3136 = vunpack.c.l.s4 1934713408
        %v3137 = vunpack.c.0.s8 %v3136
        %v3138 = vlaneseq
        %v3139 = vshrl.u32 %v3138, 7
        %v3140 = vsub.s32 %v3137, %v3139
        %v3141 = vrot.slane %v3127, %v3140
        %v3142 = vcombine.low %v3117, %v3125
        %v3143 = vcombine.high %v3117, %v3125
        %v3145 = vunpack.c.l.s4 1934713408
        %v3146 = vunpack.c.0.s8 %v3145
        %v3147 = vlaneseq
        %v3148 = vshrl.u32 %v3147, 7
        %v3149 = vsub.s32 %v3146, %v3148
        %v3150 = vrot.slane %v3142, %v3149
        %v3152 = vunpack.c.l.s4 1934713408
        %v3153 = vunpack.c.0.s8 %v3152
        %v3154 = vlaneseq
        %v3155 = vshrl.u32 %v3154, 7
        %v3156 = vsub.s32 %v3153, %v3155
        %v3157 = vrot.slane %v3143, %v3156
        %v3158 = vcombine.low %v3134, %v3150
        %v3159 = vcombine.high %v3134, %v3150
        %v3160 = vcombine.low %v3141, %v3157
        %v3161 = vcombine.high %v3141, %v3157
        %3162 = vrot.lane.b32.xlu0 %v2862, 96
        %v3163 = vpop.permute.xlu0 %3162
        %3164 = vrot.lane.b32.xlu0 %v2867, 96
        %v3165 = vpop.permute.xlu0 %3164
        %3166 = vrot.lane.b32.xlu0 %v2873, 96
        %v3167 = vpop.permute.xlu0 %3166
        %3168 = vrot.lane.b32.xlu0 %v2875, 96
        %v3169 = vpop.permute.xlu0 %3168
        %3170 = vrot.lane.b32.xlu0 %v2879, 96
        %v3171 = vpop.permute.xlu0 %3170
        %3172 = vrot.lane.b32.xlu0 %v2881, 96
        %v3173 = vpop.permute.xlu0 %3172
        %3174 = vrot.lane.b32.xlu0 %v2885, 96
        %v3175 = vpop.permute.xlu0 %3174
        %3176 = vrot.lane.b32.xlu0 %v2887, 96
        %v3177 = vpop.permute.xlu0 %3176
        %v3186 = vcombine.low %v3163, %v3171
        %v3187 = vcombine.high %v3163, %v3171
        %v3189 = vunpack.c.l.s4 1983009808
        %v3190 = vunpack.c.0.s8 %v3189
        %v3191 = vlaneseq
        %v3192 = vshrl.u32 %v3191, 7
        %v3193 = vsub.s32 %v3190, %v3192
        %v3194 = vrot.slane %v3186, %v3193
        %v3196 = vunpack.c.l.s4 1983009808
        %v3197 = vunpack.c.0.s8 %v3196
        %v3198 = vlaneseq
        %v3199 = vshrl.u32 %v3198, 7
        %v3200 = vsub.s32 %v3197, %v3199
        %v3201 = vrot.slane %v3187, %v3200
        %v3202 = vcombine.low %v3167, %v3175
        %v3203 = vcombine.high %v3167, %v3175
        %v3205 = vunpack.c.l.s4 1983009808
        %v3206 = vunpack.c.0.s8 %v3205
        %v3207 = vlaneseq
        %v3208 = vshrl.u32 %v3207, 7
        %v3209 = vsub.s32 %v3206, %v3208
        %v3210 = vrot.slane %v3202, %v3209
        %v3212 = vunpack.c.l.s4 1983009808
        %v3213 = vunpack.c.0.s8 %v3212
        %v3214 = vlaneseq
        %v3215 = vshrl.u32 %v3214, 7
        %v3216 = vsub.s32 %v3213, %v3215
        %v3217 = vrot.slane %v3203, %v3216
        %v3218 = vcombine.low %v3194, %v3210
        %v3219 = vcombine.high %v3194, %v3210
        %v3221 = vunpack.c.l.s4 1934713408
        %v3222 = vunpack.c.0.s8 %v3221
        %v3223 = vlaneseq
        %v3224 = vshrl.u32 %v3223, 7
        %v3225 = vsub.s32 %v3222, %v3224
        %v3226 = vrot.slane %v3218, %v3225
        %v3228 = vunpack.c.l.s4 1934713408
        %v3229 = vunpack.c.0.s8 %v3228
        %v3230 = vlaneseq
        %v3231 = vshrl.u32 %v3230, 7
        %v3232 = vsub.s32 %v3229, %v3231
        %v3233 = vrot.slane %v3219, %v3232
        %v3234 = vcombine.low %v3201, %v3217
        %v3235 = vcombine.high %v3201, %v3217
        %v3237 = vunpack.c.l.s4 1934713408
        %v3238 = vunpack.c.0.s8 %v3237
        %v3239 = vlaneseq
        %v3240 = vshrl.u32 %v3239, 7
        %v3241 = vsub.s32 %v3238, %v3240
        %v3242 = vrot.slane %v3234, %v3241
        %v3244 = vunpack.c.l.s4 1934713408
        %v3245 = vunpack.c.0.s8 %v3244
        %v3246 = vlaneseq
        %v3247 = vshrl.u32 %v3246, 7
        %v3248 = vsub.s32 %v3245, %v3247
        %v3249 = vrot.slane %v3235, %v3248
        %v3250 = vcombine.high %v3226, 0.0
        %v3251 = vcombine.high %v3233, 0.0
        %v3252 = vcombine.high %v3242, 0.0
        %v3253 = vcombine.high %v3249, 0.0
        %v3254 = vcombine.low %v3165, %v3173
        %v3255 = vcombine.high %v3165, %v3173
        %v3257 = vunpack.c.l.s4 1983009808
        %v3258 = vunpack.c.0.s8 %v3257
        %v3259 = vlaneseq
        %v3260 = vshrl.u32 %v3259, 7
        %v3261 = vsub.s32 %v3258, %v3260
        %v3262 = vrot.slane %v3254, %v3261
        %v3264 = vunpack.c.l.s4 1983009808
        %v3265 = vunpack.c.0.s8 %v3264
        %v3266 = vlaneseq
        %v3267 = vshrl.u32 %v3266, 7
        %v3268 = vsub.s32 %v3265, %v3267
        %v3269 = vrot.slane %v3255, %v3268
        %v3270 = vcombine.low %v3169, %v3177
        %v3271 = vcombine.high %v3169, %v3177
        %v3273 = vunpack.c.l.s4 1983009808
        %v3274 = vunpack.c.0.s8 %v3273
        %v3275 = vlaneseq
        %v3276 = vshrl.u32 %v3275, 7
        %v3277 = vsub.s32 %v3274, %v3276
        %v3278 = vrot.slane %v3270, %v3277
        %v3280 = vunpack.c.l.s4 1983009808
        %v3281 = vunpack.c.0.s8 %v3280
        %v3282 = vlaneseq
        %v3283 = vshrl.u32 %v3282, 7
        %v3284 = vsub.s32 %v3281, %v3283
        %v3285 = vrot.slane %v3271, %v3284
        %v3286 = vcombine.low %v3262, %v3278
        %v3287 = vcombine.high %v3262, %v3278
        %v3289 = vunpack.c.l.s4 1934713408
        %v3290 = vunpack.c.0.s8 %v3289
        %v3291 = vlaneseq
        %v3292 = vshrl.u32 %v3291, 7
        %v3293 = vsub.s32 %v3290, %v3292
        %v3294 = vrot.slane %v3286, %v3293
        %v3296 = vunpack.c.l.s4 1934713408
        %v3297 = vunpack.c.0.s8 %v3296
        %v3298 = vlaneseq
        %v3299 = vshrl.u32 %v3298, 7
        %v3300 = vsub.s32 %v3297, %v3299
        %v3301 = vrot.slane %v3287, %v3300
        %v3302 = vcombine.low %v3269, %v3285
        %v3303 = vcombine.high %v3269, %v3285
        %v3305 = vunpack.c.l.s4 1934713408
        %v3306 = vunpack.c.0.s8 %v3305
        %v3307 = vlaneseq
        %v3308 = vshrl.u32 %v3307, 7
        %v3309 = vsub.s32 %v3306, %v3308
        %v3310 = vrot.slane %v3302, %v3309
        %v3312 = vunpack.c.l.s4 1934713408
        %v3313 = vunpack.c.0.s8 %v3312
        %v3314 = vlaneseq
        %v3315 = vshrl.u32 %v3314, 7
        %v3316 = vsub.s32 %v3313, %v3315
        %v3317 = vrot.slane %v3303, %v3316
        %v3318 = vcombine.high %v3294, 0.0
        %v3319 = vcombine.high %v3301, 0.0
        %v3320 = vcombine.high %v3310, 0.0
        %v3321 = vcombine.high %v3317, 0.0
        %v3322 = vcombine.low %v3226, %v3233
        %v3324 = vunpack.c.l.s4 1983009808
        %v3325 = vunpack.c.0.s8 %v3324
        %v3326 = vlaneseq
        %v3327 = vshrl.u32 %v3326, 7
        %v3328 = vsub.s32 %v3325, %v3327
        %v3329 = vrot.slane %v3322, %v3328
        %v3330 = vcombine.low %v3250, %v3251
        %v3332 = vunpack.c.l.s4 1983009808
        %v3333 = vunpack.c.0.s8 %v3332
        %v3334 = vlaneseq
        %v3335 = vshrl.u32 %v3334, 7
        %v3336 = vsub.s32 %v3333, %v3335
        %v3337 = vrot.slane %v3330, %v3336
        %v3338 = vcombine.low %v3242, %v3249
        %v3340 = vunpack.c.l.s4 1983009808
        %v3341 = vunpack.c.0.s8 %v3340
        %v3342 = vlaneseq
        %v3343 = vshrl.u32 %v3342, 7
        %v3344 = vsub.s32 %v3341, %v3343
        %v3345 = vrot.slane %v3338, %v3344
        %v3346 = vcombine.low %v3252, %v3253
        %v3348 = vunpack.c.l.s4 1983009808
        %v3349 = vunpack.c.0.s8 %v3348
        %v3350 = vlaneseq
        %v3351 = vshrl.u32 %v3350, 7
        %v3352 = vsub.s32 %v3349, %v3351
        %v3353 = vrot.slane %v3346, %v3352
        %v3354 = vcombine.low %v3329, %v3337
        %v3355 = vcombine.high %v3329, %v3337
        %v3357 = vunpack.c.l.s4 1934713408
        %v3358 = vunpack.c.0.s8 %v3357
        %v3359 = vlaneseq
        %v3360 = vshrl.u32 %v3359, 7
        %v3361 = vsub.s32 %v3358, %v3360
        %v3362 = vrot.slane %v3354, %v3361
        %v3364 = vunpack.c.l.s4 1934713408
        %v3365 = vunpack.c.0.s8 %v3364
        %v3366 = vlaneseq
        %v3367 = vshrl.u32 %v3366, 7
        %v3368 = vsub.s32 %v3365, %v3367
        %v3369 = vrot.slane %v3355, %v3368
        %v3370 = vcombine.low %v3345, %v3353
        %v3371 = vcombine.high %v3345, %v3353
        %v3373 = vunpack.c.l.s4 1934713408
        %v3374 = vunpack.c.0.s8 %v3373
        %v3375 = vlaneseq
        %v3376 = vshrl.u32 %v3375, 7
        %v3377 = vsub.s32 %v3374, %v3376
        %v3378 = vrot.slane %v3370, %v3377
        %v3380 = vunpack.c.l.s4 1934713408
        %v3381 = vunpack.c.0.s8 %v3380
        %v3382 = vlaneseq
        %v3383 = vshrl.u32 %v3382, 7
        %v3384 = vsub.s32 %v3381, %v3383
        %v3385 = vrot.slane %v3371, %v3384
        %v3386 = vcombine.low %v3362, %v3378
        %v3387 = vcombine.high %v3362, %v3378
        %v3388 = vcombine.low %v3369, %v3385
        %v3389 = vcombine.high %v3369, %v3385
        %v3390 = vcombine.low %v3294, %v3301
        %v3392 = vunpack.c.l.s4 1983009808
        %v3393 = vunpack.c.0.s8 %v3392
        %v3394 = vlaneseq
        %v3395 = vshrl.u32 %v3394, 7
        %v3396 = vsub.s32 %v3393, %v3395
        %v3397 = vrot.slane %v3390, %v3396
        %v3398 = vcombine.low %v3318, %v3319
        %v3400 = vunpack.c.l.s4 1983009808
        %v3401 = vunpack.c.0.s8 %v3400
        %v3402 = vlaneseq
        %v3403 = vshrl.u32 %v3402, 7
        %v3404 = vsub.s32 %v3401, %v3403
        %v3405 = vrot.slane %v3398, %v3404
        %v3406 = vcombine.low %v3310, %v3317
        %v3408 = vunpack.c.l.s4 1983009808
        %v3409 = vunpack.c.0.s8 %v3408
        %v3410 = vlaneseq
        %v3411 = vshrl.u32 %v3410, 7
        %v3412 = vsub.s32 %v3409, %v3411
        %v3413 = vrot.slane %v3406, %v3412
        %v3414 = vcombine.low %v3320, %v3321
        %v3416 = vunpack.c.l.s4 1983009808
        %v3417 = vunpack.c.0.s8 %v3416
        %v3418 = vlaneseq
        %v3419 = vshrl.u32 %v3418, 7
        %v3420 = vsub.s32 %v3417, %v3419
        %v3421 = vrot.slane %v3414, %v3420
        %v3422 = vcombine.low %v3397, %v3405
        %v3423 = vcombine.high %v3397, %v3405
        %v3425 = vunpack.c.l.s4 1934713408
        %v3426 = vunpack.c.0.s8 %v3425
        %v3427 = vlaneseq
        %v3428 = vshrl.u32 %v3427, 7
        %v3429 = vsub.s32 %v3426, %v3428
        %v3430 = vrot.slane %v3422, %v3429
        %v3432 = vunpack.c.l.s4 1934713408
        %v3433 = vunpack.c.0.s8 %v3432
        %v3434 = vlaneseq
        %v3435 = vshrl.u32 %v3434, 7
        %v3436 = vsub.s32 %v3433, %v3435
        %v3437 = vrot.slane %v3423, %v3436
        %v3438 = vcombine.low %v3413, %v3421
        %v3439 = vcombine.high %v3413, %v3421
        %v3441 = vunpack.c.l.s4 1934713408
        %v3442 = vunpack.c.0.s8 %v3441
        %v3443 = vlaneseq
        %v3444 = vshrl.u32 %v3443, 7
        %v3445 = vsub.s32 %v3442, %v3444
        %v3446 = vrot.slane %v3438, %v3445
        %v3448 = vunpack.c.l.s4 1934713408
        %v3449 = vunpack.c.0.s8 %v3448
        %v3450 = vlaneseq
        %v3451 = vshrl.u32 %v3450, 7
        %v3452 = vsub.s32 %v3449, %v3451
        %v3453 = vrot.slane %v3439, %v3452
        %v3454 = vcombine.low %v3430, %v3446
        %v3455 = vcombine.high %v3430, %v3446
        %v3456 = vcombine.low %v3437, %v3453
        %v3457 = vcombine.high %v3437, %v3453
        %3458 = vrot.lane.b32.xlu0 %v2862, 64
        %v3459 = vpop.permute.xlu0 %3458
        %3460 = vrot.lane.b32.xlu0 %v2867, 64
        %v3461 = vpop.permute.xlu0 %3460
        %3462 = vrot.lane.b32.xlu0 %v2873, 64
        %v3463 = vpop.permute.xlu0 %3462
        %3464 = vrot.lane.b32.xlu0 %v2875, 64
        %v3465 = vpop.permute.xlu0 %3464
        %3466 = vrot.lane.b32.xlu0 %v2879, 64
        %v3467 = vpop.permute.xlu0 %3466
        %3468 = vrot.lane.b32.xlu0 %v2881, 64
        %v3469 = vpop.permute.xlu0 %3468
        %3470 = vrot.lane.b32.xlu0 %v2885, 64
        %v3471 = vpop.permute.xlu0 %3470
        %3472 = vrot.lane.b32.xlu0 %v2887, 64
        %v3473 = vpop.permute.xlu0 %3472
        %v3482 = vcombine.low %v3459, %v3467
        %v3483 = vcombine.high %v3459, %v3467
        %v3485 = vunpack.c.l.s4 1983009808
        %v3486 = vunpack.c.0.s8 %v3485
        %v3487 = vlaneseq
        %v3488 = vshrl.u32 %v3487, 7
        %v3489 = vsub.s32 %v3486, %v3488
        %v3490 = vrot.slane %v3482, %v3489
        %v3492 = vunpack.c.l.s4 1983009808
        %v3493 = vunpack.c.0.s8 %v3492
        %v3494 = vlaneseq
        %v3495 = vshrl.u32 %v3494, 7
        %v3496 = vsub.s32 %v3493, %v3495
        %v3497 = vrot.slane %v3483, %v3496
        %v3498 = vcombine.low %v3463, %v3471
        %v3499 = vcombine.high %v3463, %v3471
        %v3501 = vunpack.c.l.s4 1983009808
        %v3502 = vunpack.c.0.s8 %v3501
        %v3503 = vlaneseq
        %v3504 = vshrl.u32 %v3503, 7
        %v3505 = vsub.s32 %v3502, %v3504
        %v3506 = vrot.slane %v3498, %v3505
        %v3508 = vunpack.c.l.s4 1983009808
        %v3509 = vunpack.c.0.s8 %v3508
        %v3510 = vlaneseq
        %v3511 = vshrl.u32 %v3510, 7
        %v3512 = vsub.s32 %v3509, %v3511
        %v3513 = vrot.slane %v3499, %v3512
        %v3514 = vcombine.low %v3490, %v3506
        %v3515 = vcombine.high %v3490, %v3506
        %v3517 = vunpack.c.l.s4 1934713408
        %v3518 = vunpack.c.0.s8 %v3517
        %v3519 = vlaneseq
        %v3520 = vshrl.u32 %v3519, 7
        %v3521 = vsub.s32 %v3518, %v3520
        %v3522 = vrot.slane %v3514, %v3521
        %v3524 = vunpack.c.l.s4 1934713408
        %v3525 = vunpack.c.0.s8 %v3524
        %v3526 = vlaneseq
        %v3527 = vshrl.u32 %v3526, 7
        %v3528 = vsub.s32 %v3525, %v3527
        %v3529 = vrot.slane %v3515, %v3528
        %v3530 = vcombine.low %v3497, %v3513
        %v3531 = vcombine.high %v3497, %v3513
        %v3533 = vunpack.c.l.s4 1934713408
        %v3534 = vunpack.c.0.s8 %v3533
        %v3535 = vlaneseq
        %v3536 = vshrl.u32 %v3535, 7
        %v3537 = vsub.s32 %v3534, %v3536
        %v3538 = vrot.slane %v3530, %v3537
        %v3540 = vunpack.c.l.s4 1934713408
        %v3541 = vunpack.c.0.s8 %v3540
        %v3542 = vlaneseq
        %v3543 = vshrl.u32 %v3542, 7
        %v3544 = vsub.s32 %v3541, %v3543
        %v3545 = vrot.slane %v3531, %v3544
        %v3546 = vcombine.high %v3522, 0.0
        %v3547 = vcombine.high %v3529, 0.0
        %v3548 = vcombine.high %v3538, 0.0
        %v3549 = vcombine.high %v3545, 0.0
        %v3550 = vcombine.low %v3461, %v3469
        %v3551 = vcombine.high %v3461, %v3469
        %v3553 = vunpack.c.l.s4 1983009808
        %v3554 = vunpack.c.0.s8 %v3553
        %v3555 = vlaneseq
        %v3556 = vshrl.u32 %v3555, 7
        %v3557 = vsub.s32 %v3554, %v3556
        %v3558 = vrot.slane %v3550, %v3557
        %v3560 = vunpack.c.l.s4 1983009808
        %v3561 = vunpack.c.0.s8 %v3560
        %v3562 = vlaneseq
        %v3563 = vshrl.u32 %v3562, 7
        %v3564 = vsub.s32 %v3561, %v3563
        %v3565 = vrot.slane %v3551, %v3564
        %v3566 = vcombine.low %v3465, %v3473
        %v3567 = vcombine.high %v3465, %v3473
        %v3569 = vunpack.c.l.s4 1983009808
        %v3570 = vunpack.c.0.s8 %v3569
        %v3571 = vlaneseq
        %v3572 = vshrl.u32 %v3571, 7
        %v3573 = vsub.s32 %v3570, %v3572
        %v3574 = vrot.slane %v3566, %v3573
        %v3576 = vunpack.c.l.s4 1983009808
        %v3577 = vunpack.c.0.s8 %v3576
        %v3578 = vlaneseq
        %v3579 = vshrl.u32 %v3578, 7
        %v3580 = vsub.s32 %v3577, %v3579
        %v3581 = vrot.slane %v3567, %v3580
        %v3582 = vcombine.low %v3558, %v3574
        %v3583 = vcombine.high %v3558, %v3574
        %v3585 = vunpack.c.l.s4 1934713408
        %v3586 = vunpack.c.0.s8 %v3585
        %v3587 = vlaneseq
        %v3588 = vshrl.u32 %v3587, 7
        %v3589 = vsub.s32 %v3586, %v3588
        %v3590 = vrot.slane %v3582, %v3589
        %v3592 = vunpack.c.l.s4 1934713408
        %v3593 = vunpack.c.0.s8 %v3592
        %v3594 = vlaneseq
        %v3595 = vshrl.u32 %v3594, 7
        %v3596 = vsub.s32 %v3593, %v3595
        %v3597 = vrot.slane %v3583, %v3596
        %v3598 = vcombine.low %v3565, %v3581
        %v3599 = vcombine.high %v3565, %v3581
        %v3601 = vunpack.c.l.s4 1934713408
        %v3602 = vunpack.c.0.s8 %v3601
        %v3603 = vlaneseq
        %v3604 = vshrl.u32 %v3603, 7
        %v3605 = vsub.s32 %v3602, %v3604
        %v3606 = vrot.slane %v3598, %v3605
        %v3608 = vunpack.c.l.s4 1934713408
        %v3609 = vunpack.c.0.s8 %v3608
        %v3610 = vlaneseq
        %v3611 = vshrl.u32 %v3610, 7
        %v3612 = vsub.s32 %v3609, %v3611
        %v3613 = vrot.slane %v3599, %v3612
        %v3614 = vcombine.high %v3590, 0.0
        %v3615 = vcombine.high %v3597, 0.0
        %v3616 = vcombine.high %v3606, 0.0
        %v3617 = vcombine.high %v3613, 0.0
        %v3618 = vcombine.low %v3522, %v3529
        %v3620 = vunpack.c.l.s4 1983009808
        %v3621 = vunpack.c.0.s8 %v3620
        %v3622 = vlaneseq
        %v3623 = vshrl.u32 %v3622, 7
        %v3624 = vsub.s32 %v3621, %v3623
        %v3625 = vrot.slane %v3618, %v3624
        %v3626 = vcombine.low %v3546, %v3547
        %v3628 = vunpack.c.l.s4 1983009808
        %v3629 = vunpack.c.0.s8 %v3628
        %v3630 = vlaneseq
        %v3631 = vshrl.u32 %v3630, 7
        %v3632 = vsub.s32 %v3629, %v3631
        %v3633 = vrot.slane %v3626, %v3632
        %v3634 = vcombine.low %v3538, %v3545
        %v3636 = vunpack.c.l.s4 1983009808
        %v3637 = vunpack.c.0.s8 %v3636
        %v3638 = vlaneseq
        %v3639 = vshrl.u32 %v3638, 7
        %v3640 = vsub.s32 %v3637, %v3639
        %v3641 = vrot.slane %v3634, %v3640
        %v3642 = vcombine.low %v3548, %v3549
        %v3644 = vunpack.c.l.s4 1983009808
        %v3645 = vunpack.c.0.s8 %v3644
        %v3646 = vlaneseq
        %v3647 = vshrl.u32 %v3646, 7
        %v3648 = vsub.s32 %v3645, %v3647
        %v3649 = vrot.slane %v3642, %v3648
        %v3650 = vcombine.low %v3625, %v3633
        %v3651 = vcombine.high %v3625, %v3633
        %v3653 = vunpack.c.l.s4 1934713408
        %v3654 = vunpack.c.0.s8 %v3653
        %v3655 = vlaneseq
        %v3656 = vshrl.u32 %v3655, 7
        %v3657 = vsub.s32 %v3654, %v3656
        %v3658 = vrot.slane %v3650, %v3657
        %v3660 = vunpack.c.l.s4 1934713408
        %v3661 = vunpack.c.0.s8 %v3660
        %v3662 = vlaneseq
        %v3663 = vshrl.u32 %v3662, 7
        %v3664 = vsub.s32 %v3661, %v3663
        %v3665 = vrot.slane %v3651, %v3664
        %v3666 = vcombine.low %v3641, %v3649
        %v3667 = vcombine.high %v3641, %v3649
        %v3669 = vunpack.c.l.s4 1934713408
        %v3670 = vunpack.c.0.s8 %v3669
        %v3671 = vlaneseq
        %v3672 = vshrl.u32 %v3671, 7
        %v3673 = vsub.s32 %v3670, %v3672
        %v3674 = vrot.slane %v3666, %v3673
        %v3676 = vunpack.c.l.s4 1934713408
        %v3677 = vunpack.c.0.s8 %v3676
        %v3678 = vlaneseq
        %v3679 = vshrl.u32 %v3678, 7
        %v3680 = vsub.s32 %v3677, %v3679
        %v3681 = vrot.slane %v3667, %v3680
        %v3682 = vcombine.low %v3658, %v3674
        %v3683 = vcombine.high %v3658, %v3674
        %v3684 = vcombine.low %v3665, %v3681
        %v3685 = vcombine.high %v3665, %v3681
        %v3686 = vcombine.low %v3590, %v3597
        %v3688 = vunpack.c.l.s4 1983009808
        %v3689 = vunpack.c.0.s8 %v3688
        %v3690 = vlaneseq
        %v3691 = vshrl.u32 %v3690, 7
        %v3692 = vsub.s32 %v3689, %v3691
        %v3693 = vrot.slane %v3686, %v3692
        %v3694 = vcombine.low %v3614, %v3615
        %v3696 = vunpack.c.l.s4 1983009808
        %v3697 = vunpack.c.0.s8 %v3696
        %v3698 = vlaneseq
        %v3699 = vshrl.u32 %v3698, 7
        %v3700 = vsub.s32 %v3697, %v3699
        %v3701 = vrot.slane %v3694, %v3700
        %v3702 = vcombine.low %v3606, %v3613
        %v3704 = vunpack.c.l.s4 1983009808
        %v3705 = vunpack.c.0.s8 %v3704
        %v3706 = vlaneseq
        %v3707 = vshrl.u32 %v3706, 7
        %v3708 = vsub.s32 %v3705, %v3707
        %v3709 = vrot.slane %v3702, %v3708
        %v3710 = vcombine.low %v3616, %v3617
        %v3712 = vunpack.c.l.s4 1983009808
        %v3713 = vunpack.c.0.s8 %v3712
        %v3714 = vlaneseq
        %v3715 = vshrl.u32 %v3714, 7
        %v3716 = vsub.s32 %v3713, %v3715
        %v3717 = vrot.slane %v3710, %v3716
        %v3718 = vcombine.low %v3693, %v3701
        %v3719 = vcombine.high %v3693, %v3701
        %v3721 = vunpack.c.l.s4 1934713408
        %v3722 = vunpack.c.0.s8 %v3721
        %v3723 = vlaneseq
        %v3724 = vshrl.u32 %v3723, 7
        %v3725 = vsub.s32 %v3722, %v3724
        %v3726 = vrot.slane %v3718, %v3725
        %v3728 = vunpack.c.l.s4 1934713408
        %v3729 = vunpack.c.0.s8 %v3728
        %v3730 = vlaneseq
        %v3731 = vshrl.u32 %v3730, 7
        %v3732 = vsub.s32 %v3729, %v3731
        %v3733 = vrot.slane %v3719, %v3732
        %v3734 = vcombine.low %v3709, %v3717
        %v3735 = vcombine.high %v3709, %v3717
        %v3737 = vunpack.c.l.s4 1934713408
        %v3738 = vunpack.c.0.s8 %v3737
        %v3739 = vlaneseq
        %v3740 = vshrl.u32 %v3739, 7
        %v3741 = vsub.s32 %v3738, %v3740
        %v3742 = vrot.slane %v3734, %v3741
        %v3744 = vunpack.c.l.s4 1934713408
        %v3745 = vunpack.c.0.s8 %v3744
        %v3746 = vlaneseq
        %v3747 = vshrl.u32 %v3746, 7
        %v3748 = vsub.s32 %v3745, %v3747
        %v3749 = vrot.slane %v3735, %v3748
        %v3750 = vcombine.low %v3726, %v3742
        %v3751 = vcombine.high %v3726, %v3742
        %v3752 = vcombine.low %v3733, %v3749
        %v3753 = vcombine.high %v3733, %v3749
        %vm3754 = vcmp.gt.f32.partialorder %v561, 0.0
        %vm3755 = vcmp.gt.f32.partialorder %v562, 0.0
        %v3757 = vsel %vm1671, %v3090, 0
        %v3760 = vsel %vm1671, %v3158, 0
        %v3763 = vsel %vm1671, %v3386, 0
        %v3766 = vsel %vm1671, %v3454, 0
        %3768 = vmatprep.subr.mxu0 0.0
        %3769 = vmatpush1.xpose.msra.mxu0 %v3763
        %3770 = vmatprep.subr.mxu0 0.0
        %3771 = vmatpush1.xpose.msra.mxu0 %v3766
        %3772 = vmatprep.subr.mxu0 0.0
        %3773 = vmatpush1.xpose.msra.mxu0 0.0
        %3774 = vmatprep.subr.mxu0 0.0
        %3775 = vmatpush1.xpose.msra.mxu0 0.0
        %3776 = vmatprep.subr.mxu0 0.0
        %3777 = vmatpush1.xpose.msra.mxu0 0.0
        %3778 = vmatprep.subr.mxu0 0.0
        %3779 = vmatpush1.xpose.msra.mxu0 0.0
        %3780 = vmatprep.subr.mxu0 0.0
        %3781 = vmatpush1.xpose.msra.mxu0 0.0
        %3782 = vmatprep.subr.mxu0 0.0
        %3783 = vmatpush1.xpose.msra.mxu0 0.0
        %3784 = vmatprep.subr.mxu0 0.0
        %3785 = vmatpush1.xpose.msra.mxu0 0.0
        %3786 = vmatprep.subr.mxu0 0.0
        %3787 = vmatpush1.xpose.msra.mxu0 0.0
        %3788 = vmatprep.subr.mxu0 0.0
        %3789 = vmatpush1.xpose.msra.mxu0 0.0
        %3790 = vmatprep.subr.mxu0 0.0
        %3791 = vmatpush1.xpose.msra.mxu0 0.0
        %3792 = vmatprep.subr.mxu0 0.0
        %3793 = vmatpush1.xpose.msra.mxu0 0.0
        %3794 = vmatprep.subr.mxu0 0.0
        %3795 = vmatpush1.xpose.msra.mxu0 0.0
        %3796 = vmatprep.subr.mxu0 0.0
        %3797 = vmatpush1.xpose.msra.mxu0 0.0
        %3798 = vmatprep.subr.mxu0 0.0
        %3799 = vmatpush1.xpose.msra.mxu0 0.0
        %3800 = vmatprep.subr.mxu0 0.0
        %3801 = vmatpush1.xpose.msra.mxu0 0.0
        %3802 = vmatprep.subr.mxu0 0.0
        %3803 = vmatpush1.xpose.msra.mxu0 0.0
        %3804 = vmatprep.subr.mxu0 0.0
        %3805 = vmatpush1.xpose.msra.mxu0 0.0
        %3806 = vmatprep.subr.mxu0 0.0
        %3807 = vmatpush1.xpose.msra.mxu0 0.0
        %3808 = vmatprep.subr.mxu0 0.0
        %3809 = vmatpush1.xpose.msra.mxu0 0.0
        %3810 = vmatprep.subr.mxu0 0.0
        %3811 = vmatpush1.xpose.msra.mxu0 0.0
        %3812 = vmatprep.subr.mxu0 0.0
        %3813 = vmatpush1.xpose.msra.mxu0 0.0
        %3814 = vmatprep.subr.mxu0 0.0
        %3815 = vmatpush1.xpose.msra.mxu0 0.0
        %3816 = vmatprep.subr.mxu0 0.0
        %3817 = vmatpush1.xpose.msra.mxu0 0.0
        %3818 = vmatprep.subr.mxu0 0.0
        %3819 = vmatpush1.xpose.msra.mxu0 0.0
        %3820 = vmatprep.subr.mxu0 0.0
        %3821 = vmatpush1.xpose.msra.mxu0 0.0
        %3822 = vmatprep.subr.mxu0 0.0
        %3823 = vmatpush1.xpose.msra.mxu0 0.0
        %3824 = vmatprep.subr.mxu0 0.0
        %3825 = vmatpush1.xpose.msra.mxu0 0.0
        %3826 = vmatprep.subr.mxu0 0.0
        %3827 = vmatpush1.xpose.msra.mxu0 0.0
        %3828 = vmatprep.subr.mxu0 0.0
        %3829 = vmatpush1.xpose.msra.mxu0 0.0
        %3830 = vmatprep.subr.mxu0 0.0
        %3831 = vmatpush1.xpose.msra.mxu0 0.0
        %3832 = vmatprep.mubr.f32.mxu0 0.0
        %3833 = vmatmul.mubr.f32.gmra.mrb[0].mxu0 %v3757
        %v3834 = vpop.f32.mrb[0].mxu0
        %v3835 = vadd.f32 0.0, %v3834
        %v3836 = vpop.f32.mrb[0].mxu0
        %3837 = vmatprep.mubr.f32.mxu0 0.0
        %3838 = vmatmul.mubr.f32.gmra.mrb[0].mxu0 %v3760
        %v3839 = vpop.f32.mrb[0].mxu0
        %v3840 = vadd.f32 0.0, %v3839
        %v3841 = vpop.f32.mrb[0].mxu0
        %3842 = vdwg.mxu0
        %v3844 = vsel %vm1671, %v3091, 0
        %v3847 = vsel %vm1671, %v3159, 0
        %v3850 = vsel %vm1671, %v3387, 0
        %v3853 = vsel %vm1671, %v3455, 0
        %3855 = vmatprep.subr.mxu0 0.0
        %3856 = vmatpush1.xpose.msra.mxu0 %v3850
        %3857 = vmatprep.subr.mxu0 0.0
        %3858 = vmatpush1.xpose.msra.mxu0 %v3853
        %3859 = vmatprep.subr.mxu0 0.0
        %3860 = vmatpush1.xpose.msra.mxu0 0.0
        %3861 = vmatprep.subr.mxu0 0.0
        %3862 = vmatpush1.xpose.msra.mxu0 0.0
        %3863 = vmatprep.subr.mxu0 0.0
        %3864 = vmatpush1.xpose.msra.mxu0 0.0
        %3865 = vmatprep.subr.mxu0 0.0
        %3866 = vmatpush1.xpose.msra.mxu0 0.0
        %3867 = vmatprep.subr.mxu0 0.0
        %3868 = vmatpush1.xpose.msra.mxu0 0.0
        %3869 = vmatprep.subr.mxu0 0.0
        %3870 = vmatpush1.xpose.msra.mxu0 0.0
        %3871 = vmatprep.subr.mxu0 0.0
        %3872 = vmatpush1.xpose.msra.mxu0 0.0
        %3873 = vmatprep.subr.mxu0 0.0
        %3874 = vmatpush1.xpose.msra.mxu0 0.0
        %3875 = vmatprep.subr.mxu0 0.0
        %3876 = vmatpush1.xpose.msra.mxu0 0.0
        %3877 = vmatprep.subr.mxu0 0.0
        %3878 = vmatpush1.xpose.msra.mxu0 0.0
        %3879 = vmatprep.subr.mxu0 0.0
        %3880 = vmatpush1.xpose.msra.mxu0 0.0
        %3881 = vmatprep.subr.mxu0 0.0
        %3882 = vmatpush1.xpose.msra.mxu0 0.0
        %3883 = vmatprep.subr.mxu0 0.0
        %3884 = vmatpush1.xpose.msra.mxu0 0.0
        %3885 = vmatprep.subr.mxu0 0.0
        %3886 = vmatpush1.xpose.msra.mxu0 0.0
        %3887 = vmatprep.subr.mxu0 0.0
        %3888 = vmatpush1.xpose.msra.mxu0 0.0
        %3889 = vmatprep.subr.mxu0 0.0
        %3890 = vmatpush1.xpose.msra.mxu0 0.0
        %3891 = vmatprep.subr.mxu0 0.0
        %3892 = vmatpush1.xpose.msra.mxu0 0.0
        %3893 = vmatprep.subr.mxu0 0.0
        %3894 = vmatpush1.xpose.msra.mxu0 0.0
        %3895 = vmatprep.subr.mxu0 0.0
        %3896 = vmatpush1.xpose.msra.mxu0 0.0
        %3897 = vmatprep.subr.mxu0 0.0
        %3898 = vmatpush1.xpose.msra.mxu0 0.0
        %3899 = vmatprep.subr.mxu0 0.0
        %3900 = vmatpush1.xpose.msra.mxu0 0.0
        %3901 = vmatprep.subr.mxu0 0.0
        %3902 = vmatpush1.xpose.msra.mxu0 0.0
        %3903 = vmatprep.subr.mxu0 0.0
        %3904 = vmatpush1.xpose.msra.mxu0 0.0
        %3905 = vmatprep.subr.mxu0 0.0
        %3906 = vmatpush1.xpose.msra.mxu0 0.0
        %3907 = vmatprep.subr.mxu0 0.0
        %3908 = vmatpush1.xpose.msra.mxu0 0.0
        %3909 = vmatprep.subr.mxu0 0.0
        %3910 = vmatpush1.xpose.msra.mxu0 0.0
        %3911 = vmatprep.subr.mxu0 0.0
        %3912 = vmatpush1.xpose.msra.mxu0 0.0
        %3913 = vmatprep.subr.mxu0 0.0
        %3914 = vmatpush1.xpose.msra.mxu0 0.0
        %3915 = vmatprep.subr.mxu0 0.0
        %3916 = vmatpush1.xpose.msra.mxu0 0.0
        %3917 = vmatprep.subr.mxu0 0.0
        %3918 = vmatpush1.xpose.msra.mxu0 0.0
        %3919 = vmatprep.mubr.f32.mxu0 0.0
        %3920 = vmatmul.mubr.f32.gmra.mrb[0].mxu0 %v3844
        %v3921 = vpop.f32.mrb[0].mxu0
        %v3922 = vadd.f32 0.0, %v3921
        %v3923 = vpop.f32.mrb[0].mxu0
        %3924 = vmatprep.mubr.f32.mxu0 0.0
        %3925 = vmatmul.mubr.f32.gmra.mrb[0].mxu0 %v3847
        %v3926 = vpop.f32.mrb[0].mxu0
        %v3927 = vadd.f32 0.0, %v3926
        %v3928 = vpop.f32.mrb[0].mxu0
        %3929 = vdwg.mxu0
        %v3931 = vsel %vm1671, %v3092, 0
        %v3934 = vsel %vm1671, %v3160, 0
        %v3937 = vsel %vm1671, %v3388, 0
        %v3940 = vsel %vm1671, %v3456, 0
        %3942 = vmatprep.subr.mxu0 0.0
        %3943 = vmatpush1.xpose.msra.mxu0 %v3937
        %3944 = vmatprep.subr.mxu0 0.0
        %3945 = vmatpush1.xpose.msra.mxu0 %v3940
        %3946 = vmatprep.subr.mxu0 0.0
        %3947 = vmatpush1.xpose.msra.mxu0 0.0
        %3948 = vmatprep.subr.mxu0 0.0
        %3949 = vmatpush1.xpose.msra.mxu0 0.0
        %3950 = vmatprep.subr.mxu0 0.0
        %3951 = vmatpush1.xpose.msra.mxu0 0.0
        %3952 = vmatprep.subr.mxu0 0.0
        %3953 = vmatpush1.xpose.msra.mxu0 0.0
        %3954 = vmatprep.subr.mxu0 0.0
        %3955 = vmatpush1.xpose.msra.mxu0 0.0
        %3956 = vmatprep.subr.mxu0 0.0
        %3957 = vmatpush1.xpose.msra.mxu0 0.0
        %3958 = vmatprep.subr.mxu0 0.0
        %3959 = vmatpush1.xpose.msra.mxu0 0.0
        %3960 = vmatprep.subr.mxu0 0.0
        %3961 = vmatpush1.xpose.msra.mxu0 0.0
        %3962 = vmatprep.subr.mxu0 0.0
        %3963 = vmatpush1.xpose.msra.mxu0 0.0
        %3964 = vmatprep.subr.mxu0 0.0
        %3965 = vmatpush1.xpose.msra.mxu0 0.0
        %3966 = vmatprep.subr.mxu0 0.0
        %3967 = vmatpush1.xpose.msra.mxu0 0.0
        %3968 = vmatprep.subr.mxu0 0.0
        %3969 = vmatpush1.xpose.msra.mxu0 0.0
        %3970 = vmatprep.subr.mxu0 0.0
        %3971 = vmatpush1.xpose.msra.mxu0 0.0
        %3972 = vmatprep.subr.mxu0 0.0
        %3973 = vmatpush1.xpose.msra.mxu0 0.0
        %3974 = vmatprep.subr.mxu0 0.0
        %3975 = vmatpush1.xpose.msra.mxu0 0.0
        %3976 = vmatprep.subr.mxu0 0.0
        %3977 = vmatpush1.xpose.msra.mxu0 0.0
        %3978 = vmatprep.subr.mxu0 0.0
        %3979 = vmatpush1.xpose.msra.mxu0 0.0
        %3980 = vmatprep.subr.mxu0 0.0
        %3981 = vmatpush1.xpose.msra.mxu0 0.0
        %3982 = vmatprep.subr.mxu0 0.0
        %3983 = vmatpush1.xpose.msra.mxu0 0.0
        %3984 = vmatprep.subr.mxu0 0.0
        %3985 = vmatpush1.xpose.msra.mxu0 0.0
        %3986 = vmatprep.subr.mxu0 0.0
        %3987 = vmatpush1.xpose.msra.mxu0 0.0
        %3988 = vmatprep.subr.mxu0 0.0
        %3989 = vmatpush1.xpose.msra.mxu0 0.0
        %3990 = vmatprep.subr.mxu0 0.0
        %3991 = vmatpush1.xpose.msra.mxu0 0.0
        %3992 = vmatprep.subr.mxu0 0.0
        %3993 = vmatpush1.xpose.msra.mxu0 0.0
        %3994 = vmatprep.subr.mxu0 0.0
        %3995 = vmatpush1.xpose.msra.mxu0 0.0
        %3996 = vmatprep.subr.mxu0 0.0
        %3997 = vmatpush1.xpose.msra.mxu0 0.0
        %3998 = vmatprep.subr.mxu0 0.0
        %3999 = vmatpush1.xpose.msra.mxu0 0.0
        %4000 = vmatprep.subr.mxu0 0.0
        %4001 = vmatpush1.xpose.msra.mxu0 0.0
        %4002 = vmatprep.subr.mxu0 0.0
        %4003 = vmatpush1.xpose.msra.mxu0 0.0
        %4004 = vmatprep.subr.mxu0 0.0
        %4005 = vmatpush1.xpose.msra.mxu0 0.0
        %4006 = vmatprep.mubr.f32.mxu0 0.0
        %4007 = vmatmul.mubr.f32.gmra.mrb[0].mxu0 %v3931
        %v4008 = vpop.f32.mrb[0].mxu0
        %v4009 = vadd.f32 0.0, %v4008
        %v4010 = vpop.f32.mrb[0].mxu0
        %4011 = vmatprep.mubr.f32.mxu0 0.0
        %4012 = vmatmul.mubr.f32.gmra.mrb[0].mxu0 %v3934
        %v4013 = vpop.f32.mrb[0].mxu0
        %v4014 = vadd.f32 0.0, %v4013
        %v4015 = vpop.f32.mrb[0].mxu0
        %4016 = vdwg.mxu0
        %v4018 = vsel %vm1671, %v3093, 0
        %v4021 = vsel %vm1671, %v3161, 0
        %v4024 = vsel %vm1671, %v3389, 0
        %v4027 = vsel %vm1671, %v3457, 0
        %4029 = vmatprep.subr.mxu0 0.0
        %4030 = vmatpush1.xpose.msra.mxu0 %v4024
        %4031 = vmatprep.subr.mxu0 0.0
        %4032 = vmatpush1.xpose.msra.mxu0 %v4027
        %4033 = vmatprep.subr.mxu0 0.0
        %4034 = vmatpush1.xpose.msra.mxu0 0.0
        %4035 = vmatprep.subr.mxu0 0.0
        %4036 = vmatpush1.xpose.msra.mxu0 0.0
        %4037 = vmatprep.subr.mxu0 0.0
        %4038 = vmatpush1.xpose.msra.mxu0 0.0
        %4039 = vmatprep.subr.mxu0 0.0
        %4040 = vmatpush1.xpose.msra.mxu0 0.0
        %4041 = vmatprep.subr.mxu0 0.0
        %4042 = vmatpush1.xpose.msra.mxu0 0.0
        %4043 = vmatprep.subr.mxu0 0.0
        %4044 = vmatpush1.xpose.msra.mxu0 0.0
        %4045 = vmatprep.subr.mxu0 0.0
        %4046 = vmatpush1.xpose.msra.mxu0 0.0
        %4047 = vmatprep.subr.mxu0 0.0
        %4048 = vmatpush1.xpose.msra.mxu0 0.0
        %4049 = vmatprep.subr.mxu0 0.0
        %4050 = vmatpush1.xpose.msra.mxu0 0.0
        %4051 = vmatprep.subr.mxu0 0.0
        %4052 = vmatpush1.xpose.msra.mxu0 0.0
        %4053 = vmatprep.subr.mxu0 0.0
        %4054 = vmatpush1.xpose.msra.mxu0 0.0
        %4055 = vmatprep.subr.mxu0 0.0
        %4056 = vmatpush1.xpose.msra.mxu0 0.0
        %4057 = vmatprep.subr.mxu0 0.0
        %4058 = vmatpush1.xpose.msra.mxu0 0.0
        %4059 = vmatprep.subr.mxu0 0.0
        %4060 = vmatpush1.xpose.msra.mxu0 0.0
        %4061 = vmatprep.subr.mxu0 0.0
        %4062 = vmatpush1.xpose.msra.mxu0 0.0
        %4063 = vmatprep.subr.mxu0 0.0
        %4064 = vmatpush1.xpose.msra.mxu0 0.0
        %4065 = vmatprep.subr.mxu0 0.0
        %4066 = vmatpush1.xpose.msra.mxu0 0.0
        %4067 = vmatprep.subr.mxu0 0.0
        %4068 = vmatpush1.xpose.msra.mxu0 0.0
        %4069 = vmatprep.subr.mxu0 0.0
        %4070 = vmatpush1.xpose.msra.mxu0 0.0
        %4071 = vmatprep.subr.mxu0 0.0
        %4072 = vmatpush1.xpose.msra.mxu0 0.0
        %4073 = vmatprep.subr.mxu0 0.0
        %4074 = vmatpush1.xpose.msra.mxu0 0.0
        %4075 = vmatprep.subr.mxu0 0.0
        %4076 = vmatpush1.xpose.msra.mxu0 0.0
        %4077 = vmatprep.subr.mxu0 0.0
        %4078 = vmatpush1.xpose.msra.mxu0 0.0
        %4079 = vmatprep.subr.mxu0 0.0
        %4080 = vmatpush1.xpose.msra.mxu0 0.0
        %4081 = vmatprep.subr.mxu0 0.0
        %4082 = vmatpush1.xpose.msra.mxu0 0.0
        %4083 = vmatprep.subr.mxu0 0.0
        %4084 = vmatpush1.xpose.msra.mxu0 0.0
        %4085 = vmatprep.subr.mxu0 0.0
        %4086 = vmatpush1.xpose.msra.mxu0 0.0
        %4087 = vmatprep.subr.mxu0 0.0
        %4088 = vmatpush1.xpose.msra.mxu0 0.0
        %4089 = vmatprep.subr.mxu0 0.0
        %4090 = vmatpush1.xpose.msra.mxu0 0.0
        %4091 = vmatprep.subr.mxu0 0.0
        %4092 = vmatpush1.xpose.msra.mxu0 0.0
        %4093 = vmatprep.mubr.f32.mxu0 0.0
        %4094 = vmatmul.mubr.f32.gmra.mrb[0].mxu0 %v4018
        %v4095 = vpop.f32.mrb[0].mxu0
        %v4096 = vadd.f32 0.0, %v4095
        %v4097 = vpop.f32.mrb[0].mxu0
        %4098 = vmatprep.mubr.f32.mxu0 0.0
        %4099 = vmatmul.mubr.f32.gmra.mrb[0].mxu0 %v4021
        %v4100 = vpop.f32.mrb[0].mxu0
        %v4101 = vadd.f32 0.0, %v4100
        %v4102 = vpop.f32.mrb[0].mxu0
        %4103 = vdwg.mxu0
        %v4104 = vmul.f32 %v3835, 0.35355338
        %v4105 = vmul.f32 %v3840, 0.35355338
        %v4106 = vmul.f32 %v3922, 0.35355338
        %v4107 = vmul.f32 %v3927, 0.35355338
        %v4108 = vmul.f32 %v4009, 0.35355338
        %v4109 = vmul.f32 %v4014, 0.35355338
        %v4110 = vmul.f32 %v4096, 0.35355338
        %v4111 = vmul.f32 %v4101, 0.35355338
        %v4112 = vsel %vm3754, 1, 0
        %v4113 = vsel %vm3755, 1, 0
        %vm4114 = vcmp.eq.s32.totalorder %v4112, 1
        %vm4115 = vcmp.eq.s32.totalorder %v4113, 1
        %v4116 = vsel %vm4114, %v4104, -1e+30
        %v4117 = vsel %vm4115, %v4105, -1e+30
        %v4118 = vsel %vm4114, %v4106, -1e+30
        %v4119 = vsel %vm4115, %v4107, -1e+30
        %v4120 = vsel %vm4114, %v4108, -1e+30
        %v4121 = vsel %vm4115, %v4109, -1e+30
        %v4122 = vsel %vm4114, %v4110, -1e+30
        %v4123 = vsel %vm4115, %v4111, -1e+30
        %v4124 = vsel %vm2040, %v4116, -inf
        %4125 = vmax.xlane.f32.xlu0 %v4124
        %v4126 = vpop.xlane.xlu0 %4125
        %v4127 = vsel %vm2040, %v4117, -inf
        %4128 = vmax.xlane.f32.xlu0 %v4127
        %v4129 = vpop.xlane.xlu0 %4128
        %v4130 = vsel %vm2040, %v4118, -inf
        %4131 = vmax.xlane.f32.xlu0 %v4130
        %v4132 = vpop.xlane.xlu0 %4131
        %v4133 = vsel %vm2040, %v4119, -inf
        %4134 = vmax.xlane.f32.xlu0 %v4133
        %v4135 = vpop.xlane.xlu0 %4134
        %v4136 = vsel %vm2040, %v4120, -inf
        %4137 = vmax.xlane.f32.xlu0 %v4136
        %v4138 = vpop.xlane.xlu0 %4137
        %v4139 = vsel %vm2040, %v4121, -inf
        %4140 = vmax.xlane.f32.xlu0 %v4139
        %v4141 = vpop.xlane.xlu0 %4140
        %v4142 = vsel %vm2040, %v4122, -inf
        %4143 = vmax.xlane.f32.xlu0 %v4142
        %v4144 = vpop.xlane.xlu0 %4143
        %v4145 = vsel %vm2040, %v4123, -inf
        %4146 = vmax.xlane.f32.xlu0 %v4145
        %v4147 = vpop.xlane.xlu0 %4146
        %v4148 = vsub.f32 %v4116, %v4126
        %v4149 = vsub.f32 %v4117, %v4129
        %v4150 = vsub.f32 %v4118, %v4132
        %v4151 = vsub.f32 %v4119, %v4135
        %v4152 = vsub.f32 %v4120, %v4138
        %v4153 = vsub.f32 %v4121, %v4141
        %v4154 = vsub.f32 %v4122, %v4144
        %v4155 = vsub.f32 %v4123, %v4147
        %v4156 = vmul.f32 %v4148, 1.442695
        %v4157 = vpow.pop %v4156
        %v4158 = vmul.f32 %v4149, 1.442695
        %v4159 = vpow.pop %v4158
        %v4160 = vmul.f32 %v4150, 1.442695
        %v4161 = vpow.pop %v4160
        %v4162 = vmul.f32 %v4151, 1.442695
        %v4163 = vpow.pop %v4162
        %v4164 = vmul.f32 %v4152, 1.442695
        %v4165 = vpow.pop %v4164
        %v4166 = vmul.f32 %v4153, 1.442695
        %v4167 = vpow.pop %v4166
        %v4168 = vmul.f32 %v4154, 1.442695
        %v4169 = vpow.pop %v4168
        %v4170 = vmul.f32 %v4155, 1.442695
        %v4171 = vpow.pop %v4170
        %v4172 = vsel %vm4114, %v4157, 0.0
        %v4173 = vsel %vm4115, %v4159, 0.0
        %v4174 = vsel %vm4114, %v4161, 0.0
        %v4175 = vsel %vm4115, %v4163, 0.0
        %v4176 = vsel %vm4114, %v4165, 0.0
        %v4177 = vsel %vm4115, %v4167, 0.0
        %v4178 = vsel %vm4114, %v4169, 0.0
        %v4179 = vsel %vm4115, %v4171, 0.0
        %v4180 = vsel %vm2040, %v4172, 0.0
        %4181 = vadd.xlane.f32.xlu0 %v4180
        %v4182 = vpop.xlane.xlu0 %4181
        %v4183 = vsel %vm2040, %v4173, 0.0
        %4184 = vadd.xlane.f32.xlu0 %v4183
        %v4185 = vpop.xlane.xlu0 %4184
        %v4186 = vsel %vm2040, %v4174, 0.0
        %4187 = vadd.xlane.f32.xlu0 %v4186
        %v4188 = vpop.xlane.xlu0 %4187
        %v4189 = vsel %vm2040, %v4175, 0.0
        %4190 = vadd.xlane.f32.xlu0 %v4189
        %v4191 = vpop.xlane.xlu0 %4190
        %v4192 = vsel %vm2040, %v4176, 0.0
        %4193 = vadd.xlane.f32.xlu0 %v4192
        %v4194 = vpop.xlane.xlu0 %4193
        %v4195 = vsel %vm2040, %v4177, 0.0
        %4196 = vadd.xlane.f32.xlu0 %v4195
        %v4197 = vpop.xlane.xlu0 %4196
        %v4198 = vsel %vm2040, %v4178, 0.0
        %4199 = vadd.xlane.f32.xlu0 %v4198
        %v4200 = vpop.xlane.xlu0 %4199
        %v4201 = vsel %vm2040, %v4179, 0.0
        %4202 = vadd.xlane.f32.xlu0 %v4201
        %v4203 = vpop.xlane.xlu0 %4202
        %v4204 = vmax.f32 %v4182, 1e-30
        %v4205 = vmax.f32 %v4185, 1e-30
        %v4206 = vmax.f32 %v4188, 1e-30
        %v4207 = vmax.f32 %v4191, 1e-30
        %v4208 = vmax.f32 %v4194, 1e-30
        %v4209 = vmax.f32 %v4197, 1e-30
        %v4210 = vmax.f32 %v4200, 1e-30
        %v4211 = vmax.f32 %v4203, 1e-30
        %v4212 = vrcp.pop %v4204
        %v4213 = vmul.f32 1.0, %v4212
        %v4214 = vrcp.pop %v4205
        %v4215 = vmul.f32 1.0, %v4214
        %v4216 = vrcp.pop %v4206
        %v4217 = vmul.f32 1.0, %v4216
        %v4218 = vrcp.pop %v4207
        %v4219 = vmul.f32 1.0, %v4218
        %v4220 = vrcp.pop %v4208
        %v4221 = vmul.f32 1.0, %v4220
        %v4222 = vrcp.pop %v4209
        %v4223 = vmul.f32 1.0, %v4222
        %v4224 = vrcp.pop %v4210
        %v4225 = vmul.f32 1.0, %v4224
        %v4226 = vrcp.pop %v4211
        %v4227 = vmul.f32 1.0, %v4226
        %v4228 = vmul.f32 %v4172, %v4213
        %v4229 = vmul.f32 %v4173, %v4215
        %v4230 = vmul.f32 %v4174, %v4217
        %v4231 = vmul.f32 %v4175, %v4219
        %v4232 = vmul.f32 %v4176, %v4221
        %v4233 = vmul.f32 %v4177, %v4223
        %v4234 = vmul.f32 %v4178, %v4225
        %v4235 = vmul.f32 %v4179, %v4227
        %v4237 = vsel %vm2040, %v4228, 0
        %v4240 = vsel %vm2040, %v4229, 0
        %4242 = vmatprep.subr.mxu0 0.0
        %4243 = vmatpush1.msra.mxu0 %v3682
        %4244 = vmatprep.subr.mxu0 0.0
        %4245 = vmatpush1.msra.mxu0 %v3750
        %4246 = vmatprep.subr.mxu0 0.0
        %4247 = vmatpush1.msra.mxu0 0.0
        %4248 = vmatprep.subr.mxu0 0.0
        %4249 = vmatpush1.msra.mxu0 0.0
        %4250 = vmatprep.subr.mxu0 0.0
        %4251 = vmatpush1.msra.mxu0 0.0
        %4252 = vmatprep.subr.mxu0 0.0
        %4253 = vmatpush1.msra.mxu0 0.0
        %4254 = vmatprep.subr.mxu0 0.0
        %4255 = vmatpush1.msra.mxu0 0.0
        %4256 = vmatprep.subr.mxu0 0.0
        %4257 = vmatpush1.msra.mxu0 0.0
        %4258 = vmatprep.subr.mxu0 0.0
        %4259 = vmatpush1.msra.mxu0 0.0
        %4260 = vmatprep.subr.mxu0 0.0
        %4261 = vmatpush1.msra.mxu0 0.0
        %4262 = vmatprep.subr.mxu0 0.0
        %4263 = vmatpush1.msra.mxu0 0.0
        %4264 = vmatprep.subr.mxu0 0.0
        %4265 = vmatpush1.msra.mxu0 0.0
        %4266 = vmatprep.subr.mxu0 0.0
        %4267 = vmatpush1.msra.mxu0 0.0
        %4268 = vmatprep.subr.mxu0 0.0
        %4269 = vmatpush1.msra.mxu0 0.0
        %4270 = vmatprep.subr.mxu0 0.0
        %4271 = vmatpush1.msra.mxu0 0.0
        %4272 = vmatprep.subr.mxu0 0.0
        %4273 = vmatpush1.msra.mxu0 0.0
        %4274 = vmatprep.subr.mxu0 0.0
        %4275 = vmatpush1.msra.mxu0 0.0
        %4276 = vmatprep.subr.mxu0 0.0
        %4277 = vmatpush1.msra.mxu0 0.0
        %4278 = vmatprep.subr.mxu0 0.0
        %4279 = vmatpush1.msra.mxu0 0.0
        %4280 = vmatprep.subr.mxu0 0.0
        %4281 = vmatpush1.msra.mxu0 0.0
        %4282 = vmatprep.subr.mxu0 0.0
        %4283 = vmatpush1.msra.mxu0 0.0
        %4284 = vmatprep.subr.mxu0 0.0
        %4285 = vmatpush1.msra.mxu0 0.0
        %4286 = vmatprep.subr.mxu0 0.0
        %4287 = vmatpush1.msra.mxu0 0.0
        %4288 = vmatprep.subr.mxu0 0.0
        %4289 = vmatpush1.msra.mxu0 0.0
        %4290 = vmatprep.subr.mxu0 0.0
        %4291 = vmatpush1.msra.mxu0 0.0
        %4292 = vmatprep.subr.mxu0 0.0
        %4293 = vmatpush1.msra.mxu0 0.0
        %4294 = vmatprep.subr.mxu0 0.0
        %4295 = vmatpush1.msra.mxu0 0.0
        %4296 = vmatprep.subr.mxu0 0.0
        %4297 = vmatpush1.msra.mxu0 0.0
        %4298 = vmatprep.subr.mxu0 0.0
        %4299 = vmatpush1.msra.mxu0 0.0
        %4300 = vmatprep.subr.mxu0 0.0
        %4301 = vmatpush1.msra.mxu0 0.0
        %4302 = vmatprep.subr.mxu0 0.0
        %4303 = vmatpush1.msra.mxu0 0.0
        %4304 = vmatprep.subr.mxu0 0.0
        %4305 = vmatpush1.msra.mxu0 0.0
        %4306 = vmatprep.mubr.f32.mxu0 0.0
        %4307 = vmatmul.mubr.f32.gmra.mrb[0].mxu0 %v4237
        %v4308 = vpop.f32.mrb[0].mxu0
        %v4309 = vadd.f32 0.0, %v4308
        %v4310 = vpop.f32.mrb[0].mxu0
        %4311 = vmatprep.mubr.f32.mxu0 0.0
        %4312 = vmatmul.mubr.f32.gmra.mrb[0].mxu0 %v4240
        %v4313 = vpop.f32.mrb[0].mxu0
        %v4314 = vadd.f32 0.0, %v4313
        %v4315 = vpop.f32.mrb[0].mxu0
        %4316 = vdwg.mxu0
        %v4318 = vsel %vm2040, %v4230, 0
        %v4321 = vsel %vm2040, %v4231, 0
        %4323 = vmatprep.subr.mxu0 0.0
        %4324 = vmatpush1.msra.mxu0 %v3683
        %4325 = vmatprep.subr.mxu0 0.0
        %4326 = vmatpush1.msra.mxu0 %v3751
        %4327 = vmatprep.subr.mxu0 0.0
        %4328 = vmatpush1.msra.mxu0 0.0
        %4329 = vmatprep.subr.mxu0 0.0
        %4330 = vmatpush1.msra.mxu0 0.0
        %4331 = vmatprep.subr.mxu0 0.0
        %4332 = vmatpush1.msra.mxu0 0.0
        %4333 = vmatprep.subr.mxu0 0.0
        %4334 = vmatpush1.msra.mxu0 0.0
        %4335 = vmatprep.subr.mxu0 0.0
        %4336 = vmatpush1.msra.mxu0 0.0
        %4337 = vmatprep.subr.mxu0 0.0
        %4338 = vmatpush1.msra.mxu0 0.0
        %4339 = vmatprep.subr.mxu0 0.0
        %4340 = vmatpush1.msra.mxu0 0.0
        %4341 = vmatprep.subr.mxu0 0.0
        %4342 = vmatpush1.msra.mxu0 0.0
        %4343 = vmatprep.subr.mxu0 0.0
        %4344 = vmatpush1.msra.mxu0 0.0
        %4345 = vmatprep.subr.mxu0 0.0
        %4346 = vmatpush1.msra.mxu0 0.0
        %4347 = vmatprep.subr.mxu0 0.0
        %4348 = vmatpush1.msra.mxu0 0.0
        %4349 = vmatprep.subr.mxu0 0.0
        %4350 = vmatpush1.msra.mxu0 0.0
        %4351 = vmatprep.subr.mxu0 0.0
        %4352 = vmatpush1.msra.mxu0 0.0
        %4353 = vmatprep.subr.mxu0 0.0
        %4354 = vmatpush1.msra.mxu0 0.0
        %4355 = vmatprep.subr.mxu0 0.0
        %4356 = vmatpush1.msra.mxu0 0.0
        %4357 = vmatprep.subr.mxu0 0.0
        %4358 = vmatpush1.msra.mxu0 0.0
        %4359 = vmatprep.subr.mxu0 0.0
        %4360 = vmatpush1.msra.mxu0 0.0
        %4361 = vmatprep.subr.mxu0 0.0
        %4362 = vmatpush1.msra.mxu0 0.0
        %4363 = vmatprep.subr.mxu0 0.0
        %4364 = vmatpush1.msra.mxu0 0.0
        %4365 = vmatprep.subr.mxu0 0.0
        %4366 = vmatpush1.msra.mxu0 0.0
        %4367 = vmatprep.subr.mxu0 0.0
        %4368 = vmatpush1.msra.mxu0 0.0
        %4369 = vmatprep.subr.mxu0 0.0
        %4370 = vmatpush1.msra.mxu0 0.0
        %4371 = vmatprep.subr.mxu0 0.0
        %4372 = vmatpush1.msra.mxu0 0.0
        %4373 = vmatprep.subr.mxu0 0.0
        %4374 = vmatpush1.msra.mxu0 0.0
        %4375 = vmatprep.subr.mxu0 0.0
        %4376 = vmatpush1.msra.mxu0 0.0
        %4377 = vmatprep.subr.mxu0 0.0
        %4378 = vmatpush1.msra.mxu0 0.0
        %4379 = vmatprep.subr.mxu0 0.0
        %4380 = vmatpush1.msra.mxu0 0.0
        %4381 = vmatprep.subr.mxu0 0.0
        %4382 = vmatpush1.msra.mxu0 0.0
        %4383 = vmatprep.subr.mxu0 0.0
        %4384 = vmatpush1.msra.mxu0 0.0
        %4385 = vmatprep.subr.mxu0 0.0
        %4386 = vmatpush1.msra.mxu0 0.0
        %4387 = vmatprep.mubr.f32.mxu0 0.0
        %4388 = vmatmul.mubr.f32.gmra.mrb[0].mxu0 %v4318
        %v4389 = vpop.f32.mrb[0].mxu0
        %v4390 = vadd.f32 0.0, %v4389
        %v4391 = vpop.f32.mrb[0].mxu0
        %4392 = vmatprep.mubr.f32.mxu0 0.0
        %4393 = vmatmul.mubr.f32.gmra.mrb[0].mxu0 %v4321
        %v4394 = vpop.f32.mrb[0].mxu0
        %v4395 = vadd.f32 0.0, %v4394
        %v4396 = vpop.f32.mrb[0].mxu0
        %4397 = vdwg.mxu0
        %v4399 = vsel %vm2040, %v4232, 0
        %v4402 = vsel %vm2040, %v4233, 0
        %4404 = vmatprep.subr.mxu0 0.0
        %4405 = vmatpush1.msra.mxu0 %v3684
        %4406 = vmatprep.subr.mxu0 0.0
        %4407 = vmatpush1.msra.mxu0 %v3752
        %4408 = vmatprep.subr.mxu0 0.0
        %4409 = vmatpush1.msra.mxu0 0.0
        %4410 = vmatprep.subr.mxu0 0.0
        %4411 = vmatpush1.msra.mxu0 0.0
        %4412 = vmatprep.subr.mxu0 0.0
        %4413 = vmatpush1.msra.mxu0 0.0
        %4414 = vmatprep.subr.mxu0 0.0
        %4415 = vmatpush1.msra.mxu0 0.0
        %4416 = vmatprep.subr.mxu0 0.0
        %4417 = vmatpush1.msra.mxu0 0.0
        %4418 = vmatprep.subr.mxu0 0.0
        %4419 = vmatpush1.msra.mxu0 0.0
        %4420 = vmatprep.subr.mxu0 0.0
        %4421 = vmatpush1.msra.mxu0 0.0
        %4422 = vmatprep.subr.mxu0 0.0
        %4423 = vmatpush1.msra.mxu0 0.0
        %4424 = vmatprep.subr.mxu0 0.0
        %4425 = vmatpush1.msra.mxu0 0.0
        %4426 = vmatprep.subr.mxu0 0.0
        %4427 = vmatpush1.msra.mxu0 0.0
        %4428 = vmatprep.subr.mxu0 0.0
        %4429 = vmatpush1.msra.mxu0 0.0
        %4430 = vmatprep.subr.mxu0 0.0
        %4431 = vmatpush1.msra.mxu0 0.0
        %4432 = vmatprep.subr.mxu0 0.0
        %4433 = vmatpush1.msra.mxu0 0.0
        %4434 = vmatprep.subr.mxu0 0.0
        %4435 = vmatpush1.msra.mxu0 0.0
        %4436 = vmatprep.subr.mxu0 0.0
        %4437 = vmatpush1.msra.mxu0 0.0
        %4438 = vmatprep.subr.mxu0 0.0
        %4439 = vmatpush1.msra.mxu0 0.0
        %4440 = vmatprep.subr.mxu0 0.0
        %4441 = vmatpush1.msra.mxu0 0.0
        %4442 = vmatprep.subr.mxu0 0.0
        %4443 = vmatpush1.msra.mxu0 0.0
        %4444 = vmatprep.subr.mxu0 0.0
        %4445 = vmatpush1.msra.mxu0 0.0
        %4446 = vmatprep.subr.mxu0 0.0
        %4447 = vmatpush1.msra.mxu0 0.0
        %4448 = vmatprep.subr.mxu0 0.0
        %4449 = vmatpush1.msra.mxu0 0.0
        %4450 = vmatprep.subr.mxu0 0.0
        %4451 = vmatpush1.msra.mxu0 0.0
        %4452 = vmatprep.subr.mxu0 0.0
        %4453 = vmatpush1.msra.mxu0 0.0
        %4454 = vmatprep.subr.mxu0 0.0
        %4455 = vmatpush1.msra.mxu0 0.0
        %4456 = vmatprep.subr.mxu0 0.0
        %4457 = vmatpush1.msra.mxu0 0.0
        %4458 = vmatprep.subr.mxu0 0.0
        %4459 = vmatpush1.msra.mxu0 0.0
        %4460 = vmatprep.subr.mxu0 0.0
        %4461 = vmatpush1.msra.mxu0 0.0
        %4462 = vmatprep.subr.mxu0 0.0
        %4463 = vmatpush1.msra.mxu0 0.0
        %4464 = vmatprep.subr.mxu0 0.0
        %4465 = vmatpush1.msra.mxu0 0.0
        %4466 = vmatprep.subr.mxu0 0.0
        %4467 = vmatpush1.msra.mxu0 0.0
        %4468 = vmatprep.mubr.f32.mxu0 0.0
        %4469 = vmatmul.mubr.f32.gmra.mrb[0].mxu0 %v4399
        %v4470 = vpop.f32.mrb[0].mxu0
        %v4471 = vadd.f32 0.0, %v4470
        %v4472 = vpop.f32.mrb[0].mxu0
        %4473 = vmatprep.mubr.f32.mxu0 0.0
        %4474 = vmatmul.mubr.f32.gmra.mrb[0].mxu0 %v4402
        %v4475 = vpop.f32.mrb[0].mxu0
        %v4476 = vadd.f32 0.0, %v4475
        %v4477 = vpop.f32.mrb[0].mxu0
        %4478 = vdwg.mxu0
        %v4480 = vsel %vm2040, %v4234, 0
        %v4483 = vsel %vm2040, %v4235, 0
        %4485 = vmatprep.subr.mxu0 0.0
        %4486 = vmatpush1.msra.mxu0 %v3685
        %4487 = vmatprep.subr.mxu0 0.0
        %4488 = vmatpush1.msra.mxu0 %v3753
        %4489 = vmatprep.subr.mxu0 0.0
        %4490 = vmatpush1.msra.mxu0 0.0
        %4491 = vmatprep.subr.mxu0 0.0
        %4492 = vmatpush1.msra.mxu0 0.0
        %4493 = vmatprep.subr.mxu0 0.0
        %4494 = vmatpush1.msra.mxu0 0.0
        %4495 = vmatprep.subr.mxu0 0.0
        %4496 = vmatpush1.msra.mxu0 0.0
        %4497 = vmatprep.subr.mxu0 0.0
        %4498 = vmatpush1.msra.mxu0 0.0
        %4499 = vmatprep.subr.mxu0 0.0
        %4500 = vmatpush1.msra.mxu0 0.0
        %4501 = vmatprep.subr.mxu0 0.0
        %4502 = vmatpush1.msra.mxu0 0.0
        %4503 = vmatprep.subr.mxu0 0.0
        %4504 = vmatpush1.msra.mxu0 0.0
        %4505 = vmatprep.subr.mxu0 0.0
        %4506 = vmatpush1.msra.mxu0 0.0
        %4507 = vmatprep.subr.mxu0 0.0
        %4508 = vmatpush1.msra.mxu0 0.0
        %4509 = vmatprep.subr.mxu0 0.0
        %4510 = vmatpush1.msra.mxu0 0.0
        %4511 = vmatprep.subr.mxu0 0.0
        %4512 = vmatpush1.msra.mxu0 0.0
        %4513 = vmatprep.subr.mxu0 0.0
        %4514 = vmatpush1.msra.mxu0 0.0
        %4515 = vmatprep.subr.mxu0 0.0
        %4516 = vmatpush1.msra.mxu0 0.0
        %4517 = vmatprep.subr.mxu0 0.0
        %4518 = vmatpush1.msra.mxu0 0.0
        %4519 = vmatprep.subr.mxu0 0.0
        %4520 = vmatpush1.msra.mxu0 0.0
        %4521 = vmatprep.subr.mxu0 0.0
        %4522 = vmatpush1.msra.mxu0 0.0
        %4523 = vmatprep.subr.mxu0 0.0
        %4524 = vmatpush1.msra.mxu0 0.0
        %4525 = vmatprep.subr.mxu0 0.0
        %4526 = vmatpush1.msra.mxu0 0.0
        %4527 = vmatprep.subr.mxu0 0.0
        %4528 = vmatpush1.msra.mxu0 0.0
        %4529 = vmatprep.subr.mxu0 0.0
        %4530 = vmatpush1.msra.mxu0 0.0
        %4531 = vmatprep.subr.mxu0 0.0
        %4532 = vmatpush1.msra.mxu0 0.0
        %4533 = vmatprep.subr.mxu0 0.0
        %4534 = vmatpush1.msra.mxu0 0.0
        %4535 = vmatprep.subr.mxu0 0.0
        %4536 = vmatpush1.msra.mxu0 0.0
        %4537 = vmatprep.subr.mxu0 0.0
        %4538 = vmatpush1.msra.mxu0 0.0
        %4539 = vmatprep.subr.mxu0 0.0
        %4540 = vmatpush1.msra.mxu0 0.0
        %4541 = vmatprep.subr.mxu0 0.0
        %4542 = vmatpush1.msra.mxu0 0.0
        %4543 = vmatprep.subr.mxu0 0.0
        %4544 = vmatpush1.msra.mxu0 0.0
        %4545 = vmatprep.subr.mxu0 0.0
        %4546 = vmatpush1.msra.mxu0 0.0
        %4547 = vmatprep.subr.mxu0 0.0
        %4548 = vmatpush1.msra.mxu0 0.0
        %4549 = vmatprep.mubr.f32.mxu0 0.0
        %4550 = vmatmul.mubr.f32.gmra.mrb[0].mxu0 %v4480
        %v4551 = vpop.f32.mrb[0].mxu0
        %v4552 = vadd.f32 0.0, %v4551
        %v4553 = vpop.f32.mrb[0].mxu0
        %4554 = vmatprep.mubr.f32.mxu0 0.0
        %4555 = vmatmul.mubr.f32.gmra.mrb[0].mxu0 %v4483
        %v4556 = vpop.f32.mrb[0].mxu0
        %v4557 = vadd.f32 0.0, %v4556
        %v4558 = vpop.f32.mrb[0].mxu0
        %4559 = vdwg.mxu0
        %v4560 = vcombine.low %v4309, %v4471
        %v4561 = vcombine.high %v4309, %v4471
        %v4563 = vunpack.c.l.s4 1983009808
        %v4564 = vunpack.c.0.s8 %v4563
        %v4565 = vlaneseq
        %v4566 = vshrl.u32 %v4565, 7
        %v4567 = vsub.s32 %v4564, %v4566
        %v4568 = vrot.slane %v4560, %v4567
        %v4570 = vunpack.c.l.s4 1983009808
        %v4571 = vunpack.c.0.s8 %v4570
        %v4572 = vlaneseq
        %v4573 = vshrl.u32 %v4572, 7
        %v4574 = vsub.s32 %v4571, %v4573
        %v4575 = vrot.slane %v4561, %v4574
        %v4576 = vcombine.low %v4390, %v4552
        %v4577 = vcombine.high %v4390, %v4552
        %v4579 = vunpack.c.l.s4 1983009808
        %v4580 = vunpack.c.0.s8 %v4579
        %v4581 = vlaneseq
        %v4582 = vshrl.u32 %v4581, 7
        %v4583 = vsub.s32 %v4580, %v4582
        %v4584 = vrot.slane %v4576, %v4583
        %v4586 = vunpack.c.l.s4 1983009808
        %v4587 = vunpack.c.0.s8 %v4586
        %v4588 = vlaneseq
        %v4589 = vshrl.u32 %v4588, 7
        %v4590 = vsub.s32 %v4587, %v4589
        %v4591 = vrot.slane %v4577, %v4590
        %v4592 = vcombine.low %v4568, %v4584
        %v4593 = vcombine.high %v4568, %v4584
        %v4595 = vunpack.c.l.s4 1934713408
        %v4596 = vunpack.c.0.s8 %v4595
        %v4597 = vlaneseq
        %v4598 = vshrl.u32 %v4597, 7
        %v4599 = vsub.s32 %v4596, %v4598
        %v4600 = vrot.slane %v4592, %v4599
        %v4602 = vunpack.c.l.s4 1934713408
        %v4603 = vunpack.c.0.s8 %v4602
        %v4604 = vlaneseq
        %v4605 = vshrl.u32 %v4604, 7
        %v4606 = vsub.s32 %v4603, %v4605
        %v4607 = vrot.slane %v4593, %v4606
        %v4608 = vcombine.low %v4575, %v4591
        %v4609 = vcombine.high %v4575, %v4591
        %v4611 = vunpack.c.l.s4 1934713408
        %v4612 = vunpack.c.0.s8 %v4611
        %v4613 = vlaneseq
        %v4614 = vshrl.u32 %v4613, 7
        %v4615 = vsub.s32 %v4612, %v4614
        %v4616 = vrot.slane %v4608, %v4615
        %v4618 = vunpack.c.l.s4 1934713408
        %v4619 = vunpack.c.0.s8 %v4618
        %v4620 = vlaneseq
        %v4621 = vshrl.u32 %v4620, 7
        %v4622 = vsub.s32 %v4619, %v4621
        %v4623 = vrot.slane %v4609, %v4622
        %v4624 = vcombine.high %v4600, 0.0
        %v4625 = vcombine.high %v4607, 0.0
        %v4626 = vcombine.high %v4616, 0.0
        %v4627 = vcombine.high %v4623, 0.0
        %v4628 = vcombine.low %v4314, %v4476
        %v4629 = vcombine.high %v4314, %v4476
        %v4631 = vunpack.c.l.s4 1983009808
        %v4632 = vunpack.c.0.s8 %v4631
        %v4633 = vlaneseq
        %v4634 = vshrl.u32 %v4633, 7
        %v4635 = vsub.s32 %v4632, %v4634
        %v4636 = vrot.slane %v4628, %v4635
        %v4638 = vunpack.c.l.s4 1983009808
        %v4639 = vunpack.c.0.s8 %v4638
        %v4640 = vlaneseq
        %v4641 = vshrl.u32 %v4640, 7
        %v4642 = vsub.s32 %v4639, %v4641
        %v4643 = vrot.slane %v4629, %v4642
        %v4644 = vcombine.low %v4395, %v4557
        %v4645 = vcombine.high %v4395, %v4557
        %v4647 = vunpack.c.l.s4 1983009808
        %v4648 = vunpack.c.0.s8 %v4647
        %v4649 = vlaneseq
        %v4650 = vshrl.u32 %v4649, 7
        %v4651 = vsub.s32 %v4648, %v4650
        %v4652 = vrot.slane %v4644, %v4651
        %v4654 = vunpack.c.l.s4 1983009808
        %v4655 = vunpack.c.0.s8 %v4654
        %v4656 = vlaneseq
        %v4657 = vshrl.u32 %v4656, 7
        %v4658 = vsub.s32 %v4655, %v4657
        %v4659 = vrot.slane %v4645, %v4658
        %v4660 = vcombine.low %v4636, %v4652
        %v4661 = vcombine.high %v4636, %v4652
        %v4663 = vunpack.c.l.s4 1934713408
        %v4664 = vunpack.c.0.s8 %v4663
        %v4665 = vlaneseq
        %v4666 = vshrl.u32 %v4665, 7
        %v4667 = vsub.s32 %v4664, %v4666
        %v4668 = vrot.slane %v4660, %v4667
        %v4670 = vunpack.c.l.s4 1934713408
        %v4671 = vunpack.c.0.s8 %v4670
        %v4672 = vlaneseq
        %v4673 = vshrl.u32 %v4672, 7
        %v4674 = vsub.s32 %v4671, %v4673
        %v4675 = vrot.slane %v4661, %v4674
        %v4676 = vcombine.low %v4643, %v4659
        %v4677 = vcombine.high %v4643, %v4659
        %v4679 = vunpack.c.l.s4 1934713408
        %v4680 = vunpack.c.0.s8 %v4679
        %v4681 = vlaneseq
        %v4682 = vshrl.u32 %v4681, 7
        %v4683 = vsub.s32 %v4680, %v4682
        %v4684 = vrot.slane %v4676, %v4683
        %v4686 = vunpack.c.l.s4 1934713408
        %v4687 = vunpack.c.0.s8 %v4686
        %v4688 = vlaneseq
        %v4689 = vshrl.u32 %v4688, 7
        %v4690 = vsub.s32 %v4687, %v4689
        %v4691 = vrot.slane %v4677, %v4690
        %v4692 = vcombine.high %v4668, 0.0
        %v4693 = vcombine.high %v4675, 0.0
        %v4694 = vcombine.high %v4684, 0.0
        %v4695 = vcombine.high %v4691, 0.0
        %v4696 = vcombine.low %v4600, %v4607
        %v4698 = vunpack.c.l.s4 1983009808
        %v4699 = vunpack.c.0.s8 %v4698
        %v4700 = vlaneseq
        %v4701 = vshrl.u32 %v4700, 7
        %v4702 = vsub.s32 %v4699, %v4701
        %v4703 = vrot.slane %v4696, %v4702
        %v4704 = vcombine.low %v4624, %v4625
        %v4706 = vunpack.c.l.s4 1983009808
        %v4707 = vunpack.c.0.s8 %v4706
        %v4708 = vlaneseq
        %v4709 = vshrl.u32 %v4708, 7
        %v4710 = vsub.s32 %v4707, %v4709
        %v4711 = vrot.slane %v4704, %v4710
        %v4712 = vcombine.low %v4616, %v4623
        %v4714 = vunpack.c.l.s4 1983009808
        %v4715 = vunpack.c.0.s8 %v4714
        %v4716 = vlaneseq
        %v4717 = vshrl.u32 %v4716, 7
        %v4718 = vsub.s32 %v4715, %v4717
        %v4719 = vrot.slane %v4712, %v4718
        %v4720 = vcombine.low %v4626, %v4627
        %v4722 = vunpack.c.l.s4 1983009808
        %v4723 = vunpack.c.0.s8 %v4722
        %v4724 = vlaneseq
        %v4725 = vshrl.u32 %v4724, 7
        %v4726 = vsub.s32 %v4723, %v4725
        %v4727 = vrot.slane %v4720, %v4726
        %v4728 = vcombine.low %v4703, %v4711
        %v4729 = vcombine.high %v4703, %v4711
        %v4731 = vunpack.c.l.s4 1934713408
        %v4732 = vunpack.c.0.s8 %v4731
        %v4733 = vlaneseq
        %v4734 = vshrl.u32 %v4733, 7
        %v4735 = vsub.s32 %v4732, %v4734
        %v4736 = vrot.slane %v4728, %v4735
        %v4738 = vunpack.c.l.s4 1934713408
        %v4739 = vunpack.c.0.s8 %v4738
        %v4740 = vlaneseq
        %v4741 = vshrl.u32 %v4740, 7
        %v4742 = vsub.s32 %v4739, %v4741
        %v4743 = vrot.slane %v4729, %v4742
        %v4744 = vcombine.low %v4719, %v4727
        %v4745 = vcombine.high %v4719, %v4727
        %v4747 = vunpack.c.l.s4 1934713408
        %v4748 = vunpack.c.0.s8 %v4747
        %v4749 = vlaneseq
        %v4750 = vshrl.u32 %v4749, 7
        %v4751 = vsub.s32 %v4748, %v4750
        %v4752 = vrot.slane %v4744, %v4751
        %v4754 = vunpack.c.l.s4 1934713408
        %v4755 = vunpack.c.0.s8 %v4754
        %v4756 = vlaneseq
        %v4757 = vshrl.u32 %v4756, 7
        %v4758 = vsub.s32 %v4755, %v4757
        %v4759 = vrot.slane %v4745, %v4758
        %v4760 = vcombine.low %v4736, %v4752
        %v4761 = vcombine.high %v4736, %v4752
        %v4762 = vcombine.low %v4743, %v4759
        %v4763 = vcombine.high %v4743, %v4759
        %v4764 = vcombine.low %v4668, %v4675
        %v4766 = vunpack.c.l.s4 1983009808
        %v4767 = vunpack.c.0.s8 %v4766
        %v4768 = vlaneseq
        %v4769 = vshrl.u32 %v4768, 7
        %v4770 = vsub.s32 %v4767, %v4769
        %v4771 = vrot.slane %v4764, %v4770
        %v4772 = vcombine.low %v4692, %v4693
        %v4774 = vunpack.c.l.s4 1983009808
        %v4775 = vunpack.c.0.s8 %v4774
        %v4776 = vlaneseq
        %v4777 = vshrl.u32 %v4776, 7
        %v4778 = vsub.s32 %v4775, %v4777
        %v4779 = vrot.slane %v4772, %v4778
        %v4780 = vcombine.low %v4684, %v4691
        %v4782 = vunpack.c.l.s4 1983009808
        %v4783 = vunpack.c.0.s8 %v4782
        %v4784 = vlaneseq
        %v4785 = vshrl.u32 %v4784, 7
        %v4786 = vsub.s32 %v4783, %v4785
        %v4787 = vrot.slane %v4780, %v4786
        %v4788 = vcombine.low %v4694, %v4695
        %v4790 = vunpack.c.l.s4 1983009808
        %v4791 = vunpack.c.0.s8 %v4790
        %v4792 = vlaneseq
        %v4793 = vshrl.u32 %v4792, 7
        %v4794 = vsub.s32 %v4791, %v4793
        %v4795 = vrot.slane %v4788, %v4794
        %v4796 = vcombine.low %v4771, %v4779
        %v4797 = vcombine.high %v4771, %v4779
        %v4799 = vunpack.c.l.s4 1934713408
        %v4800 = vunpack.c.0.s8 %v4799
        %v4801 = vlaneseq
        %v4802 = vshrl.u32 %v4801, 7
        %v4803 = vsub.s32 %v4800, %v4802
        %v4804 = vrot.slane %v4796, %v4803
        %v4806 = vunpack.c.l.s4 1934713408
        %v4807 = vunpack.c.0.s8 %v4806
        %v4808 = vlaneseq
        %v4809 = vshrl.u32 %v4808, 7
        %v4810 = vsub.s32 %v4807, %v4809
        %v4811 = vrot.slane %v4797, %v4810
        %v4812 = vcombine.low %v4787, %v4795
        %v4813 = vcombine.high %v4787, %v4795
        %v4815 = vunpack.c.l.s4 1934713408
        %v4816 = vunpack.c.0.s8 %v4815
        %v4817 = vlaneseq
        %v4818 = vshrl.u32 %v4817, 7
        %v4819 = vsub.s32 %v4816, %v4818
        %v4820 = vrot.slane %v4812, %v4819
        %v4822 = vunpack.c.l.s4 1934713408
        %v4823 = vunpack.c.0.s8 %v4822
        %v4824 = vlaneseq
        %v4825 = vshrl.u32 %v4824, 7
        %v4826 = vsub.s32 %v4823, %v4825
        %v4827 = vrot.slane %v4813, %v4826
        %v4828 = vcombine.low %v4804, %v4820
        %v4829 = vcombine.high %v4804, %v4820
        %v4830 = vcombine.low %v4811, %v4827
        %v4831 = vcombine.high %v4811, %v4827
        %4834 = vrot.lane.b32.xlu0 %v4761, 8
        %v4835 = vpop.permute.xlu0 %4834
        %4836 = vrot.lane.b32.xlu0 %v4829, 8
        %v4837 = vpop.permute.xlu0 %4836
        %4842 = vrot.lane.b32.xlu0 %v4762, 16
        %v4843 = vpop.permute.xlu0 %4842
        %4844 = vrot.lane.b32.xlu0 %v4830, 16
        %v4845 = vpop.permute.xlu0 %4844
        %4850 = vrot.lane.b32.xlu0 %v4763, 24
        %v4851 = vpop.permute.xlu0 %4850
        %4852 = vrot.lane.b32.xlu0 %v4831, 24
        %v4853 = vpop.permute.xlu0 %4852
        %v4856 = vsel %vm1671, %v4760, %v4835
        %v4857 = vsel %vm1671, %v4828, %v4837
        %v4858 = vsel %vm2040, %v4856, %v4843
        %v4859 = vsel %vm2040, %v4857, %v4845
        %v4860 = vsel %vm615, %v4858, %v4851
        %v4861 = vsel %vm615, %v4859, %v4853
        %v4862 = vadd.f32 %v2787, %v4860
        %v4863 = vadd.f32 %v2788, %v4861
        %4864 = vrot.lane.b32.xlu0 %v2862, 32
        %v4865 = vpop.permute.xlu0 %4864
        %4866 = vrot.lane.b32.xlu0 %v2867, 32
        %v4867 = vpop.permute.xlu0 %4866
        %v4870 = vadd.f32 %v4862, %v4865
        %v4871 = vadd.f32 %v4863, %v4867
        %v4872 = vmax.f32 %v4870, 0.0
        %v4873 = vmax.f32 %v4871, 0.0
        %v4874 = vsel %vm703, %v4872, 0.0
        %v4875 = vsel %vm703, %v4873, 0.0
        %v4876 = vadd.f32 %v4874, %v4875
        %4877 = vadd.xlane.f32.xlu0 %v4876
        %v4878 = vpop.xlane.xlu0 %4877
        %v4879 = vrot.slane %v4878, 4
        %v4880 = vadd.f32 %v4878, %v4879
        %v4881 = vrot.slane %v4880, 2
        %v4882 = vadd.f32 %v4880, %v4881
        %v4883 = vrot.slane %v4882, 1
        %v4884 = vadd.f32 %v4882, %v4883
        %s4885 = vtos %v4884
        %v4886 = vrcp.pop 512.0
        %s4887 = vtos %v4886
        %s4888 = smul.f32 %s4885, %s4887
        %v4889 = vmul.f32 %v4872, %v4872
        %v4890 = vmul.f32 %v4873, %v4873
        %v4891 = vsel %vm703, %v4889, 0.0
        %v4892 = vsel %vm703, %v4890, 0.0
        %v4893 = vadd.f32 %v4891, %v4892
        %4894 = vadd.xlane.f32.xlu0 %v4893
        %v4895 = vpop.xlane.xlu0 %4894
        %v4896 = vrot.slane %v4895, 4
        %v4897 = vadd.f32 %v4895, %v4896
        %v4898 = vrot.slane %v4897, 2
        %v4899 = vadd.f32 %v4897, %v4898
        %v4900 = vrot.slane %v4899, 1
        %v4901 = vadd.f32 %v4899, %v4900
        %s4902 = vtos %v4901
        %v4903 = vrcp.pop 512.0
        %s4904 = vtos %v4903
        %s4905 = smul.f32 %s4902, %s4904
        %s4906 = smul.f32 %s4888, %s4888
        %s4907 = ssub.f32 %s4905, %s4906
        %s4908 = smax.f32 %s4907, 0.0
        %v4909 = vstv %s4908
        %v4910 = vrsqrt.pop %v4909
        %v4911 = vmul.f32 %v4909, %v4910
        %vm4912 = vcmp.eq.f32.partialorder %v4909, inf
        %v4913 = vsel %vm4912, %v4909, %v4911
        %vm4914 = vcmp.eq.f32.partialorder %v4909, 0.0
        %v4915 = vand.u32 %v4909, 2147483648
        %v4916 = vsel %vm4914, %v4915, %v4913
        %s4917 = vtos %v4916
        %v4918 = vstv %s4888
        %v4919 = vsub.f32 %v4872, %v4918
        %v4920 = vsub.f32 %v4873, %v4918
        %s4921 = sadd.f32 %s4917, 1e-05
        %v4922 = vstv %s4921
        %v4923 = vrcp.pop %v4922
        %v4924 = vmul.f32 %v4919, %v4923
        %v4925 = vmul.f32 %v4920, %v4923
        %v4927 = vlaneseq
        %v4928 = vshrl.u32 %v4927, 7
        %v4929 = vsub.s32 0, %v4928
        %v4930 = vrot.slane %v587, %v4929
        %v4932 = vmul.f32 %v4924, %v4930
        %v4933 = vmul.f32 %v4925, %v4930
        %v4935 = vlaneseq
        %v4936 = vshrl.u32 %v4935, 7
        %v4937 = vsub.s32 0, %v4936
        %v4938 = vrot.slane %v589, %v4937
        %v4940 = vadd.f32 %v4932, %v4938
        %v4941 = vadd.f32 %v4933, %v4938
        %v4943 = vlaneseq
        %v4944 = vshrl.u32 %v4943, 7
        %v4945 = vsub.s32 0, %v4944
        %v4946 = vrot.slane %v585, %v4945
        %v4949 = vsel %vm703, %v4940, 0
        %v4952 = vsel %vm703, %v4941, 0
        %4954 = vmatprep.subr.mxu0 0.0
        %4955 = vmatpush1.msra.mxu0 %v575
        %4956 = vmatprep.subr.mxu0 0.0
        %4957 = vmatpush1.msra.mxu0 %v576
        %4958 = vmatprep.subr.mxu0 0.0
        %4959 = vmatpush1.msra.mxu0 %v577
        %4960 = vmatprep.subr.mxu0 0.0
        %4961 = vmatpush1.msra.mxu0 %v578
        %4962 = vmatprep.subr.mxu0 0.0
        %4963 = vmatpush1.msra.mxu0 0.0
        %4964 = vmatprep.subr.mxu0 0.0
        %4965 = vmatpush1.msra.mxu0 0.0
        %4966 = vmatprep.subr.mxu0 0.0
        %4967 = vmatpush1.msra.mxu0 0.0
        %4968 = vmatprep.subr.mxu0 0.0
        %4969 = vmatpush1.msra.mxu0 0.0
        %4970 = vmatprep.subr.mxu0 0.0
        %4971 = vmatpush1.msra.mxu0 0.0
        %4972 = vmatprep.subr.mxu0 0.0
        %4973 = vmatpush1.msra.mxu0 0.0
        %4974 = vmatprep.subr.mxu0 0.0
        %4975 = vmatpush1.msra.mxu0 0.0
        %4976 = vmatprep.subr.mxu0 0.0
        %4977 = vmatpush1.msra.mxu0 0.0
        %4978 = vmatprep.subr.mxu0 0.0
        %4979 = vmatpush1.msra.mxu0 0.0
        %4980 = vmatprep.subr.mxu0 0.0
        %4981 = vmatpush1.msra.mxu0 0.0
        %4982 = vmatprep.subr.mxu0 0.0
        %4983 = vmatpush1.msra.mxu0 0.0
        %4984 = vmatprep.subr.mxu0 0.0
        %4985 = vmatpush1.msra.mxu0 0.0
        %4986 = vmatprep.subr.mxu0 0.0
        %4987 = vmatpush1.msra.mxu0 0.0
        %4988 = vmatprep.subr.mxu0 0.0
        %4989 = vmatpush1.msra.mxu0 0.0
        %4990 = vmatprep.subr.mxu0 0.0
        %4991 = vmatpush1.msra.mxu0 0.0
        %4992 = vmatprep.subr.mxu0 0.0
        %4993 = vmatpush1.msra.mxu0 0.0
        %4994 = vmatprep.subr.mxu0 0.0
        %4995 = vmatpush1.msra.mxu0 0.0
        %4996 = vmatprep.subr.mxu0 0.0
        %4997 = vmatpush1.msra.mxu0 0.0
        %4998 = vmatprep.subr.mxu0 0.0
        %4999 = vmatpush1.msra.mxu0 0.0
        %5000 = vmatprep.subr.mxu0 0.0
        %5001 = vmatpush1.msra.mxu0 0.0
        %5002 = vmatprep.subr.mxu0 0.0
        %5003 = vmatpush1.msra.mxu0 0.0
        %5004 = vmatprep.subr.mxu0 0.0
        %5005 = vmatpush1.msra.mxu0 0.0
        %5006 = vmatprep.subr.mxu0 0.0
        %5007 = vmatpush1.msra.mxu0 0.0
        %5008 = vmatprep.subr.mxu0 0.0
        %5009 = vmatpush1.msra.mxu0 0.0
        %5010 = vmatprep.subr.mxu0 0.0
        %5011 = vmatpush1.msra.mxu0 0.0
        %5012 = vmatprep.subr.mxu0 0.0
        %5013 = vmatpush1.msra.mxu0 0.0
        %5014 = vmatprep.subr.mxu0 0.0
        %5015 = vmatpush1.msra.mxu0 0.0
        %5016 = vmatprep.subr.mxu0 0.0
        %5017 = vmatpush1.msra.mxu0 0.0
        %5018 = vmatprep.mubr.f32.mxu0 0.0
        %5019 = vmatmul.mubr.f32.gmra.mrb[0].mxu0 %v4949
        %v5020 = vpop.f32.mrb[0].mxu0
        %v5021 = vadd.f32 %v4946, %v5020
        %v5022 = vpop.f32.mrb[0].mxu0
        %5023 = vmatprep.mubr.f32.mxu0 0.0
        %5024 = vmatmul.mubr.f32.gmra.mrb[0].mxu0 %v4952
        %v5025 = vpop.f32.mrb[0].mxu0
        %v5026 = vadd.f32 %v4946, %v5025
        %v5027 = vpop.f32.mrb[0].mxu0
        %5028 = vdwg.mxu0
        %5031 = vrot.lane.b32.xlu0 %v5021, 120
        %v5032 = vpop.permute.xlu0 %5031
        %5033 = vrot.lane.b32.xlu0 %v5026, 120
        %v5034 = vpop.permute.xlu0 %5033
        %5037 = vrot.lane.b32.xlu0 %v5021, 112
        %v5038 = vpop.permute.xlu0 %5037
        %5039 = vrot.lane.b32.xlu0 %v5026, 112
        %v5040 = vpop.permute.xlu0 %5039
        %5043 = vrot.lane.b32.xlu0 %v5021, 104
        %v5044 = vpop.permute.xlu0 %5043
        %5045 = vrot.lane.b32.xlu0 %v5026, 104
        %v5046 = vpop.permute.xlu0 %5045
        %v5049 = vcombine.low %v5021, %v5038
        %v5050 = vcombine.high %v5021, %v5038
        %v5052 = vunpack.c.l.s4 1983009808
        %v5053 = vunpack.c.0.s8 %v5052
        %v5054 = vlaneseq
        %v5055 = vshrl.u32 %v5054, 7
        %v5056 = vsub.s32 %v5053, %v5055
        %v5057 = vrot.slane %v5049, %v5056
        %v5059 = vunpack.c.l.s4 1983009808
        %v5060 = vunpack.c.0.s8 %v5059
        %v5061 = vlaneseq
        %v5062 = vshrl.u32 %v5061, 7
        %v5063 = vsub.s32 %v5060, %v5062
        %v5064 = vrot.slane %v5050, %v5063
        %v5065 = vcombine.low %v5032, %v5044
        %v5066 = vcombine.high %v5032, %v5044
        %v5068 = vunpack.c.l.s4 1983009808
        %v5069 = vunpack.c.0.s8 %v5068
        %v5070 = vlaneseq
        %v5071 = vshrl.u32 %v5070, 7
        %v5072 = vsub.s32 %v5069, %v5071
        %v5073 = vrot.slane %v5065, %v5072
        %v5075 = vunpack.c.l.s4 1983009808
        %v5076 = vunpack.c.0.s8 %v5075
        %v5077 = vlaneseq
        %v5078 = vshrl.u32 %v5077, 7
        %v5079 = vsub.s32 %v5076, %v5078
        %v5080 = vrot.slane %v5066, %v5079
        %v5081 = vcombine.low %v5057, %v5073
        %v5082 = vcombine.high %v5057, %v5073
        %v5084 = vunpack.c.l.s4 1934713408
        %v5085 = vunpack.c.0.s8 %v5084
        %v5086 = vlaneseq
        %v5087 = vshrl.u32 %v5086, 7
        %v5088 = vsub.s32 %v5085, %v5087
        %v5089 = vrot.slane %v5081, %v5088
        %v5091 = vunpack.c.l.s4 1934713408
        %v5092 = vunpack.c.0.s8 %v5091
        %v5093 = vlaneseq
        %v5094 = vshrl.u32 %v5093, 7
        %v5095 = vsub.s32 %v5092, %v5094
        %v5096 = vrot.slane %v5082, %v5095
        %v5097 = vcombine.low %v5064, %v5080
        %v5098 = vcombine.high %v5064, %v5080
        %v5100 = vunpack.c.l.s4 1934713408
        %v5101 = vunpack.c.0.s8 %v5100
        %v5102 = vlaneseq
        %v5103 = vshrl.u32 %v5102, 7
        %v5104 = vsub.s32 %v5101, %v5103
        %v5105 = vrot.slane %v5097, %v5104
        %v5107 = vunpack.c.l.s4 1934713408
        %v5108 = vunpack.c.0.s8 %v5107
        %v5109 = vlaneseq
        %v5110 = vshrl.u32 %v5109, 7
        %v5111 = vsub.s32 %v5108, %v5110
        %v5112 = vrot.slane %v5098, %v5111
        %v5113 = vcombine.high %v5089, 0.0
        %v5114 = vcombine.high %v5096, 0.0
        %v5115 = vcombine.high %v5105, 0.0
        %v5116 = vcombine.high %v5112, 0.0
        %v5117 = vcombine.low %v5026, %v5040
        %v5118 = vcombine.high %v5026, %v5040
        %v5120 = vunpack.c.l.s4 1983009808
        %v5121 = vunpack.c.0.s8 %v5120
        %v5122 = vlaneseq
        %v5123 = vshrl.u32 %v5122, 7
        %v5124 = vsub.s32 %v5121, %v5123
        %v5125 = vrot.slane %v5117, %v5124
        %v5127 = vunpack.c.l.s4 1983009808
        %v5128 = vunpack.c.0.s8 %v5127
        %v5129 = vlaneseq
        %v5130 = vshrl.u32 %v5129, 7
        %v5131 = vsub.s32 %v5128, %v5130
        %v5132 = vrot.slane %v5118, %v5131
        %v5133 = vcombine.low %v5034, %v5046
        %v5134 = vcombine.high %v5034, %v5046
        %v5136 = vunpack.c.l.s4 1983009808
        %v5137 = vunpack.c.0.s8 %v5136
        %v5138 = vlaneseq
        %v5139 = vshrl.u32 %v5138, 7
        %v5140 = vsub.s32 %v5137, %v5139
        %v5141 = vrot.slane %v5133, %v5140
        %v5143 = vunpack.c.l.s4 1983009808
        %v5144 = vunpack.c.0.s8 %v5143
        %v5145 = vlaneseq
        %v5146 = vshrl.u32 %v5145, 7
        %v5147 = vsub.s32 %v5144, %v5146
        %v5148 = vrot.slane %v5134, %v5147
        %v5149 = vcombine.low %v5125, %v5141
        %v5150 = vcombine.high %v5125, %v5141
        %v5152 = vunpack.c.l.s4 1934713408
        %v5153 = vunpack.c.0.s8 %v5152
        %v5154 = vlaneseq
        %v5155 = vshrl.u32 %v5154, 7
        %v5156 = vsub.s32 %v5153, %v5155
        %v5157 = vrot.slane %v5149, %v5156
        %v5159 = vunpack.c.l.s4 1934713408
        %v5160 = vunpack.c.0.s8 %v5159
        %v5161 = vlaneseq
        %v5162 = vshrl.u32 %v5161, 7
        %v5163 = vsub.s32 %v5160, %v5162
        %v5164 = vrot.slane %v5150, %v5163
        %v5165 = vcombine.low %v5132, %v5148
        %v5166 = vcombine.high %v5132, %v5148
        %v5168 = vunpack.c.l.s4 1934713408
        %v5169 = vunpack.c.0.s8 %v5168
        %v5170 = vlaneseq
        %v5171 = vshrl.u32 %v5170, 7
        %v5172 = vsub.s32 %v5169, %v5171
        %v5173 = vrot.slane %v5165, %v5172
        %v5175 = vunpack.c.l.s4 1934713408
        %v5176 = vunpack.c.0.s8 %v5175
        %v5177 = vlaneseq
        %v5178 = vshrl.u32 %v5177, 7
        %v5179 = vsub.s32 %v5176, %v5178
        %v5180 = vrot.slane %v5166, %v5179
        %v5181 = vcombine.high %v5157, 0.0
        %v5182 = vcombine.high %v5164, 0.0
        %v5183 = vcombine.high %v5173, 0.0
        %v5184 = vcombine.high %v5180, 0.0
        %v5185 = vcombine.low %v5089, %v5096
        %v5187 = vunpack.c.l.s4 1983009808
        %v5188 = vunpack.c.0.s8 %v5187
        %v5189 = vlaneseq
        %v5190 = vshrl.u32 %v5189, 7
        %v5191 = vsub.s32 %v5188, %v5190
        %v5192 = vrot.slane %v5185, %v5191
        %v5193 = vcombine.low %v5113, %v5114
        %v5195 = vunpack.c.l.s4 1983009808
        %v5196 = vunpack.c.0.s8 %v5195
        %v5197 = vlaneseq
        %v5198 = vshrl.u32 %v5197, 7
        %v5199 = vsub.s32 %v5196, %v5198
        %v5200 = vrot.slane %v5193, %v5199
        %v5201 = vcombine.low %v5105, %v5112
        %v5203 = vunpack.c.l.s4 1983009808
        %v5204 = vunpack.c.0.s8 %v5203
        %v5205 = vlaneseq
        %v5206 = vshrl.u32 %v5205, 7
        %v5207 = vsub.s32 %v5204, %v5206
        %v5208 = vrot.slane %v5201, %v5207
        %v5209 = vcombine.low %v5115, %v5116
        %v5211 = vunpack.c.l.s4 1983009808
        %v5212 = vunpack.c.0.s8 %v5211
        %v5213 = vlaneseq
        %v5214 = vshrl.u32 %v5213, 7
        %v5215 = vsub.s32 %v5212, %v5214
        %v5216 = vrot.slane %v5209, %v5215
        %v5217 = vcombine.low %v5192, %v5200
        %v5218 = vcombine.high %v5192, %v5200
        %v5220 = vunpack.c.l.s4 1934713408
        %v5221 = vunpack.c.0.s8 %v5220
        %v5222 = vlaneseq
        %v5223 = vshrl.u32 %v5222, 7
        %v5224 = vsub.s32 %v5221, %v5223
        %v5225 = vrot.slane %v5217, %v5224
        %v5227 = vunpack.c.l.s4 1934713408
        %v5228 = vunpack.c.0.s8 %v5227
        %v5229 = vlaneseq
        %v5230 = vshrl.u32 %v5229, 7
        %v5231 = vsub.s32 %v5228, %v5230
        %v5232 = vrot.slane %v5218, %v5231
        %v5233 = vcombine.low %v5208, %v5216
        %v5234 = vcombine.high %v5208, %v5216
        %v5236 = vunpack.c.l.s4 1934713408
        %v5237 = vunpack.c.0.s8 %v5236
        %v5238 = vlaneseq
        %v5239 = vshrl.u32 %v5238, 7
        %v5240 = vsub.s32 %v5237, %v5239
        %v5241 = vrot.slane %v5233, %v5240
        %v5243 = vunpack.c.l.s4 1934713408
        %v5244 = vunpack.c.0.s8 %v5243
        %v5245 = vlaneseq
        %v5246 = vshrl.u32 %v5245, 7
        %v5247 = vsub.s32 %v5244, %v5246
        %v5248 = vrot.slane %v5234, %v5247
        %v5249 = vcombine.low %v5225, %v5241
        %v5250 = vcombine.high %v5225, %v5241
        %v5251 = vcombine.low %v5232, %v5248
        %v5252 = vcombine.high %v5232, %v5248
        %v5253 = vcombine.low %v5157, %v5164
        %v5255 = vunpack.c.l.s4 1983009808
        %v5256 = vunpack.c.0.s8 %v5255
        %v5257 = vlaneseq
        %v5258 = vshrl.u32 %v5257, 7
        %v5259 = vsub.s32 %v5256, %v5258
        %v5260 = vrot.slane %v5253, %v5259
        %v5261 = vcombine.low %v5181, %v5182
        %v5263 = vunpack.c.l.s4 1983009808
        %v5264 = vunpack.c.0.s8 %v5263
        %v5265 = vlaneseq
        %v5266 = vshrl.u32 %v5265, 7
        %v5267 = vsub.s32 %v5264, %v5266
        %v5268 = vrot.slane %v5261, %v5267
        %v5269 = vcombine.low %v5173, %v5180
        %v5271 = vunpack.c.l.s4 1983009808
        %v5272 = vunpack.c.0.s8 %v5271
        %v5273 = vlaneseq
        %v5274 = vshrl.u32 %v5273, 7
        %v5275 = vsub.s32 %v5272, %v5274
        %v5276 = vrot.slane %v5269, %v5275
        %v5277 = vcombine.low %v5183, %v5184
        %v5279 = vunpack.c.l.s4 1983009808
        %v5280 = vunpack.c.0.s8 %v5279
        %v5281 = vlaneseq
        %v5282 = vshrl.u32 %v5281, 7
        %v5283 = vsub.s32 %v5280, %v5282
        %v5284 = vrot.slane %v5277, %v5283
        %v5285 = vcombine.low %v5260, %v5268
        %v5286 = vcombine.high %v5260, %v5268
        %v5288 = vunpack.c.l.s4 1934713408
        %v5289 = vunpack.c.0.s8 %v5288
        %v5290 = vlaneseq
        %v5291 = vshrl.u32 %v5290, 7
        %v5292 = vsub.s32 %v5289, %v5291
        %v5293 = vrot.slane %v5285, %v5292
        %v5295 = vunpack.c.l.s4 1934713408
        %v5296 = vunpack.c.0.s8 %v5295
        %v5297 = vlaneseq
        %v5298 = vshrl.u32 %v5297, 7
        %v5299 = vsub.s32 %v5296, %v5298
        %v5300 = vrot.slane %v5286, %v5299
        %v5301 = vcombine.low %v5276, %v5284
        %v5302 = vcombine.high %v5276, %v5284
        %v5304 = vunpack.c.l.s4 1934713408
        %v5305 = vunpack.c.0.s8 %v5304
        %v5306 = vlaneseq
        %v5307 = vshrl.u32 %v5306, 7
        %v5308 = vsub.s32 %v5305, %v5307
        %v5309 = vrot.slane %v5301, %v5308
        %v5311 = vunpack.c.l.s4 1934713408
        %v5312 = vunpack.c.0.s8 %v5311
        %v5313 = vlaneseq
        %v5314 = vshrl.u32 %v5313, 7
        %v5315 = vsub.s32 %v5312, %v5314
        %v5316 = vrot.slane %v5302, %v5315
        %v5317 = vcombine.low %v5293, %v5309
        %v5318 = vcombine.high %v5293, %v5309
        %v5319 = vcombine.low %v5300, %v5316
        %v5320 = vcombine.high %v5300, %v5316
        %5321 = vrot.lane.b32.xlu0 %v5021, 96
        %v5322 = vpop.permute.xlu0 %5321
        %5323 = vrot.lane.b32.xlu0 %v5026, 96
        %v5324 = vpop.permute.xlu0 %5323
        %5325 = vrot.lane.b32.xlu0 %v5032, 96
        %v5326 = vpop.permute.xlu0 %5325
        %5327 = vrot.lane.b32.xlu0 %v5034, 96
        %v5328 = vpop.permute.xlu0 %5327
        %5329 = vrot.lane.b32.xlu0 %v5038, 96
        %v5330 = vpop.permute.xlu0 %5329
        %5331 = vrot.lane.b32.xlu0 %v5040, 96
        %v5332 = vpop.permute.xlu0 %5331
        %5333 = vrot.lane.b32.xlu0 %v5044, 96
        %v5334 = vpop.permute.xlu0 %5333
        %5335 = vrot.lane.b32.xlu0 %v5046, 96
        %v5336 = vpop.permute.xlu0 %5335
        %v5345 = vcombine.low %v5322, %v5330
        %v5346 = vcombine.high %v5322, %v5330
        %v5348 = vunpack.c.l.s4 1983009808
        %v5349 = vunpack.c.0.s8 %v5348
        %v5350 = vlaneseq
        %v5351 = vshrl.u32 %v5350, 7
        %v5352 = vsub.s32 %v5349, %v5351
        %v5353 = vrot.slane %v5345, %v5352
        %v5355 = vunpack.c.l.s4 1983009808
        %v5356 = vunpack.c.0.s8 %v5355
        %v5357 = vlaneseq
        %v5358 = vshrl.u32 %v5357, 7
        %v5359 = vsub.s32 %v5356, %v5358
        %v5360 = vrot.slane %v5346, %v5359
        %v5361 = vcombine.low %v5326, %v5334
        %v5362 = vcombine.high %v5326, %v5334
        %v5364 = vunpack.c.l.s4 1983009808
        %v5365 = vunpack.c.0.s8 %v5364
        %v5366 = vlaneseq
        %v5367 = vshrl.u32 %v5366, 7
        %v5368 = vsub.s32 %v5365, %v5367
        %v5369 = vrot.slane %v5361, %v5368
        %v5371 = vunpack.c.l.s4 1983009808
        %v5372 = vunpack.c.0.s8 %v5371
        %v5373 = vlaneseq
        %v5374 = vshrl.u32 %v5373, 7
        %v5375 = vsub.s32 %v5372, %v5374
        %v5376 = vrot.slane %v5362, %v5375
        %v5377 = vcombine.low %v5353, %v5369
        %v5378 = vcombine.high %v5353, %v5369
        %v5380 = vunpack.c.l.s4 1934713408
        %v5381 = vunpack.c.0.s8 %v5380
        %v5382 = vlaneseq
        %v5383 = vshrl.u32 %v5382, 7
        %v5384 = vsub.s32 %v5381, %v5383
        %v5385 = vrot.slane %v5377, %v5384
        %v5387 = vunpack.c.l.s4 1934713408
        %v5388 = vunpack.c.0.s8 %v5387
        %v5389 = vlaneseq
        %v5390 = vshrl.u32 %v5389, 7
        %v5391 = vsub.s32 %v5388, %v5390
        %v5392 = vrot.slane %v5378, %v5391
        %v5393 = vcombine.low %v5360, %v5376
        %v5394 = vcombine.high %v5360, %v5376
        %v5396 = vunpack.c.l.s4 1934713408
        %v5397 = vunpack.c.0.s8 %v5396
        %v5398 = vlaneseq
        %v5399 = vshrl.u32 %v5398, 7
        %v5400 = vsub.s32 %v5397, %v5399
        %v5401 = vrot.slane %v5393, %v5400
        %v5403 = vunpack.c.l.s4 1934713408
        %v5404 = vunpack.c.0.s8 %v5403
        %v5405 = vlaneseq
        %v5406 = vshrl.u32 %v5405, 7
        %v5407 = vsub.s32 %v5404, %v5406
        %v5408 = vrot.slane %v5394, %v5407
        %v5409 = vcombine.high %v5385, 0.0
        %v5410 = vcombine.high %v5392, 0.0
        %v5411 = vcombine.high %v5401, 0.0
        %v5412 = vcombine.high %v5408, 0.0
        %v5413 = vcombine.low %v5324, %v5332
        %v5414 = vcombine.high %v5324, %v5332
        %v5416 = vunpack.c.l.s4 1983009808
        %v5417 = vunpack.c.0.s8 %v5416
        %v5418 = vlaneseq
        %v5419 = vshrl.u32 %v5418, 7
        %v5420 = vsub.s32 %v5417, %v5419
        %v5421 = vrot.slane %v5413, %v5420
        %v5423 = vunpack.c.l.s4 1983009808
        %v5424 = vunpack.c.0.s8 %v5423
        %v5425 = vlaneseq
        %v5426 = vshrl.u32 %v5425, 7
        %v5427 = vsub.s32 %v5424, %v5426
        %v5428 = vrot.slane %v5414, %v5427
        %v5429 = vcombine.low %v5328, %v5336
        %v5430 = vcombine.high %v5328, %v5336
        %v5432 = vunpack.c.l.s4 1983009808
        %v5433 = vunpack.c.0.s8 %v5432
        %v5434 = vlaneseq
        %v5435 = vshrl.u32 %v5434, 7
        %v5436 = vsub.s32 %v5433, %v5435
        %v5437 = vrot.slane %v5429, %v5436
        %v5439 = vunpack.c.l.s4 1983009808
        %v5440 = vunpack.c.0.s8 %v5439
        %v5441 = vlaneseq
        %v5442 = vshrl.u32 %v5441, 7
        %v5443 = vsub.s32 %v5440, %v5442
        %v5444 = vrot.slane %v5430, %v5443
        %v5445 = vcombine.low %v5421, %v5437
        %v5446 = vcombine.high %v5421, %v5437
        %v5448 = vunpack.c.l.s4 1934713408
        %v5449 = vunpack.c.0.s8 %v5448
        %v5450 = vlaneseq
        %v5451 = vshrl.u32 %v5450, 7
        %v5452 = vsub.s32 %v5449, %v5451
        %v5453 = vrot.slane %v5445, %v5452
        %v5455 = vunpack.c.l.s4 1934713408
        %v5456 = vunpack.c.0.s8 %v5455
        %v5457 = vlaneseq
        %v5458 = vshrl.u32 %v5457, 7
        %v5459 = vsub.s32 %v5456, %v5458
        %v5460 = vrot.slane %v5446, %v5459
        %v5461 = vcombine.low %v5428, %v5444
        %v5462 = vcombine.high %v5428, %v5444
        %v5464 = vunpack.c.l.s4 1934713408
        %v5465 = vunpack.c.0.s8 %v5464
        %v5466 = vlaneseq
        %v5467 = vshrl.u32 %v5466, 7
        %v5468 = vsub.s32 %v5465, %v5467
        %v5469 = vrot.slane %v5461, %v5468
        %v5471 = vunpack.c.l.s4 1934713408
        %v5472 = vunpack.c.0.s8 %v5471
        %v5473 = vlaneseq
        %v5474 = vshrl.u32 %v5473, 7
        %v5475 = vsub.s32 %v5472, %v5474
        %v5476 = vrot.slane %v5462, %v5475
        %v5477 = vcombine.high %v5453, 0.0
        %v5478 = vcombine.high %v5460, 0.0
        %v5479 = vcombine.high %v5469, 0.0
        %v5480 = vcombine.high %v5476, 0.0
        %v5481 = vcombine.low %v5385, %v5392
        %v5483 = vunpack.c.l.s4 1983009808
        %v5484 = vunpack.c.0.s8 %v5483
        %v5485 = vlaneseq
        %v5486 = vshrl.u32 %v5485, 7
        %v5487 = vsub.s32 %v5484, %v5486
        %v5488 = vrot.slane %v5481, %v5487
        %v5489 = vcombine.low %v5409, %v5410
        %v5491 = vunpack.c.l.s4 1983009808
        %v5492 = vunpack.c.0.s8 %v5491
        %v5493 = vlaneseq
        %v5494 = vshrl.u32 %v5493, 7
        %v5495 = vsub.s32 %v5492, %v5494
        %v5496 = vrot.slane %v5489, %v5495
        %v5497 = vcombine.low %v5401, %v5408
        %v5499 = vunpack.c.l.s4 1983009808
        %v5500 = vunpack.c.0.s8 %v5499
        %v5501 = vlaneseq
        %v5502 = vshrl.u32 %v5501, 7
        %v5503 = vsub.s32 %v5500, %v5502
        %v5504 = vrot.slane %v5497, %v5503
        %v5505 = vcombine.low %v5411, %v5412
        %v5507 = vunpack.c.l.s4 1983009808
        %v5508 = vunpack.c.0.s8 %v5507
        %v5509 = vlaneseq
        %v5510 = vshrl.u32 %v5509, 7
        %v5511 = vsub.s32 %v5508, %v5510
        %v5512 = vrot.slane %v5505, %v5511
        %v5513 = vcombine.low %v5488, %v5496
        %v5514 = vcombine.high %v5488, %v5496
        %v5516 = vunpack.c.l.s4 1934713408
        %v5517 = vunpack.c.0.s8 %v5516
        %v5518 = vlaneseq
        %v5519 = vshrl.u32 %v5518, 7
        %v5520 = vsub.s32 %v5517, %v5519
        %v5521 = vrot.slane %v5513, %v5520
        %v5523 = vunpack.c.l.s4 1934713408
        %v5524 = vunpack.c.0.s8 %v5523
        %v5525 = vlaneseq
        %v5526 = vshrl.u32 %v5525, 7
        %v5527 = vsub.s32 %v5524, %v5526
        %v5528 = vrot.slane %v5514, %v5527
        %v5529 = vcombine.low %v5504, %v5512
        %v5530 = vcombine.high %v5504, %v5512
        %v5532 = vunpack.c.l.s4 1934713408
        %v5533 = vunpack.c.0.s8 %v5532
        %v5534 = vlaneseq
        %v5535 = vshrl.u32 %v5534, 7
        %v5536 = vsub.s32 %v5533, %v5535
        %v5537 = vrot.slane %v5529, %v5536
        %v5539 = vunpack.c.l.s4 1934713408
        %v5540 = vunpack.c.0.s8 %v5539
        %v5541 = vlaneseq
        %v5542 = vshrl.u32 %v5541, 7
        %v5543 = vsub.s32 %v5540, %v5542
        %v5544 = vrot.slane %v5530, %v5543
        %v5545 = vcombine.low %v5521, %v5537
        %v5546 = vcombine.high %v5521, %v5537
        %v5547 = vcombine.low %v5528, %v5544
        %v5548 = vcombine.high %v5528, %v5544
        %v5549 = vcombine.low %v5453, %v5460
        %v5551 = vunpack.c.l.s4 1983009808
        %v5552 = vunpack.c.0.s8 %v5551
        %v5553 = vlaneseq
        %v5554 = vshrl.u32 %v5553, 7
        %v5555 = vsub.s32 %v5552, %v5554
        %v5556 = vrot.slane %v5549, %v5555
        %v5557 = vcombine.low %v5477, %v5478
        %v5559 = vunpack.c.l.s4 1983009808
        %v5560 = vunpack.c.0.s8 %v5559
        %v5561 = vlaneseq
        %v5562 = vshrl.u32 %v5561, 7
        %v5563 = vsub.s32 %v5560, %v5562
        %v5564 = vrot.slane %v5557, %v5563
        %v5565 = vcombine.low %v5469, %v5476
        %v5567 = vunpack.c.l.s4 1983009808
        %v5568 = vunpack.c.0.s8 %v5567
        %v5569 = vlaneseq
        %v5570 = vshrl.u32 %v5569, 7
        %v5571 = vsub.s32 %v5568, %v5570
        %v5572 = vrot.slane %v5565, %v5571
        %v5573 = vcombine.low %v5479, %v5480
        %v5575 = vunpack.c.l.s4 1983009808
        %v5576 = vunpack.c.0.s8 %v5575
        %v5577 = vlaneseq
        %v5578 = vshrl.u32 %v5577, 7
        %v5579 = vsub.s32 %v5576, %v5578
        %v5580 = vrot.slane %v5573, %v5579
        %v5581 = vcombine.low %v5556, %v5564
        %v5582 = vcombine.high %v5556, %v5564
        %v5584 = vunpack.c.l.s4 1934713408
        %v5585 = vunpack.c.0.s8 %v5584
        %v5586 = vlaneseq
        %v5587 = vshrl.u32 %v5586, 7
        %v5588 = vsub.s32 %v5585, %v5587
        %v5589 = vrot.slane %v5581, %v5588
        %v5591 = vunpack.c.l.s4 1934713408
        %v5592 = vunpack.c.0.s8 %v5591
        %v5593 = vlaneseq
        %v5594 = vshrl.u32 %v5593, 7
        %v5595 = vsub.s32 %v5592, %v5594
        %v5596 = vrot.slane %v5582, %v5595
        %v5597 = vcombine.low %v5572, %v5580
        %v5598 = vcombine.high %v5572, %v5580
        %v5600 = vunpack.c.l.s4 1934713408
        %v5601 = vunpack.c.0.s8 %v5600
        %v5602 = vlaneseq
        %v5603 = vshrl.u32 %v5602, 7
        %v5604 = vsub.s32 %v5601, %v5603
        %v5605 = vrot.slane %v5597, %v5604
        %v5607 = vunpack.c.l.s4 1934713408
        %v5608 = vunpack.c.0.s8 %v5607
        %v5609 = vlaneseq
        %v5610 = vshrl.u32 %v5609, 7
        %v5611 = vsub.s32 %v5608, %v5610
        %v5612 = vrot.slane %v5598, %v5611
        %v5613 = vcombine.low %v5589, %v5605
        %v5614 = vcombine.high %v5589, %v5605
        %v5615 = vcombine.low %v5596, %v5612
        %v5616 = vcombine.high %v5596, %v5612
        %5617 = vrot.lane.b32.xlu0 %v5021, 64
        %v5618 = vpop.permute.xlu0 %5617
        %5619 = vrot.lane.b32.xlu0 %v5026, 64
        %v5620 = vpop.permute.xlu0 %5619
        %5621 = vrot.lane.b32.xlu0 %v5032, 64
        %v5622 = vpop.permute.xlu0 %5621
        %5623 = vrot.lane.b32.xlu0 %v5034, 64
        %v5624 = vpop.permute.xlu0 %5623
        %5625 = vrot.lane.b32.xlu0 %v5038, 64
        %v5626 = vpop.permute.xlu0 %5625
        %5627 = vrot.lane.b32.xlu0 %v5040, 64
        %v5628 = vpop.permute.xlu0 %5627
        %5629 = vrot.lane.b32.xlu0 %v5044, 64
        %v5630 = vpop.permute.xlu0 %5629
        %5631 = vrot.lane.b32.xlu0 %v5046, 64
        %v5632 = vpop.permute.xlu0 %5631
        %v5641 = vcombine.low %v5618, %v5626
        %v5642 = vcombine.high %v5618, %v5626
        %v5644 = vunpack.c.l.s4 1983009808
        %v5645 = vunpack.c.0.s8 %v5644
        %v5646 = vlaneseq
        %v5647 = vshrl.u32 %v5646, 7
        %v5648 = vsub.s32 %v5645, %v5647
        %v5649 = vrot.slane %v5641, %v5648
        %v5651 = vunpack.c.l.s4 1983009808
        %v5652 = vunpack.c.0.s8 %v5651
        %v5653 = vlaneseq
        %v5654 = vshrl.u32 %v5653, 7
        %v5655 = vsub.s32 %v5652, %v5654
        %v5656 = vrot.slane %v5642, %v5655
        %v5657 = vcombine.low %v5622, %v5630
        %v5658 = vcombine.high %v5622, %v5630
        %v5660 = vunpack.c.l.s4 1983009808
        %v5661 = vunpack.c.0.s8 %v5660
        %v5662 = vlaneseq
        %v5663 = vshrl.u32 %v5662, 7
        %v5664 = vsub.s32 %v5661, %v5663
        %v5665 = vrot.slane %v5657, %v5664
        %v5667 = vunpack.c.l.s4 1983009808
        %v5668 = vunpack.c.0.s8 %v5667
        %v5669 = vlaneseq
        %v5670 = vshrl.u32 %v5669, 7
        %v5671 = vsub.s32 %v5668, %v5670
        %v5672 = vrot.slane %v5658, %v5671
        %v5673 = vcombine.low %v5649, %v5665
        %v5674 = vcombine.high %v5649, %v5665
        %v5676 = vunpack.c.l.s4 1934713408
        %v5677 = vunpack.c.0.s8 %v5676
        %v5678 = vlaneseq
        %v5679 = vshrl.u32 %v5678, 7
        %v5680 = vsub.s32 %v5677, %v5679
        %v5681 = vrot.slane %v5673, %v5680
        %v5683 = vunpack.c.l.s4 1934713408
        %v5684 = vunpack.c.0.s8 %v5683
        %v5685 = vlaneseq
        %v5686 = vshrl.u32 %v5685, 7
        %v5687 = vsub.s32 %v5684, %v5686
        %v5688 = vrot.slane %v5674, %v5687
        %v5689 = vcombine.low %v5656, %v5672
        %v5690 = vcombine.high %v5656, %v5672
        %v5692 = vunpack.c.l.s4 1934713408
        %v5693 = vunpack.c.0.s8 %v5692
        %v5694 = vlaneseq
        %v5695 = vshrl.u32 %v5694, 7
        %v5696 = vsub.s32 %v5693, %v5695
        %v5697 = vrot.slane %v5689, %v5696
        %v5699 = vunpack.c.l.s4 1934713408
        %v5700 = vunpack.c.0.s8 %v5699
        %v5701 = vlaneseq
        %v5702 = vshrl.u32 %v5701, 7
        %v5703 = vsub.s32 %v5700, %v5702
        %v5704 = vrot.slane %v5690, %v5703
        %v5705 = vcombine.high %v5681, 0.0
        %v5706 = vcombine.high %v5688, 0.0
        %v5707 = vcombine.high %v5697, 0.0
        %v5708 = vcombine.high %v5704, 0.0
        %v5709 = vcombine.low %v5620, %v5628
        %v5710 = vcombine.high %v5620, %v5628
        %v5712 = vunpack.c.l.s4 1983009808
        %v5713 = vunpack.c.0.s8 %v5712
        %v5714 = vlaneseq
        %v5715 = vshrl.u32 %v5714, 7
        %v5716 = vsub.s32 %v5713, %v5715
        %v5717 = vrot.slane %v5709, %v5716
        %v5719 = vunpack.c.l.s4 1983009808
        %v5720 = vunpack.c.0.s8 %v5719
        %v5721 = vlaneseq
        %v5722 = vshrl.u32 %v5721, 7
        %v5723 = vsub.s32 %v5720, %v5722
        %v5724 = vrot.slane %v5710, %v5723
        %v5725 = vcombine.low %v5624, %v5632
        %v5726 = vcombine.high %v5624, %v5632
        %v5728 = vunpack.c.l.s4 1983009808
        %v5729 = vunpack.c.0.s8 %v5728
        %v5730 = vlaneseq
        %v5731 = vshrl.u32 %v5730, 7
        %v5732 = vsub.s32 %v5729, %v5731
        %v5733 = vrot.slane %v5725, %v5732
        %v5735 = vunpack.c.l.s4 1983009808
        %v5736 = vunpack.c.0.s8 %v5735
        %v5737 = vlaneseq
        %v5738 = vshrl.u32 %v5737, 7
        %v5739 = vsub.s32 %v5736, %v5738
        %v5740 = vrot.slane %v5726, %v5739
        %v5741 = vcombine.low %v5717, %v5733
        %v5742 = vcombine.high %v5717, %v5733
        %v5744 = vunpack.c.l.s4 1934713408
        %v5745 = vunpack.c.0.s8 %v5744
        %v5746 = vlaneseq
        %v5747 = vshrl.u32 %v5746, 7
        %v5748 = vsub.s32 %v5745, %v5747
        %v5749 = vrot.slane %v5741, %v5748
        %v5751 = vunpack.c.l.s4 1934713408
        %v5752 = vunpack.c.0.s8 %v5751
        %v5753 = vlaneseq
        %v5754 = vshrl.u32 %v5753, 7
        %v5755 = vsub.s32 %v5752, %v5754
        %v5756 = vrot.slane %v5742, %v5755
        %v5757 = vcombine.low %v5724, %v5740
        %v5758 = vcombine.high %v5724, %v5740
        %v5760 = vunpack.c.l.s4 1934713408
        %v5761 = vunpack.c.0.s8 %v5760
        %v5762 = vlaneseq
        %v5763 = vshrl.u32 %v5762, 7
        %v5764 = vsub.s32 %v5761, %v5763
        %v5765 = vrot.slane %v5757, %v5764
        %v5767 = vunpack.c.l.s4 1934713408
        %v5768 = vunpack.c.0.s8 %v5767
        %v5769 = vlaneseq
        %v5770 = vshrl.u32 %v5769, 7
        %v5771 = vsub.s32 %v5768, %v5770
        %v5772 = vrot.slane %v5758, %v5771
        %v5773 = vcombine.high %v5749, 0.0
        %v5774 = vcombine.high %v5756, 0.0
        %v5775 = vcombine.high %v5765, 0.0
        %v5776 = vcombine.high %v5772, 0.0
        %v5777 = vcombine.low %v5681, %v5688
        %v5779 = vunpack.c.l.s4 1983009808
        %v5780 = vunpack.c.0.s8 %v5779
        %v5781 = vlaneseq
        %v5782 = vshrl.u32 %v5781, 7
        %v5783 = vsub.s32 %v5780, %v5782
        %v5784 = vrot.slane %v5777, %v5783
        %v5785 = vcombine.low %v5705, %v5706
        %v5787 = vunpack.c.l.s4 1983009808
        %v5788 = vunpack.c.0.s8 %v5787
        %v5789 = vlaneseq
        %v5790 = vshrl.u32 %v5789, 7
        %v5791 = vsub.s32 %v5788, %v5790
        %v5792 = vrot.slane %v5785, %v5791
        %v5793 = vcombine.low %v5697, %v5704
        %v5795 = vunpack.c.l.s4 1983009808
        %v5796 = vunpack.c.0.s8 %v5795
        %v5797 = vlaneseq
        %v5798 = vshrl.u32 %v5797, 7
        %v5799 = vsub.s32 %v5796, %v5798
        %v5800 = vrot.slane %v5793, %v5799
        %v5801 = vcombine.low %v5707, %v5708
        %v5803 = vunpack.c.l.s4 1983009808
        %v5804 = vunpack.c.0.s8 %v5803
        %v5805 = vlaneseq
        %v5806 = vshrl.u32 %v5805, 7
        %v5807 = vsub.s32 %v5804, %v5806
        %v5808 = vrot.slane %v5801, %v5807
        %v5809 = vcombine.low %v5784, %v5792
        %v5810 = vcombine.high %v5784, %v5792
        %v5812 = vunpack.c.l.s4 1934713408
        %v5813 = vunpack.c.0.s8 %v5812
        %v5814 = vlaneseq
        %v5815 = vshrl.u32 %v5814, 7
        %v5816 = vsub.s32 %v5813, %v5815
        %v5817 = vrot.slane %v5809, %v5816
        %v5819 = vunpack.c.l.s4 1934713408
        %v5820 = vunpack.c.0.s8 %v5819
        %v5821 = vlaneseq
        %v5822 = vshrl.u32 %v5821, 7
        %v5823 = vsub.s32 %v5820, %v5822
        %v5824 = vrot.slane %v5810, %v5823
        %v5825 = vcombine.low %v5800, %v5808
        %v5826 = vcombine.high %v5800, %v5808
        %v5828 = vunpack.c.l.s4 1934713408
        %v5829 = vunpack.c.0.s8 %v5828
        %v5830 = vlaneseq
        %v5831 = vshrl.u32 %v5830, 7
        %v5832 = vsub.s32 %v5829, %v5831
        %v5833 = vrot.slane %v5825, %v5832
        %v5835 = vunpack.c.l.s4 1934713408
        %v5836 = vunpack.c.0.s8 %v5835
        %v5837 = vlaneseq
        %v5838 = vshrl.u32 %v5837, 7
        %v5839 = vsub.s32 %v5836, %v5838
        %v5840 = vrot.slane %v5826, %v5839
        %v5841 = vcombine.low %v5817, %v5833
        %v5842 = vcombine.high %v5817, %v5833
        %v5843 = vcombine.low %v5824, %v5840
        %v5844 = vcombine.high %v5824, %v5840
        %v5845 = vcombine.low %v5749, %v5756
        %v5847 = vunpack.c.l.s4 1983009808
        %v5848 = vunpack.c.0.s8 %v5847
        %v5849 = vlaneseq
        %v5850 = vshrl.u32 %v5849, 7
        %v5851 = vsub.s32 %v5848, %v5850
        %v5852 = vrot.slane %v5845, %v5851
        %v5853 = vcombine.low %v5773, %v5774
        %v5855 = vunpack.c.l.s4 1983009808
        %v5856 = vunpack.c.0.s8 %v5855
        %v5857 = vlaneseq
        %v5858 = vshrl.u32 %v5857, 7
        %v5859 = vsub.s32 %v5856, %v5858
        %v5860 = vrot.slane %v5853, %v5859
        %v5861 = vcombine.low %v5765, %v5772
        %v5863 = vunpack.c.l.s4 1983009808
        %v5864 = vunpack.c.0.s8 %v5863
        %v5865 = vlaneseq
        %v5866 = vshrl.u32 %v5865, 7
        %v5867 = vsub.s32 %v5864, %v5866
        %v5868 = vrot.slane %v5861, %v5867
        %v5869 = vcombine.low %v5775, %v5776
        %v5871 = vunpack.c.l.s4 1983009808
        %v5872 = vunpack.c.0.s8 %v5871
        %v5873 = vlaneseq
        %v5874 = vshrl.u32 %v5873, 7
        %v5875 = vsub.s32 %v5872, %v5874
        %v5876 = vrot.slane %v5869, %v5875
        %v5877 = vcombine.low %v5852, %v5860
        %v5878 = vcombine.high %v5852, %v5860
        %v5880 = vunpack.c.l.s4 1934713408
        %v5881 = vunpack.c.0.s8 %v5880
        %v5882 = vlaneseq
        %v5883 = vshrl.u32 %v5882, 7
        %v5884 = vsub.s32 %v5881, %v5883
        %v5885 = vrot.slane %v5877, %v5884
        %v5887 = vunpack.c.l.s4 1934713408
        %v5888 = vunpack.c.0.s8 %v5887
        %v5889 = vlaneseq
        %v5890 = vshrl.u32 %v5889, 7
        %v5891 = vsub.s32 %v5888, %v5890
        %v5892 = vrot.slane %v5878, %v5891
        %v5893 = vcombine.low %v5868, %v5876
        %v5894 = vcombine.high %v5868, %v5876
        %v5896 = vunpack.c.l.s4 1934713408
        %v5897 = vunpack.c.0.s8 %v5896
        %v5898 = vlaneseq
        %v5899 = vshrl.u32 %v5898, 7
        %v5900 = vsub.s32 %v5897, %v5899
        %v5901 = vrot.slane %v5893, %v5900
        %v5903 = vunpack.c.l.s4 1934713408
        %v5904 = vunpack.c.0.s8 %v5903
        %v5905 = vlaneseq
        %v5906 = vshrl.u32 %v5905, 7
        %v5907 = vsub.s32 %v5904, %v5906
        %v5908 = vrot.slane %v5894, %v5907
        %v5909 = vcombine.low %v5885, %v5901
        %v5910 = vcombine.high %v5885, %v5901
        %v5911 = vcombine.low %v5892, %v5908
        %v5912 = vcombine.high %v5892, %v5908
        %v5914 = vsel %vm1671, %v5249, 0
        %v5917 = vsel %vm1671, %v5317, 0
        %v5920 = vsel %vm1671, %v5545, 0
        %v5923 = vsel %vm1671, %v5613, 0
        %5925 = vmatprep.subr.mxu0 0.0
        %5926 = vmatpush1.xpose.msra.mxu0 %v5920
        %5927 = vmatprep.subr.mxu0 0.0
        %5928 = vmatpush1.xpose.msra.mxu0 %v5923
        %5929 = vmatprep.subr.mxu0 0.0
        %5930 = vmatpush1.xpose.msra.mxu0 0.0
        %5931 = vmatprep.subr.mxu0 0.0
        %5932 = vmatpush1.xpose.msra.mxu0 0.0
        %5933 = vmatprep.subr.mxu0 0.0
        %5934 = vmatpush1.xpose.msra.mxu0 0.0
        %5935 = vmatprep.subr.mxu0 0.0
        %5936 = vmatpush1.xpose.msra.mxu0 0.0
        %5937 = vmatprep.subr.mxu0 0.0
        %5938 = vmatpush1.xpose.msra.mxu0 0.0
        %5939 = vmatprep.subr.mxu0 0.0
        %5940 = vmatpush1.xpose.msra.mxu0 0.0
        %5941 = vmatprep.subr.mxu0 0.0
        %5942 = vmatpush1.xpose.msra.mxu0 0.0
        %5943 = vmatprep.subr.mxu0 0.0
        %5944 = vmatpush1.xpose.msra.mxu0 0.0
        %5945 = vmatprep.subr.mxu0 0.0
        %5946 = vmatpush1.xpose.msra.mxu0 0.0
        %5947 = vmatprep.subr.mxu0 0.0
        %5948 = vmatpush1.xpose.msra.mxu0 0.0
        %5949 = vmatprep.subr.mxu0 0.0
        %5950 = vmatpush1.xpose.msra.mxu0 0.0
        %5951 = vmatprep.subr.mxu0 0.0
        %5952 = vmatpush1.xpose.msra.mxu0 0.0
        %5953 = vmatprep.subr.mxu0 0.0
        %5954 = vmatpush1.xpose.msra.mxu0 0.0
        %5955 = vmatprep.subr.mxu0 0.0
        %5956 = vmatpush1.xpose.msra.mxu0 0.0
        %5957 = vmatprep.subr.mxu0 0.0
        %5958 = vmatpush1.xpose.msra.mxu0 0.0
        %5959 = vmatprep.subr.mxu0 0.0
        %5960 = vmatpush1.xpose.msra.mxu0 0.0
        %5961 = vmatprep.subr.mxu0 0.0
        %5962 = vmatpush1.xpose.msra.mxu0 0.0
        %5963 = vmatprep.subr.mxu0 0.0
        %5964 = vmatpush1.xpose.msra.mxu0 0.0
        %5965 = vmatprep.subr.mxu0 0.0
        %5966 = vmatpush1.xpose.msra.mxu0 0.0
        %5967 = vmatprep.subr.mxu0 0.0
        %5968 = vmatpush1.xpose.msra.mxu0 0.0
        %5969 = vmatprep.subr.mxu0 0.0
        %5970 = vmatpush1.xpose.msra.mxu0 0.0
        %5971 = vmatprep.subr.mxu0 0.0
        %5972 = vmatpush1.xpose.msra.mxu0 0.0
        %5973 = vmatprep.subr.mxu0 0.0
        %5974 = vmatpush1.xpose.msra.mxu0 0.0
        %5975 = vmatprep.subr.mxu0 0.0
        %5976 = vmatpush1.xpose.msra.mxu0 0.0
        %5977 = vmatprep.subr.mxu0 0.0
        %5978 = vmatpush1.xpose.msra.mxu0 0.0
        %5979 = vmatprep.subr.mxu0 0.0
        %5980 = vmatpush1.xpose.msra.mxu0 0.0
        %5981 = vmatprep.subr.mxu0 0.0
        %5982 = vmatpush1.xpose.msra.mxu0 0.0
        %5983 = vmatprep.subr.mxu0 0.0
        %5984 = vmatpush1.xpose.msra.mxu0 0.0
        %5985 = vmatprep.subr.mxu0 0.0
        %5986 = vmatpush1.xpose.msra.mxu0 0.0
        %5987 = vmatprep.subr.mxu0 0.0
        %5988 = vmatpush1.xpose.msra.mxu0 0.0
        %5989 = vmatprep.mubr.f32.mxu0 0.0
        %5990 = vmatmul.mubr.f32.gmra.mrb[0].mxu0 %v5914
        %v5991 = vpop.f32.mrb[0].mxu0
        %v5992 = vadd.f32 0.0, %v5991
        %v5993 = vpop.f32.mrb[0].mxu0
        %5994 = vmatprep.mubr.f32.mxu0 0.0
        %5995 = vmatmul.mubr.f32.gmra.mrb[0].mxu0 %v5917
        %v5996 = vpop.f32.mrb[0].mxu0
        %v5997 = vadd.f32 0.0, %v5996
        %v5998 = vpop.f32.mrb[0].mxu0
        %5999 = vdwg.mxu0
        %v6001 = vsel %vm1671, %v5250, 0
        %v6004 = vsel %vm1671, %v5318, 0
        %v6007 = vsel %vm1671, %v5546, 0
        %v6010 = vsel %vm1671, %v5614, 0
        %6012 = vmatprep.subr.mxu0 0.0
        %6013 = vmatpush1.xpose.msra.mxu0 %v6007
        %6014 = vmatprep.subr.mxu0 0.0
        %6015 = vmatpush1.xpose.msra.mxu0 %v6010
        %6016 = vmatprep.subr.mxu0 0.0
        %6017 = vmatpush1.xpose.msra.mxu0 0.0
        %6018 = vmatprep.subr.mxu0 0.0
        %6019 = vmatpush1.xpose.msra.mxu0 0.0
        %6020 = vmatprep.subr.mxu0 0.0
        %6021 = vmatpush1.xpose.msra.mxu0 0.0
        %6022 = vmatprep.subr.mxu0 0.0
        %6023 = vmatpush1.xpose.msra.mxu0 0.0
        %6024 = vmatprep.subr.mxu0 0.0
        %6025 = vmatpush1.xpose.msra.mxu0 0.0
        %6026 = vmatprep.subr.mxu0 0.0
        %6027 = vmatpush1.xpose.msra.mxu0 0.0
        %6028 = vmatprep.subr.mxu0 0.0
        %6029 = vmatpush1.xpose.msra.mxu0 0.0
        %6030 = vmatprep.subr.mxu0 0.0
        %6031 = vmatpush1.xpose.msra.mxu0 0.0
        %6032 = vmatprep.subr.mxu0 0.0
        %6033 = vmatpush1.xpose.msra.mxu0 0.0
        %6034 = vmatprep.subr.mxu0 0.0
        %6035 = vmatpush1.xpose.msra.mxu0 0.0
        %6036 = vmatprep.subr.mxu0 0.0
        %6037 = vmatpush1.xpose.msra.mxu0 0.0
        %6038 = vmatprep.subr.mxu0 0.0
        %6039 = vmatpush1.xpose.msra.mxu0 0.0
        %6040 = vmatprep.subr.mxu0 0.0
        %6041 = vmatpush1.xpose.msra.mxu0 0.0
        %6042 = vmatprep.subr.mxu0 0.0
        %6043 = vmatpush1.xpose.msra.mxu0 0.0
        %6044 = vmatprep.subr.mxu0 0.0
        %6045 = vmatpush1.xpose.msra.mxu0 0.0
        %6046 = vmatprep.subr.mxu0 0.0
        %6047 = vmatpush1.xpose.msra.mxu0 0.0
        %6048 = vmatprep.subr.mxu0 0.0
        %6049 = vmatpush1.xpose.msra.mxu0 0.0
        %6050 = vmatprep.subr.mxu0 0.0
        %6051 = vmatpush1.xpose.msra.mxu0 0.0
        %6052 = vmatprep.subr.mxu0 0.0
        %6053 = vmatpush1.xpose.msra.mxu0 0.0
        %6054 = vmatprep.subr.mxu0 0.0
        %6055 = vmatpush1.xpose.msra.mxu0 0.0
        %6056 = vmatprep.subr.mxu0 0.0
        %6057 = vmatpush1.xpose.msra.mxu0 0.0
        %6058 = vmatprep.subr.mxu0 0.0
        %6059 = vmatpush1.xpose.msra.mxu0 0.0
        %6060 = vmatprep.subr.mxu0 0.0
        %6061 = vmatpush1.xpose.msra.mxu0 0.0
        %6062 = vmatprep.subr.mxu0 0.0
        %6063 = vmatpush1.xpose.msra.mxu0 0.0
        %6064 = vmatprep.subr.mxu0 0.0
        %6065 = vmatpush1.xpose.msra.mxu0 0.0
        %6066 = vmatprep.subr.mxu0 0.0
        %6067 = vmatpush1.xpose.msra.mxu0 0.0
        %6068 = vmatprep.subr.mxu0 0.0
        %6069 = vmatpush1.xpose.msra.mxu0 0.0
        %6070 = vmatprep.subr.mxu0 0.0
        %6071 = vmatpush1.xpose.msra.mxu0 0.0
        %6072 = vmatprep.subr.mxu0 0.0
        %6073 = vmatpush1.xpose.msra.mxu0 0.0
        %6074 = vmatprep.subr.mxu0 0.0
        %6075 = vmatpush1.xpose.msra.mxu0 0.0
        %6076 = vmatprep.mubr.f32.mxu0 0.0
        %6077 = vmatmul.mubr.f32.gmra.mrb[0].mxu0 %v6001
        %v6078 = vpop.f32.mrb[0].mxu0
        %v6079 = vadd.f32 0.0, %v6078
        %v6080 = vpop.f32.mrb[0].mxu0
        %6081 = vmatprep.mubr.f32.mxu0 0.0
        %6082 = vmatmul.mubr.f32.gmra.mrb[0].mxu0 %v6004
        %v6083 = vpop.f32.mrb[0].mxu0
        %v6084 = vadd.f32 0.0, %v6083
        %v6085 = vpop.f32.mrb[0].mxu0
        %6086 = vdwg.mxu0
        %v6088 = vsel %vm1671, %v5251, 0
        %v6091 = vsel %vm1671, %v5319, 0
        %v6094 = vsel %vm1671, %v5547, 0
        %v6097 = vsel %vm1671, %v5615, 0
        %6099 = vmatprep.subr.mxu0 0.0
        %6100 = vmatpush1.xpose.msra.mxu0 %v6094
        %6101 = vmatprep.subr.mxu0 0.0
        %6102 = vmatpush1.xpose.msra.mxu0 %v6097
        %6103 = vmatprep.subr.mxu0 0.0
        %6104 = vmatpush1.xpose.msra.mxu0 0.0
        %6105 = vmatprep.subr.mxu0 0.0
        %6106 = vmatpush1.xpose.msra.mxu0 0.0
        %6107 = vmatprep.subr.mxu0 0.0
        %6108 = vmatpush1.xpose.msra.mxu0 0.0
        %6109 = vmatprep.subr.mxu0 0.0
        %6110 = vmatpush1.xpose.msra.mxu0 0.0
        %6111 = vmatprep.subr.mxu0 0.0
        %6112 = vmatpush1.xpose.msra.mxu0 0.0
        %6113 = vmatprep.subr.mxu0 0.0
        %6114 = vmatpush1.xpose.msra.mxu0 0.0
        %6115 = vmatprep.subr.mxu0 0.0
        %6116 = vmatpush1.xpose.msra.mxu0 0.0
        %6117 = vmatprep.subr.mxu0 0.0
        %6118 = vmatpush1.xpose.msra.mxu0 0.0
        %6119 = vmatprep.subr.mxu0 0.0
        %6120 = vmatpush1.xpose.msra.mxu0 0.0
        %6121 = vmatprep.subr.mxu0 0.0
        %6122 = vmatpush1.xpose.msra.mxu0 0.0
        %6123 = vmatprep.subr.mxu0 0.0
        %6124 = vmatpush1.xpose.msra.mxu0 0.0
        %6125 = vmatprep.subr.mxu0 0.0
        %6126 = vmatpush1.xpose.msra.mxu0 0.0
        %6127 = vmatprep.subr.mxu0 0.0
        %6128 = vmatpush1.xpose.msra.mxu0 0.0
        %6129 = vmatprep.subr.mxu0 0.0
        %6130 = vmatpush1.xpose.msra.mxu0 0.0
        %6131 = vmatprep.subr.mxu0 0.0
        %6132 = vmatpush1.xpose.msra.mxu0 0.0
        %6133 = vmatprep.subr.mxu0 0.0
        %6134 = vmatpush1.xpose.msra.mxu0 0.0
        %6135 = vmatprep.subr.mxu0 0.0
        %6136 = vmatpush1.xpose.msra.mxu0 0.0
        %6137 = vmatprep.subr.mxu0 0.0
        %6138 = vmatpush1.xpose.msra.mxu0 0.0
        %6139 = vmatprep.subr.mxu0 0.0
        %6140 = vmatpush1.xpose.msra.mxu0 0.0
        %6141 = vmatprep.subr.mxu0 0.0
        %6142 = vmatpush1.xpose.msra.mxu0 0.0
        %6143 = vmatprep.subr.mxu0 0.0
        %6144 = vmatpush1.xpose.msra.mxu0 0.0
        %6145 = vmatprep.subr.mxu0 0.0
        %6146 = vmatpush1.xpose.msra.mxu0 0.0
        %6147 = vmatprep.subr.mxu0 0.0
        %6148 = vmatpush1.xpose.msra.mxu0 0.0
        %6149 = vmatprep.subr.mxu0 0.0
        %6150 = vmatpush1.xpose.msra.mxu0 0.0
        %6151 = vmatprep.subr.mxu0 0.0
        %6152 = vmatpush1.xpose.msra.mxu0 0.0
        %6153 = vmatprep.subr.mxu0 0.0
        %6154 = vmatpush1.xpose.msra.mxu0 0.0
        %6155 = vmatprep.subr.mxu0 0.0
        %6156 = vmatpush1.xpose.msra.mxu0 0.0
        %6157 = vmatprep.subr.mxu0 0.0
        %6158 = vmatpush1.xpose.msra.mxu0 0.0
        %6159 = vmatprep.subr.mxu0 0.0
        %6160 = vmatpush1.xpose.msra.mxu0 0.0
        %6161 = vmatprep.subr.mxu0 0.0
        %6162 = vmatpush1.xpose.msra.mxu0 0.0
        %6163 = vmatprep.mubr.f32.mxu0 0.0
        %6164 = vmatmul.mubr.f32.gmra.mrb[0].mxu0 %v6088
        %v6165 = vpop.f32.mrb[0].mxu0
        %v6166 = vadd.f32 0.0, %v6165
        %v6167 = vpop.f32.mrb[0].mxu0
        %6168 = vmatprep.mubr.f32.mxu0 0.0
        %6169 = vmatmul.mubr.f32.gmra.mrb[0].mxu0 %v6091
        %v6170 = vpop.f32.mrb[0].mxu0
        %v6171 = vadd.f32 0.0, %v6170
        %v6172 = vpop.f32.mrb[0].mxu0
        %6173 = vdwg.mxu0
        %v6175 = vsel %vm1671, %v5252, 0
        %v6178 = vsel %vm1671, %v5320, 0
        %v6181 = vsel %vm1671, %v5548, 0
        %v6184 = vsel %vm1671, %v5616, 0
        %6186 = vmatprep.subr.mxu0 0.0
        %6187 = vmatpush1.xpose.msra.mxu0 %v6181
        %6188 = vmatprep.subr.mxu0 0.0
        %6189 = vmatpush1.xpose.msra.mxu0 %v6184
        %6190 = vmatprep.subr.mxu0 0.0
        %6191 = vmatpush1.xpose.msra.mxu0 0.0
        %6192 = vmatprep.subr.mxu0 0.0
        %6193 = vmatpush1.xpose.msra.mxu0 0.0
        %6194 = vmatprep.subr.mxu0 0.0
        %6195 = vmatpush1.xpose.msra.mxu0 0.0
        %6196 = vmatprep.subr.mxu0 0.0
        %6197 = vmatpush1.xpose.msra.mxu0 0.0
        %6198 = vmatprep.subr.mxu0 0.0
        %6199 = vmatpush1.xpose.msra.mxu0 0.0
        %6200 = vmatprep.subr.mxu0 0.0
        %6201 = vmatpush1.xpose.msra.mxu0 0.0
        %6202 = vmatprep.subr.mxu0 0.0
        %6203 = vmatpush1.xpose.msra.mxu0 0.0
        %6204 = vmatprep.subr.mxu0 0.0
        %6205 = vmatpush1.xpose.msra.mxu0 0.0
        %6206 = vmatprep.subr.mxu0 0.0
        %6207 = vmatpush1.xpose.msra.mxu0 0.0
        %6208 = vmatprep.subr.mxu0 0.0
        %6209 = vmatpush1.xpose.msra.mxu0 0.0
        %6210 = vmatprep.subr.mxu0 0.0
        %6211 = vmatpush1.xpose.msra.mxu0 0.0
        %6212 = vmatprep.subr.mxu0 0.0
        %6213 = vmatpush1.xpose.msra.mxu0 0.0
        %6214 = vmatprep.subr.mxu0 0.0
        %6215 = vmatpush1.xpose.msra.mxu0 0.0
        %6216 = vmatprep.subr.mxu0 0.0
        %6217 = vmatpush1.xpose.msra.mxu0 0.0
        %6218 = vmatprep.subr.mxu0 0.0
        %6219 = vmatpush1.xpose.msra.mxu0 0.0
        %6220 = vmatprep.subr.mxu0 0.0
        %6221 = vmatpush1.xpose.msra.mxu0 0.0
        %6222 = vmatprep.subr.mxu0 0.0
        %6223 = vmatpush1.xpose.msra.mxu0 0.0
        %6224 = vmatprep.subr.mxu0 0.0
        %6225 = vmatpush1.xpose.msra.mxu0 0.0
        %6226 = vmatprep.subr.mxu0 0.0
        %6227 = vmatpush1.xpose.msra.mxu0 0.0
        %6228 = vmatprep.subr.mxu0 0.0
        %6229 = vmatpush1.xpose.msra.mxu0 0.0
        %6230 = vmatprep.subr.mxu0 0.0
        %6231 = vmatpush1.xpose.msra.mxu0 0.0
        %6232 = vmatprep.subr.mxu0 0.0
        %6233 = vmatpush1.xpose.msra.mxu0 0.0
        %6234 = vmatprep.subr.mxu0 0.0
        %6235 = vmatpush1.xpose.msra.mxu0 0.0
        %6236 = vmatprep.subr.mxu0 0.0
        %6237 = vmatpush1.xpose.msra.mxu0 0.0
        %6238 = vmatprep.subr.mxu0 0.0
        %6239 = vmatpush1.xpose.msra.mxu0 0.0
        %6240 = vmatprep.subr.mxu0 0.0
        %6241 = vmatpush1.xpose.msra.mxu0 0.0
        %6242 = vmatprep.subr.mxu0 0.0
        %6243 = vmatpush1.xpose.msra.mxu0 0.0
        %6244 = vmatprep.subr.mxu0 0.0
        %6245 = vmatpush1.xpose.msra.mxu0 0.0
        %6246 = vmatprep.subr.mxu0 0.0
        %6247 = vmatpush1.xpose.msra.mxu0 0.0
        %6248 = vmatprep.subr.mxu0 0.0
        %6249 = vmatpush1.xpose.msra.mxu0 0.0
        %6250 = vmatprep.mubr.f32.mxu0 0.0
        %6251 = vmatmul.mubr.f32.gmra.mrb[0].mxu0 %v6175
        %v6252 = vpop.f32.mrb[0].mxu0
        %v6253 = vadd.f32 0.0, %v6252
        %v6254 = vpop.f32.mrb[0].mxu0
        %6255 = vmatprep.mubr.f32.mxu0 0.0
        %6256 = vmatmul.mubr.f32.gmra.mrb[0].mxu0 %v6178
        %v6257 = vpop.f32.mrb[0].mxu0
        %v6258 = vadd.f32 0.0, %v6257
        %v6259 = vpop.f32.mrb[0].mxu0
        %6260 = vdwg.mxu0
        %v6261 = vmul.f32 %v5992, 0.35355338
        %v6262 = vmul.f32 %v5997, 0.35355338
        %v6263 = vmul.f32 %v6079, 0.35355338
        %v6264 = vmul.f32 %v6084, 0.35355338
        %v6265 = vmul.f32 %v6166, 0.35355338
        %v6266 = vmul.f32 %v6171, 0.35355338
        %v6267 = vmul.f32 %v6253, 0.35355338
        %v6268 = vmul.f32 %v6258, 0.35355338
        %v6269 = vsel %vm2030, %v6261, -1e+30
        %v6270 = vsel %vm2031, %v6262, -1e+30
        %v6271 = vsel %vm2030, %v6263, -1e+30
        %v6272 = vsel %vm2031, %v6264, -1e+30
        %v6273 = vsel %vm2030, %v6265, -1e+30
        %v6274 = vsel %vm2031, %v6266, -1e+30
        %v6275 = vsel %vm2030, %v6267, -1e+30
        %v6276 = vsel %vm2031, %v6268, -1e+30
        %v6277 = vsel %vm2040, %v6269, -inf
        %6278 = vmax.xlane.f32.xlu0 %v6277
        %v6279 = vpop.xlane.xlu0 %6278
        %v6280 = vsel %vm2040, %v6270, -inf
        %6281 = vmax.xlane.f32.xlu0 %v6280
        %v6282 = vpop.xlane.xlu0 %6281
        %v6283 = vsel %vm2040, %v6271, -inf
        %6284 = vmax.xlane.f32.xlu0 %v6283
        %v6285 = vpop.xlane.xlu0 %6284
        %v6286 = vsel %vm2040, %v6272, -inf
        %6287 = vmax.xlane.f32.xlu0 %v6286
        %v6288 = vpop.xlane.xlu0 %6287
        %v6289 = vsel %vm2040, %v6273, -inf
        %6290 = vmax.xlane.f32.xlu0 %v6289
        %v6291 = vpop.xlane.xlu0 %6290
        %v6292 = vsel %vm2040, %v6274, -inf
        %6293 = vmax.xlane.f32.xlu0 %v6292
        %v6294 = vpop.xlane.xlu0 %6293
        %v6295 = vsel %vm2040, %v6275, -inf
        %6296 = vmax.xlane.f32.xlu0 %v6295
        %v6297 = vpop.xlane.xlu0 %6296
        %v6298 = vsel %vm2040, %v6276, -inf
        %6299 = vmax.xlane.f32.xlu0 %v6298
        %v6300 = vpop.xlane.xlu0 %6299
        %v6301 = vsub.f32 %v6269, %v6279
        %v6302 = vsub.f32 %v6270, %v6282
        %v6303 = vsub.f32 %v6271, %v6285
        %v6304 = vsub.f32 %v6272, %v6288
        %v6305 = vsub.f32 %v6273, %v6291
        %v6306 = vsub.f32 %v6274, %v6294
        %v6307 = vsub.f32 %v6275, %v6297
        %v6308 = vsub.f32 %v6276, %v6300
        %v6309 = vmul.f32 %v6301, 1.442695
        %v6310 = vpow.pop %v6309
        %v6311 = vmul.f32 %v6302, 1.442695
        %v6312 = vpow.pop %v6311
        %v6313 = vmul.f32 %v6303, 1.442695
        %v6314 = vpow.pop %v6313
        %v6315 = vmul.f32 %v6304, 1.442695
        %v6316 = vpow.pop %v6315
        %v6317 = vmul.f32 %v6305, 1.442695
        %v6318 = vpow.pop %v6317
        %v6319 = vmul.f32 %v6306, 1.442695
        %v6320 = vpow.pop %v6319
        %v6321 = vmul.f32 %v6307, 1.442695
        %v6322 = vpow.pop %v6321
        %v6323 = vmul.f32 %v6308, 1.442695
        %v6324 = vpow.pop %v6323
        %v6325 = vsel %vm2030, %v6310, 0.0
        %v6326 = vsel %vm2031, %v6312, 0.0
        %v6327 = vsel %vm2030, %v6314, 0.0
        %v6328 = vsel %vm2031, %v6316, 0.0
        %v6329 = vsel %vm2030, %v6318, 0.0
        %v6330 = vsel %vm2031, %v6320, 0.0
        %v6331 = vsel %vm2030, %v6322, 0.0
        %v6332 = vsel %vm2031, %v6324, 0.0
        %v6333 = vsel %vm2040, %v6325, 0.0
        %6334 = vadd.xlane.f32.xlu0 %v6333
        %v6335 = vpop.xlane.xlu0 %6334
        %v6336 = vsel %vm2040, %v6326, 0.0
        %6337 = vadd.xlane.f32.xlu0 %v6336
        %v6338 = vpop.xlane.xlu0 %6337
        %v6339 = vsel %vm2040, %v6327, 0.0
        %6340 = vadd.xlane.f32.xlu0 %v6339
        %v6341 = vpop.xlane.xlu0 %6340
        %v6342 = vsel %vm2040, %v6328, 0.0
        %6343 = vadd.xlane.f32.xlu0 %v6342
        %v6344 = vpop.xlane.xlu0 %6343
        %v6345 = vsel %vm2040, %v6329, 0.0
        %6346 = vadd.xlane.f32.xlu0 %v6345
        %v6347 = vpop.xlane.xlu0 %6346
        %v6348 = vsel %vm2040, %v6330, 0.0
        %6349 = vadd.xlane.f32.xlu0 %v6348
        %v6350 = vpop.xlane.xlu0 %6349
        %v6351 = vsel %vm2040, %v6331, 0.0
        %6352 = vadd.xlane.f32.xlu0 %v6351
        %v6353 = vpop.xlane.xlu0 %6352
        %v6354 = vsel %vm2040, %v6332, 0.0
        %6355 = vadd.xlane.f32.xlu0 %v6354
        %v6356 = vpop.xlane.xlu0 %6355
        %v6357 = vmax.f32 %v6335, 1e-30
        %v6358 = vmax.f32 %v6338, 1e-30
        %v6359 = vmax.f32 %v6341, 1e-30
        %v6360 = vmax.f32 %v6344, 1e-30
        %v6361 = vmax.f32 %v6347, 1e-30
        %v6362 = vmax.f32 %v6350, 1e-30
        %v6363 = vmax.f32 %v6353, 1e-30
        %v6364 = vmax.f32 %v6356, 1e-30
        %v6365 = vrcp.pop %v6357
        %v6366 = vmul.f32 1.0, %v6365
        %v6367 = vrcp.pop %v6358
        %v6368 = vmul.f32 1.0, %v6367
        %v6369 = vrcp.pop %v6359
        %v6370 = vmul.f32 1.0, %v6369
        %v6371 = vrcp.pop %v6360
        %v6372 = vmul.f32 1.0, %v6371
        %v6373 = vrcp.pop %v6361
        %v6374 = vmul.f32 1.0, %v6373
        %v6375 = vrcp.pop %v6362
        %v6376 = vmul.f32 1.0, %v6375
        %v6377 = vrcp.pop %v6363
        %v6378 = vmul.f32 1.0, %v6377
        %v6379 = vrcp.pop %v6364
        %v6380 = vmul.f32 1.0, %v6379
        %v6381 = vmul.f32 %v6325, %v6366
        %v6382 = vmul.f32 %v6326, %v6368
        %v6383 = vmul.f32 %v6327, %v6370
        %v6384 = vmul.f32 %v6328, %v6372
        %v6385 = vmul.f32 %v6329, %v6374
        %v6386 = vmul.f32 %v6330, %v6376
        %v6387 = vmul.f32 %v6331, %v6378
        %v6388 = vmul.f32 %v6332, %v6380
        %v6390 = vsel %vm2040, %v6381, 0
        %v6393 = vsel %vm2040, %v6382, 0
        %6395 = vmatprep.subr.mxu0 0.0
        %6396 = vmatpush1.msra.mxu0 %v5841
        %6397 = vmatprep.subr.mxu0 0.0
        %6398 = vmatpush1.msra.mxu0 %v5909
        %6399 = vmatprep.subr.mxu0 0.0
        %6400 = vmatpush1.msra.mxu0 0.0
        %6401 = vmatprep.subr.mxu0 0.0
        %6402 = vmatpush1.msra.mxu0 0.0
        %6403 = vmatprep.subr.mxu0 0.0
        %6404 = vmatpush1.msra.mxu0 0.0
        %6405 = vmatprep.subr.mxu0 0.0
        %6406 = vmatpush1.msra.mxu0 0.0
        %6407 = vmatprep.subr.mxu0 0.0
        %6408 = vmatpush1.msra.mxu0 0.0
        %6409 = vmatprep.subr.mxu0 0.0
        %6410 = vmatpush1.msra.mxu0 0.0
        %6411 = vmatprep.subr.mxu0 0.0
        %6412 = vmatpush1.msra.mxu0 0.0
        %6413 = vmatprep.subr.mxu0 0.0
        %6414 = vmatpush1.msra.mxu0 0.0
        %6415 = vmatprep.subr.mxu0 0.0
        %6416 = vmatpush1.msra.mxu0 0.0
        %6417 = vmatprep.subr.mxu0 0.0
        %6418 = vmatpush1.msra.mxu0 0.0
        %6419 = vmatprep.subr.mxu0 0.0
        %6420 = vmatpush1.msra.mxu0 0.0
        %6421 = vmatprep.subr.mxu0 0.0
        %6422 = vmatpush1.msra.mxu0 0.0
        %6423 = vmatprep.subr.mxu0 0.0
        %6424 = vmatpush1.msra.mxu0 0.0
        %6425 = vmatprep.subr.mxu0 0.0
        %6426 = vmatpush1.msra.mxu0 0.0
        %6427 = vmatprep.subr.mxu0 0.0
        %6428 = vmatpush1.msra.mxu0 0.0
        %6429 = vmatprep.subr.mxu0 0.0
        %6430 = vmatpush1.msra.mxu0 0.0
        %6431 = vmatprep.subr.mxu0 0.0
        %6432 = vmatpush1.msra.mxu0 0.0
        %6433 = vmatprep.subr.mxu0 0.0
        %6434 = vmatpush1.msra.mxu0 0.0
        %6435 = vmatprep.subr.mxu0 0.0
        %6436 = vmatpush1.msra.mxu0 0.0
        %6437 = vmatprep.subr.mxu0 0.0
        %6438 = vmatpush1.msra.mxu0 0.0
        %6439 = vmatprep.subr.mxu0 0.0
        %6440 = vmatpush1.msra.mxu0 0.0
        %6441 = vmatprep.subr.mxu0 0.0
        %6442 = vmatpush1.msra.mxu0 0.0
        %6443 = vmatprep.subr.mxu0 0.0
        %6444 = vmatpush1.msra.mxu0 0.0
        %6445 = vmatprep.subr.mxu0 0.0
        %6446 = vmatpush1.msra.mxu0 0.0
        %6447 = vmatprep.subr.mxu0 0.0
        %6448 = vmatpush1.msra.mxu0 0.0
        %6449 = vmatprep.subr.mxu0 0.0
        %6450 = vmatpush1.msra.mxu0 0.0
        %6451 = vmatprep.subr.mxu0 0.0
        %6452 = vmatpush1.msra.mxu0 0.0
        %6453 = vmatprep.subr.mxu0 0.0
        %6454 = vmatpush1.msra.mxu0 0.0
        %6455 = vmatprep.subr.mxu0 0.0
        %6456 = vmatpush1.msra.mxu0 0.0
        %6457 = vmatprep.subr.mxu0 0.0
        %6458 = vmatpush1.msra.mxu0 0.0
        %6459 = vmatprep.mubr.f32.mxu0 0.0
        %6460 = vmatmul.mubr.f32.gmra.mrb[0].mxu0 %v6390
        %v6461 = vpop.f32.mrb[0].mxu0
        %v6462 = vadd.f32 0.0, %v6461
        %v6463 = vpop.f32.mrb[0].mxu0
        %6464 = vmatprep.mubr.f32.mxu0 0.0
        %6465 = vmatmul.mubr.f32.gmra.mrb[0].mxu0 %v6393
        %v6466 = vpop.f32.mrb[0].mxu0
        %v6467 = vadd.f32 0.0, %v6466
        %v6468 = vpop.f32.mrb[0].mxu0
        %6469 = vdwg.mxu0
        %v6471 = vsel %vm2040, %v6383, 0
        %v6474 = vsel %vm2040, %v6384, 0
        %6476 = vmatprep.subr.mxu0 0.0
        %6477 = vmatpush1.msra.mxu0 %v5842
        %6478 = vmatprep.subr.mxu0 0.0
        %6479 = vmatpush1.msra.mxu0 %v5910
        %6480 = vmatprep.subr.mxu0 0.0
        %6481 = vmatpush1.msra.mxu0 0.0
        %6482 = vmatprep.subr.mxu0 0.0
        %6483 = vmatpush1.msra.mxu0 0.0
        %6484 = vmatprep.subr.mxu0 0.0
        %6485 = vmatpush1.msra.mxu0 0.0
        %6486 = vmatprep.subr.mxu0 0.0
        %6487 = vmatpush1.msra.mxu0 0.0
        %6488 = vmatprep.subr.mxu0 0.0
        %6489 = vmatpush1.msra.mxu0 0.0
        %6490 = vmatprep.subr.mxu0 0.0
        %6491 = vmatpush1.msra.mxu0 0.0
        %6492 = vmatprep.subr.mxu0 0.0
        %6493 = vmatpush1.msra.mxu0 0.0
        %6494 = vmatprep.subr.mxu0 0.0
        %6495 = vmatpush1.msra.mxu0 0.0
        %6496 = vmatprep.subr.mxu0 0.0
        %6497 = vmatpush1.msra.mxu0 0.0
        %6498 = vmatprep.subr.mxu0 0.0
        %6499 = vmatpush1.msra.mxu0 0.0
        %6500 = vmatprep.subr.mxu0 0.0
        %6501 = vmatpush1.msra.mxu0 0.0
        %6502 = vmatprep.subr.mxu0 0.0
        %6503 = vmatpush1.msra.mxu0 0.0
        %6504 = vmatprep.subr.mxu0 0.0
        %6505 = vmatpush1.msra.mxu0 0.0
        %6506 = vmatprep.subr.mxu0 0.0
        %6507 = vmatpush1.msra.mxu0 0.0
        %6508 = vmatprep.subr.mxu0 0.0
        %6509 = vmatpush1.msra.mxu0 0.0
        %6510 = vmatprep.subr.mxu0 0.0
        %6511 = vmatpush1.msra.mxu0 0.0
        %6512 = vmatprep.subr.mxu0 0.0
        %6513 = vmatpush1.msra.mxu0 0.0
        %6514 = vmatprep.subr.mxu0 0.0
        %6515 = vmatpush1.msra.mxu0 0.0
        %6516 = vmatprep.subr.mxu0 0.0
        %6517 = vmatpush1.msra.mxu0 0.0
        %6518 = vmatprep.subr.mxu0 0.0
        %6519 = vmatpush1.msra.mxu0 0.0
        %6520 = vmatprep.subr.mxu0 0.0
        %6521 = vmatpush1.msra.mxu0 0.0
        %6522 = vmatprep.subr.mxu0 0.0
        %6523 = vmatpush1.msra.mxu0 0.0
        %6524 = vmatprep.subr.mxu0 0.0
        %6525 = vmatpush1.msra.mxu0 0.0
        %6526 = vmatprep.subr.mxu0 0.0
        %6527 = vmatpush1.msra.mxu0 0.0
        %6528 = vmatprep.subr.mxu0 0.0
        %6529 = vmatpush1.msra.mxu0 0.0
        %6530 = vmatprep.subr.mxu0 0.0
        %6531 = vmatpush1.msra.mxu0 0.0
        %6532 = vmatprep.subr.mxu0 0.0
        %6533 = vmatpush1.msra.mxu0 0.0
        %6534 = vmatprep.subr.mxu0 0.0
        %6535 = vmatpush1.msra.mxu0 0.0
        %6536 = vmatprep.subr.mxu0 0.0
        %6537 = vmatpush1.msra.mxu0 0.0
        %6538 = vmatprep.subr.mxu0 0.0
        %6539 = vmatpush1.msra.mxu0 0.0
        %6540 = vmatprep.mubr.f32.mxu0 0.0
        %6541 = vmatmul.mubr.f32.gmra.mrb[0].mxu0 %v6471
        %v6542 = vpop.f32.mrb[0].mxu0
        %v6543 = vadd.f32 0.0, %v6542
        %v6544 = vpop.f32.mrb[0].mxu0
        %6545 = vmatprep.mubr.f32.mxu0 0.0
        %6546 = vmatmul.mubr.f32.gmra.mrb[0].mxu0 %v6474
        %v6547 = vpop.f32.mrb[0].mxu0
        %v6548 = vadd.f32 0.0, %v6547
        %v6549 = vpop.f32.mrb[0].mxu0
        %6550 = vdwg.mxu0
        %v6552 = vsel %vm2040, %v6385, 0
        %v6555 = vsel %vm2040, %v6386, 0
        %6557 = vmatprep.subr.mxu0 0.0
        %6558 = vmatpush1.msra.mxu0 %v5843
        %6559 = vmatprep.subr.mxu0 0.0
        %6560 = vmatpush1.msra.mxu0 %v5911
        %6561 = vmatprep.subr.mxu0 0.0
        %6562 = vmatpush1.msra.mxu0 0.0
        %6563 = vmatprep.subr.mxu0 0.0
        %6564 = vmatpush1.msra.mxu0 0.0
        %6565 = vmatprep.subr.mxu0 0.0
        %6566 = vmatpush1.msra.mxu0 0.0
        %6567 = vmatprep.subr.mxu0 0.0
        %6568 = vmatpush1.msra.mxu0 0.0
        %6569 = vmatprep.subr.mxu0 0.0
        %6570 = vmatpush1.msra.mxu0 0.0
        %6571 = vmatprep.subr.mxu0 0.0
        %6572 = vmatpush1.msra.mxu0 0.0
        %6573 = vmatprep.subr.mxu0 0.0
        %6574 = vmatpush1.msra.mxu0 0.0
        %6575 = vmatprep.subr.mxu0 0.0
        %6576 = vmatpush1.msra.mxu0 0.0
        %6577 = vmatprep.subr.mxu0 0.0
        %6578 = vmatpush1.msra.mxu0 0.0
        %6579 = vmatprep.subr.mxu0 0.0
        %6580 = vmatpush1.msra.mxu0 0.0
        %6581 = vmatprep.subr.mxu0 0.0
        %6582 = vmatpush1.msra.mxu0 0.0
        %6583 = vmatprep.subr.mxu0 0.0
        %6584 = vmatpush1.msra.mxu0 0.0
        %6585 = vmatprep.subr.mxu0 0.0
        %6586 = vmatpush1.msra.mxu0 0.0
        %6587 = vmatprep.subr.mxu0 0.0
        %6588 = vmatpush1.msra.mxu0 0.0
        %6589 = vmatprep.subr.mxu0 0.0
        %6590 = vmatpush1.msra.mxu0 0.0
        %6591 = vmatprep.subr.mxu0 0.0
        %6592 = vmatpush1.msra.mxu0 0.0
        %6593 = vmatprep.subr.mxu0 0.0
        %6594 = vmatpush1.msra.mxu0 0.0
        %6595 = vmatprep.subr.mxu0 0.0
        %6596 = vmatpush1.msra.mxu0 0.0
        %6597 = vmatprep.subr.mxu0 0.0
        %6598 = vmatpush1.msra.mxu0 0.0
        %6599 = vmatprep.subr.mxu0 0.0
        %6600 = vmatpush1.msra.mxu0 0.0
        %6601 = vmatprep.subr.mxu0 0.0
        %6602 = vmatpush1.msra.mxu0 0.0
        %6603 = vmatprep.subr.mxu0 0.0
        %6604 = vmatpush1.msra.mxu0 0.0
        %6605 = vmatprep.subr.mxu0 0.0
        %6606 = vmatpush1.msra.mxu0 0.0
        %6607 = vmatprep.subr.mxu0 0.0
        %6608 = vmatpush1.msra.mxu0 0.0
        %6609 = vmatprep.subr.mxu0 0.0
        %6610 = vmatpush1.msra.mxu0 0.0
        %6611 = vmatprep.subr.mxu0 0.0
        %6612 = vmatpush1.msra.mxu0 0.0
        %6613 = vmatprep.subr.mxu0 0.0
        %6614 = vmatpush1.msra.mxu0 0.0
        %6615 = vmatprep.subr.mxu0 0.0
        %6616 = vmatpush1.msra.mxu0 0.0
        %6617 = vmatprep.subr.mxu0 0.0
        %6618 = vmatpush1.msra.mxu0 0.0
        %6619 = vmatprep.subr.mxu0 0.0
        %6620 = vmatpush1.msra.mxu0 0.0
        %6621 = vmatprep.mubr.f32.mxu0 0.0
        %6622 = vmatmul.mubr.f32.gmra.mrb[0].mxu0 %v6552
        %v6623 = vpop.f32.mrb[0].mxu0
        %v6624 = vadd.f32 0.0, %v6623
        %v6625 = vpop.f32.mrb[0].mxu0
        %6626 = vmatprep.mubr.f32.mxu0 0.0
        %6627 = vmatmul.mubr.f32.gmra.mrb[0].mxu0 %v6555
        %v6628 = vpop.f32.mrb[0].mxu0
        %v6629 = vadd.f32 0.0, %v6628
        %v6630 = vpop.f32.mrb[0].mxu0
        %6631 = vdwg.mxu0
        %v6633 = vsel %vm2040, %v6387, 0
        %v6636 = vsel %vm2040, %v6388, 0
        %6638 = vmatprep.subr.mxu0 0.0
        %6639 = vmatpush1.msra.mxu0 %v5844
        %6640 = vmatprep.subr.mxu0 0.0
        %6641 = vmatpush1.msra.mxu0 %v5912
        %6642 = vmatprep.subr.mxu0 0.0
        %6643 = vmatpush1.msra.mxu0 0.0
        %6644 = vmatprep.subr.mxu0 0.0
        %6645 = vmatpush1.msra.mxu0 0.0
        %6646 = vmatprep.subr.mxu0 0.0
        %6647 = vmatpush1.msra.mxu0 0.0
        %6648 = vmatprep.subr.mxu0 0.0
        %6649 = vmatpush1.msra.mxu0 0.0
        %6650 = vmatprep.subr.mxu0 0.0
        %6651 = vmatpush1.msra.mxu0 0.0
        %6652 = vmatprep.subr.mxu0 0.0
        %6653 = vmatpush1.msra.mxu0 0.0
        %6654 = vmatprep.subr.mxu0 0.0
        %6655 = vmatpush1.msra.mxu0 0.0
        %6656 = vmatprep.subr.mxu0 0.0
        %6657 = vmatpush1.msra.mxu0 0.0
        %6658 = vmatprep.subr.mxu0 0.0
        %6659 = vmatpush1.msra.mxu0 0.0
        %6660 = vmatprep.subr.mxu0 0.0
        %6661 = vmatpush1.msra.mxu0 0.0
        %6662 = vmatprep.subr.mxu0 0.0
        %6663 = vmatpush1.msra.mxu0 0.0
        %6664 = vmatprep.subr.mxu0 0.0
        %6665 = vmatpush1.msra.mxu0 0.0
        %6666 = vmatprep.subr.mxu0 0.0
        %6667 = vmatpush1.msra.mxu0 0.0
        %6668 = vmatprep.subr.mxu0 0.0
        %6669 = vmatpush1.msra.mxu0 0.0
        %6670 = vmatprep.subr.mxu0 0.0
        %6671 = vmatpush1.msra.mxu0 0.0
        %6672 = vmatprep.subr.mxu0 0.0
        %6673 = vmatpush1.msra.mxu0 0.0
        %6674 = vmatprep.subr.mxu0 0.0
        %6675 = vmatpush1.msra.mxu0 0.0
        %6676 = vmatprep.subr.mxu0 0.0
        %6677 = vmatpush1.msra.mxu0 0.0
        %6678 = vmatprep.subr.mxu0 0.0
        %6679 = vmatpush1.msra.mxu0 0.0
        %6680 = vmatprep.subr.mxu0 0.0
        %6681 = vmatpush1.msra.mxu0 0.0
        %6682 = vmatprep.subr.mxu0 0.0
        %6683 = vmatpush1.msra.mxu0 0.0
        %6684 = vmatprep.subr.mxu0 0.0
        %6685 = vmatpush1.msra.mxu0 0.0
        %6686 = vmatprep.subr.mxu0 0.0
        %6687 = vmatpush1.msra.mxu0 0.0
        %6688 = vmatprep.subr.mxu0 0.0
        %6689 = vmatpush1.msra.mxu0 0.0
        %6690 = vmatprep.subr.mxu0 0.0
        %6691 = vmatpush1.msra.mxu0 0.0
        %6692 = vmatprep.subr.mxu0 0.0
        %6693 = vmatpush1.msra.mxu0 0.0
        %6694 = vmatprep.subr.mxu0 0.0
        %6695 = vmatpush1.msra.mxu0 0.0
        %6696 = vmatprep.subr.mxu0 0.0
        %6697 = vmatpush1.msra.mxu0 0.0
        %6698 = vmatprep.subr.mxu0 0.0
        %6699 = vmatpush1.msra.mxu0 0.0
        %6700 = vmatprep.subr.mxu0 0.0
        %6701 = vmatpush1.msra.mxu0 0.0
        %6702 = vmatprep.mubr.f32.mxu0 0.0
        %6703 = vmatmul.mubr.f32.gmra.mrb[0].mxu0 %v6633
        %v6704 = vpop.f32.mrb[0].mxu0
        %v6705 = vadd.f32 0.0, %v6704
        %v6706 = vpop.f32.mrb[0].mxu0
        %6707 = vmatprep.mubr.f32.mxu0 0.0
        %6708 = vmatmul.mubr.f32.gmra.mrb[0].mxu0 %v6636
        %v6709 = vpop.f32.mrb[0].mxu0
        %v6710 = vadd.f32 0.0, %v6709
        %v6711 = vpop.f32.mrb[0].mxu0
        %6712 = vdwg.mxu0
        %v6713 = vcombine.low %v6462, %v6624
        %v6714 = vcombine.high %v6462, %v6624
        %v6716 = vunpack.c.l.s4 1983009808
        %v6717 = vunpack.c.0.s8 %v6716
        %v6718 = vlaneseq
        %v6719 = vshrl.u32 %v6718, 7
        %v6720 = vsub.s32 %v6717, %v6719
        %v6721 = vrot.slane %v6713, %v6720
        %v6723 = vunpack.c.l.s4 1983009808
        %v6724 = vunpack.c.0.s8 %v6723
        %v6725 = vlaneseq
        %v6726 = vshrl.u32 %v6725, 7
        %v6727 = vsub.s32 %v6724, %v6726
        %v6728 = vrot.slane %v6714, %v6727
        %v6729 = vcombine.low %v6543, %v6705
        %v6730 = vcombine.high %v6543, %v6705
        %v6732 = vunpack.c.l.s4 1983009808
        %v6733 = vunpack.c.0.s8 %v6732
        %v6734 = vlaneseq
        %v6735 = vshrl.u32 %v6734, 7
        %v6736 = vsub.s32 %v6733, %v6735
        %v6737 = vrot.slane %v6729, %v6736
        %v6739 = vunpack.c.l.s4 1983009808
        %v6740 = vunpack.c.0.s8 %v6739
        %v6741 = vlaneseq
        %v6742 = vshrl.u32 %v6741, 7
        %v6743 = vsub.s32 %v6740, %v6742
        %v6744 = vrot.slane %v6730, %v6743
        %v6745 = vcombine.low %v6721, %v6737
        %v6746 = vcombine.high %v6721, %v6737
        %v6748 = vunpack.c.l.s4 1934713408
        %v6749 = vunpack.c.0.s8 %v6748
        %v6750 = vlaneseq
        %v6751 = vshrl.u32 %v6750, 7
        %v6752 = vsub.s32 %v6749, %v6751
        %v6753 = vrot.slane %v6745, %v6752
        %v6755 = vunpack.c.l.s4 1934713408
        %v6756 = vunpack.c.0.s8 %v6755
        %v6757 = vlaneseq
        %v6758 = vshrl.u32 %v6757, 7
        %v6759 = vsub.s32 %v6756, %v6758
        %v6760 = vrot.slane %v6746, %v6759
        %v6761 = vcombine.low %v6728, %v6744
        %v6762 = vcombine.high %v6728, %v6744
        %v6764 = vunpack.c.l.s4 1934713408
        %v6765 = vunpack.c.0.s8 %v6764
        %v6766 = vlaneseq
        %v6767 = vshrl.u32 %v6766, 7
        %v6768 = vsub.s32 %v6765, %v6767
        %v6769 = vrot.slane %v6761, %v6768
        %v6771 = vunpack.c.l.s4 1934713408
        %v6772 = vunpack.c.0.s8 %v6771
        %v6773 = vlaneseq
        %v6774 = vshrl.u32 %v6773, 7
        %v6775 = vsub.s32 %v6772, %v6774
        %v6776 = vrot.slane %v6762, %v6775
        %v6777 = vcombine.high %v6753, 0.0
        %v6778 = vcombine.high %v6760, 0.0
        %v6779 = vcombine.high %v6769, 0.0
        %v6780 = vcombine.high %v6776, 0.0
        %v6781 = vcombine.low %v6467, %v6629
        %v6782 = vcombine.high %v6467, %v6629
        %v6784 = vunpack.c.l.s4 1983009808
        %v6785 = vunpack.c.0.s8 %v6784
        %v6786 = vlaneseq
        %v6787 = vshrl.u32 %v6786, 7
        %v6788 = vsub.s32 %v6785, %v6787
        %v6789 = vrot.slane %v6781, %v6788
        %v6791 = vunpack.c.l.s4 1983009808
        %v6792 = vunpack.c.0.s8 %v6791
        %v6793 = vlaneseq
        %v6794 = vshrl.u32 %v6793, 7
        %v6795 = vsub.s32 %v6792, %v6794
        %v6796 = vrot.slane %v6782, %v6795
        %v6797 = vcombine.low %v6548, %v6710
        %v6798 = vcombine.high %v6548, %v6710
        %v6800 = vunpack.c.l.s4 1983009808
        %v6801 = vunpack.c.0.s8 %v6800
        %v6802 = vlaneseq
        %v6803 = vshrl.u32 %v6802, 7
        %v6804 = vsub.s32 %v6801, %v6803
        %v6805 = vrot.slane %v6797, %v6804
        %v6807 = vunpack.c.l.s4 1983009808
        %v6808 = vunpack.c.0.s8 %v6807
        %v6809 = vlaneseq
        %v6810 = vshrl.u32 %v6809, 7
        %v6811 = vsub.s32 %v6808, %v6810
        %v6812 = vrot.slane %v6798, %v6811
        %v6813 = vcombine.low %v6789, %v6805
        %v6814 = vcombine.high %v6789, %v6805
        %v6816 = vunpack.c.l.s4 1934713408
        %v6817 = vunpack.c.0.s8 %v6816
        %v6818 = vlaneseq
        %v6819 = vshrl.u32 %v6818, 7
        %v6820 = vsub.s32 %v6817, %v6819
        %v6821 = vrot.slane %v6813, %v6820
        %v6823 = vunpack.c.l.s4 1934713408
        %v6824 = vunpack.c.0.s8 %v6823
        %v6825 = vlaneseq
        %v6826 = vshrl.u32 %v6825, 7
        %v6827 = vsub.s32 %v6824, %v6826
        %v6828 = vrot.slane %v6814, %v6827
        %v6829 = vcombine.low %v6796, %v6812
        %v6830 = vcombine.high %v6796, %v6812
        %v6832 = vunpack.c.l.s4 1934713408
        %v6833 = vunpack.c.0.s8 %v6832
        %v6834 = vlaneseq
        %v6835 = vshrl.u32 %v6834, 7
        %v6836 = vsub.s32 %v6833, %v6835
        %v6837 = vrot.slane %v6829, %v6836
        %v6839 = vunpack.c.l.s4 1934713408
        %v6840 = vunpack.c.0.s8 %v6839
        %v6841 = vlaneseq
        %v6842 = vshrl.u32 %v6841, 7
        %v6843 = vsub.s32 %v6840, %v6842
        %v6844 = vrot.slane %v6830, %v6843
        %v6845 = vcombine.high %v6821, 0.0
        %v6846 = vcombine.high %v6828, 0.0
        %v6847 = vcombine.high %v6837, 0.0
        %v6848 = vcombine.high %v6844, 0.0
        %v6849 = vcombine.low %v6753, %v6760
        %v6851 = vunpack.c.l.s4 1983009808
        %v6852 = vunpack.c.0.s8 %v6851
        %v6853 = vlaneseq
        %v6854 = vshrl.u32 %v6853, 7
        %v6855 = vsub.s32 %v6852, %v6854
        %v6856 = vrot.slane %v6849, %v6855
        %v6857 = vcombine.low %v6777, %v6778
        %v6859 = vunpack.c.l.s4 1983009808
        %v6860 = vunpack.c.0.s8 %v6859
        %v6861 = vlaneseq
        %v6862 = vshrl.u32 %v6861, 7
        %v6863 = vsub.s32 %v6860, %v6862
        %v6864 = vrot.slane %v6857, %v6863
        %v6865 = vcombine.low %v6769, %v6776
        %v6867 = vunpack.c.l.s4 1983009808
        %v6868 = vunpack.c.0.s8 %v6867
        %v6869 = vlaneseq
        %v6870 = vshrl.u32 %v6869, 7
        %v6871 = vsub.s32 %v6868, %v6870
        %v6872 = vrot.slane %v6865, %v6871
        %v6873 = vcombine.low %v6779, %v6780
        %v6875 = vunpack.c.l.s4 1983009808
        %v6876 = vunpack.c.0.s8 %v6875
        %v6877 = vlaneseq
        %v6878 = vshrl.u32 %v6877, 7
        %v6879 = vsub.s32 %v6876, %v6878
        %v6880 = vrot.slane %v6873, %v6879
        %v6881 = vcombine.low %v6856, %v6864
        %v6882 = vcombine.high %v6856, %v6864
        %v6884 = vunpack.c.l.s4 1934713408
        %v6885 = vunpack.c.0.s8 %v6884
        %v6886 = vlaneseq
        %v6887 = vshrl.u32 %v6886, 7
        %v6888 = vsub.s32 %v6885, %v6887
        %v6889 = vrot.slane %v6881, %v6888
        %v6891 = vunpack.c.l.s4 1934713408
        %v6892 = vunpack.c.0.s8 %v6891
        %v6893 = vlaneseq
        %v6894 = vshrl.u32 %v6893, 7
        %v6895 = vsub.s32 %v6892, %v6894
        %v6896 = vrot.slane %v6882, %v6895
        %v6897 = vcombine.low %v6872, %v6880
        %v6898 = vcombine.high %v6872, %v6880
        %v6900 = vunpack.c.l.s4 1934713408
        %v6901 = vunpack.c.0.s8 %v6900
        %v6902 = vlaneseq
        %v6903 = vshrl.u32 %v6902, 7
        %v6904 = vsub.s32 %v6901, %v6903
        %v6905 = vrot.slane %v6897, %v6904
        %v6907 = vunpack.c.l.s4 1934713408
        %v6908 = vunpack.c.0.s8 %v6907
        %v6909 = vlaneseq
        %v6910 = vshrl.u32 %v6909, 7
        %v6911 = vsub.s32 %v6908, %v6910
        %v6912 = vrot.slane %v6898, %v6911
        %v6913 = vcombine.low %v6889, %v6905
        %v6914 = vcombine.high %v6889, %v6905
        %v6915 = vcombine.low %v6896, %v6912
        %v6916 = vcombine.high %v6896, %v6912
        %v6917 = vcombine.low %v6821, %v6828
        %v6919 = vunpack.c.l.s4 1983009808
        %v6920 = vunpack.c.0.s8 %v6919
        %v6921 = vlaneseq
        %v6922 = vshrl.u32 %v6921, 7
        %v6923 = vsub.s32 %v6920, %v6922
        %v6924 = vrot.slane %v6917, %v6923
        %v6925 = vcombine.low %v6845, %v6846
        %v6927 = vunpack.c.l.s4 1983009808
        %v6928 = vunpack.c.0.s8 %v6927
        %v6929 = vlaneseq
        %v6930 = vshrl.u32 %v6929, 7
        %v6931 = vsub.s32 %v6928, %v6930
        %v6932 = vrot.slane %v6925, %v6931
        %v6933 = vcombine.low %v6837, %v6844
        %v6935 = vunpack.c.l.s4 1983009808
        %v6936 = vunpack.c.0.s8 %v6935
        %v6937 = vlaneseq
        %v6938 = vshrl.u32 %v6937, 7
        %v6939 = vsub.s32 %v6936, %v6938
        %v6940 = vrot.slane %v6933, %v6939
        %v6941 = vcombine.low %v6847, %v6848
        %v6943 = vunpack.c.l.s4 1983009808
        %v6944 = vunpack.c.0.s8 %v6943
        %v6945 = vlaneseq
        %v6946 = vshrl.u32 %v6945, 7
        %v6947 = vsub.s32 %v6944, %v6946
        %v6948 = vrot.slane %v6941, %v6947
        %v6949 = vcombine.low %v6924, %v6932
        %v6950 = vcombine.high %v6924, %v6932
        %v6952 = vunpack.c.l.s4 1934713408
        %v6953 = vunpack.c.0.s8 %v6952
        %v6954 = vlaneseq
        %v6955 = vshrl.u32 %v6954, 7
        %v6956 = vsub.s32 %v6953, %v6955
        %v6957 = vrot.slane %v6949, %v6956
        %v6959 = vunpack.c.l.s4 1934713408
        %v6960 = vunpack.c.0.s8 %v6959
        %v6961 = vlaneseq
        %v6962 = vshrl.u32 %v6961, 7
        %v6963 = vsub.s32 %v6960, %v6962
        %v6964 = vrot.slane %v6950, %v6963
        %v6965 = vcombine.low %v6940, %v6948
        %v6966 = vcombine.high %v6940, %v6948
        %v6968 = vunpack.c.l.s4 1934713408
        %v6969 = vunpack.c.0.s8 %v6968
        %v6970 = vlaneseq
        %v6971 = vshrl.u32 %v6970, 7
        %v6972 = vsub.s32 %v6969, %v6971
        %v6973 = vrot.slane %v6965, %v6972
        %v6975 = vunpack.c.l.s4 1934713408
        %v6976 = vunpack.c.0.s8 %v6975
        %v6977 = vlaneseq
        %v6978 = vshrl.u32 %v6977, 7
        %v6979 = vsub.s32 %v6976, %v6978
        %v6980 = vrot.slane %v6966, %v6979
        %v6981 = vcombine.low %v6957, %v6973
        %v6982 = vcombine.high %v6957, %v6973
        %v6983 = vcombine.low %v6964, %v6980
        %v6984 = vcombine.high %v6964, %v6980
        %6987 = vrot.lane.b32.xlu0 %v6914, 8
        %v6988 = vpop.permute.xlu0 %6987
        %6989 = vrot.lane.b32.xlu0 %v6982, 8
        %v6990 = vpop.permute.xlu0 %6989
        %6995 = vrot.lane.b32.xlu0 %v6915, 16
        %v6996 = vpop.permute.xlu0 %6995
        %6997 = vrot.lane.b32.xlu0 %v6983, 16
        %v6998 = vpop.permute.xlu0 %6997
        %7003 = vrot.lane.b32.xlu0 %v6916, 24
        %v7004 = vpop.permute.xlu0 %7003
        %7005 = vrot.lane.b32.xlu0 %v6984, 24
        %v7006 = vpop.permute.xlu0 %7005
        %v7009 = vsel %vm1671, %v6913, %v6988
        %v7010 = vsel %vm1671, %v6981, %v6990
        %v7011 = vsel %vm2040, %v7009, %v6996
        %v7012 = vsel %vm2040, %v7010, %v6998
        %v7013 = vsel %vm615, %v7011, %v7004
        %v7014 = vsel %vm615, %v7012, %v7006
        %v7015 = vadd.f32 %v7013, 0.0
        %v7016 = vadd.f32 %v7014, 0.0
        %7017 = vrot.lane.b32.xlu0 %v5021, 32
        %v7018 = vpop.permute.xlu0 %7017
        %7019 = vrot.lane.b32.xlu0 %v5026, 32
        %v7020 = vpop.permute.xlu0 %7019
        %v7023 = vadd.f32 %v7015, %v7018
        %v7024 = vadd.f32 %v7016, %v7020
        %v7026 = vlaneseq
        %v7027 = vshrl.u32 %v7026, 7
        %v7028 = vsub.s32 0, %v7027
        %v7029 = vrot.slane %v586, %v7028
        %7031 = vmatprep.subr.mxu0 0.0
        %7032 = vmatpush1.msra.mxu0 %v579
        %7033 = vmatprep.subr.mxu0 0.0
        %7034 = vmatpush1.msra.mxu0 %v580
        %7035 = vmatprep.subr.mxu0 0.0
        %7036 = vmatpush1.msra.mxu0 %v581
        %7037 = vmatprep.subr.mxu0 0.0
        %7038 = vmatpush1.msra.mxu0 %v582
        %7039 = vmatprep.subr.mxu0 0.0
        %7040 = vmatpush1.msra.mxu0 0.0
        %7041 = vmatprep.subr.mxu0 0.0
        %7042 = vmatpush1.msra.mxu0 0.0
        %7043 = vmatprep.subr.mxu0 0.0
        %7044 = vmatpush1.msra.mxu0 0.0
        %7045 = vmatprep.subr.mxu0 0.0
        %7046 = vmatpush1.msra.mxu0 0.0
        %7047 = vmatprep.subr.mxu0 0.0
        %7048 = vmatpush1.msra.mxu0 0.0
        %7049 = vmatprep.subr.mxu0 0.0
        %7050 = vmatpush1.msra.mxu0 0.0
        %7051 = vmatprep.subr.mxu0 0.0
        %7052 = vmatpush1.msra.mxu0 0.0
        %7053 = vmatprep.subr.mxu0 0.0
        %7054 = vmatpush1.msra.mxu0 0.0
        %7055 = vmatprep.subr.mxu0 0.0
        %7056 = vmatpush1.msra.mxu0 0.0
        %7057 = vmatprep.subr.mxu0 0.0
        %7058 = vmatpush1.msra.mxu0 0.0
        %7059 = vmatprep.subr.mxu0 0.0
        %7060 = vmatpush1.msra.mxu0 0.0
        %7061 = vmatprep.subr.mxu0 0.0
        %7062 = vmatpush1.msra.mxu0 0.0
        %7063 = vmatprep.subr.mxu0 0.0
        %7064 = vmatpush1.msra.mxu0 0.0
        %7065 = vmatprep.subr.mxu0 0.0
        %7066 = vmatpush1.msra.mxu0 0.0
        %7067 = vmatprep.subr.mxu0 0.0
        %7068 = vmatpush1.msra.mxu0 0.0
        %7069 = vmatprep.subr.mxu0 0.0
        %7070 = vmatpush1.msra.mxu0 0.0
        %7071 = vmatprep.subr.mxu0 0.0
        %7072 = vmatpush1.msra.mxu0 0.0
        %7073 = vmatprep.subr.mxu0 0.0
        %7074 = vmatpush1.msra.mxu0 0.0
        %7075 = vmatprep.subr.mxu0 0.0
        %7076 = vmatpush1.msra.mxu0 0.0
        %7077 = vmatprep.subr.mxu0 0.0
        %7078 = vmatpush1.msra.mxu0 0.0
        %7079 = vmatprep.subr.mxu0 0.0
        %7080 = vmatpush1.msra.mxu0 0.0
        %7081 = vmatprep.subr.mxu0 0.0
        %7082 = vmatpush1.msra.mxu0 0.0
        %7083 = vmatprep.subr.mxu0 0.0
        %7084 = vmatpush1.msra.mxu0 0.0
        %7085 = vmatprep.subr.mxu0 0.0
        %7086 = vmatpush1.msra.mxu0 0.0
        %7087 = vmatprep.subr.mxu0 0.0
        %7088 = vmatpush1.msra.mxu0 0.0
        %7089 = vmatprep.subr.mxu0 0.0
        %7090 = vmatpush1.msra.mxu0 0.0
        %7091 = vmatprep.subr.mxu0 0.0
        %7092 = vmatpush1.msra.mxu0 0.0
        %7093 = vmatprep.subr.mxu0 0.0
        %7094 = vmatpush1.msra.mxu0 0.0
        %7095 = vmatprep.mubr.f32.mxu0 0.0
        %7096 = vmatmul.mubr.f32.gmra.mrb[0].mxu0 %v4949
        %v7097 = vpop.f32.mrb[0].mxu0
        %v7098 = vadd.f32 %v7029, %v7097
        %v7099 = vpop.f32.mrb[0].mxu0
        %7100 = vmatprep.mubr.f32.mxu0 0.0
        %7101 = vmatmul.mubr.f32.gmra.mrb[0].mxu0 %v4952
        %v7102 = vpop.f32.mrb[0].mxu0
        %v7103 = vadd.f32 %v7029, %v7102
        %v7104 = vpop.f32.mrb[0].mxu0
        %7105 = vdwg.mxu0
        %7108 = vrot.lane.b32.xlu0 %v7098, 120
        %v7109 = vpop.permute.xlu0 %7108
        %7110 = vrot.lane.b32.xlu0 %v7103, 120
        %v7111 = vpop.permute.xlu0 %7110
        %7114 = vrot.lane.b32.xlu0 %v7098, 112
        %v7115 = vpop.permute.xlu0 %7114
        %7116 = vrot.lane.b32.xlu0 %v7103, 112
        %v7117 = vpop.permute.xlu0 %7116
        %7120 = vrot.lane.b32.xlu0 %v7098, 104
        %v7121 = vpop.permute.xlu0 %7120
        %7122 = vrot.lane.b32.xlu0 %v7103, 104
        %v7123 = vpop.permute.xlu0 %7122
        %v7126 = vcombine.low %v7098, %v7115
        %v7127 = vcombine.high %v7098, %v7115
        %v7129 = vunpack.c.l.s4 1983009808
        %v7130 = vunpack.c.0.s8 %v7129
        %v7131 = vlaneseq
        %v7132 = vshrl.u32 %v7131, 7
        %v7133 = vsub.s32 %v7130, %v7132
        %v7134 = vrot.slane %v7126, %v7133
        %v7136 = vunpack.c.l.s4 1983009808
        %v7137 = vunpack.c.0.s8 %v7136
        %v7138 = vlaneseq
        %v7139 = vshrl.u32 %v7138, 7
        %v7140 = vsub.s32 %v7137, %v7139
        %v7141 = vrot.slane %v7127, %v7140
        %v7142 = vcombine.low %v7109, %v7121
        %v7143 = vcombine.high %v7109, %v7121
        %v7145 = vunpack.c.l.s4 1983009808
        %v7146 = vunpack.c.0.s8 %v7145
        %v7147 = vlaneseq
        %v7148 = vshrl.u32 %v7147, 7
        %v7149 = vsub.s32 %v7146, %v7148
        %v7150 = vrot.slane %v7142, %v7149
        %v7152 = vunpack.c.l.s4 1983009808
        %v7153 = vunpack.c.0.s8 %v7152
        %v7154 = vlaneseq
        %v7155 = vshrl.u32 %v7154, 7
        %v7156 = vsub.s32 %v7153, %v7155
        %v7157 = vrot.slane %v7143, %v7156
        %v7158 = vcombine.low %v7134, %v7150
        %v7159 = vcombine.high %v7134, %v7150
        %v7161 = vunpack.c.l.s4 1934713408
        %v7162 = vunpack.c.0.s8 %v7161
        %v7163 = vlaneseq
        %v7164 = vshrl.u32 %v7163, 7
        %v7165 = vsub.s32 %v7162, %v7164
        %v7166 = vrot.slane %v7158, %v7165
        %v7168 = vunpack.c.l.s4 1934713408
        %v7169 = vunpack.c.0.s8 %v7168
        %v7170 = vlaneseq
        %v7171 = vshrl.u32 %v7170, 7
        %v7172 = vsub.s32 %v7169, %v7171
        %v7173 = vrot.slane %v7159, %v7172
        %v7174 = vcombine.low %v7141, %v7157
        %v7175 = vcombine.high %v7141, %v7157
        %v7177 = vunpack.c.l.s4 1934713408
        %v7178 = vunpack.c.0.s8 %v7177
        %v7179 = vlaneseq
        %v7180 = vshrl.u32 %v7179, 7
        %v7181 = vsub.s32 %v7178, %v7180
        %v7182 = vrot.slane %v7174, %v7181
        %v7184 = vunpack.c.l.s4 1934713408
        %v7185 = vunpack.c.0.s8 %v7184
        %v7186 = vlaneseq
        %v7187 = vshrl.u32 %v7186, 7
        %v7188 = vsub.s32 %v7185, %v7187
        %v7189 = vrot.slane %v7175, %v7188
        %v7190 = vcombine.high %v7166, 0.0
        %v7191 = vcombine.high %v7173, 0.0
        %v7192 = vcombine.high %v7182, 0.0
        %v7193 = vcombine.high %v7189, 0.0
        %v7194 = vcombine.low %v7103, %v7117
        %v7195 = vcombine.high %v7103, %v7117
        %v7197 = vunpack.c.l.s4 1983009808
        %v7198 = vunpack.c.0.s8 %v7197
        %v7199 = vlaneseq
        %v7200 = vshrl.u32 %v7199, 7
        %v7201 = vsub.s32 %v7198, %v7200
        %v7202 = vrot.slane %v7194, %v7201
        %v7204 = vunpack.c.l.s4 1983009808
        %v7205 = vunpack.c.0.s8 %v7204
        %v7206 = vlaneseq
        %v7207 = vshrl.u32 %v7206, 7
        %v7208 = vsub.s32 %v7205, %v7207
        %v7209 = vrot.slane %v7195, %v7208
        %v7210 = vcombine.low %v7111, %v7123
        %v7211 = vcombine.high %v7111, %v7123
        %v7213 = vunpack.c.l.s4 1983009808
        %v7214 = vunpack.c.0.s8 %v7213
        %v7215 = vlaneseq
        %v7216 = vshrl.u32 %v7215, 7
        %v7217 = vsub.s32 %v7214, %v7216
        %v7218 = vrot.slane %v7210, %v7217
        %v7220 = vunpack.c.l.s4 1983009808
        %v7221 = vunpack.c.0.s8 %v7220
        %v7222 = vlaneseq
        %v7223 = vshrl.u32 %v7222, 7
        %v7224 = vsub.s32 %v7221, %v7223
        %v7225 = vrot.slane %v7211, %v7224
        %v7226 = vcombine.low %v7202, %v7218
        %v7227 = vcombine.high %v7202, %v7218
        %v7229 = vunpack.c.l.s4 1934713408
        %v7230 = vunpack.c.0.s8 %v7229
        %v7231 = vlaneseq
        %v7232 = vshrl.u32 %v7231, 7
        %v7233 = vsub.s32 %v7230, %v7232
        %v7234 = vrot.slane %v7226, %v7233
        %v7236 = vunpack.c.l.s4 1934713408
        %v7237 = vunpack.c.0.s8 %v7236
        %v7238 = vlaneseq
        %v7239 = vshrl.u32 %v7238, 7
        %v7240 = vsub.s32 %v7237, %v7239
        %v7241 = vrot.slane %v7227, %v7240
        %v7242 = vcombine.low %v7209, %v7225
        %v7243 = vcombine.high %v7209, %v7225
        %v7245 = vunpack.c.l.s4 1934713408
        %v7246 = vunpack.c.0.s8 %v7245
        %v7247 = vlaneseq
        %v7248 = vshrl.u32 %v7247, 7
        %v7249 = vsub.s32 %v7246, %v7248
        %v7250 = vrot.slane %v7242, %v7249
        %v7252 = vunpack.c.l.s4 1934713408
        %v7253 = vunpack.c.0.s8 %v7252
        %v7254 = vlaneseq
        %v7255 = vshrl.u32 %v7254, 7
        %v7256 = vsub.s32 %v7253, %v7255
        %v7257 = vrot.slane %v7243, %v7256
        %v7258 = vcombine.high %v7234, 0.0
        %v7259 = vcombine.high %v7241, 0.0
        %v7260 = vcombine.high %v7250, 0.0
        %v7261 = vcombine.high %v7257, 0.0
        %v7262 = vcombine.low %v7166, %v7173
        %v7264 = vunpack.c.l.s4 1983009808
        %v7265 = vunpack.c.0.s8 %v7264
        %v7266 = vlaneseq
        %v7267 = vshrl.u32 %v7266, 7
        %v7268 = vsub.s32 %v7265, %v7267
        %v7269 = vrot.slane %v7262, %v7268
        %v7270 = vcombine.low %v7190, %v7191
        %v7272 = vunpack.c.l.s4 1983009808
        %v7273 = vunpack.c.0.s8 %v7272
        %v7274 = vlaneseq
        %v7275 = vshrl.u32 %v7274, 7
        %v7276 = vsub.s32 %v7273, %v7275
        %v7277 = vrot.slane %v7270, %v7276
        %v7278 = vcombine.low %v7182, %v7189
        %v7280 = vunpack.c.l.s4 1983009808
        %v7281 = vunpack.c.0.s8 %v7280
        %v7282 = vlaneseq
        %v7283 = vshrl.u32 %v7282, 7
        %v7284 = vsub.s32 %v7281, %v7283
        %v7285 = vrot.slane %v7278, %v7284
        %v7286 = vcombine.low %v7192, %v7193
        %v7288 = vunpack.c.l.s4 1983009808
        %v7289 = vunpack.c.0.s8 %v7288
        %v7290 = vlaneseq
        %v7291 = vshrl.u32 %v7290, 7
        %v7292 = vsub.s32 %v7289, %v7291
        %v7293 = vrot.slane %v7286, %v7292
        %v7294 = vcombine.low %v7269, %v7277
        %v7295 = vcombine.high %v7269, %v7277
        %v7297 = vunpack.c.l.s4 1934713408
        %v7298 = vunpack.c.0.s8 %v7297
        %v7299 = vlaneseq
        %v7300 = vshrl.u32 %v7299, 7
        %v7301 = vsub.s32 %v7298, %v7300
        %v7302 = vrot.slane %v7294, %v7301
        %v7304 = vunpack.c.l.s4 1934713408
        %v7305 = vunpack.c.0.s8 %v7304
        %v7306 = vlaneseq
        %v7307 = vshrl.u32 %v7306, 7
        %v7308 = vsub.s32 %v7305, %v7307
        %v7309 = vrot.slane %v7295, %v7308
        %v7310 = vcombine.low %v7285, %v7293
        %v7311 = vcombine.high %v7285, %v7293
        %v7313 = vunpack.c.l.s4 1934713408
        %v7314 = vunpack.c.0.s8 %v7313
        %v7315 = vlaneseq
        %v7316 = vshrl.u32 %v7315, 7
        %v7317 = vsub.s32 %v7314, %v7316
        %v7318 = vrot.slane %v7310, %v7317
        %v7320 = vunpack.c.l.s4 1934713408
        %v7321 = vunpack.c.0.s8 %v7320
        %v7322 = vlaneseq
        %v7323 = vshrl.u32 %v7322, 7
        %v7324 = vsub.s32 %v7321, %v7323
        %v7325 = vrot.slane %v7311, %v7324
        %v7326 = vcombine.low %v7302, %v7318
        %v7327 = vcombine.high %v7302, %v7318
        %v7328 = vcombine.low %v7309, %v7325
        %v7329 = vcombine.high %v7309, %v7325
        %v7330 = vcombine.low %v7234, %v7241
        %v7332 = vunpack.c.l.s4 1983009808
        %v7333 = vunpack.c.0.s8 %v7332
        %v7334 = vlaneseq
        %v7335 = vshrl.u32 %v7334, 7
        %v7336 = vsub.s32 %v7333, %v7335
        %v7337 = vrot.slane %v7330, %v7336
        %v7338 = vcombine.low %v7258, %v7259
        %v7340 = vunpack.c.l.s4 1983009808
        %v7341 = vunpack.c.0.s8 %v7340
        %v7342 = vlaneseq
        %v7343 = vshrl.u32 %v7342, 7
        %v7344 = vsub.s32 %v7341, %v7343
        %v7345 = vrot.slane %v7338, %v7344
        %v7346 = vcombine.low %v7250, %v7257
        %v7348 = vunpack.c.l.s4 1983009808
        %v7349 = vunpack.c.0.s8 %v7348
        %v7350 = vlaneseq
        %v7351 = vshrl.u32 %v7350, 7
        %v7352 = vsub.s32 %v7349, %v7351
        %v7353 = vrot.slane %v7346, %v7352
        %v7354 = vcombine.low %v7260, %v7261
        %v7356 = vunpack.c.l.s4 1983009808
        %v7357 = vunpack.c.0.s8 %v7356
        %v7358 = vlaneseq
        %v7359 = vshrl.u32 %v7358, 7
        %v7360 = vsub.s32 %v7357, %v7359
        %v7361 = vrot.slane %v7354, %v7360
        %v7362 = vcombine.low %v7337, %v7345
        %v7363 = vcombine.high %v7337, %v7345
        %v7365 = vunpack.c.l.s4 1934713408
        %v7366 = vunpack.c.0.s8 %v7365
        %v7367 = vlaneseq
        %v7368 = vshrl.u32 %v7367, 7
        %v7369 = vsub.s32 %v7366, %v7368
        %v7370 = vrot.slane %v7362, %v7369
        %v7372 = vunpack.c.l.s4 1934713408
        %v7373 = vunpack.c.0.s8 %v7372
        %v7374 = vlaneseq
        %v7375 = vshrl.u32 %v7374, 7
        %v7376 = vsub.s32 %v7373, %v7375
        %v7377 = vrot.slane %v7363, %v7376
        %v7378 = vcombine.low %v7353, %v7361
        %v7379 = vcombine.high %v7353, %v7361
        %v7381 = vunpack.c.l.s4 1934713408
        %v7382 = vunpack.c.0.s8 %v7381
        %v7383 = vlaneseq
        %v7384 = vshrl.u32 %v7383, 7
        %v7385 = vsub.s32 %v7382, %v7384
        %v7386 = vrot.slane %v7378, %v7385
        %v7388 = vunpack.c.l.s4 1934713408
        %v7389 = vunpack.c.0.s8 %v7388
        %v7390 = vlaneseq
        %v7391 = vshrl.u32 %v7390, 7
        %v7392 = vsub.s32 %v7389, %v7391
        %v7393 = vrot.slane %v7379, %v7392
        %v7394 = vcombine.low %v7370, %v7386
        %v7395 = vcombine.high %v7370, %v7386
        %v7396 = vcombine.low %v7377, %v7393
        %v7397 = vcombine.high %v7377, %v7393
        %7398 = vrot.lane.b32.xlu0 %v7098, 96
        %v7399 = vpop.permute.xlu0 %7398
        %7400 = vrot.lane.b32.xlu0 %v7103, 96
        %v7401 = vpop.permute.xlu0 %7400
        %7402 = vrot.lane.b32.xlu0 %v7109, 96
        %v7403 = vpop.permute.xlu0 %7402
        %7404 = vrot.lane.b32.xlu0 %v7111, 96
        %v7405 = vpop.permute.xlu0 %7404
        %7406 = vrot.lane.b32.xlu0 %v7115, 96
        %v7407 = vpop.permute.xlu0 %7406
        %7408 = vrot.lane.b32.xlu0 %v7117, 96
        %v7409 = vpop.permute.xlu0 %7408
        %7410 = vrot.lane.b32.xlu0 %v7121, 96
        %v7411 = vpop.permute.xlu0 %7410
        %7412 = vrot.lane.b32.xlu0 %v7123, 96
        %v7413 = vpop.permute.xlu0 %7412
        %v7422 = vcombine.low %v7399, %v7407
        %v7423 = vcombine.high %v7399, %v7407
        %v7425 = vunpack.c.l.s4 1983009808
        %v7426 = vunpack.c.0.s8 %v7425
        %v7427 = vlaneseq
        %v7428 = vshrl.u32 %v7427, 7
        %v7429 = vsub.s32 %v7426, %v7428
        %v7430 = vrot.slane %v7422, %v7429
        %v7432 = vunpack.c.l.s4 1983009808
        %v7433 = vunpack.c.0.s8 %v7432
        %v7434 = vlaneseq
        %v7435 = vshrl.u32 %v7434, 7
        %v7436 = vsub.s32 %v7433, %v7435
        %v7437 = vrot.slane %v7423, %v7436
        %v7438 = vcombine.low %v7403, %v7411
        %v7439 = vcombine.high %v7403, %v7411
        %v7441 = vunpack.c.l.s4 1983009808
        %v7442 = vunpack.c.0.s8 %v7441
        %v7443 = vlaneseq
        %v7444 = vshrl.u32 %v7443, 7
        %v7445 = vsub.s32 %v7442, %v7444
        %v7446 = vrot.slane %v7438, %v7445
        %v7448 = vunpack.c.l.s4 1983009808
        %v7449 = vunpack.c.0.s8 %v7448
        %v7450 = vlaneseq
        %v7451 = vshrl.u32 %v7450, 7
        %v7452 = vsub.s32 %v7449, %v7451
        %v7453 = vrot.slane %v7439, %v7452
        %v7454 = vcombine.low %v7430, %v7446
        %v7455 = vcombine.high %v7430, %v7446
        %v7457 = vunpack.c.l.s4 1934713408
        %v7458 = vunpack.c.0.s8 %v7457
        %v7459 = vlaneseq
        %v7460 = vshrl.u32 %v7459, 7
        %v7461 = vsub.s32 %v7458, %v7460
        %v7462 = vrot.slane %v7454, %v7461
        %v7464 = vunpack.c.l.s4 1934713408
        %v7465 = vunpack.c.0.s8 %v7464
        %v7466 = vlaneseq
        %v7467 = vshrl.u32 %v7466, 7
        %v7468 = vsub.s32 %v7465, %v7467
        %v7469 = vrot.slane %v7455, %v7468
        %v7470 = vcombine.low %v7437, %v7453
        %v7471 = vcombine.high %v7437, %v7453
        %v7473 = vunpack.c.l.s4 1934713408
        %v7474 = vunpack.c.0.s8 %v7473
        %v7475 = vlaneseq
        %v7476 = vshrl.u32 %v7475, 7
        %v7477 = vsub.s32 %v7474, %v7476
        %v7478 = vrot.slane %v7470, %v7477
        %v7480 = vunpack.c.l.s4 1934713408
        %v7481 = vunpack.c.0.s8 %v7480
        %v7482 = vlaneseq
        %v7483 = vshrl.u32 %v7482, 7
        %v7484 = vsub.s32 %v7481, %v7483
        %v7485 = vrot.slane %v7471, %v7484
        %v7486 = vcombine.high %v7462, 0.0
        %v7487 = vcombine.high %v7469, 0.0
        %v7488 = vcombine.high %v7478, 0.0
        %v7489 = vcombine.high %v7485, 0.0
        %v7490 = vcombine.low %v7401, %v7409
        %v7491 = vcombine.high %v7401, %v7409
        %v7493 = vunpack.c.l.s4 1983009808
        %v7494 = vunpack.c.0.s8 %v7493
        %v7495 = vlaneseq
        %v7496 = vshrl.u32 %v7495, 7
        %v7497 = vsub.s32 %v7494, %v7496
        %v7498 = vrot.slane %v7490, %v7497
        %v7500 = vunpack.c.l.s4 1983009808
        %v7501 = vunpack.c.0.s8 %v7500
        %v7502 = vlaneseq
        %v7503 = vshrl.u32 %v7502, 7
        %v7504 = vsub.s32 %v7501, %v7503
        %v7505 = vrot.slane %v7491, %v7504
        %v7506 = vcombine.low %v7405, %v7413
        %v7507 = vcombine.high %v7405, %v7413
        %v7509 = vunpack.c.l.s4 1983009808
        %v7510 = vunpack.c.0.s8 %v7509
        %v7511 = vlaneseq
        %v7512 = vshrl.u32 %v7511, 7
        %v7513 = vsub.s32 %v7510, %v7512
        %v7514 = vrot.slane %v7506, %v7513
        %v7516 = vunpack.c.l.s4 1983009808
        %v7517 = vunpack.c.0.s8 %v7516
        %v7518 = vlaneseq
        %v7519 = vshrl.u32 %v7518, 7
        %v7520 = vsub.s32 %v7517, %v7519
        %v7521 = vrot.slane %v7507, %v7520
        %v7522 = vcombine.low %v7498, %v7514
        %v7523 = vcombine.high %v7498, %v7514
        %v7525 = vunpack.c.l.s4 1934713408
        %v7526 = vunpack.c.0.s8 %v7525
        %v7527 = vlaneseq
        %v7528 = vshrl.u32 %v7527, 7
        %v7529 = vsub.s32 %v7526, %v7528
        %v7530 = vrot.slane %v7522, %v7529
        %v7532 = vunpack.c.l.s4 1934713408
        %v7533 = vunpack.c.0.s8 %v7532
        %v7534 = vlaneseq
        %v7535 = vshrl.u32 %v7534, 7
        %v7536 = vsub.s32 %v7533, %v7535
        %v7537 = vrot.slane %v7523, %v7536
        %v7538 = vcombine.low %v7505, %v7521
        %v7539 = vcombine.high %v7505, %v7521
        %v7541 = vunpack.c.l.s4 1934713408
        %v7542 = vunpack.c.0.s8 %v7541
        %v7543 = vlaneseq
        %v7544 = vshrl.u32 %v7543, 7
        %v7545 = vsub.s32 %v7542, %v7544
        %v7546 = vrot.slane %v7538, %v7545
        %v7548 = vunpack.c.l.s4 1934713408
        %v7549 = vunpack.c.0.s8 %v7548
        %v7550 = vlaneseq
        %v7551 = vshrl.u32 %v7550, 7
        %v7552 = vsub.s32 %v7549, %v7551
        %v7553 = vrot.slane %v7539, %v7552
        %v7554 = vcombine.high %v7530, 0.0
        %v7555 = vcombine.high %v7537, 0.0
        %v7556 = vcombine.high %v7546, 0.0
        %v7557 = vcombine.high %v7553, 0.0
        %v7558 = vcombine.low %v7462, %v7469
        %v7560 = vunpack.c.l.s4 1983009808
        %v7561 = vunpack.c.0.s8 %v7560
        %v7562 = vlaneseq
        %v7563 = vshrl.u32 %v7562, 7
        %v7564 = vsub.s32 %v7561, %v7563
        %v7565 = vrot.slane %v7558, %v7564
        %v7566 = vcombine.low %v7486, %v7487
        %v7568 = vunpack.c.l.s4 1983009808
        %v7569 = vunpack.c.0.s8 %v7568
        %v7570 = vlaneseq
        %v7571 = vshrl.u32 %v7570, 7
        %v7572 = vsub.s32 %v7569, %v7571
        %v7573 = vrot.slane %v7566, %v7572
        %v7574 = vcombine.low %v7478, %v7485
        %v7576 = vunpack.c.l.s4 1983009808
        %v7577 = vunpack.c.0.s8 %v7576
        %v7578 = vlaneseq
        %v7579 = vshrl.u32 %v7578, 7
        %v7580 = vsub.s32 %v7577, %v7579
        %v7581 = vrot.slane %v7574, %v7580
        %v7582 = vcombine.low %v7488, %v7489
        %v7584 = vunpack.c.l.s4 1983009808
        %v7585 = vunpack.c.0.s8 %v7584
        %v7586 = vlaneseq
        %v7587 = vshrl.u32 %v7586, 7
        %v7588 = vsub.s32 %v7585, %v7587
        %v7589 = vrot.slane %v7582, %v7588
        %v7590 = vcombine.low %v7565, %v7573
        %v7591 = vcombine.high %v7565, %v7573
        %v7593 = vunpack.c.l.s4 1934713408
        %v7594 = vunpack.c.0.s8 %v7593
        %v7595 = vlaneseq
        %v7596 = vshrl.u32 %v7595, 7
        %v7597 = vsub.s32 %v7594, %v7596
        %v7598 = vrot.slane %v7590, %v7597
        %v7600 = vunpack.c.l.s4 1934713408
        %v7601 = vunpack.c.0.s8 %v7600
        %v7602 = vlaneseq
        %v7603 = vshrl.u32 %v7602, 7
        %v7604 = vsub.s32 %v7601, %v7603
        %v7605 = vrot.slane %v7591, %v7604
        %v7606 = vcombine.low %v7581, %v7589
        %v7607 = vcombine.high %v7581, %v7589
        %v7609 = vunpack.c.l.s4 1934713408
        %v7610 = vunpack.c.0.s8 %v7609
        %v7611 = vlaneseq
        %v7612 = vshrl.u32 %v7611, 7
        %v7613 = vsub.s32 %v7610, %v7612
        %v7614 = vrot.slane %v7606, %v7613
        %v7616 = vunpack.c.l.s4 1934713408
        %v7617 = vunpack.c.0.s8 %v7616
        %v7618 = vlaneseq
        %v7619 = vshrl.u32 %v7618, 7
        %v7620 = vsub.s32 %v7617, %v7619
        %v7621 = vrot.slane %v7607, %v7620
        %v7622 = vcombine.low %v7598, %v7614
        %v7623 = vcombine.high %v7598, %v7614
        %v7624 = vcombine.low %v7605, %v7621
        %v7625 = vcombine.high %v7605, %v7621
        %v7626 = vcombine.low %v7530, %v7537
        %v7628 = vunpack.c.l.s4 1983009808
        %v7629 = vunpack.c.0.s8 %v7628
        %v7630 = vlaneseq
        %v7631 = vshrl.u32 %v7630, 7
        %v7632 = vsub.s32 %v7629, %v7631
        %v7633 = vrot.slane %v7626, %v7632
        %v7634 = vcombine.low %v7554, %v7555
        %v7636 = vunpack.c.l.s4 1983009808
        %v7637 = vunpack.c.0.s8 %v7636
        %v7638 = vlaneseq
        %v7639 = vshrl.u32 %v7638, 7
        %v7640 = vsub.s32 %v7637, %v7639
        %v7641 = vrot.slane %v7634, %v7640
        %v7642 = vcombine.low %v7546, %v7553
        %v7644 = vunpack.c.l.s4 1983009808
        %v7645 = vunpack.c.0.s8 %v7644
        %v7646 = vlaneseq
        %v7647 = vshrl.u32 %v7646, 7
        %v7648 = vsub.s32 %v7645, %v7647
        %v7649 = vrot.slane %v7642, %v7648
        %v7650 = vcombine.low %v7556, %v7557
        %v7652 = vunpack.c.l.s4 1983009808
        %v7653 = vunpack.c.0.s8 %v7652
        %v7654 = vlaneseq
        %v7655 = vshrl.u32 %v7654, 7
        %v7656 = vsub.s32 %v7653, %v7655
        %v7657 = vrot.slane %v7650, %v7656
        %v7658 = vcombine.low %v7633, %v7641
        %v7659 = vcombine.high %v7633, %v7641
        %v7661 = vunpack.c.l.s4 1934713408
        %v7662 = vunpack.c.0.s8 %v7661
        %v7663 = vlaneseq
        %v7664 = vshrl.u32 %v7663, 7
        %v7665 = vsub.s32 %v7662, %v7664
        %v7666 = vrot.slane %v7658, %v7665
        %v7668 = vunpack.c.l.s4 1934713408
        %v7669 = vunpack.c.0.s8 %v7668
        %v7670 = vlaneseq
        %v7671 = vshrl.u32 %v7670, 7
        %v7672 = vsub.s32 %v7669, %v7671
        %v7673 = vrot.slane %v7659, %v7672
        %v7674 = vcombine.low %v7649, %v7657
        %v7675 = vcombine.high %v7649, %v7657
        %v7677 = vunpack.c.l.s4 1934713408
        %v7678 = vunpack.c.0.s8 %v7677
        %v7679 = vlaneseq
        %v7680 = vshrl.u32 %v7679, 7
        %v7681 = vsub.s32 %v7678, %v7680
        %v7682 = vrot.slane %v7674, %v7681
        %v7684 = vunpack.c.l.s4 1934713408
        %v7685 = vunpack.c.0.s8 %v7684
        %v7686 = vlaneseq
        %v7687 = vshrl.u32 %v7686, 7
        %v7688 = vsub.s32 %v7685, %v7687
        %v7689 = vrot.slane %v7675, %v7688
        %v7690 = vcombine.low %v7666, %v7682
        %v7691 = vcombine.high %v7666, %v7682
        %v7692 = vcombine.low %v7673, %v7689
        %v7693 = vcombine.high %v7673, %v7689
        %7694 = vrot.lane.b32.xlu0 %v7098, 64
        %v7695 = vpop.permute.xlu0 %7694
        %7696 = vrot.lane.b32.xlu0 %v7103, 64
        %v7697 = vpop.permute.xlu0 %7696
        %7698 = vrot.lane.b32.xlu0 %v7109, 64
        %v7699 = vpop.permute.xlu0 %7698
        %7700 = vrot.lane.b32.xlu0 %v7111, 64
        %v7701 = vpop.permute.xlu0 %7700
        %7702 = vrot.lane.b32.xlu0 %v7115, 64
        %v7703 = vpop.permute.xlu0 %7702
        %7704 = vrot.lane.b32.xlu0 %v7117, 64
        %v7705 = vpop.permute.xlu0 %7704
        %7706 = vrot.lane.b32.xlu0 %v7121, 64
        %v7707 = vpop.permute.xlu0 %7706
        %7708 = vrot.lane.b32.xlu0 %v7123, 64
        %v7709 = vpop.permute.xlu0 %7708
        %v7718 = vcombine.low %v7695, %v7703
        %v7719 = vcombine.high %v7695, %v7703
        %v7721 = vunpack.c.l.s4 1983009808
        %v7722 = vunpack.c.0.s8 %v7721
        %v7723 = vlaneseq
        %v7724 = vshrl.u32 %v7723, 7
        %v7725 = vsub.s32 %v7722, %v7724
        %v7726 = vrot.slane %v7718, %v7725
        %v7728 = vunpack.c.l.s4 1983009808
        %v7729 = vunpack.c.0.s8 %v7728
        %v7730 = vlaneseq
        %v7731 = vshrl.u32 %v7730, 7
        %v7732 = vsub.s32 %v7729, %v7731
        %v7733 = vrot.slane %v7719, %v7732
        %v7734 = vcombine.low %v7699, %v7707
        %v7735 = vcombine.high %v7699, %v7707
        %v7737 = vunpack.c.l.s4 1983009808
        %v7738 = vunpack.c.0.s8 %v7737
        %v7739 = vlaneseq
        %v7740 = vshrl.u32 %v7739, 7
        %v7741 = vsub.s32 %v7738, %v7740
        %v7742 = vrot.slane %v7734, %v7741
        %v7744 = vunpack.c.l.s4 1983009808
        %v7745 = vunpack.c.0.s8 %v7744
        %v7746 = vlaneseq
        %v7747 = vshrl.u32 %v7746, 7
        %v7748 = vsub.s32 %v7745, %v7747
        %v7749 = vrot.slane %v7735, %v7748
        %v7750 = vcombine.low %v7726, %v7742
        %v7751 = vcombine.high %v7726, %v7742
        %v7753 = vunpack.c.l.s4 1934713408
        %v7754 = vunpack.c.0.s8 %v7753
        %v7755 = vlaneseq
        %v7756 = vshrl.u32 %v7755, 7
        %v7757 = vsub.s32 %v7754, %v7756
        %v7758 = vrot.slane %v7750, %v7757
        %v7760 = vunpack.c.l.s4 1934713408
        %v7761 = vunpack.c.0.s8 %v7760
        %v7762 = vlaneseq
        %v7763 = vshrl.u32 %v7762, 7
        %v7764 = vsub.s32 %v7761, %v7763
        %v7765 = vrot.slane %v7751, %v7764
        %v7766 = vcombine.low %v7733, %v7749
        %v7767 = vcombine.high %v7733, %v7749
        %v7769 = vunpack.c.l.s4 1934713408
        %v7770 = vunpack.c.0.s8 %v7769
        %v7771 = vlaneseq
        %v7772 = vshrl.u32 %v7771, 7
        %v7773 = vsub.s32 %v7770, %v7772
        %v7774 = vrot.slane %v7766, %v7773
        %v7776 = vunpack.c.l.s4 1934713408
        %v7777 = vunpack.c.0.s8 %v7776
        %v7778 = vlaneseq
        %v7779 = vshrl.u32 %v7778, 7
        %v7780 = vsub.s32 %v7777, %v7779
        %v7781 = vrot.slane %v7767, %v7780
        %v7782 = vcombine.high %v7758, 0.0
        %v7783 = vcombine.high %v7765, 0.0
        %v7784 = vcombine.high %v7774, 0.0
        %v7785 = vcombine.high %v7781, 0.0
        %v7786 = vcombine.low %v7697, %v7705
        %v7787 = vcombine.high %v7697, %v7705
        %v7789 = vunpack.c.l.s4 1983009808
        %v7790 = vunpack.c.0.s8 %v7789
        %v7791 = vlaneseq
        %v7792 = vshrl.u32 %v7791, 7
        %v7793 = vsub.s32 %v7790, %v7792
        %v7794 = vrot.slane %v7786, %v7793
        %v7796 = vunpack.c.l.s4 1983009808
        %v7797 = vunpack.c.0.s8 %v7796
        %v7798 = vlaneseq
        %v7799 = vshrl.u32 %v7798, 7
        %v7800 = vsub.s32 %v7797, %v7799
        %v7801 = vrot.slane %v7787, %v7800
        %v7802 = vcombine.low %v7701, %v7709
        %v7803 = vcombine.high %v7701, %v7709
        %v7805 = vunpack.c.l.s4 1983009808
        %v7806 = vunpack.c.0.s8 %v7805
        %v7807 = vlaneseq
        %v7808 = vshrl.u32 %v7807, 7
        %v7809 = vsub.s32 %v7806, %v7808
        %v7810 = vrot.slane %v7802, %v7809
        %v7812 = vunpack.c.l.s4 1983009808
        %v7813 = vunpack.c.0.s8 %v7812
        %v7814 = vlaneseq
        %v7815 = vshrl.u32 %v7814, 7
        %v7816 = vsub.s32 %v7813, %v7815
        %v7817 = vrot.slane %v7803, %v7816
        %v7818 = vcombine.low %v7794, %v7810
        %v7819 = vcombine.high %v7794, %v7810
        %v7821 = vunpack.c.l.s4 1934713408
        %v7822 = vunpack.c.0.s8 %v7821
        %v7823 = vlaneseq
        %v7824 = vshrl.u32 %v7823, 7
        %v7825 = vsub.s32 %v7822, %v7824
        %v7826 = vrot.slane %v7818, %v7825
        %v7828 = vunpack.c.l.s4 1934713408
        %v7829 = vunpack.c.0.s8 %v7828
        %v7830 = vlaneseq
        %v7831 = vshrl.u32 %v7830, 7
        %v7832 = vsub.s32 %v7829, %v7831
        %v7833 = vrot.slane %v7819, %v7832
        %v7834 = vcombine.low %v7801, %v7817
        %v7835 = vcombine.high %v7801, %v7817
        %v7837 = vunpack.c.l.s4 1934713408
        %v7838 = vunpack.c.0.s8 %v7837
        %v7839 = vlaneseq
        %v7840 = vshrl.u32 %v7839, 7
        %v7841 = vsub.s32 %v7838, %v7840
        %v7842 = vrot.slane %v7834, %v7841
        %v7844 = vunpack.c.l.s4 1934713408
        %v7845 = vunpack.c.0.s8 %v7844
        %v7846 = vlaneseq
        %v7847 = vshrl.u32 %v7846, 7
        %v7848 = vsub.s32 %v7845, %v7847
        %v7849 = vrot.slane %v7835, %v7848
        %v7850 = vcombine.high %v7826, 0.0
        %v7851 = vcombine.high %v7833, 0.0
        %v7852 = vcombine.high %v7842, 0.0
        %v7853 = vcombine.high %v7849, 0.0
        %v7854 = vcombine.low %v7758, %v7765
        %v7856 = vunpack.c.l.s4 1983009808
        %v7857 = vunpack.c.0.s8 %v7856
        %v7858 = vlaneseq
        %v7859 = vshrl.u32 %v7858, 7
        %v7860 = vsub.s32 %v7857, %v7859
        %v7861 = vrot.slane %v7854, %v7860
        %v7862 = vcombine.low %v7782, %v7783
        %v7864 = vunpack.c.l.s4 1983009808
        %v7865 = vunpack.c.0.s8 %v7864
        %v7866 = vlaneseq
        %v7867 = vshrl.u32 %v7866, 7
        %v7868 = vsub.s32 %v7865, %v7867
        %v7869 = vrot.slane %v7862, %v7868
        %v7870 = vcombine.low %v7774, %v7781
        %v7872 = vunpack.c.l.s4 1983009808
        %v7873 = vunpack.c.0.s8 %v7872
        %v7874 = vlaneseq
        %v7875 = vshrl.u32 %v7874, 7
        %v7876 = vsub.s32 %v7873, %v7875
        %v7877 = vrot.slane %v7870, %v7876
        %v7878 = vcombine.low %v7784, %v7785
        %v7880 = vunpack.c.l.s4 1983009808
        %v7881 = vunpack.c.0.s8 %v7880
        %v7882 = vlaneseq
        %v7883 = vshrl.u32 %v7882, 7
        %v7884 = vsub.s32 %v7881, %v7883
        %v7885 = vrot.slane %v7878, %v7884
        %v7886 = vcombine.low %v7861, %v7869
        %v7887 = vcombine.high %v7861, %v7869
        %v7889 = vunpack.c.l.s4 1934713408
        %v7890 = vunpack.c.0.s8 %v7889
        %v7891 = vlaneseq
        %v7892 = vshrl.u32 %v7891, 7
        %v7893 = vsub.s32 %v7890, %v7892
        %v7894 = vrot.slane %v7886, %v7893
        %v7896 = vunpack.c.l.s4 1934713408
        %v7897 = vunpack.c.0.s8 %v7896
        %v7898 = vlaneseq
        %v7899 = vshrl.u32 %v7898, 7
        %v7900 = vsub.s32 %v7897, %v7899
        %v7901 = vrot.slane %v7887, %v7900
        %v7902 = vcombine.low %v7877, %v7885
        %v7903 = vcombine.high %v7877, %v7885
        %v7905 = vunpack.c.l.s4 1934713408
        %v7906 = vunpack.c.0.s8 %v7905
        %v7907 = vlaneseq
        %v7908 = vshrl.u32 %v7907, 7
        %v7909 = vsub.s32 %v7906, %v7908
        %v7910 = vrot.slane %v7902, %v7909
        %v7912 = vunpack.c.l.s4 1934713408
        %v7913 = vunpack.c.0.s8 %v7912
        %v7914 = vlaneseq
        %v7915 = vshrl.u32 %v7914, 7
        %v7916 = vsub.s32 %v7913, %v7915
        %v7917 = vrot.slane %v7903, %v7916
        %v7918 = vcombine.low %v7894, %v7910
        %v7919 = vcombine.high %v7894, %v7910
        %v7920 = vcombine.low %v7901, %v7917
        %v7921 = vcombine.high %v7901, %v7917
        %v7922 = vcombine.low %v7826, %v7833
        %v7924 = vunpack.c.l.s4 1983009808
        %v7925 = vunpack.c.0.s8 %v7924
        %v7926 = vlaneseq
        %v7927 = vshrl.u32 %v7926, 7
        %v7928 = vsub.s32 %v7925, %v7927
        %v7929 = vrot.slane %v7922, %v7928
        %v7930 = vcombine.low %v7850, %v7851
        %v7932 = vunpack.c.l.s4 1983009808
        %v7933 = vunpack.c.0.s8 %v7932
        %v7934 = vlaneseq
        %v7935 = vshrl.u32 %v7934, 7
        %v7936 = vsub.s32 %v7933, %v7935
        %v7937 = vrot.slane %v7930, %v7936
        %v7938 = vcombine.low %v7842, %v7849
        %v7940 = vunpack.c.l.s4 1983009808
        %v7941 = vunpack.c.0.s8 %v7940
        %v7942 = vlaneseq
        %v7943 = vshrl.u32 %v7942, 7
        %v7944 = vsub.s32 %v7941, %v7943
        %v7945 = vrot.slane %v7938, %v7944
        %v7946 = vcombine.low %v7852, %v7853
        %v7948 = vunpack.c.l.s4 1983009808
        %v7949 = vunpack.c.0.s8 %v7948
        %v7950 = vlaneseq
        %v7951 = vshrl.u32 %v7950, 7
        %v7952 = vsub.s32 %v7949, %v7951
        %v7953 = vrot.slane %v7946, %v7952
        %v7954 = vcombine.low %v7929, %v7937
        %v7955 = vcombine.high %v7929, %v7937
        %v7957 = vunpack.c.l.s4 1934713408
        %v7958 = vunpack.c.0.s8 %v7957
        %v7959 = vlaneseq
        %v7960 = vshrl.u32 %v7959, 7
        %v7961 = vsub.s32 %v7958, %v7960
        %v7962 = vrot.slane %v7954, %v7961
        %v7964 = vunpack.c.l.s4 1934713408
        %v7965 = vunpack.c.0.s8 %v7964
        %v7966 = vlaneseq
        %v7967 = vshrl.u32 %v7966, 7
        %v7968 = vsub.s32 %v7965, %v7967
        %v7969 = vrot.slane %v7955, %v7968
        %v7970 = vcombine.low %v7945, %v7953
        %v7971 = vcombine.high %v7945, %v7953
        %v7973 = vunpack.c.l.s4 1934713408
        %v7974 = vunpack.c.0.s8 %v7973
        %v7975 = vlaneseq
        %v7976 = vshrl.u32 %v7975, 7
        %v7977 = vsub.s32 %v7974, %v7976
        %v7978 = vrot.slane %v7970, %v7977
        %v7980 = vunpack.c.l.s4 1934713408
        %v7981 = vunpack.c.0.s8 %v7980
        %v7982 = vlaneseq
        %v7983 = vshrl.u32 %v7982, 7
        %v7984 = vsub.s32 %v7981, %v7983
        %v7985 = vrot.slane %v7971, %v7984
        %v7986 = vcombine.low %v7962, %v7978
        %v7987 = vcombine.high %v7962, %v7978
        %v7988 = vcombine.low %v7969, %v7985
        %v7989 = vcombine.high %v7969, %v7985
        %v7991 = vsel %vm1671, %v7326, 0
        %v7994 = vsel %vm1671, %v7394, 0
        %v7997 = vsel %vm1671, %v7622, 0
        %v8000 = vsel %vm1671, %v7690, 0
        %8002 = vmatprep.subr.mxu0 0.0
        %8003 = vmatpush1.xpose.msra.mxu0 %v7997
        %8004 = vmatprep.subr.mxu0 0.0
        %8005 = vmatpush1.xpose.msra.mxu0 %v8000
        %8006 = vmatprep.subr.mxu0 0.0
        %8007 = vmatpush1.xpose.msra.mxu0 0.0
        %8008 = vmatprep.subr.mxu0 0.0
        %8009 = vmatpush1.xpose.msra.mxu0 0.0
        %8010 = vmatprep.subr.mxu0 0.0
        %8011 = vmatpush1.xpose.msra.mxu0 0.0
        %8012 = vmatprep.subr.mxu0 0.0
        %8013 = vmatpush1.xpose.msra.mxu0 0.0
        %8014 = vmatprep.subr.mxu0 0.0
        %8015 = vmatpush1.xpose.msra.mxu0 0.0
        %8016 = vmatprep.subr.mxu0 0.0
        %8017 = vmatpush1.xpose.msra.mxu0 0.0
        %8018 = vmatprep.subr.mxu0 0.0
        %8019 = vmatpush1.xpose.msra.mxu0 0.0
        %8020 = vmatprep.subr.mxu0 0.0
        %8021 = vmatpush1.xpose.msra.mxu0 0.0
        %8022 = vmatprep.subr.mxu0 0.0
        %8023 = vmatpush1.xpose.msra.mxu0 0.0
        %8024 = vmatprep.subr.mxu0 0.0
        %8025 = vmatpush1.xpose.msra.mxu0 0.0
        %8026 = vmatprep.subr.mxu0 0.0
        %8027 = vmatpush1.xpose.msra.mxu0 0.0
        %8028 = vmatprep.subr.mxu0 0.0
        %8029 = vmatpush1.xpose.msra.mxu0 0.0
        %8030 = vmatprep.subr.mxu0 0.0
        %8031 = vmatpush1.xpose.msra.mxu0 0.0
        %8032 = vmatprep.subr.mxu0 0.0
        %8033 = vmatpush1.xpose.msra.mxu0 0.0
        %8034 = vmatprep.subr.mxu0 0.0
        %8035 = vmatpush1.xpose.msra.mxu0 0.0
        %8036 = vmatprep.subr.mxu0 0.0
        %8037 = vmatpush1.xpose.msra.mxu0 0.0
        %8038 = vmatprep.subr.mxu0 0.0
        %8039 = vmatpush1.xpose.msra.mxu0 0.0
        %8040 = vmatprep.subr.mxu0 0.0
        %8041 = vmatpush1.xpose.msra.mxu0 0.0
        %8042 = vmatprep.subr.mxu0 0.0
        %8043 = vmatpush1.xpose.msra.mxu0 0.0
        %8044 = vmatprep.subr.mxu0 0.0
        %8045 = vmatpush1.xpose.msra.mxu0 0.0
        %8046 = vmatprep.subr.mxu0 0.0
        %8047 = vmatpush1.xpose.msra.mxu0 0.0
        %8048 = vmatprep.subr.mxu0 0.0
        %8049 = vmatpush1.xpose.msra.mxu0 0.0
        %8050 = vmatprep.subr.mxu0 0.0
        %8051 = vmatpush1.xpose.msra.mxu0 0.0
        %8052 = vmatprep.subr.mxu0 0.0
        %8053 = vmatpush1.xpose.msra.mxu0 0.0
        %8054 = vmatprep.subr.mxu0 0.0
        %8055 = vmatpush1.xpose.msra.mxu0 0.0
        %8056 = vmatprep.subr.mxu0 0.0
        %8057 = vmatpush1.xpose.msra.mxu0 0.0
        %8058 = vmatprep.subr.mxu0 0.0
        %8059 = vmatpush1.xpose.msra.mxu0 0.0
        %8060 = vmatprep.subr.mxu0 0.0
        %8061 = vmatpush1.xpose.msra.mxu0 0.0
        %8062 = vmatprep.subr.mxu0 0.0
        %8063 = vmatpush1.xpose.msra.mxu0 0.0
        %8064 = vmatprep.subr.mxu0 0.0
        %8065 = vmatpush1.xpose.msra.mxu0 0.0
        %8066 = vmatprep.mubr.f32.mxu0 0.0
        %8067 = vmatmul.mubr.f32.gmra.mrb[0].mxu0 %v7991
        %v8068 = vpop.f32.mrb[0].mxu0
        %v8069 = vadd.f32 0.0, %v8068
        %v8070 = vpop.f32.mrb[0].mxu0
        %8071 = vmatprep.mubr.f32.mxu0 0.0
        %8072 = vmatmul.mubr.f32.gmra.mrb[0].mxu0 %v7994
        %v8073 = vpop.f32.mrb[0].mxu0
        %v8074 = vadd.f32 0.0, %v8073
        %v8075 = vpop.f32.mrb[0].mxu0
        %8076 = vdwg.mxu0
        %v8078 = vsel %vm1671, %v7327, 0
        %v8081 = vsel %vm1671, %v7395, 0
        %v8084 = vsel %vm1671, %v7623, 0
        %v8087 = vsel %vm1671, %v7691, 0
        %8089 = vmatprep.subr.mxu0 0.0
        %8090 = vmatpush1.xpose.msra.mxu0 %v8084
        %8091 = vmatprep.subr.mxu0 0.0
        %8092 = vmatpush1.xpose.msra.mxu0 %v8087
        %8093 = vmatprep.subr.mxu0 0.0
        %8094 = vmatpush1.xpose.msra.mxu0 0.0
        %8095 = vmatprep.subr.mxu0 0.0
        %8096 = vmatpush1.xpose.msra.mxu0 0.0
        %8097 = vmatprep.subr.mxu0 0.0
        %8098 = vmatpush1.xpose.msra.mxu0 0.0
        %8099 = vmatprep.subr.mxu0 0.0
        %8100 = vmatpush1.xpose.msra.mxu0 0.0
        %8101 = vmatprep.subr.mxu0 0.0
        %8102 = vmatpush1.xpose.msra.mxu0 0.0
        %8103 = vmatprep.subr.mxu0 0.0
        %8104 = vmatpush1.xpose.msra.mxu0 0.0
        %8105 = vmatprep.subr.mxu0 0.0
        %8106 = vmatpush1.xpose.msra.mxu0 0.0
        %8107 = vmatprep.subr.mxu0 0.0
        %8108 = vmatpush1.xpose.msra.mxu0 0.0
        %8109 = vmatprep.subr.mxu0 0.0
        %8110 = vmatpush1.xpose.msra.mxu0 0.0
        %8111 = vmatprep.subr.mxu0 0.0
        %8112 = vmatpush1.xpose.msra.mxu0 0.0
        %8113 = vmatprep.subr.mxu0 0.0
        %8114 = vmatpush1.xpose.msra.mxu0 0.0
        %8115 = vmatprep.subr.mxu0 0.0
        %8116 = vmatpush1.xpose.msra.mxu0 0.0
        %8117 = vmatprep.subr.mxu0 0.0
        %8118 = vmatpush1.xpose.msra.mxu0 0.0
        %8119 = vmatprep.subr.mxu0 0.0
        %8120 = vmatpush1.xpose.msra.mxu0 0.0
        %8121 = vmatprep.subr.mxu0 0.0
        %8122 = vmatpush1.xpose.msra.mxu0 0.0
        %8123 = vmatprep.subr.mxu0 0.0
        %8124 = vmatpush1.xpose.msra.mxu0 0.0
        %8125 = vmatprep.subr.mxu0 0.0
        %8126 = vmatpush1.xpose.msra.mxu0 0.0
        %8127 = vmatprep.subr.mxu0 0.0
        %8128 = vmatpush1.xpose.msra.mxu0 0.0
        %8129 = vmatprep.subr.mxu0 0.0
        %8130 = vmatpush1.xpose.msra.mxu0 0.0
        %8131 = vmatprep.subr.mxu0 0.0
        %8132 = vmatpush1.xpose.msra.mxu0 0.0
        %8133 = vmatprep.subr.mxu0 0.0
        %8134 = vmatpush1.xpose.msra.mxu0 0.0
        %8135 = vmatprep.subr.mxu0 0.0
        %8136 = vmatpush1.xpose.msra.mxu0 0.0
        %8137 = vmatprep.subr.mxu0 0.0
        %8138 = vmatpush1.xpose.msra.mxu0 0.0
        %8139 = vmatprep.subr.mxu0 0.0
        %8140 = vmatpush1.xpose.msra.mxu0 0.0
        %8141 = vmatprep.subr.mxu0 0.0
        %8142 = vmatpush1.xpose.msra.mxu0 0.0
        %8143 = vmatprep.subr.mxu0 0.0
        %8144 = vmatpush1.xpose.msra.mxu0 0.0
        %8145 = vmatprep.subr.mxu0 0.0
        %8146 = vmatpush1.xpose.msra.mxu0 0.0
        %8147 = vmatprep.subr.mxu0 0.0
        %8148 = vmatpush1.xpose.msra.mxu0 0.0
        %8149 = vmatprep.subr.mxu0 0.0
        %8150 = vmatpush1.xpose.msra.mxu0 0.0
        %8151 = vmatprep.subr.mxu0 0.0
        %8152 = vmatpush1.xpose.msra.mxu0 0.0
        %8153 = vmatprep.mubr.f32.mxu0 0.0
        %8154 = vmatmul.mubr.f32.gmra.mrb[0].mxu0 %v8078
        %v8155 = vpop.f32.mrb[0].mxu0
        %v8156 = vadd.f32 0.0, %v8155
        %v8157 = vpop.f32.mrb[0].mxu0
        %8158 = vmatprep.mubr.f32.mxu0 0.0
        %8159 = vmatmul.mubr.f32.gmra.mrb[0].mxu0 %v8081
        %v8160 = vpop.f32.mrb[0].mxu0
        %v8161 = vadd.f32 0.0, %v8160
        %v8162 = vpop.f32.mrb[0].mxu0
        %8163 = vdwg.mxu0
        %v8165 = vsel %vm1671, %v7328, 0
        %v8168 = vsel %vm1671, %v7396, 0
        %v8171 = vsel %vm1671, %v7624, 0
        %v8174 = vsel %vm1671, %v7692, 0
        %8176 = vmatprep.subr.mxu0 0.0
        %8177 = vmatpush1.xpose.msra.mxu0 %v8171
        %8178 = vmatprep.subr.mxu0 0.0
        %8179 = vmatpush1.xpose.msra.mxu0 %v8174
        %8180 = vmatprep.subr.mxu0 0.0
        %8181 = vmatpush1.xpose.msra.mxu0 0.0
        %8182 = vmatprep.subr.mxu0 0.0
        %8183 = vmatpush1.xpose.msra.mxu0 0.0
        %8184 = vmatprep.subr.mxu0 0.0
        %8185 = vmatpush1.xpose.msra.mxu0 0.0
        %8186 = vmatprep.subr.mxu0 0.0
        %8187 = vmatpush1.xpose.msra.mxu0 0.0
        %8188 = vmatprep.subr.mxu0 0.0
        %8189 = vmatpush1.xpose.msra.mxu0 0.0
        %8190 = vmatprep.subr.mxu0 0.0
        %8191 = vmatpush1.xpose.msra.mxu0 0.0
        %8192 = vmatprep.subr.mxu0 0.0
        %8193 = vmatpush1.xpose.msra.mxu0 0.0
        %8194 = vmatprep.subr.mxu0 0.0
        %8195 = vmatpush1.xpose.msra.mxu0 0.0
        %8196 = vmatprep.subr.mxu0 0.0
        %8197 = vmatpush1.xpose.msra.mxu0 0.0
        %8198 = vmatprep.subr.mxu0 0.0
        %8199 = vmatpush1.xpose.msra.mxu0 0.0
        %8200 = vmatprep.subr.mxu0 0.0
        %8201 = vmatpush1.xpose.msra.mxu0 0.0
        %8202 = vmatprep.subr.mxu0 0.0
        %8203 = vmatpush1.xpose.msra.mxu0 0.0
        %8204 = vmatprep.subr.mxu0 0.0
        %8205 = vmatpush1.xpose.msra.mxu0 0.0
        %8206 = vmatprep.subr.mxu0 0.0
        %8207 = vmatpush1.xpose.msra.mxu0 0.0
        %8208 = vmatprep.subr.mxu0 0.0
        %8209 = vmatpush1.xpose.msra.mxu0 0.0
        %8210 = vmatprep.subr.mxu0 0.0
        %8211 = vmatpush1.xpose.msra.mxu0 0.0
        %8212 = vmatprep.subr.mxu0 0.0
        %8213 = vmatpush1.xpose.msra.mxu0 0.0
        %8214 = vmatprep.subr.mxu0 0.0
        %8215 = vmatpush1.xpose.msra.mxu0 0.0
        %8216 = vmatprep.subr.mxu0 0.0
        %8217 = vmatpush1.xpose.msra.mxu0 0.0
        %8218 = vmatprep.subr.mxu0 0.0
        %8219 = vmatpush1.xpose.msra.mxu0 0.0
        %8220 = vmatprep.subr.mxu0 0.0
        %8221 = vmatpush1.xpose.msra.mxu0 0.0
        %8222 = vmatprep.subr.mxu0 0.0
        %8223 = vmatpush1.xpose.msra.mxu0 0.0
        %8224 = vmatprep.subr.mxu0 0.0
        %8225 = vmatpush1.xpose.msra.mxu0 0.0
        %8226 = vmatprep.subr.mxu0 0.0
        %8227 = vmatpush1.xpose.msra.mxu0 0.0
        %8228 = vmatprep.subr.mxu0 0.0
        %8229 = vmatpush1.xpose.msra.mxu0 0.0
        %8230 = vmatprep.subr.mxu0 0.0
        %8231 = vmatpush1.xpose.msra.mxu0 0.0
        %8232 = vmatprep.subr.mxu0 0.0
        %8233 = vmatpush1.xpose.msra.mxu0 0.0
        %8234 = vmatprep.subr.mxu0 0.0
        %8235 = vmatpush1.xpose.msra.mxu0 0.0
        %8236 = vmatprep.subr.mxu0 0.0
        %8237 = vmatpush1.xpose.msra.mxu0 0.0
        %8238 = vmatprep.subr.mxu0 0.0
        %8239 = vmatpush1.xpose.msra.mxu0 0.0
        %8240 = vmatprep.mubr.f32.mxu0 0.0
        %8241 = vmatmul.mubr.f32.gmra.mrb[0].mxu0 %v8165
        %v8242 = vpop.f32.mrb[0].mxu0
        %v8243 = vadd.f32 0.0, %v8242
        %v8244 = vpop.f32.mrb[0].mxu0
        %8245 = vmatprep.mubr.f32.mxu0 0.0
        %8246 = vmatmul.mubr.f32.gmra.mrb[0].mxu0 %v8168
        %v8247 = vpop.f32.mrb[0].mxu0
        %v8248 = vadd.f32 0.0, %v8247
        %v8249 = vpop.f32.mrb[0].mxu0
        %8250 = vdwg.mxu0
        %v8252 = vsel %vm1671, %v7329, 0
        %v8255 = vsel %vm1671, %v7397, 0
        %v8258 = vsel %vm1671, %v7625, 0
        %v8261 = vsel %vm1671, %v7693, 0
        %8263 = vmatprep.subr.mxu0 0.0
        %8264 = vmatpush1.xpose.msra.mxu0 %v8258
        %8265 = vmatprep.subr.mxu0 0.0
        %8266 = vmatpush1.xpose.msra.mxu0 %v8261
        %8267 = vmatprep.subr.mxu0 0.0
        %8268 = vmatpush1.xpose.msra.mxu0 0.0
        %8269 = vmatprep.subr.mxu0 0.0
        %8270 = vmatpush1.xpose.msra.mxu0 0.0
        %8271 = vmatprep.subr.mxu0 0.0
        %8272 = vmatpush1.xpose.msra.mxu0 0.0
        %8273 = vmatprep.subr.mxu0 0.0
        %8274 = vmatpush1.xpose.msra.mxu0 0.0
        %8275 = vmatprep.subr.mxu0 0.0
        %8276 = vmatpush1.xpose.msra.mxu0 0.0
        %8277 = vmatprep.subr.mxu0 0.0
        %8278 = vmatpush1.xpose.msra.mxu0 0.0
        %8279 = vmatprep.subr.mxu0 0.0
        %8280 = vmatpush1.xpose.msra.mxu0 0.0
        %8281 = vmatprep.subr.mxu0 0.0
        %8282 = vmatpush1.xpose.msra.mxu0 0.0
        %8283 = vmatprep.subr.mxu0 0.0
        %8284 = vmatpush1.xpose.msra.mxu0 0.0
        %8285 = vmatprep.subr.mxu0 0.0
        %8286 = vmatpush1.xpose.msra.mxu0 0.0
        %8287 = vmatprep.subr.mxu0 0.0
        %8288 = vmatpush1.xpose.msra.mxu0 0.0
        %8289 = vmatprep.subr.mxu0 0.0
        %8290 = vmatpush1.xpose.msra.mxu0 0.0
        %8291 = vmatprep.subr.mxu0 0.0
        %8292 = vmatpush1.xpose.msra.mxu0 0.0
        %8293 = vmatprep.subr.mxu0 0.0
        %8294 = vmatpush1.xpose.msra.mxu0 0.0
        %8295 = vmatprep.subr.mxu0 0.0
        %8296 = vmatpush1.xpose.msra.mxu0 0.0
        %8297 = vmatprep.subr.mxu0 0.0
        %8298 = vmatpush1.xpose.msra.mxu0 0.0
        %8299 = vmatprep.subr.mxu0 0.0
        %8300 = vmatpush1.xpose.msra.mxu0 0.0
        %8301 = vmatprep.subr.mxu0 0.0
        %8302 = vmatpush1.xpose.msra.mxu0 0.0
        %8303 = vmatprep.subr.mxu0 0.0
        %8304 = vmatpush1.xpose.msra.mxu0 0.0
        %8305 = vmatprep.subr.mxu0 0.0
        %8306 = vmatpush1.xpose.msra.mxu0 0.0
        %8307 = vmatprep.subr.mxu0 0.0
        %8308 = vmatpush1.xpose.msra.mxu0 0.0
        %8309 = vmatprep.subr.mxu0 0.0
        %8310 = vmatpush1.xpose.msra.mxu0 0.0
        %8311 = vmatprep.subr.mxu0 0.0
        %8312 = vmatpush1.xpose.msra.mxu0 0.0
        %8313 = vmatprep.subr.mxu0 0.0
        %8314 = vmatpush1.xpose.msra.mxu0 0.0
        %8315 = vmatprep.subr.mxu0 0.0
        %8316 = vmatpush1.xpose.msra.mxu0 0.0
        %8317 = vmatprep.subr.mxu0 0.0
        %8318 = vmatpush1.xpose.msra.mxu0 0.0
        %8319 = vmatprep.subr.mxu0 0.0
        %8320 = vmatpush1.xpose.msra.mxu0 0.0
        %8321 = vmatprep.subr.mxu0 0.0
        %8322 = vmatpush1.xpose.msra.mxu0 0.0
        %8323 = vmatprep.subr.mxu0 0.0
        %8324 = vmatpush1.xpose.msra.mxu0 0.0
        %8325 = vmatprep.subr.mxu0 0.0
        %8326 = vmatpush1.xpose.msra.mxu0 0.0
        %8327 = vmatprep.mubr.f32.mxu0 0.0
        %8328 = vmatmul.mubr.f32.gmra.mrb[0].mxu0 %v8252
        %v8329 = vpop.f32.mrb[0].mxu0
        %v8330 = vadd.f32 0.0, %v8329
        %v8331 = vpop.f32.mrb[0].mxu0
        %8332 = vmatprep.mubr.f32.mxu0 0.0
        %8333 = vmatmul.mubr.f32.gmra.mrb[0].mxu0 %v8255
        %v8334 = vpop.f32.mrb[0].mxu0
        %v8335 = vadd.f32 0.0, %v8334
        %v8336 = vpop.f32.mrb[0].mxu0
        %8337 = vdwg.mxu0
        %v8338 = vmul.f32 %v8069, 0.35355338
        %v8339 = vmul.f32 %v8074, 0.35355338
        %v8340 = vmul.f32 %v8156, 0.35355338
        %v8341 = vmul.f32 %v8161, 0.35355338
        %v8342 = vmul.f32 %v8243, 0.35355338
        %v8343 = vmul.f32 %v8248, 0.35355338
        %v8344 = vmul.f32 %v8330, 0.35355338
        %v8345 = vmul.f32 %v8335, 0.35355338
        %v8346 = vsel %vm4114, %v8338, -1e+30
        %v8347 = vsel %vm4115, %v8339, -1e+30
        %v8348 = vsel %vm4114, %v8340, -1e+30
        %v8349 = vsel %vm4115, %v8341, -1e+30
        %v8350 = vsel %vm4114, %v8342, -1e+30
        %v8351 = vsel %vm4115, %v8343, -1e+30
        %v8352 = vsel %vm4114, %v8344, -1e+30
        %v8353 = vsel %vm4115, %v8345, -1e+30
        %v8354 = vsel %vm2040, %v8346, -inf
        %8355 = vmax.xlane.f32.xlu0 %v8354
        %v8356 = vpop.xlane.xlu0 %8355
        %v8357 = vsel %vm2040, %v8347, -inf
        %8358 = vmax.xlane.f32.xlu0 %v8357
        %v8359 = vpop.xlane.xlu0 %8358
        %v8360 = vsel %vm2040, %v8348, -inf
        %8361 = vmax.xlane.f32.xlu0 %v8360
        %v8362 = vpop.xlane.xlu0 %8361
        %v8363 = vsel %vm2040, %v8349, -inf
        %8364 = vmax.xlane.f32.xlu0 %v8363
        %v8365 = vpop.xlane.xlu0 %8364
        %v8366 = vsel %vm2040, %v8350, -inf
        %8367 = vmax.xlane.f32.xlu0 %v8366
        %v8368 = vpop.xlane.xlu0 %8367
        %v8369 = vsel %vm2040, %v8351, -inf
        %8370 = vmax.xlane.f32.xlu0 %v8369
        %v8371 = vpop.xlane.xlu0 %8370
        %v8372 = vsel %vm2040, %v8352, -inf
        %8373 = vmax.xlane.f32.xlu0 %v8372
        %v8374 = vpop.xlane.xlu0 %8373
        %v8375 = vsel %vm2040, %v8353, -inf
        %8376 = vmax.xlane.f32.xlu0 %v8375
        %v8377 = vpop.xlane.xlu0 %8376
        %v8378 = vsub.f32 %v8346, %v8356
        %v8379 = vsub.f32 %v8347, %v8359
        %v8380 = vsub.f32 %v8348, %v8362
        %v8381 = vsub.f32 %v8349, %v8365
        %v8382 = vsub.f32 %v8350, %v8368
        %v8383 = vsub.f32 %v8351, %v8371
        %v8384 = vsub.f32 %v8352, %v8374
        %v8385 = vsub.f32 %v8353, %v8377
        %v8386 = vmul.f32 %v8378, 1.442695
        %v8387 = vpow.pop %v8386
        %v8388 = vmul.f32 %v8379, 1.442695
        %v8389 = vpow.pop %v8388
        %v8390 = vmul.f32 %v8380, 1.442695
        %v8391 = vpow.pop %v8390
        %v8392 = vmul.f32 %v8381, 1.442695
        %v8393 = vpow.pop %v8392
        %v8394 = vmul.f32 %v8382, 1.442695
        %v8395 = vpow.pop %v8394
        %v8396 = vmul.f32 %v8383, 1.442695
        %v8397 = vpow.pop %v8396
        %v8398 = vmul.f32 %v8384, 1.442695
        %v8399 = vpow.pop %v8398
        %v8400 = vmul.f32 %v8385, 1.442695
        %v8401 = vpow.pop %v8400
        %v8402 = vsel %vm4114, %v8387, 0.0
        %v8403 = vsel %vm4115, %v8389, 0.0
        %v8404 = vsel %vm4114, %v8391, 0.0
        %v8405 = vsel %vm4115, %v8393, 0.0
        %v8406 = vsel %vm4114, %v8395, 0.0
        %v8407 = vsel %vm4115, %v8397, 0.0
        %v8408 = vsel %vm4114, %v8399, 0.0
        %v8409 = vsel %vm4115, %v8401, 0.0
        %v8410 = vsel %vm2040, %v8402, 0.0
        %8411 = vadd.xlane.f32.xlu0 %v8410
        %v8412 = vpop.xlane.xlu0 %8411
        %v8413 = vsel %vm2040, %v8403, 0.0
        %8414 = vadd.xlane.f32.xlu0 %v8413
        %v8415 = vpop.xlane.xlu0 %8414
        %v8416 = vsel %vm2040, %v8404, 0.0
        %8417 = vadd.xlane.f32.xlu0 %v8416
        %v8418 = vpop.xlane.xlu0 %8417
        %v8419 = vsel %vm2040, %v8405, 0.0
        %8420 = vadd.xlane.f32.xlu0 %v8419
        %v8421 = vpop.xlane.xlu0 %8420
        %v8422 = vsel %vm2040, %v8406, 0.0
        %8423 = vadd.xlane.f32.xlu0 %v8422
        %v8424 = vpop.xlane.xlu0 %8423
        %v8425 = vsel %vm2040, %v8407, 0.0
        %8426 = vadd.xlane.f32.xlu0 %v8425
        %v8427 = vpop.xlane.xlu0 %8426
        %v8428 = vsel %vm2040, %v8408, 0.0
        %8429 = vadd.xlane.f32.xlu0 %v8428
        %v8430 = vpop.xlane.xlu0 %8429
        %v8431 = vsel %vm2040, %v8409, 0.0
        %8432 = vadd.xlane.f32.xlu0 %v8431
        %v8433 = vpop.xlane.xlu0 %8432
        %v8434 = vmax.f32 %v8412, 1e-30
        %v8435 = vmax.f32 %v8415, 1e-30
        %v8436 = vmax.f32 %v8418, 1e-30
        %v8437 = vmax.f32 %v8421, 1e-30
        %v8438 = vmax.f32 %v8424, 1e-30
        %v8439 = vmax.f32 %v8427, 1e-30
        %v8440 = vmax.f32 %v8430, 1e-30
        %v8441 = vmax.f32 %v8433, 1e-30
        %v8442 = vrcp.pop %v8434
        %v8443 = vmul.f32 1.0, %v8442
        %v8444 = vrcp.pop %v8435
        %v8445 = vmul.f32 1.0, %v8444
        %v8446 = vrcp.pop %v8436
        %v8447 = vmul.f32 1.0, %v8446
        %v8448 = vrcp.pop %v8437
        %v8449 = vmul.f32 1.0, %v8448
        %v8450 = vrcp.pop %v8438
        %v8451 = vmul.f32 1.0, %v8450
        %v8452 = vrcp.pop %v8439
        %v8453 = vmul.f32 1.0, %v8452
        %v8454 = vrcp.pop %v8440
        %v8455 = vmul.f32 1.0, %v8454
        %v8456 = vrcp.pop %v8441
        %v8457 = vmul.f32 1.0, %v8456
        %v8458 = vmul.f32 %v8402, %v8443
        %v8459 = vmul.f32 %v8403, %v8445
        %v8460 = vmul.f32 %v8404, %v8447
        %v8461 = vmul.f32 %v8405, %v8449
        %v8462 = vmul.f32 %v8406, %v8451
        %v8463 = vmul.f32 %v8407, %v8453
        %v8464 = vmul.f32 %v8408, %v8455
        %v8465 = vmul.f32 %v8409, %v8457
        %v8467 = vsel %vm2040, %v8458, 0
        %v8470 = vsel %vm2040, %v8459, 0
        %8472 = vmatprep.subr.mxu0 0.0
        %8473 = vmatpush1.msra.mxu0 %v7918
        %8474 = vmatprep.subr.mxu0 0.0
        %8475 = vmatpush1.msra.mxu0 %v7986
        %8476 = vmatprep.subr.mxu0 0.0
        %8477 = vmatpush1.msra.mxu0 0.0
        %8478 = vmatprep.subr.mxu0 0.0
        %8479 = vmatpush1.msra.mxu0 0.0
        %8480 = vmatprep.subr.mxu0 0.0
        %8481 = vmatpush1.msra.mxu0 0.0
        %8482 = vmatprep.subr.mxu0 0.0
        %8483 = vmatpush1.msra.mxu0 0.0
        %8484 = vmatprep.subr.mxu0 0.0
        %8485 = vmatpush1.msra.mxu0 0.0
        %8486 = vmatprep.subr.mxu0 0.0
        %8487 = vmatpush1.msra.mxu0 0.0
        %8488 = vmatprep.subr.mxu0 0.0
        %8489 = vmatpush1.msra.mxu0 0.0
        %8490 = vmatprep.subr.mxu0 0.0
        %8491 = vmatpush1.msra.mxu0 0.0
        %8492 = vmatprep.subr.mxu0 0.0
        %8493 = vmatpush1.msra.mxu0 0.0
        %8494 = vmatprep.subr.mxu0 0.0
        %8495 = vmatpush1.msra.mxu0 0.0
        %8496 = vmatprep.subr.mxu0 0.0
        %8497 = vmatpush1.msra.mxu0 0.0
        %8498 = vmatprep.subr.mxu0 0.0
        %8499 = vmatpush1.msra.mxu0 0.0
        %8500 = vmatprep.subr.mxu0 0.0
        %8501 = vmatpush1.msra.mxu0 0.0
        %8502 = vmatprep.subr.mxu0 0.0
        %8503 = vmatpush1.msra.mxu0 0.0
        %8504 = vmatprep.subr.mxu0 0.0
        %8505 = vmatpush1.msra.mxu0 0.0
        %8506 = vmatprep.subr.mxu0 0.0
        %8507 = vmatpush1.msra.mxu0 0.0
        %8508 = vmatprep.subr.mxu0 0.0
        %8509 = vmatpush1.msra.mxu0 0.0
        %8510 = vmatprep.subr.mxu0 0.0
        %8511 = vmatpush1.msra.mxu0 0.0
        %8512 = vmatprep.subr.mxu0 0.0
        %8513 = vmatpush1.msra.mxu0 0.0
        %8514 = vmatprep.subr.mxu0 0.0
        %8515 = vmatpush1.msra.mxu0 0.0
        %8516 = vmatprep.subr.mxu0 0.0
        %8517 = vmatpush1.msra.mxu0 0.0
        %8518 = vmatprep.subr.mxu0 0.0
        %8519 = vmatpush1.msra.mxu0 0.0
        %8520 = vmatprep.subr.mxu0 0.0
        %8521 = vmatpush1.msra.mxu0 0.0
        %8522 = vmatprep.subr.mxu0 0.0
        %8523 = vmatpush1.msra.mxu0 0.0
        %8524 = vmatprep.subr.mxu0 0.0
        %8525 = vmatpush1.msra.mxu0 0.0
        %8526 = vmatprep.subr.mxu0 0.0
        %8527 = vmatpush1.msra.mxu0 0.0
        %8528 = vmatprep.subr.mxu0 0.0
        %8529 = vmatpush1.msra.mxu0 0.0
        %8530 = vmatprep.subr.mxu0 0.0
        %8531 = vmatpush1.msra.mxu0 0.0
        %8532 = vmatprep.subr.mxu0 0.0
        %8533 = vmatpush1.msra.mxu0 0.0
        %8534 = vmatprep.subr.mxu0 0.0
        %8535 = vmatpush1.msra.mxu0 0.0
        %8536 = vmatprep.mubr.f32.mxu0 0.0
        %8537 = vmatmul.mubr.f32.gmra.mrb[0].mxu0 %v8467
        %v8538 = vpop.f32.mrb[0].mxu0
        %v8539 = vadd.f32 0.0, %v8538
        %v8540 = vpop.f32.mrb[0].mxu0
        %8541 = vmatprep.mubr.f32.mxu0 0.0
        %8542 = vmatmul.mubr.f32.gmra.mrb[0].mxu0 %v8470
        %v8543 = vpop.f32.mrb[0].mxu0
        %v8544 = vadd.f32 0.0, %v8543
        %v8545 = vpop.f32.mrb[0].mxu0
        %8546 = vdwg.mxu0
        %v8548 = vsel %vm2040, %v8460, 0
        %v8551 = vsel %vm2040, %v8461, 0
        %8553 = vmatprep.subr.mxu0 0.0
        %8554 = vmatpush1.msra.mxu0 %v7919
        %8555 = vmatprep.subr.mxu0 0.0
        %8556 = vmatpush1.msra.mxu0 %v7987
        %8557 = vmatprep.subr.mxu0 0.0
        %8558 = vmatpush1.msra.mxu0 0.0
        %8559 = vmatprep.subr.mxu0 0.0
        %8560 = vmatpush1.msra.mxu0 0.0
        %8561 = vmatprep.subr.mxu0 0.0
        %8562 = vmatpush1.msra.mxu0 0.0
        %8563 = vmatprep.subr.mxu0 0.0
        %8564 = vmatpush1.msra.mxu0 0.0
        %8565 = vmatprep.subr.mxu0 0.0
        %8566 = vmatpush1.msra.mxu0 0.0
        %8567 = vmatprep.subr.mxu0 0.0
        %8568 = vmatpush1.msra.mxu0 0.0
        %8569 = vmatprep.subr.mxu0 0.0
        %8570 = vmatpush1.msra.mxu0 0.0
        %8571 = vmatprep.subr.mxu0 0.0
        %8572 = vmatpush1.msra.mxu0 0.0
        %8573 = vmatprep.subr.mxu0 0.0
        %8574 = vmatpush1.msra.mxu0 0.0
        %8575 = vmatprep.subr.mxu0 0.0
        %8576 = vmatpush1.msra.mxu0 0.0
        %8577 = vmatprep.subr.mxu0 0.0
        %8578 = vmatpush1.msra.mxu0 0.0
        %8579 = vmatprep.subr.mxu0 0.0
        %8580 = vmatpush1.msra.mxu0 0.0
        %8581 = vmatprep.subr.mxu0 0.0
        %8582 = vmatpush1.msra.mxu0 0.0
        %8583 = vmatprep.subr.mxu0 0.0
        %8584 = vmatpush1.msra.mxu0 0.0
        %8585 = vmatprep.subr.mxu0 0.0
        %8586 = vmatpush1.msra.mxu0 0.0
        %8587 = vmatprep.subr.mxu0 0.0
        %8588 = vmatpush1.msra.mxu0 0.0
        %8589 = vmatprep.subr.mxu0 0.0
        %8590 = vmatpush1.msra.mxu0 0.0
        %8591 = vmatprep.subr.mxu0 0.0
        %8592 = vmatpush1.msra.mxu0 0.0
        %8593 = vmatprep.subr.mxu0 0.0
        %8594 = vmatpush1.msra.mxu0 0.0
        %8595 = vmatprep.subr.mxu0 0.0
        %8596 = vmatpush1.msra.mxu0 0.0
        %8597 = vmatprep.subr.mxu0 0.0
        %8598 = vmatpush1.msra.mxu0 0.0
        %8599 = vmatprep.subr.mxu0 0.0
        %8600 = vmatpush1.msra.mxu0 0.0
        %8601 = vmatprep.subr.mxu0 0.0
        %8602 = vmatpush1.msra.mxu0 0.0
        %8603 = vmatprep.subr.mxu0 0.0
        %8604 = vmatpush1.msra.mxu0 0.0
        %8605 = vmatprep.subr.mxu0 0.0
        %8606 = vmatpush1.msra.mxu0 0.0
        %8607 = vmatprep.subr.mxu0 0.0
        %8608 = vmatpush1.msra.mxu0 0.0
        %8609 = vmatprep.subr.mxu0 0.0
        %8610 = vmatpush1.msra.mxu0 0.0
        %8611 = vmatprep.subr.mxu0 0.0
        %8612 = vmatpush1.msra.mxu0 0.0
        %8613 = vmatprep.subr.mxu0 0.0
        %8614 = vmatpush1.msra.mxu0 0.0
        %8615 = vmatprep.subr.mxu0 0.0
        %8616 = vmatpush1.msra.mxu0 0.0
        %8617 = vmatprep.mubr.f32.mxu0 0.0
        %8618 = vmatmul.mubr.f32.gmra.mrb[0].mxu0 %v8548
        %v8619 = vpop.f32.mrb[0].mxu0
        %v8620 = vadd.f32 0.0, %v8619
        %v8621 = vpop.f32.mrb[0].mxu0
        %8622 = vmatprep.mubr.f32.mxu0 0.0
        %8623 = vmatmul.mubr.f32.gmra.mrb[0].mxu0 %v8551
        %v8624 = vpop.f32.mrb[0].mxu0
        %v8625 = vadd.f32 0.0, %v8624
        %v8626 = vpop.f32.mrb[0].mxu0
        %8627 = vdwg.mxu0
        %v8629 = vsel %vm2040, %v8462, 0
        %v8632 = vsel %vm2040, %v8463, 0
        %8634 = vmatprep.subr.mxu0 0.0
        %8635 = vmatpush1.msra.mxu0 %v7920
        %8636 = vmatprep.subr.mxu0 0.0
        %8637 = vmatpush1.msra.mxu0 %v7988
        %8638 = vmatprep.subr.mxu0 0.0
        %8639 = vmatpush1.msra.mxu0 0.0
        %8640 = vmatprep.subr.mxu0 0.0
        %8641 = vmatpush1.msra.mxu0 0.0
        %8642 = vmatprep.subr.mxu0 0.0
        %8643 = vmatpush1.msra.mxu0 0.0
        %8644 = vmatprep.subr.mxu0 0.0
        %8645 = vmatpush1.msra.mxu0 0.0
        %8646 = vmatprep.subr.mxu0 0.0
        %8647 = vmatpush1.msra.mxu0 0.0
        %8648 = vmatprep.subr.mxu0 0.0
        %8649 = vmatpush1.msra.mxu0 0.0
        %8650 = vmatprep.subr.mxu0 0.0
        %8651 = vmatpush1.msra.mxu0 0.0
        %8652 = vmatprep.subr.mxu0 0.0
        %8653 = vmatpush1.msra.mxu0 0.0
        %8654 = vmatprep.subr.mxu0 0.0
        %8655 = vmatpush1.msra.mxu0 0.0
        %8656 = vmatprep.subr.mxu0 0.0
        %8657 = vmatpush1.msra.mxu0 0.0
        %8658 = vmatprep.subr.mxu0 0.0
        %8659 = vmatpush1.msra.mxu0 0.0
        %8660 = vmatprep.subr.mxu0 0.0
        %8661 = vmatpush1.msra.mxu0 0.0
        %8662 = vmatprep.subr.mxu0 0.0
        %8663 = vmatpush1.msra.mxu0 0.0
        %8664 = vmatprep.subr.mxu0 0.0
        %8665 = vmatpush1.msra.mxu0 0.0
        %8666 = vmatprep.subr.mxu0 0.0
        %8667 = vmatpush1.msra.mxu0 0.0
        %8668 = vmatprep.subr.mxu0 0.0
        %8669 = vmatpush1.msra.mxu0 0.0
        %8670 = vmatprep.subr.mxu0 0.0
        %8671 = vmatpush1.msra.mxu0 0.0
        %8672 = vmatprep.subr.mxu0 0.0
        %8673 = vmatpush1.msra.mxu0 0.0
        %8674 = vmatprep.subr.mxu0 0.0
        %8675 = vmatpush1.msra.mxu0 0.0
        %8676 = vmatprep.subr.mxu0 0.0
        %8677 = vmatpush1.msra.mxu0 0.0
        %8678 = vmatprep.subr.mxu0 0.0
        %8679 = vmatpush1.msra.mxu0 0.0
        %8680 = vmatprep.subr.mxu0 0.0
        %8681 = vmatpush1.msra.mxu0 0.0
        %8682 = vmatprep.subr.mxu0 0.0
        %8683 = vmatpush1.msra.mxu0 0.0
        %8684 = vmatprep.subr.mxu0 0.0
        %8685 = vmatpush1.msra.mxu0 0.0
        %8686 = vmatprep.subr.mxu0 0.0
        %8687 = vmatpush1.msra.mxu0 0.0
        %8688 = vmatprep.subr.mxu0 0.0
        %8689 = vmatpush1.msra.mxu0 0.0
        %8690 = vmatprep.subr.mxu0 0.0
        %8691 = vmatpush1.msra.mxu0 0.0
        %8692 = vmatprep.subr.mxu0 0.0
        %8693 = vmatpush1.msra.mxu0 0.0
        %8694 = vmatprep.subr.mxu0 0.0
        %8695 = vmatpush1.msra.mxu0 0.0
        %8696 = vmatprep.subr.mxu0 0.0
        %8697 = vmatpush1.msra.mxu0 0.0
        %8698 = vmatprep.mubr.f32.mxu0 0.0
        %8699 = vmatmul.mubr.f32.gmra.mrb[0].mxu0 %v8629
        %v8700 = vpop.f32.mrb[0].mxu0
        %v8701 = vadd.f32 0.0, %v8700
        %v8702 = vpop.f32.mrb[0].mxu0
        %8703 = vmatprep.mubr.f32.mxu0 0.0
        %8704 = vmatmul.mubr.f32.gmra.mrb[0].mxu0 %v8632
        %v8705 = vpop.f32.mrb[0].mxu0
        %v8706 = vadd.f32 0.0, %v8705
        %v8707 = vpop.f32.mrb[0].mxu0
        %8708 = vdwg.mxu0
        %v8710 = vsel %vm2040, %v8464, 0
        %v8713 = vsel %vm2040, %v8465, 0
        %8715 = vmatprep.subr.mxu0 0.0
        %8716 = vmatpush1.msra.mxu0 %v7921
        %8717 = vmatprep.subr.mxu0 0.0
        %8718 = vmatpush1.msra.mxu0 %v7989
        %8719 = vmatprep.subr.mxu0 0.0
        %8720 = vmatpush1.msra.mxu0 0.0
        %8721 = vmatprep.subr.mxu0 0.0
        %8722 = vmatpush1.msra.mxu0 0.0
        %8723 = vmatprep.subr.mxu0 0.0
        %8724 = vmatpush1.msra.mxu0 0.0
        %8725 = vmatprep.subr.mxu0 0.0
        %8726 = vmatpush1.msra.mxu0 0.0
        %8727 = vmatprep.subr.mxu0 0.0
        %8728 = vmatpush1.msra.mxu0 0.0
        %8729 = vmatprep.subr.mxu0 0.0
        %8730 = vmatpush1.msra.mxu0 0.0
        %8731 = vmatprep.subr.mxu0 0.0
        %8732 = vmatpush1.msra.mxu0 0.0
        %8733 = vmatprep.subr.mxu0 0.0
        %8734 = vmatpush1.msra.mxu0 0.0
        %8735 = vmatprep.subr.mxu0 0.0
        %8736 = vmatpush1.msra.mxu0 0.0
        %8737 = vmatprep.subr.mxu0 0.0
        %8738 = vmatpush1.msra.mxu0 0.0
        %8739 = vmatprep.subr.mxu0 0.0
        %8740 = vmatpush1.msra.mxu0 0.0
        %8741 = vmatprep.subr.mxu0 0.0
        %8742 = vmatpush1.msra.mxu0 0.0
        %8743 = vmatprep.subr.mxu0 0.0
        %8744 = vmatpush1.msra.mxu0 0.0
        %8745 = vmatprep.subr.mxu0 0.0
        %8746 = vmatpush1.msra.mxu0 0.0
        %8747 = vmatprep.subr.mxu0 0.0
        %8748 = vmatpush1.msra.mxu0 0.0
        %8749 = vmatprep.subr.mxu0 0.0
        %8750 = vmatpush1.msra.mxu0 0.0
        %8751 = vmatprep.subr.mxu0 0.0
        %8752 = vmatpush1.msra.mxu0 0.0
        %8753 = vmatprep.subr.mxu0 0.0
        %8754 = vmatpush1.msra.mxu0 0.0
        %8755 = vmatprep.subr.mxu0 0.0
        %8756 = vmatpush1.msra.mxu0 0.0
        %8757 = vmatprep.subr.mxu0 0.0
        %8758 = vmatpush1.msra.mxu0 0.0
        %8759 = vmatprep.subr.mxu0 0.0
        %8760 = vmatpush1.msra.mxu0 0.0
        %8761 = vmatprep.subr.mxu0 0.0
        %8762 = vmatpush1.msra.mxu0 0.0
        %8763 = vmatprep.subr.mxu0 0.0
        %8764 = vmatpush1.msra.mxu0 0.0
        %8765 = vmatprep.subr.mxu0 0.0
        %8766 = vmatpush1.msra.mxu0 0.0
        %8767 = vmatprep.subr.mxu0 0.0
        %8768 = vmatpush1.msra.mxu0 0.0
        %8769 = vmatprep.subr.mxu0 0.0
        %8770 = vmatpush1.msra.mxu0 0.0
        %8771 = vmatprep.subr.mxu0 0.0
        %8772 = vmatpush1.msra.mxu0 0.0
        %8773 = vmatprep.subr.mxu0 0.0
        %8774 = vmatpush1.msra.mxu0 0.0
        %8775 = vmatprep.subr.mxu0 0.0
        %8776 = vmatpush1.msra.mxu0 0.0
        %8777 = vmatprep.subr.mxu0 0.0
        %8778 = vmatpush1.msra.mxu0 0.0
        %8779 = vmatprep.mubr.f32.mxu0 0.0
        %8780 = vmatmul.mubr.f32.gmra.mrb[0].mxu0 %v8710
        %v8781 = vpop.f32.mrb[0].mxu0
        %v8782 = vadd.f32 0.0, %v8781
        %v8783 = vpop.f32.mrb[0].mxu0
        %8784 = vmatprep.mubr.f32.mxu0 0.0
        %8785 = vmatmul.mubr.f32.gmra.mrb[0].mxu0 %v8713
        %v8786 = vpop.f32.mrb[0].mxu0
        %v8787 = vadd.f32 0.0, %v8786
        %v8788 = vpop.f32.mrb[0].mxu0
        %8789 = vdwg.mxu0
        %v8790 = vcombine.low %v8539, %v8701
        %v8791 = vcombine.high %v8539, %v8701
        %v8793 = vunpack.c.l.s4 1983009808
        %v8794 = vunpack.c.0.s8 %v8793
        %v8795 = vlaneseq
        %v8796 = vshrl.u32 %v8795, 7
        %v8797 = vsub.s32 %v8794, %v8796
        %v8798 = vrot.slane %v8790, %v8797
        %v8800 = vunpack.c.l.s4 1983009808
        %v8801 = vunpack.c.0.s8 %v8800
        %v8802 = vlaneseq
        %v8803 = vshrl.u32 %v8802, 7
        %v8804 = vsub.s32 %v8801, %v8803
        %v8805 = vrot.slane %v8791, %v8804
        %v8806 = vcombine.low %v8620, %v8782
        %v8807 = vcombine.high %v8620, %v8782
        %v8809 = vunpack.c.l.s4 1983009808
        %v8810 = vunpack.c.0.s8 %v8809
        %v8811 = vlaneseq
        %v8812 = vshrl.u32 %v8811, 7
        %v8813 = vsub.s32 %v8810, %v8812
        %v8814 = vrot.slane %v8806, %v8813
        %v8816 = vunpack.c.l.s4 1983009808
        %v8817 = vunpack.c.0.s8 %v8816
        %v8818 = vlaneseq
        %v8819 = vshrl.u32 %v8818, 7
        %v8820 = vsub.s32 %v8817, %v8819
        %v8821 = vrot.slane %v8807, %v8820
        %v8822 = vcombine.low %v8798, %v8814
        %v8823 = vcombine.high %v8798, %v8814
        %v8825 = vunpack.c.l.s4 1934713408
        %v8826 = vunpack.c.0.s8 %v8825
        %v8827 = vlaneseq
        %v8828 = vshrl.u32 %v8827, 7
        %v8829 = vsub.s32 %v8826, %v8828
        %v8830 = vrot.slane %v8822, %v8829
        %v8832 = vunpack.c.l.s4 1934713408
        %v8833 = vunpack.c.0.s8 %v8832
        %v8834 = vlaneseq
        %v8835 = vshrl.u32 %v8834, 7
        %v8836 = vsub.s32 %v8833, %v8835
        %v8837 = vrot.slane %v8823, %v8836
        %v8838 = vcombine.low %v8805, %v8821
        %v8839 = vcombine.high %v8805, %v8821
        %v8841 = vunpack.c.l.s4 1934713408
        %v8842 = vunpack.c.0.s8 %v8841
        %v8843 = vlaneseq
        %v8844 = vshrl.u32 %v8843, 7
        %v8845 = vsub.s32 %v8842, %v8844
        %v8846 = vrot.slane %v8838, %v8845
        %v8848 = vunpack.c.l.s4 1934713408
        %v8849 = vunpack.c.0.s8 %v8848
        %v8850 = vlaneseq
        %v8851 = vshrl.u32 %v8850, 7
        %v8852 = vsub.s32 %v8849, %v8851
        %v8853 = vrot.slane %v8839, %v8852
        %v8854 = vcombine.high %v8830, 0.0
        %v8855 = vcombine.high %v8837, 0.0
        %v8856 = vcombine.high %v8846, 0.0
        %v8857 = vcombine.high %v8853, 0.0
        %v8858 = vcombine.low %v8544, %v8706
        %v8859 = vcombine.high %v8544, %v8706
        %v8861 = vunpack.c.l.s4 1983009808
        %v8862 = vunpack.c.0.s8 %v8861
        %v8863 = vlaneseq
        %v8864 = vshrl.u32 %v8863, 7
        %v8865 = vsub.s32 %v8862, %v8864
        %v8866 = vrot.slane %v8858, %v8865
        %v8868 = vunpack.c.l.s4 1983009808
        %v8869 = vunpack.c.0.s8 %v8868
        %v8870 = vlaneseq
        %v8871 = vshrl.u32 %v8870, 7
        %v8872 = vsub.s32 %v8869, %v8871
        %v8873 = vrot.slane %v8859, %v8872
        %v8874 = vcombine.low %v8625, %v8787
        %v8875 = vcombine.high %v8625, %v8787
        %v8877 = vunpack.c.l.s4 1983009808
        %v8878 = vunpack.c.0.s8 %v8877
        %v8879 = vlaneseq
        %v8880 = vshrl.u32 %v8879, 7
        %v8881 = vsub.s32 %v8878, %v8880
        %v8882 = vrot.slane %v8874, %v8881
        %v8884 = vunpack.c.l.s4 1983009808
        %v8885 = vunpack.c.0.s8 %v8884
        %v8886 = vlaneseq
        %v8887 = vshrl.u32 %v8886, 7
        %v8888 = vsub.s32 %v8885, %v8887
        %v8889 = vrot.slane %v8875, %v8888
        %v8890 = vcombine.low %v8866, %v8882
        %v8891 = vcombine.high %v8866, %v8882
        %v8893 = vunpack.c.l.s4 1934713408
        %v8894 = vunpack.c.0.s8 %v8893
        %v8895 = vlaneseq
        %v8896 = vshrl.u32 %v8895, 7
        %v8897 = vsub.s32 %v8894, %v8896
        %v8898 = vrot.slane %v8890, %v8897
        %v8900 = vunpack.c.l.s4 1934713408
        %v8901 = vunpack.c.0.s8 %v8900
        %v8902 = vlaneseq
        %v8903 = vshrl.u32 %v8902, 7
        %v8904 = vsub.s32 %v8901, %v8903
        %v8905 = vrot.slane %v8891, %v8904
        %v8906 = vcombine.low %v8873, %v8889
        %v8907 = vcombine.high %v8873, %v8889
        %v8909 = vunpack.c.l.s4 1934713408
        %v8910 = vunpack.c.0.s8 %v8909
        %v8911 = vlaneseq
        %v8912 = vshrl.u32 %v8911, 7
        %v8913 = vsub.s32 %v8910, %v8912
        %v8914 = vrot.slane %v8906, %v8913
        %v8916 = vunpack.c.l.s4 1934713408
        %v8917 = vunpack.c.0.s8 %v8916
        %v8918 = vlaneseq
        %v8919 = vshrl.u32 %v8918, 7
        %v8920 = vsub.s32 %v8917, %v8919
        %v8921 = vrot.slane %v8907, %v8920
        %v8922 = vcombine.high %v8898, 0.0
        %v8923 = vcombine.high %v8905, 0.0
        %v8924 = vcombine.high %v8914, 0.0
        %v8925 = vcombine.high %v8921, 0.0
        %v8926 = vcombine.low %v8830, %v8837
        %v8928 = vunpack.c.l.s4 1983009808
        %v8929 = vunpack.c.0.s8 %v8928
        %v8930 = vlaneseq
        %v8931 = vshrl.u32 %v8930, 7
        %v8932 = vsub.s32 %v8929, %v8931
        %v8933 = vrot.slane %v8926, %v8932
        %v8934 = vcombine.low %v8854, %v8855
        %v8936 = vunpack.c.l.s4 1983009808
        %v8937 = vunpack.c.0.s8 %v8936
        %v8938 = vlaneseq
        %v8939 = vshrl.u32 %v8938, 7
        %v8940 = vsub.s32 %v8937, %v8939
        %v8941 = vrot.slane %v8934, %v8940
        %v8942 = vcombine.low %v8846, %v8853
        %v8944 = vunpack.c.l.s4 1983009808
        %v8945 = vunpack.c.0.s8 %v8944
        %v8946 = vlaneseq
        %v8947 = vshrl.u32 %v8946, 7
        %v8948 = vsub.s32 %v8945, %v8947
        %v8949 = vrot.slane %v8942, %v8948
        %v8950 = vcombine.low %v8856, %v8857
        %v8952 = vunpack.c.l.s4 1983009808
        %v8953 = vunpack.c.0.s8 %v8952
        %v8954 = vlaneseq
        %v8955 = vshrl.u32 %v8954, 7
        %v8956 = vsub.s32 %v8953, %v8955
        %v8957 = vrot.slane %v8950, %v8956
        %v8958 = vcombine.low %v8933, %v8941
        %v8959 = vcombine.high %v8933, %v8941
        %v8961 = vunpack.c.l.s4 1934713408
        %v8962 = vunpack.c.0.s8 %v8961
        %v8963 = vlaneseq
        %v8964 = vshrl.u32 %v8963, 7
        %v8965 = vsub.s32 %v8962, %v8964
        %v8966 = vrot.slane %v8958, %v8965
        %v8968 = vunpack.c.l.s4 1934713408
        %v8969 = vunpack.c.0.s8 %v8968
        %v8970 = vlaneseq
        %v8971 = vshrl.u32 %v8970, 7
        %v8972 = vsub.s32 %v8969, %v8971
        %v8973 = vrot.slane %v8959, %v8972
        %v8974 = vcombine.low %v8949, %v8957
        %v8975 = vcombine.high %v8949, %v8957
        %v8977 = vunpack.c.l.s4 1934713408
        %v8978 = vunpack.c.0.s8 %v8977
        %v8979 = vlaneseq
        %v8980 = vshrl.u32 %v8979, 7
        %v8981 = vsub.s32 %v8978, %v8980
        %v8982 = vrot.slane %v8974, %v8981
        %v8984 = vunpack.c.l.s4 1934713408
        %v8985 = vunpack.c.0.s8 %v8984
        %v8986 = vlaneseq
        %v8987 = vshrl.u32 %v8986, 7
        %v8988 = vsub.s32 %v8985, %v8987
        %v8989 = vrot.slane %v8975, %v8988
        %v8990 = vcombine.low %v8966, %v8982
        %v8991 = vcombine.high %v8966, %v8982
        %v8992 = vcombine.low %v8973, %v8989
        %v8993 = vcombine.high %v8973, %v8989
        %v8994 = vcombine.low %v8898, %v8905
        %v8996 = vunpack.c.l.s4 1983009808
        %v8997 = vunpack.c.0.s8 %v8996
        %v8998 = vlaneseq
        %v8999 = vshrl.u32 %v8998, 7
        %v9000 = vsub.s32 %v8997, %v8999
        %v9001 = vrot.slane %v8994, %v9000
        %v9002 = vcombine.low %v8922, %v8923
        %v9004 = vunpack.c.l.s4 1983009808
        %v9005 = vunpack.c.0.s8 %v9004
        %v9006 = vlaneseq
        %v9007 = vshrl.u32 %v9006, 7
        %v9008 = vsub.s32 %v9005, %v9007
        %v9009 = vrot.slane %v9002, %v9008
        %v9010 = vcombine.low %v8914, %v8921
        %v9012 = vunpack.c.l.s4 1983009808
        %v9013 = vunpack.c.0.s8 %v9012
        %v9014 = vlaneseq
        %v9015 = vshrl.u32 %v9014, 7
        %v9016 = vsub.s32 %v9013, %v9015
        %v9017 = vrot.slane %v9010, %v9016
        %v9018 = vcombine.low %v8924, %v8925
        %v9020 = vunpack.c.l.s4 1983009808
        %v9021 = vunpack.c.0.s8 %v9020
        %v9022 = vlaneseq
        %v9023 = vshrl.u32 %v9022, 7
        %v9024 = vsub.s32 %v9021, %v9023
        %v9025 = vrot.slane %v9018, %v9024
        %v9026 = vcombine.low %v9001, %v9009
        %v9027 = vcombine.high %v9001, %v9009
        %v9029 = vunpack.c.l.s4 1934713408
        %v9030 = vunpack.c.0.s8 %v9029
        %v9031 = vlaneseq
        %v9032 = vshrl.u32 %v9031, 7
        %v9033 = vsub.s32 %v9030, %v9032
        %v9034 = vrot.slane %v9026, %v9033
        %v9036 = vunpack.c.l.s4 1934713408
        %v9037 = vunpack.c.0.s8 %v9036
        %v9038 = vlaneseq
        %v9039 = vshrl.u32 %v9038, 7
        %v9040 = vsub.s32 %v9037, %v9039
        %v9041 = vrot.slane %v9027, %v9040
        %v9042 = vcombine.low %v9017, %v9025
        %v9043 = vcombine.high %v9017, %v9025
        %v9045 = vunpack.c.l.s4 1934713408
        %v9046 = vunpack.c.0.s8 %v9045
        %v9047 = vlaneseq
        %v9048 = vshrl.u32 %v9047, 7
        %v9049 = vsub.s32 %v9046, %v9048
        %v9050 = vrot.slane %v9042, %v9049
        %v9052 = vunpack.c.l.s4 1934713408
        %v9053 = vunpack.c.0.s8 %v9052
        %v9054 = vlaneseq
        %v9055 = vshrl.u32 %v9054, 7
        %v9056 = vsub.s32 %v9053, %v9055
        %v9057 = vrot.slane %v9043, %v9056
        %v9058 = vcombine.low %v9034, %v9050
        %v9059 = vcombine.high %v9034, %v9050
        %v9060 = vcombine.low %v9041, %v9057
        %v9061 = vcombine.high %v9041, %v9057
        %9064 = vrot.lane.b32.xlu0 %v8991, 8
        %v9065 = vpop.permute.xlu0 %9064
        %9066 = vrot.lane.b32.xlu0 %v9059, 8
        %v9067 = vpop.permute.xlu0 %9066
        %9072 = vrot.lane.b32.xlu0 %v8992, 16
        %v9073 = vpop.permute.xlu0 %9072
        %9074 = vrot.lane.b32.xlu0 %v9060, 16
        %v9075 = vpop.permute.xlu0 %9074
        %9080 = vrot.lane.b32.xlu0 %v8993, 24
        %v9081 = vpop.permute.xlu0 %9080
        %9082 = vrot.lane.b32.xlu0 %v9061, 24
        %v9083 = vpop.permute.xlu0 %9082
        %v9086 = vsel %vm1671, %v8990, %v9065
        %v9087 = vsel %vm1671, %v9058, %v9067
        %v9088 = vsel %vm2040, %v9086, %v9073
        %v9089 = vsel %vm2040, %v9087, %v9075
        %v9090 = vsel %vm615, %v9088, %v9081
        %v9091 = vsel %vm615, %v9089, %v9083
        %v9092 = vadd.f32 %v7023, %v9090
        %v9093 = vadd.f32 %v7024, %v9091
        %9094 = vrot.lane.b32.xlu0 %v7098, 32
        %v9095 = vpop.permute.xlu0 %9094
        %9096 = vrot.lane.b32.xlu0 %v7103, 32
        %v9097 = vpop.permute.xlu0 %9096
        %v9100 = vadd.f32 %v9092, %v9095
        %v9101 = vadd.f32 %v9093, %v9097
        %v9102 = vmax.f32 %v9100, 0.0
        %v9103 = vmax.f32 %v9101, 0.0
        %v9104 = vsel %vm703, %v9102, 0.0
        %v9105 = vsel %vm703, %v9103, 0.0
        %v9106 = vadd.f32 %v9104, %v9105
        %9107 = vadd.xlane.f32.xlu0 %v9106
        %v9108 = vpop.xlane.xlu0 %9107
        %v9109 = vrot.slane %v9108, 4
        %v9110 = vadd.f32 %v9108, %v9109
        %v9111 = vrot.slane %v9110, 2
        %v9112 = vadd.f32 %v9110, %v9111
        %v9113 = vrot.slane %v9112, 1
        %v9114 = vadd.f32 %v9112, %v9113
        %s9115 = vtos %v9114
        %v9116 = vrcp.pop 512.0
        %s9117 = vtos %v9116
        %s9118 = smul.f32 %s9115, %s9117
        %v9119 = vmul.f32 %v9102, %v9102
        %v9120 = vmul.f32 %v9103, %v9103
        %v9121 = vsel %vm703, %v9119, 0.0
        %v9122 = vsel %vm703, %v9120, 0.0
        %v9123 = vadd.f32 %v9121, %v9122
        %9124 = vadd.xlane.f32.xlu0 %v9123
        %v9125 = vpop.xlane.xlu0 %9124
        %v9126 = vrot.slane %v9125, 4
        %v9127 = vadd.f32 %v9125, %v9126
        %v9128 = vrot.slane %v9127, 2
        %v9129 = vadd.f32 %v9127, %v9128
        %v9130 = vrot.slane %v9129, 1
        %v9131 = vadd.f32 %v9129, %v9130
        %s9132 = vtos %v9131
        %v9133 = vrcp.pop 512.0
        %s9134 = vtos %v9133
        %s9135 = smul.f32 %s9132, %s9134
        %s9136 = smul.f32 %s9118, %s9118
        %s9137 = ssub.f32 %s9135, %s9136
        %s9138 = smax.f32 %s9137, 0.0
        %v9139 = vstv %s9138
        %v9140 = vrsqrt.pop %v9139
        %v9141 = vmul.f32 %v9139, %v9140
        %vm9142 = vcmp.eq.f32.partialorder %v9139, inf
        %v9143 = vsel %vm9142, %v9139, %v9141
        %vm9144 = vcmp.eq.f32.partialorder %v9139, 0.0
        %v9145 = vand.u32 %v9139, 2147483648
        %v9146 = vsel %vm9144, %v9145, %v9143
        %s9147 = vtos %v9146
        %v9148 = vstv %s9118
        %v9149 = vsub.f32 %v9102, %v9148
        %v9150 = vsub.f32 %v9103, %v9148
        %s9151 = sadd.f32 %s9147, 1e-05
        %v9152 = vstv %s9151
        %v9153 = vrcp.pop %v9152
        %v9154 = vmul.f32 %v9149, %v9153
        %v9155 = vmul.f32 %v9150, %v9153
        %v9157 = vlaneseq
        %v9158 = vshrl.u32 %v9157, 7
        %v9159 = vsub.s32 0, %v9158
        %v9160 = vrot.slane %v588, %v9159
        %v9162 = vmul.f32 %v9154, %v9160
        %v9163 = vmul.f32 %v9155, %v9160
        %v9165 = vlaneseq
        %v9166 = vshrl.u32 %v9165, 7
        %v9167 = vsub.s32 0, %v9166
        %v9168 = vrot.slane %v590, %v9167
        %v9170 = vadd.f32 %v9162, %v9168
        %v9171 = vadd.f32 %v9163, %v9168
        %9172 = vmatprep.subr.mxu0 0.0
        %9173 = vmatpush1.msra.mxu0 %v591
        %9174 = vmatprep.subr.mxu0 0.0
        %9175 = vmatpush1.msra.mxu0 %v592
        %9176 = vmatprep.subr.mxu0 0.0
        %9177 = vmatpush1.msra.mxu0 %v593
        %9178 = vmatprep.subr.mxu0 0.0
        %9179 = vmatpush1.msra.mxu0 %v594
        %9180 = vmatprep.subr.mxu0 0.0
        %9181 = vmatpush1.msra.mxu0 0.0
        %9182 = vmatprep.subr.mxu0 0.0
        %9183 = vmatpush1.msra.mxu0 0.0
        %9184 = vmatprep.subr.mxu0 0.0
        %9185 = vmatpush1.msra.mxu0 0.0
        %9186 = vmatprep.subr.mxu0 0.0
        %9187 = vmatpush1.msra.mxu0 0.0
        %9188 = vmatprep.subr.mxu0 0.0
        %9189 = vmatpush1.msra.mxu0 0.0
        %9190 = vmatprep.subr.mxu0 0.0
        %9191 = vmatpush1.msra.mxu0 0.0
        %9192 = vmatprep.subr.mxu0 0.0
        %9193 = vmatpush1.msra.mxu0 0.0
        %9194 = vmatprep.subr.mxu0 0.0
        %9195 = vmatpush1.msra.mxu0 0.0
        %9196 = vmatprep.subr.mxu0 0.0
        %9197 = vmatpush1.msra.mxu0 0.0
        %9198 = vmatprep.subr.mxu0 0.0
        %9199 = vmatpush1.msra.mxu0 0.0
        %9200 = vmatprep.subr.mxu0 0.0
        %9201 = vmatpush1.msra.mxu0 0.0
        %9202 = vmatprep.subr.mxu0 0.0
        %9203 = vmatpush1.msra.mxu0 0.0
        %9204 = vmatprep.subr.mxu0 0.0
        %9205 = vmatpush1.msra.mxu0 0.0
        %9206 = vmatprep.subr.mxu0 0.0
        %9207 = vmatpush1.msra.mxu0 0.0
        %9208 = vmatprep.subr.mxu0 0.0
        %9209 = vmatpush1.msra.mxu0 0.0
        %9210 = vmatprep.subr.mxu0 0.0
        %9211 = vmatpush1.msra.mxu0 0.0
        %9212 = vmatprep.subr.mxu0 0.0
        %9213 = vmatpush1.msra.mxu0 0.0
        %9214 = vmatprep.subr.mxu0 0.0
        %9215 = vmatpush1.msra.mxu0 0.0
        %9216 = vmatprep.subr.mxu0 0.0
        %9217 = vmatpush1.msra.mxu0 0.0
        %9218 = vmatprep.subr.mxu0 0.0
        %9219 = vmatpush1.msra.mxu0 0.0
        %9220 = vmatprep.subr.mxu0 0.0
        %9221 = vmatpush1.msra.mxu0 0.0
        %9222 = vmatprep.subr.mxu0 0.0
        %9223 = vmatpush1.msra.mxu0 0.0
        %9224 = vmatprep.subr.mxu0 0.0
        %9225 = vmatpush1.msra.mxu0 0.0
        %9226 = vmatprep.subr.mxu0 0.0
        %9227 = vmatpush1.msra.mxu0 0.0
        %9228 = vmatprep.subr.mxu0 0.0
        %9229 = vmatpush1.msra.mxu0 0.0
        %9230 = vmatprep.subr.mxu0 0.0
        %9231 = vmatpush1.msra.mxu0 0.0
        %9232 = vmatprep.subr.mxu0 0.0
        %9233 = vmatpush1.msra.mxu0 0.0
        %9234 = vmatprep.subr.mxu0 0.0
        %9235 = vmatpush1.msra.mxu0 0.0
        %9236 = vmatprep.mubr.f32.mxu0 0.0
        %9237 = vmatmul.mubr.f32.gmra.mrb[0].mxu0 %v705
        %v9238 = vpop.f32.mrb[0].mxu0
        %v9239 = vadd.f32 0.0, %v9238
        %v9240 = vpop.f32.mrb[0].mxu0
        %9241 = vmatprep.mubr.f32.mxu0 0.0
        %9242 = vmatmul.mubr.f32.gmra.mrb[0].mxu0 %v708
        %v9243 = vpop.f32.mrb[0].mxu0
        %v9244 = vadd.f32 0.0, %v9243
        %v9245 = vpop.f32.mrb[0].mxu0
        %9246 = vdwg.mxu0
        %v9248 = vlaneseq
        %v9249 = vshrl.u32 %v9248, 7
        %v9250 = vsub.s32 0, %v9249
        %v9251 = vrot.slane %v603, %v9250
        %v9253 = vadd.f32 %v9251, %v9239
        %v9254 = vadd.f32 %v9251, %v9244
        %9255 = vmatprep.subr.mxu0 0.0
        %9256 = vmatpush1.msra.mxu0 %v595
        %9257 = vmatprep.subr.mxu0 0.0
        %9258 = vmatpush1.msra.mxu0 %v596
        %9259 = vmatprep.subr.mxu0 0.0
        %9260 = vmatpush1.msra.mxu0 %v597
        %9261 = vmatprep.subr.mxu0 0.0
        %9262 = vmatpush1.msra.mxu0 %v598
        %9263 = vmatprep.subr.mxu0 0.0
        %9264 = vmatpush1.msra.mxu0 0.0
        %9265 = vmatprep.subr.mxu0 0.0
        %9266 = vmatpush1.msra.mxu0 0.0
        %9267 = vmatprep.subr.mxu0 0.0
        %9268 = vmatpush1.msra.mxu0 0.0
        %9269 = vmatprep.subr.mxu0 0.0
        %9270 = vmatpush1.msra.mxu0 0.0
        %9271 = vmatprep.subr.mxu0 0.0
        %9272 = vmatpush1.msra.mxu0 0.0
        %9273 = vmatprep.subr.mxu0 0.0
        %9274 = vmatpush1.msra.mxu0 0.0
        %9275 = vmatprep.subr.mxu0 0.0
        %9276 = vmatpush1.msra.mxu0 0.0
        %9277 = vmatprep.subr.mxu0 0.0
        %9278 = vmatpush1.msra.mxu0 0.0
        %9279 = vmatprep.subr.mxu0 0.0
        %9280 = vmatpush1.msra.mxu0 0.0
        %9281 = vmatprep.subr.mxu0 0.0
        %9282 = vmatpush1.msra.mxu0 0.0
        %9283 = vmatprep.subr.mxu0 0.0
        %9284 = vmatpush1.msra.mxu0 0.0
        %9285 = vmatprep.subr.mxu0 0.0
        %9286 = vmatpush1.msra.mxu0 0.0
        %9287 = vmatprep.subr.mxu0 0.0
        %9288 = vmatpush1.msra.mxu0 0.0
        %9289 = vmatprep.subr.mxu0 0.0
        %9290 = vmatpush1.msra.mxu0 0.0
        %9291 = vmatprep.subr.mxu0 0.0
        %9292 = vmatpush1.msra.mxu0 0.0
        %9293 = vmatprep.subr.mxu0 0.0
        %9294 = vmatpush1.msra.mxu0 0.0
        %9295 = vmatprep.subr.mxu0 0.0
        %9296 = vmatpush1.msra.mxu0 0.0
        %9297 = vmatprep.subr.mxu0 0.0
        %9298 = vmatpush1.msra.mxu0 0.0
        %9299 = vmatprep.subr.mxu0 0.0
        %9300 = vmatpush1.msra.mxu0 0.0
        %9301 = vmatprep.subr.mxu0 0.0
        %9302 = vmatpush1.msra.mxu0 0.0
        %9303 = vmatprep.subr.mxu0 0.0
        %9304 = vmatpush1.msra.mxu0 0.0
        %9305 = vmatprep.subr.mxu0 0.0
        %9306 = vmatpush1.msra.mxu0 0.0
        %9307 = vmatprep.subr.mxu0 0.0
        %9308 = vmatpush1.msra.mxu0 0.0
        %9309 = vmatprep.subr.mxu0 0.0
        %9310 = vmatpush1.msra.mxu0 0.0
        %9311 = vmatprep.subr.mxu0 0.0
        %9312 = vmatpush1.msra.mxu0 0.0
        %9313 = vmatprep.subr.mxu0 0.0
        %9314 = vmatpush1.msra.mxu0 0.0
        %9315 = vmatprep.subr.mxu0 0.0
        %9316 = vmatpush1.msra.mxu0 0.0
        %9317 = vmatprep.subr.mxu0 0.0
        %9318 = vmatpush1.msra.mxu0 0.0
        %9319 = vmatprep.mubr.f32.mxu0 0.0
        %9320 = vmatmul.mubr.f32.gmra.mrb[0].mxu0 %v4949
        %v9321 = vpop.f32.mrb[0].mxu0
        %v9322 = vadd.f32 0.0, %v9321
        %v9323 = vpop.f32.mrb[0].mxu0
        %9324 = vmatprep.mubr.f32.mxu0 0.0
        %9325 = vmatmul.mubr.f32.gmra.mrb[0].mxu0 %v4952
        %v9326 = vpop.f32.mrb[0].mxu0
        %v9327 = vadd.f32 0.0, %v9326
        %v9328 = vpop.f32.mrb[0].mxu0
        %9329 = vdwg.mxu0
        %v9330 = vadd.f32 %v9253, %v9322
        %v9331 = vadd.f32 %v9254, %v9327
        %v9333 = vsel %vm703, %v9170, 0
        %v9336 = vsel %vm703, %v9171, 0
        %9338 = vmatprep.subr.mxu0 0.0
        %9339 = vmatpush1.msra.mxu0 %v599
        %9340 = vmatprep.subr.mxu0 0.0
        %9341 = vmatpush1.msra.mxu0 %v600
        %9342 = vmatprep.subr.mxu0 0.0
        %9343 = vmatpush1.msra.mxu0 %v601
        %9344 = vmatprep.subr.mxu0 0.0
        %9345 = vmatpush1.msra.mxu0 %v602
        %9346 = vmatprep.subr.mxu0 0.0
        %9347 = vmatpush1.msra.mxu0 0.0
        %9348 = vmatprep.subr.mxu0 0.0
        %9349 = vmatpush1.msra.mxu0 0.0
        %9350 = vmatprep.subr.mxu0 0.0
        %9351 = vmatpush1.msra.mxu0 0.0
        %9352 = vmatprep.subr.mxu0 0.0
        %9353 = vmatpush1.msra.mxu0 0.0
        %9354 = vmatprep.subr.mxu0 0.0
        %9355 = vmatpush1.msra.mxu0 0.0
        %9356 = vmatprep.subr.mxu0 0.0
        %9357 = vmatpush1.msra.mxu0 0.0
        %9358 = vmatprep.subr.mxu0 0.0
        %9359 = vmatpush1.msra.mxu0 0.0
        %9360 = vmatprep.subr.mxu0 0.0
        %9361 = vmatpush1.msra.mxu0 0.0
        %9362 = vmatprep.subr.mxu0 0.0
        %9363 = vmatpush1.msra.mxu0 0.0
        %9364 = vmatprep.subr.mxu0 0.0
        %9365 = vmatpush1.msra.mxu0 0.0
        %9366 = vmatprep.subr.mxu0 0.0
        %9367 = vmatpush1.msra.mxu0 0.0
        %9368 = vmatprep.subr.mxu0 0.0
        %9369 = vmatpush1.msra.mxu0 0.0
        %9370 = vmatprep.subr.mxu0 0.0
        %9371 = vmatpush1.msra.mxu0 0.0
        %9372 = vmatprep.subr.mxu0 0.0
        %9373 = vmatpush1.msra.mxu0 0.0
        %9374 = vmatprep.subr.mxu0 0.0
        %9375 = vmatpush1.msra.mxu0 0.0
        %9376 = vmatprep.subr.mxu0 0.0
        %9377 = vmatpush1.msra.mxu0 0.0
        %9378 = vmatprep.subr.mxu0 0.0
        %9379 = vmatpush1.msra.mxu0 0.0
        %9380 = vmatprep.subr.mxu0 0.0
        %9381 = vmatpush1.msra.mxu0 0.0
        %9382 = vmatprep.subr.mxu0 0.0
        %9383 = vmatpush1.msra.mxu0 0.0
        %9384 = vmatprep.subr.mxu0 0.0
        %9385 = vmatpush1.msra.mxu0 0.0
        %9386 = vmatprep.subr.mxu0 0.0
        %9387 = vmatpush1.msra.mxu0 0.0
        %9388 = vmatprep.subr.mxu0 0.0
        %9389 = vmatpush1.msra.mxu0 0.0
        %9390 = vmatprep.subr.mxu0 0.0
        %9391 = vmatpush1.msra.mxu0 0.0
        %9392 = vmatprep.subr.mxu0 0.0
        %9393 = vmatpush1.msra.mxu0 0.0
        %9394 = vmatprep.subr.mxu0 0.0
        %9395 = vmatpush1.msra.mxu0 0.0
        %9396 = vmatprep.subr.mxu0 0.0
        %9397 = vmatpush1.msra.mxu0 0.0
        %9398 = vmatprep.subr.mxu0 0.0
        %9399 = vmatpush1.msra.mxu0 0.0
        %9400 = vmatprep.subr.mxu0 0.0
        %9401 = vmatpush1.msra.mxu0 0.0
        %9402 = vmatprep.mubr.f32.mxu0 0.0
        %9403 = vmatmul.mubr.f32.gmra.mrb[0].mxu0 %v9333
        %v9404 = vpop.f32.mrb[0].mxu0
        %v9405 = vadd.f32 0.0, %v9404
        %v9406 = vpop.f32.mrb[0].mxu0
        %9407 = vmatprep.mubr.f32.mxu0 0.0
        %9408 = vmatmul.mubr.f32.gmra.mrb[0].mxu0 %v9336
        %v9409 = vpop.f32.mrb[0].mxu0
        %v9410 = vadd.f32 0.0, %v9409
        %v9411 = vpop.f32.mrb[0].mxu0
        %9412 = vdwg.mxu0
        %v9413 = vadd.f32 %v9330, %v9405
        %v9414 = vadd.f32 %v9331, %v9410
        %v9416 = vlaneseq
        %v9417 = vshrl.u32 %v9416, 7
        %v9418 = vsub.s32 0, %v9417
        %v9419 = vrot.slane %v608, %v9418
        %v9422 = vsel %vm703, %v9413, 0
        %v9425 = vsel %vm703, %v9414, 0
        %9427 = vmatprep.subr.mxu0 0.0
        %9428 = vmatpush1.msra.mxu0 %v604
        %9429 = vmatprep.subr.mxu0 0.0
        %9430 = vmatpush1.msra.mxu0 %v605
        %9431 = vmatprep.subr.mxu0 0.0
        %9432 = vmatpush1.msra.mxu0 %v606
        %9433 = vmatprep.subr.mxu0 0.0
        %9434 = vmatpush1.msra.mxu0 %v607
        %9435 = vmatprep.subr.mxu0 0.0
        %9436 = vmatpush1.msra.mxu0 0.0
        %9437 = vmatprep.subr.mxu0 0.0
        %9438 = vmatpush1.msra.mxu0 0.0
        %9439 = vmatprep.subr.mxu0 0.0
        %9440 = vmatpush1.msra.mxu0 0.0
        %9441 = vmatprep.subr.mxu0 0.0
        %9442 = vmatpush1.msra.mxu0 0.0
        %9443 = vmatprep.subr.mxu0 0.0
        %9444 = vmatpush1.msra.mxu0 0.0
        %9445 = vmatprep.subr.mxu0 0.0
        %9446 = vmatpush1.msra.mxu0 0.0
        %9447 = vmatprep.subr.mxu0 0.0
        %9448 = vmatpush1.msra.mxu0 0.0
        %9449 = vmatprep.subr.mxu0 0.0
        %9450 = vmatpush1.msra.mxu0 0.0
        %9451 = vmatprep.subr.mxu0 0.0
        %9452 = vmatpush1.msra.mxu0 0.0
        %9453 = vmatprep.subr.mxu0 0.0
        %9454 = vmatpush1.msra.mxu0 0.0
        %9455 = vmatprep.subr.mxu0 0.0
        %9456 = vmatpush1.msra.mxu0 0.0
        %9457 = vmatprep.subr.mxu0 0.0
        %9458 = vmatpush1.msra.mxu0 0.0
        %9459 = vmatprep.subr.mxu0 0.0
        %9460 = vmatpush1.msra.mxu0 0.0
        %9461 = vmatprep.subr.mxu0 0.0
        %9462 = vmatpush1.msra.mxu0 0.0
        %9463 = vmatprep.subr.mxu0 0.0
        %9464 = vmatpush1.msra.mxu0 0.0
        %9465 = vmatprep.subr.mxu0 0.0
        %9466 = vmatpush1.msra.mxu0 0.0
        %9467 = vmatprep.subr.mxu0 0.0
        %9468 = vmatpush1.msra.mxu0 0.0
        %9469 = vmatprep.subr.mxu0 0.0
        %9470 = vmatpush1.msra.mxu0 0.0
        %9471 = vmatprep.subr.mxu0 0.0
        %9472 = vmatpush1.msra.mxu0 0.0
        %9473 = vmatprep.subr.mxu0 0.0
        %9474 = vmatpush1.msra.mxu0 0.0
        %9475 = vmatprep.subr.mxu0 0.0
        %9476 = vmatpush1.msra.mxu0 0.0
        %9477 = vmatprep.subr.mxu0 0.0
        %9478 = vmatpush1.msra.mxu0 0.0
        %9479 = vmatprep.subr.mxu0 0.0
        %9480 = vmatpush1.msra.mxu0 0.0
        %9481 = vmatprep.subr.mxu0 0.0
        %9482 = vmatpush1.msra.mxu0 0.0
        %9483 = vmatprep.subr.mxu0 0.0
        %9484 = vmatpush1.msra.mxu0 0.0
        %9485 = vmatprep.subr.mxu0 0.0
        %9486 = vmatpush1.msra.mxu0 0.0
        %9487 = vmatprep.subr.mxu0 0.0
        %9488 = vmatpush1.msra.mxu0 0.0
        %9489 = vmatprep.subr.mxu0 0.0
        %9490 = vmatpush1.msra.mxu0 0.0
        %9491 = vmatprep.mubr.f32.mxu0 0.0
        %9492 = vmatmul.mubr.f32.gmra.mrb[0].mxu0 %v9422
        %v9493 = vpop.f32.mrb[0].mxu0
        %v9494 = vadd.f32 %v9419, %v9493
        %v9495 = vpop.f32.mrb[0].mxu0
        %9496 = vmatprep.mubr.f32.mxu0 0.0
        %9497 = vmatmul.mubr.f32.gmra.mrb[0].mxu0 %v9425
        %v9498 = vpop.f32.mrb[0].mxu0
        %v9499 = vadd.f32 %v9419, %v9498
        %v9500 = vpop.f32.mrb[0].mxu0
        %9501 = vdwg.mxu0
        %9502 = vst [vmem:[%s556] sm:$0xff] %v9494
        %9503 = vst [vmem:[%s556 + $0x8] sm:$0xff] %v9499
        %s9504 = sand.u32 %s305, 1
        %s9505 = scalar_lea.sflag [#allocation4], %s9504
        %s9506 = sand.u32 %s305, 1
        %s9507 = smul.addr %s9506, 16
        %s9508 = scalar_lea.vmem [#allocation16], %s9507
        // Predicated region
        $region101: #{tpu_custom_call.1} parent=67 // pred_check
          %p9509 = pneg %p315
        $region102: #{tpu_custom_call.1} parent=67 // pred_check_branch
          %9511 = sbr.rel (%p9509) target = $region104
        $region103: #{tpu_custom_call.1} parent=67 // pred_region
          %s9513 = ssub.s32 256, 256
          %9514 = vsyncadd %s9505, %s9513
          %s9515 = smul.addr %s35, 2
          %s9516 = smul.addr %s9515, 128
          %s9517 = scalar_lea.hbm %s12, %s9516
          %s9518 = sshll.u32 %s9508, 4
          %s9519 = int_to_ptr.vmem [resolvable:$true] %s9518
          %9524 = dma.vmem_to_hbm [thread:$0]  %s9519, 256, %s9517, %s9505, 128, 128, 8
        $region104: #{tpu_custom_call.1} parent=67 // pred_fallthru
          _
      $region68: #{tpu_custom_call.1} parent=5 // pred_fallthru
        _
      %p9525 = scmp.le.s32.totalorder 2, %s30
      // Predicated region
      $region105: #{tpu_custom_call.1} parent=5 // pred_check
        %p9526 = pneg %p9525
      $region106: #{tpu_custom_call.1} parent=5 // pred_check_branch
        %9528 = sbr.rel (%p9526) target = $region108
      $region107: #{tpu_custom_call.1} parent=5 // pred_region
        %s9529 = ssub.s32 %s30, 2
        // Predicated region
        $region109: #{tpu_custom_call.1} parent=107 // pred_check
          %p9530 = pneg %p321
        $region110: #{tpu_custom_call.1} parent=107 // pred_check_branch
          %9532 = sbr.rel (%p9530) target = $region112
        $region111: #{tpu_custom_call.1} parent=107 // pred_region
          %s9533 = sand.u32 %s306, 1
          %s9534 = scalar_lea.sflag [#allocation4], %s9533
          %s9535 = sand.u32 %s306, 1
          %s9536 = smul.addr %s9535, 16
          %s9537 = scalar_lea.vmem [#allocation16], %s9536
          %9538 = dma.done %s9534, 256
        $region112: #{tpu_custom_call.1} parent=107 // pred_fallthru
          _
      $region108: #{tpu_custom_call.1} parent=5 // pred_fallthru
        _
    $region6: #{tpu_custom_call.1} parent=1 // loop_footer
      %s34 = sadd.s32 1, %s30
    $region7: #{tpu_custom_call.1} parent=1 // loop_footer_branch
      %29 = sbr.rel target = $region3
    $region8: #{tpu_custom_call.1} parent=1 // loop_exit
      _
    %9539 = vsyncpa [#allocation3], 1
    %s9540 = scalar_lea.sflag [#allocation3], 1
    %9541 = vsyncpa %s9540, 1
    %9542 = vsyncpa [#allocation6], 1
    %s9543 = scalar_lea.sflag [#allocation6], 1
    %9544 = vsyncpa %s9543, 1
    %9545 = vsyncpa [#allocation9], 1
    %9546 = vsyncpa [#allocation12], 1
    %9547 = vsyncpa [#allocation15], 1
    %9548 = vsyncpa [#allocation4], 1
    %s9549 = scalar_lea.sflag [#allocation4], 1
    %9550 = vsyncpa %s9549, 1

</llo_original>
